<compile_context>
chip_gen: v5e
topology: v5e:2x2
jax: 0.10.0
libtpu: 0.0.40
codegen_flags: <defaults>
</compile_context>

<pallas_src>
import functools

import jax
import jax.numpy as jnp
from jax.experimental import pallas as pl
from jax.experimental.pallas import tpu as pltpu


def _round_up(x, m):
    return (x + m - 1) // m * m


# --------------------------------------------------------------------------
# Pallas kernels
# --------------------------------------------------------------------------
def _conv_bn_relu_pool_kernel(a_ref, w_ref, s_ref, t_ref, o_ref):
    """Fused Conv2d(3x3, s=2) + BatchNorm(eval) + ReLU + MaxPool2d(2).

    a_ref: (4, K, tn) bf16  pooling-grouped im2col patches (q = window pos)
    w_ref: (OC, K)    bf16  conv weight rows = output channels
    s_ref: (OC, 1)    f32   BN scale  (gamma / sqrt(var + eps))
    t_ref: (OC, 1)    f32   BN shift  ((conv_bias - mean) * scale + beta)
    o_ref: (OC, tn)   f32   pooled output, channels x pooled positions
    """
    w = w_ref[...]
    s = s_ref[...]
    t = t_ref[...]

    def tap(q):
        y = jnp.dot(w, a_ref[q], preferred_element_type=jnp.float32)
        return jnp.maximum(y * s + t, 0.0)           # BN + ReLU (f32 epilogue)

    # 2x2 max pool = elementwise max over the 4 window positions.
    o_ref[...] = jnp.maximum(jnp.maximum(tap(0), tap(1)),
                             jnp.maximum(tap(2), tap(3)))


def _fc_tail_kernel(xl_ref, w1_ref, b1_ref, xd_ref, wd_ref, bd_ref,
                    w2a_ref, w2b_ref, b2_ref, o_ref):
    """relu(fc1(x_left)), relu(fnn_fc1(x_demo)), concat, fc2 -- fully fused."""
    h1 = jnp.dot(xl_ref[...], w1_ref[...], preferred_element_type=jnp.float32)
    h1 = jnp.maximum(h1 + b1_ref[...], 0.0)
    hd = jnp.dot(xd_ref[...], wd_ref[...], preferred_element_type=jnp.float32)
    hd = jnp.maximum(hd + bd_ref[...], 0.0)
    # fc2(concat([h1, hd])) == h1 @ W2a + hd @ W2b + b2
    o_ref[...] = (jnp.dot(h1, w2a_ref[...], preferred_element_type=jnp.float32)
                  + jnp.dot(hd, w2b_ref[...], preferred_element_type=jnp.float32)
                  + b2_ref[...])


# --------------------------------------------------------------------------
# Wrappers
# --------------------------------------------------------------------------
def _conv_pool_call(A, Wt, scale, shift, *, tn_max=4096):
    """out[oc, m] = max_q relu(scale * (Wt @ A[q, :, m]) + shift)."""
    _, K, M = A.shape
    OC = Wt.shape[0]
    tn = min(tn_max, _round_up(M, 128))
    return pl.pallas_call(
        _conv_bn_relu_pool_kernel,
        out_shape=jax.ShapeDtypeStruct((OC, M), jnp.float32),
        grid=(pl.cdiv(M, tn),),                      # ragged edge handled by Pallas
        in_specs=[
            pl.BlockSpec((4, K, tn), lambda i: (0, 0, i)),
            pl.BlockSpec((OC, K), lambda i: (0, 0)),
            pl.BlockSpec((OC, 1), lambda i: (0, 0)),
            pl.BlockSpec((OC, 1), lambda i: (0, 0)),
        ],
        out_specs=pl.BlockSpec((OC, tn), lambda i: (0, i)),
        compiler_params=pltpu.CompilerParams(
            dimension_semantics=("parallel",)),
    )(A, Wt, scale, shift)


def _pooled_patch_matrix(x, *, batch_first):
    """Build A[q, k, m] with q = 2x2 pool-window position, k = c*9 + ki*3 + kj
    (matches w.reshape(OC, C*9)), m = (n, ph, pw) pooled output position.

    x: (N, C, H, W) if batch_first else (C, N, H, W).
    The 36 strided slices + stacks are pure gather work that XLA fuses into
    a single pass writing |A| bytes (bf16) -- no patch-matrix round trips,
    transposes of activations, pads or slices afterwards.
    """
    if batch_first:
        N, C, H, W = x.shape
    else:
        C, N, H, W = x.shape
    OH = (H - 3) // 2 + 1
    OW = (W - 3) // 2 + 1
    PH, PW = OH // 2, OW // 2                         # MaxPool2d floor behavior
    slabs = []
    for h in range(2):
        for wq in range(2):
            cols = []
            for ki in range(3):
                for kj in range(3):
                    a = 2 * h + ki                    # input row offset
                    b = 2 * wq + kj                   # input col offset
                    s = x[:, :, a:a + 4 * PH - 3:4, b:b + 4 * PW - 3:4]
                    if batch_first:                   # (N,C,PH,PW) -> (C,N,PH,PW)
                        s = jnp.transpose(s, (1, 0, 2, 3))
                    cols.append(s)
            t = jnp.stack(cols, axis=1)               # (C, 9, N, PH, PW)
            slabs.append(t.reshape(C * 9, N * PH * PW))
    A = jnp.stack(slabs, axis=0).astype(jnp.bfloat16)  # (4, C*9, M)
    return A, PH, PW


def conv_block(x, w, conv_b, gamma, beta, mean, var, *, batch_first, eps=1e-5):
    """Conv2d(k=3,s=2) + BatchNorm2d(eval) + ReLU + MaxPool2d(2), one kernel.

    Returns the pooled activation in channels-first layout (OC, N, PH, PW)."""
    OC, IC, KH, KW = w.shape
    Nb = x.shape[0] if batch_first else x.shape[1]
    A, PH, PW = _pooled_patch_matrix(x, batch_first=batch_first)
    Wt = w.reshape(OC, IC * KH * KW).astype(jnp.bfloat16)   # (OC, K)
    inv = gamma / jnp.sqrt(var + eps)
    scale = inv.reshape(OC, 1)
    shift = ((conv_b - mean) * inv + beta).reshape(OC, 1)
    y = _conv_pool_call(A, Wt, scale, shift)                # (OC, N*PH*PW) f32
    return y.reshape(OC, Nb, PH, PW)


def fc_tail(x_flat, x_demo, params):
    """fc1 + ReLU, fnn_fc1 + ReLU, concat, fc2 in one pallas_call."""
    N = x_flat.shape[0]
    w1, b1 = params["fc1_w"], params["fc1_b"]
    wd, bd = params["fnn_w"], params["fnn_b"]
    w2, b2 = params["fc2_w"], params["fc2_b"]
    h1 = w1.shape[0]                                         # 32
    return pl.pallas_call(
        _fc_tail_kernel,
        out_shape=jax.ShapeDtypeStruct((N, w2.shape[0]), jnp.float32),
    )(x_flat, w1.T, b1.reshape(1, -1),
      x_demo, wd.T, bd.reshape(1, -1),
      w2.T[:h1], w2.T[h1:], b2.reshape(1, -1))


def net_forward(params, x_left_nchw, x_demo):
    # NCHW input consumed directly -- no standalone layout permute.
    y = conv_block(x_left_nchw, *params["conv1"], batch_first=True)   # (16,N,53,53)
    y = conv_block(y, *params["conv2"], batch_first=False)            # (32,N,13,13)
    y = conv_block(y, *params["conv3"], batch_first=False)            # (64,N, 3, 3)
    N = x_left_nchw.shape[0]
    # match PyTorch x.view(N, -1) on an NCHW tensor (tiny 4.6 KB transpose)
    x_flat = jnp.transpose(y, (1, 0, 2, 3)).reshape(N, -1)            # (N, 576)
    return fc_tail(x_flat, x_demo, params)                            # (N, 2)


# --------------------------------------------------------------------------
# Deterministic synthetic parameters
# --------------------------------------------------------------------------
def init_params(key, out_features=2):
    def conv_params(k, oc, ic):
        k1, k2, k3, k4, k5, k6 = jax.random.split(k, 6)
        w = jax.random.normal(k1, (oc, ic, 3, 3), jnp.float32) / jnp.sqrt(ic * 9.0)
        b = 0.05 * jax.random.normal(k2, (oc,), jnp.float32)
        gamma = 1.0 + 0.1 * jax.random.normal(k3, (oc,), jnp.float32)
        beta = 0.05 * jax.random.normal(k4, (oc,), jnp.float32)
        mean = 0.05 * jax.random.normal(k5, (oc,), jnp.float32)
        var = 0.5 + jax.random.uniform(k6, (oc,), jnp.float32)
        return (w, b, gamma, beta, mean, var)

    def lin_params(k, out_f, in_f):
        k1, k2 = jax.random.split(k)
        w = jax.random.normal(k1, (out_f, in_f), jnp.float32) / jnp.sqrt(float(in_f))
        b = 0.05 * jax.random.normal(k2, (out_f,), jnp.float32)
        return w, b

    kc1, kc2, kc3, kf1, kf2, kfn = jax.random.split(key, 6)
    fc1_w, fc1_b = lin_params(kf1, 32, 3 * 3 * 64)
    fc2_w, fc2_b = lin_params(kf2, out_features, 32 + 4)
    fnn_w, fnn_b = lin_params(kfn, 4, 2)
    return {
        "conv1": conv_params(kc1, 16, 3),
        "conv2": conv_params(kc2, 32, 16),
        "conv3": conv_params(kc3, 64, 32),
        "fc1_w": fc1_w, "fc1_b": fc1_b,
        "fc2_w": fc2_w, "fc2_b": fc2_b,
        "fnn_w": fnn_w, "fnn_b": fnn_b,
    }


if __name__ == "__main__":
    key = jax.random.PRNGKey(0)
    kp, kx, kd = jax.random.split(key, 3)
    params = init_params(kp, out_features=2)

    # Smallest spatial size consistent with fc1's 3*3*64 flatten: 213x213.
    x_left = jax.random.normal(kx, (2, 3, 213, 213), jnp.float32)
    x_demo = jax.random.normal(kd, (2, 2), jnp.float32)

    fwd = jax.jit(functools.partial(net_forward, params))
    out = fwd(x_left, x_demo)
    out = jax.block_until_ready(out)
    assert out.shape == (2, 2) and out.dtype == jnp.float32
    print("KERNEL_OK")
</pallas_src>

<mosaic_0001>
module attributes {stable_mosaic.version = 11 : i64} {
  func.func @_conv_bn_relu_pool_kernel(%arg0: i32, %arg1: memref<4x27x4096xbf16, #tpu.memory_space<vmem>>, %arg2: memref<16x27xbf16, #tpu.memory_space<vmem>>, %arg3: memref<16x1xf32, #tpu.memory_space<vmem>>, %arg4: memref<16x1xf32, #tpu.memory_space<vmem>>, %arg5: memref<16x4096xf32, #tpu.memory_space<vmem>>) attributes {dimension_semantics = [#tpu.dimension_semantics<parallel>], iteration_bounds = array<i64: 2>, scalar_prefetch = 0 : i64, scratch_operands = 0 : i64, tpu.core_type = #tpu.core_type<tc>, window_params = [{transform_indices = @transform_0, window_bounds = array<i64: 4, 27, 4096>}, {pipeline_mode = #tpu.pipeline_mode<synchronous>, transform_indices = @transform_1, window_bounds = array<i64: 16, 27>}, {pipeline_mode = #tpu.pipeline_mode<synchronous>, transform_indices = @transform_2, window_bounds = array<i64: 16, 1>}, {pipeline_mode = #tpu.pipeline_mode<synchronous>, transform_indices = @transform_3, window_bounds = array<i64: 16, 1>}, {transform_indices = @transform_4, window_bounds = array<i64: 16, 4096>}]} {
    %c0 = arith.constant 0 : index
    %c0_0 = arith.constant 0 : index
    %0 = vector.load %arg2[%c0, %c0_0] : memref<16x27xbf16, #tpu.memory_space<vmem>>, vector<16x27xbf16>
    %c0_1 = arith.constant 0 : index
    %c0_2 = arith.constant 0 : index
    %1 = vector.load %arg3[%c0_1, %c0_2] : memref<16x1xf32, #tpu.memory_space<vmem>>, vector<16x1xf32>
    %c0_3 = arith.constant 0 : index
    %c0_4 = arith.constant 0 : index
    %2 = vector.load %arg4[%c0_3, %c0_4] : memref<16x1xf32, #tpu.memory_space<vmem>>, vector<16x1xf32>
    %c0_5 = arith.constant 0 : index
    %c0_6 = arith.constant 0 : index
    %c0_7 = arith.constant 0 : index
    %3 = vector.load %arg1[%c0_5, %c0_6, %c0_7] : memref<4x27x4096xbf16, #tpu.memory_space<vmem>>, vector<1x27x4096xbf16>
    %4 = vector.shape_cast %3 : vector<1x27x4096xbf16> to vector<27x4096xbf16>
    %cst = arith.constant dense<0.000000e+00> : vector<16x4096xf32>
    %5 = tpu.matmul %0, %4, %cst {dimension_numbers = #tpu.dot_dimension_numbers<[1], [0], [0], [1], [0, 0, 1, 1], [], []>} : vector<16x27xbf16>, vector<27x4096xbf16>, vector<16x4096xf32> -> vector<16x4096xf32>
    %6 = vector.broadcast %1 : vector<16x1xf32> to vector<16x4096xf32>
    %7 = arith.mulf %5, %6 : vector<16x4096xf32>
    %8 = vector.broadcast %2 : vector<16x1xf32> to vector<16x4096xf32>
    %9 = arith.addf %7, %8 : vector<16x4096xf32>
    %cst_8 = arith.constant 0.000000e+00 : f32
    %10 = vector.broadcast %cst_8 : f32 to vector<16x4096xf32>
    %11 = arith.maximumf %9, %10 : vector<16x4096xf32>
    %c1 = arith.constant 1 : index
    %c0_9 = arith.constant 0 : index
    %c0_10 = arith.constant 0 : index
    %12 = vector.load %arg1[%c1, %c0_9, %c0_10] : memref<4x27x4096xbf16, #tpu.memory_space<vmem>>, vector<1x27x4096xbf16>
    %13 = vector.shape_cast %12 : vector<1x27x4096xbf16> to vector<27x4096xbf16>
    %cst_11 = arith.constant dense<0.000000e+00> : vector<16x4096xf32>
    %14 = tpu.matmul %0, %13, %cst_11 {dimension_numbers = #tpu.dot_dimension_numbers<[1], [0], [0], [1], [0, 0, 1, 1], [], []>} : vector<16x27xbf16>, vector<27x4096xbf16>, vector<16x4096xf32> -> vector<16x4096xf32>
    %15 = vector.broadcast %1 : vector<16x1xf32> to vector<16x4096xf32>
    %16 = arith.mulf %14, %15 : vector<16x4096xf32>
    %17 = vector.broadcast %2 : vector<16x1xf32> to vector<16x4096xf32>
    %18 = arith.addf %16, %17 : vector<16x4096xf32>
    %cst_12 = arith.constant 0.000000e+00 : f32
    %19 = vector.broadcast %cst_12 : f32 to vector<16x4096xf32>
    %20 = arith.maximumf %18, %19 : vector<16x4096xf32>
    %21 = arith.maximumf %11, %20 : vector<16x4096xf32>
    %c2 = arith.constant 2 : index
    %c0_13 = arith.constant 0 : index
    %c0_14 = arith.constant 0 : index
    %22 = vector.load %arg1[%c2, %c0_13, %c0_14] : memref<4x27x4096xbf16, #tpu.memory_space<vmem>>, vector<1x27x4096xbf16>
    %23 = vector.shape_cast %22 : vector<1x27x4096xbf16> to vector<27x4096xbf16>
    %cst_15 = arith.constant dense<0.000000e+00> : vector<16x4096xf32>
    %24 = tpu.matmul %0, %23, %cst_15 {dimension_numbers = #tpu.dot_dimension_numbers<[1], [0], [0], [1], [0, 0, 1, 1], [], []>} : vector<16x27xbf16>, vector<27x4096xbf16>, vector<16x4096xf32> -> vector<16x4096xf32>
    %25 = vector.broadcast %1 : vector<16x1xf32> to vector<16x4096xf32>
    %26 = arith.mulf %24, %25 : vector<16x4096xf32>
    %27 = vector.broadcast %2 : vector<16x1xf32> to vector<16x4096xf32>
    %28 = arith.addf %26, %27 : vector<16x4096xf32>
    %cst_16 = arith.constant 0.000000e+00 : f32
    %29 = vector.broadcast %cst_16 : f32 to vector<16x4096xf32>
    %30 = arith.maximumf %28, %29 : vector<16x4096xf32>
    %c3 = arith.constant 3 : index
    %c0_17 = arith.constant 0 : index
    %c0_18 = arith.constant 0 : index
    %31 = vector.load %arg1[%c3, %c0_17, %c0_18] : memref<4x27x4096xbf16, #tpu.memory_space<vmem>>, vector<1x27x4096xbf16>
    %32 = vector.shape_cast %31 : vector<1x27x4096xbf16> to vector<27x4096xbf16>
    %cst_19 = arith.constant dense<0.000000e+00> : vector<16x4096xf32>
    %33 = tpu.matmul %0, %32, %cst_19 {dimension_numbers = #tpu.dot_dimension_numbers<[1], [0], [0], [1], [0, 0, 1, 1], [], []>} : vector<16x27xbf16>, vector<27x4096xbf16>, vector<16x4096xf32> -> vector<16x4096xf32>
    %34 = vector.broadcast %1 : vector<16x1xf32> to vector<16x4096xf32>
    %35 = arith.mulf %33, %34 : vector<16x4096xf32>
    %36 = vector.broadcast %2 : vector<16x1xf32> to vector<16x4096xf32>
    %37 = arith.addf %35, %36 : vector<16x4096xf32>
    %cst_20 = arith.constant 0.000000e+00 : f32
    %38 = vector.broadcast %cst_20 : f32 to vector<16x4096xf32>
    %39 = arith.maximumf %37, %38 : vector<16x4096xf32>
    %40 = arith.maximumf %30, %39 : vector<16x4096xf32>
    %41 = arith.maximumf %21, %40 : vector<16x4096xf32>
    %c0_21 = arith.constant 0 : index
    %c0_22 = arith.constant 0 : index
    %42 = vector.load %arg5[%c0_21, %c0_22] : memref<16x4096xf32, #tpu.memory_space<vmem>>, vector<16x4096xf32>
    tpu.vector_store %arg5[%c0_21, %c0_22], %41 {strides = array<i32>} : memref<16x4096xf32, #tpu.memory_space<vmem>>, vector<16x4096xf32>,
    return
  }
  func.func @transform_0(%arg0: i32) -> (i32, i32, i32) {
    %c0_i32 = arith.constant 0 : i32
    %c0_i32_0 = arith.constant 0 : i32
    %c0_i32_1 = arith.constant 0 : i32
    return %c0_i32, %c0_i32_0, %arg0 : i32, i32, i32
  }
  func.func @transform_1(%arg0: i32) -> (i32, i32) {
    %c0_i32 = arith.constant 0 : i32
    %c0_i32_0 = arith.constant 0 : i32
    %c0_i32_1 = arith.constant 0 : i32
    return %c0_i32, %c0_i32_0 : i32, i32
  }
  func.func @transform_2(%arg0: i32) -> (i32, i32) {
    %c0_i32 = arith.constant 0 : i32
    %c0_i32_0 = arith.constant 0 : i32
    %c0_i32_1 = arith.constant 0 : i32
    return %c0_i32, %c0_i32_0 : i32, i32
  }
  func.func @transform_3(%arg0: i32) -> (i32, i32) {
    %c0_i32 = arith.constant 0 : i32
    %c0_i32_0 = arith.constant 0 : i32
    %c0_i32_1 = arith.constant 0 : i32
    return %c0_i32, %c0_i32_0 : i32, i32
  }
  func.func @transform_4(%arg0: i32) -> (i32, i32) {
    %c0_i32 = arith.constant 0 : i32
    %c0_i32_0 = arith.constant 0 : i32
    return %c0_i32, %arg0 : i32, i32
  }
}

module attributes {stable_mosaic.version = 11 : i64} {
  func.func @_conv_bn_relu_pool_kernel(%arg0: i32, %arg1: memref<4x144x384xbf16, #tpu.memory_space<vmem>>, %arg2: memref<32x144xbf16, #tpu.memory_space<vmem>>, %arg3: memref<32x1xf32, #tpu.memory_space<vmem>>, %arg4: memref<32x1xf32, #tpu.memory_space<vmem>>, %arg5: memref<32x384xf32, #tpu.memory_space<vmem>>) attributes {dimension_semantics = [#tpu.dimension_semantics<parallel>], iteration_bounds = array<i64: 1>, scalar_prefetch = 0 : i64, scratch_operands = 0 : i64, tpu.core_type = #tpu.core_type<tc>, window_params = [{transform_indices = @transform_0, window_bounds = array<i64: 4, 144, 384>}, {pipeline_mode = #tpu.pipeline_mode<synchronous>, transform_indices = @transform_1, window_bounds = array<i64: 32, 144>}, {pipeline_mode = #tpu.pipeline_mode<synchronous>, transform_indices = @transform_2, window_bounds = array<i64: 32, 1>}, {pipeline_mode = #tpu.pipeline_mode<synchronous>, transform_indices = @transform_3, window_bounds = array<i64: 32, 1>}, {transform_indices = @transform_4, window_bounds = array<i64: 32, 384>}]} {
    %c0 = arith.constant 0 : index
    %c0_0 = arith.constant 0 : index
    %0 = vector.load %arg2[%c0, %c0_0] : memref<32x144xbf16, #tpu.memory_space<vmem>>, vector<32x144xbf16>
    %c0_1 = arith.constant 0 : index
    %c0_2 = arith.constant 0 : index
    %1 = vector.load %arg3[%c0_1, %c0_2] : memref<32x1xf32, #tpu.memory_space<vmem>>, vector<32x1xf32>
    %c0_3 = arith.constant 0 : index
    %c0_4 = arith.constant 0 : index
    %2 = vector.load %arg4[%c0_3, %c0_4] : memref<32x1xf32, #tpu.memory_space<vmem>>, vector<32x1xf32>
    %c0_5 = arith.constant 0 : index
    %c0_6 = arith.constant 0 : index
    %c0_7 = arith.constant 0 : index
    %3 = vector.load %arg1[%c0_5, %c0_6, %c0_7] : memref<4x144x384xbf16, #tpu.memory_space<vmem>>, vector<1x144x384xbf16>
    %4 = vector.shape_cast %3 : vector<1x144x384xbf16> to vector<144x384xbf16>
    %cst = arith.constant dense<0.000000e+00> : vector<32x384xf32>
    %5 = tpu.matmul %0, %4, %cst {dimension_numbers = #tpu.dot_dimension_numbers<[1], [0], [0], [1], [0, 0, 1, 1], [], []>} : vector<32x144xbf16>, vector<144x384xbf16>, vector<32x384xf32> -> vector<32x384xf32>
    %6 = vector.broadcast %1 : vector<32x1xf32> to vector<32x384xf32>
    %7 = arith.mulf %5, %6 : vector<32x384xf32>
    %8 = vector.broadcast %2 : vector<32x1xf32> to vector<32x384xf32>
    %9 = arith.addf %7, %8 : vector<32x384xf32>
    %cst_8 = arith.constant 0.000000e+00 : f32
    %10 = vector.broadcast %cst_8 : f32 to vector<32x384xf32>
    %11 = arith.maximumf %9, %10 : vector<32x384xf32>
    %c1 = arith.constant 1 : index
    %c0_9 = arith.constant 0 : index
    %c0_10 = arith.constant 0 : index
    %12 = vector.load %arg1[%c1, %c0_9, %c0_10] : memref<4x144x384xbf16, #tpu.memory_space<vmem>>, vector<1x144x384xbf16>
    %13 = vector.shape_cast %12 : vector<1x144x384xbf16> to vector<144x384xbf16>
    %cst_11 = arith.constant dense<0.000000e+00> : vector<32x384xf32>
    %14 = tpu.matmul %0, %13, %cst_11 {dimension_numbers = #tpu.dot_dimension_numbers<[1], [0], [0], [1], [0, 0, 1, 1], [], []>} : vector<32x144xbf16>, vector<144x384xbf16>, vector<32x384xf32> -> vector<32x384xf32>
    %15 = vector.broadcast %1 : vector<32x1xf32> to vector<32x384xf32>
    %16 = arith.mulf %14, %15 : vector<32x384xf32>
    %17 = vector.broadcast %2 : vector<32x1xf32> to vector<32x384xf32>
    %18 = arith.addf %16, %17 : vector<32x384xf32>
    %cst_12 = arith.constant 0.000000e+00 : f32
    %19 = vector.broadcast %cst_12 : f32 to vector<32x384xf32>
    %20 = arith.maximumf %18, %19 : vector<32x384xf32>
    %21 = arith.maximumf %11, %20 : vector<32x384xf32>
    %c2 = arith.constant 2 : index
    %c0_13 = arith.constant 0 : index
    %c0_14 = arith.constant 0 : index
    %22 = vector.load %arg1[%c2, %c0_13, %c0_14] : memref<4x144x384xbf16, #tpu.memory_space<vmem>>, vector<1x144x384xbf16>
    %23 = vector.shape_cast %22 : vector<1x144x384xbf16> to vector<144x384xbf16>
    %cst_15 = arith.constant dense<0.000000e+00> : vector<32x384xf32>
    %24 = tpu.matmul %0, %23, %cst_15 {dimension_numbers = #tpu.dot_dimension_numbers<[1], [0], [0], [1], [0, 0, 1, 1], [], []>} : vector<32x144xbf16>, vector<144x384xbf16>, vector<32x384xf32> -> vector<32x384xf32>
    %25 = vector.broadcast %1 : vector<32x1xf32> to vector<32x384xf32>
    %26 = arith.mulf %24, %25 : vector<32x384xf32>
    %27 = vector.broadcast %2 : vector<32x1xf32> to vector<32x384xf32>
    %28 = arith.addf %26, %27 : vector<32x384xf32>
    %cst_16 = arith.constant 0.000000e+00 : f32
    %29 = vector.broadcast %cst_16 : f32 to vector<32x384xf32>
    %30 = arith.maximumf %28, %29 : vector<32x384xf32>
    %c3 = arith.constant 3 : index
    %c0_17 = arith.constant 0 : index
    %c0_18 = arith.constant 0 : index
    %31 = vector.load %arg1[%c3, %c0_17, %c0_18] : memref<4x144x384xbf16, #tpu.memory_space<vmem>>, vector<1x144x384xbf16>
    %32 = vector.shape_cast %31 : vector<1x144x384xbf16> to vector<144x384xbf16>
    %cst_19 = arith.constant dense<0.000000e+00> : vector<32x384xf32>
    %33 = tpu.matmul %0, %32, %cst_19 {dimension_numbers = #tpu.dot_dimension_numbers<[1], [0], [0], [1], [0, 0, 1, 1], [], []>} : vector<32x144xbf16>, vector<144x384xbf16>, vector<32x384xf32> -> vector<32x384xf32>
    %34 = vector.broadcast %1 : vector<32x1xf32> to vector<32x384xf32>
    %35 = arith.mulf %33, %34 : vector<32x384xf32>
    %36 = vector.broadcast %2 : vector<32x1xf32> to vector<32x384xf32>
    %37 = arith.addf %35, %36 : vector<32x384xf32>
    %cst_20 = arith.constant 0.000000e+00 : f32
    %38 = vector.broadcast %cst_20 : f32 to vector<32x384xf32>
    %39 = arith.maximumf %37, %38 : vector<32x384xf32>
    %40 = arith.maximumf %30, %39 : vector<32x384xf32>
    %41 = arith.maximumf %21, %40 : vector<32x384xf32>
    %c0_21 = arith.constant 0 : index
    %c0_22 = arith.constant 0 : index
    %42 = vector.load %arg5[%c0_21, %c0_22] : memref<32x384xf32, #tpu.memory_space<vmem>>, vector<32x384xf32>
    tpu.vector_store %arg5[%c0_21, %c0_22], %41 {strides = array<i32>} : memref<32x384xf32, #tpu.memory_space<vmem>>, vector<32x384xf32>,
    return
  }
  func.func @transform_0(%arg0: i32) -> (i32, i32, i32) {
    %c0_i32 = arith.constant 0 : i32
    %c0_i32_0 = arith.constant 0 : i32
    %c0_i32_1 = arith.constant 0 : i32
    return %c0_i32, %c0_i32_0, %arg0 : i32, i32, i32
  }
  func.func @transform_1(%arg0: i32) -> (i32, i32) {
    %c0_i32 = arith.constant 0 : i32
    %c0_i32_0 = arith.constant 0 : i32
    %c0_i32_1 = arith.constant 0 : i32
    return %c0_i32, %c0_i32_0 : i32, i32
  }
  func.func @transform_2(%arg0: i32) -> (i32, i32) {
    %c0_i32 = arith.constant 0 : i32
    %c0_i32_0 = arith.constant 0 : i32
    %c0_i32_1 = arith.constant 0 : i32
    return %c0_i32, %c0_i32_0 : i32, i32
  }
  func.func @transform_3(%arg0: i32) -> (i32, i32) {
    %c0_i32 = arith.constant 0 : i32
    %c0_i32_0 = arith.constant 0 : i32
    %c0_i32_1 = arith.constant 0 : i32
    return %c0_i32, %c0_i32_0 : i32, i32
  }
  func.func @transform_4(%arg0: i32) -> (i32, i32) {
    %c0_i32 = arith.constant 0 : i32
    %c0_i32_0 = arith.constant 0 : i32
    return %c0_i32, %arg0 : i32, i32
  }
}

module attributes {stable_mosaic.version = 11 : i64} {
  func.func @_conv_bn_relu_pool_kernel(%arg0: i32, %arg1: memref<4x288x128xbf16, #tpu.memory_space<vmem>>, %arg2: memref<64x288xbf16, #tpu.memory_space<vmem>>, %arg3: memref<64x1xf32, #tpu.memory_space<vmem>>, %arg4: memref<64x1xf32, #tpu.memory_space<vmem>>, %arg5: memref<64x128xf32, #tpu.memory_space<vmem>>) attributes {dimension_semantics = [#tpu.dimension_semantics<parallel>], iteration_bounds = array<i64: 1>, scalar_prefetch = 0 : i64, scratch_operands = 0 : i64, tpu.core_type = #tpu.core_type<tc>, window_params = [{transform_indices = @transform_0, window_bounds = array<i64: 4, 288, 128>}, {pipeline_mode = #tpu.pipeline_mode<synchronous>, transform_indices = @transform_1, window_bounds = array<i64: 64, 288>}, {pipeline_mode = #tpu.pipeline_mode<synchronous>, transform_indices = @transform_2, window_bounds = array<i64: 64, 1>}, {pipeline_mode = #tpu.pipeline_mode<synchronous>, transform_indices = @transform_3, window_bounds = array<i64: 64, 1>}, {transform_indices = @transform_4, window_bounds = array<i64: 64, 128>}]} {
    %c0 = arith.constant 0 : index
    %c0_0 = arith.constant 0 : index
    %0 = vector.load %arg2[%c0, %c0_0] : memref<64x288xbf16, #tpu.memory_space<vmem>>, vector<64x288xbf16>
    %c0_1 = arith.constant 0 : index
    %c0_2 = arith.constant 0 : index
    %1 = vector.load %arg3[%c0_1, %c0_2] : memref<64x1xf32, #tpu.memory_space<vmem>>, vector<64x1xf32>
    %c0_3 = arith.constant 0 : index
    %c0_4 = arith.constant 0 : index
    %2 = vector.load %arg4[%c0_3, %c0_4] : memref<64x1xf32, #tpu.memory_space<vmem>>, vector<64x1xf32>
    %c0_5 = arith.constant 0 : index
    %c0_6 = arith.constant 0 : index
    %c0_7 = arith.constant 0 : index
    %3 = vector.load %arg1[%c0_5, %c0_6, %c0_7] : memref<4x288x128xbf16, #tpu.memory_space<vmem>>, vector<1x288x128xbf16>
    %4 = vector.shape_cast %3 : vector<1x288x128xbf16> to vector<288x128xbf16>
    %cst = arith.constant dense<0.000000e+00> : vector<64x128xf32>
    %5 = tpu.matmul %0, %4, %cst {dimension_numbers = #tpu.dot_dimension_numbers<[1], [0], [0], [1], [0, 0, 1, 1], [], []>} : vector<64x288xbf16>, vector<288x128xbf16>, vector<64x128xf32> -> vector<64x128xf32>
    %6 = vector.broadcast %1 : vector<64x1xf32> to vector<64x128xf32>
    %7 = arith.mulf %5, %6 : vector<64x128xf32>
    %8 = vector.broadcast %2 : vector<64x1xf32> to vector<64x128xf32>
    %9 = arith.addf %7, %8 : vector<64x128xf32>
    %cst_8 = arith.constant 0.000000e+00 : f32
    %10 = vector.broadcast %cst_8 : f32 to vector<64x128xf32>
    %11 = arith.maximumf %9, %10 : vector<64x128xf32>
    %c1 = arith.constant 1 : index
    %c0_9 = arith.constant 0 : index
    %c0_10 = arith.constant 0 : index
    %12 = vector.load %arg1[%c1, %c0_9, %c0_10] : memref<4x288x128xbf16, #tpu.memory_space<vmem>>, vector<1x288x128xbf16>
    %13 = vector.shape_cast %12 : vector<1x288x128xbf16> to vector<288x128xbf16>
    %cst_11 = arith.constant dense<0.000000e+00> : vector<64x128xf32>
    %14 = tpu.matmul %0, %13, %cst_11 {dimension_numbers = #tpu.dot_dimension_numbers<[1], [0], [0], [1], [0, 0, 1, 1], [], []>} : vector<64x288xbf16>, vector<288x128xbf16>, vector<64x128xf32> -> vector<64x128xf32>
    %15 = vector.broadcast %1 : vector<64x1xf32> to vector<64x128xf32>
    %16 = arith.mulf %14, %15 : vector<64x128xf32>
    %17 = vector.broadcast %2 : vector<64x1xf32> to vector<64x128xf32>
    %18 = arith.addf %16, %17 : vector<64x128xf32>
    %cst_12 = arith.constant 0.000000e+00 : f32
    %19 = vector.broadcast %cst_12 : f32 to vector<64x128xf32>
    %20 = arith.maximumf %18, %19 : vector<64x128xf32>
    %21 = arith.maximumf %11, %20 : vector<64x128xf32>
    %c2 = arith.constant 2 : index
    %c0_13 = arith.constant 0 : index
    %c0_14 = arith.constant 0 : index
    %22 = vector.load %arg1[%c2, %c0_13, %c0_14] : memref<4x288x128xbf16, #tpu.memory_space<vmem>>, vector<1x288x128xbf16>
    %23 = vector.shape_cast %22 : vector<1x288x128xbf16> to vector<288x128xbf16>
    %cst_15 = arith.constant dense<0.000000e+00> : vector<64x128xf32>
    %24 = tpu.matmul %0, %23, %cst_15 {dimension_numbers = #tpu.dot_dimension_numbers<[1], [0], [0], [1], [0, 0, 1, 1], [], []>} : vector<64x288xbf16>, vector<288x128xbf16>, vector<64x128xf32> -> vector<64x128xf32>
    %25 = vector.broadcast %1 : vector<64x1xf32> to vector<64x128xf32>
    %26 = arith.mulf %24, %25 : vector<64x128xf32>
    %27 = vector.broadcast %2 : vector<64x1xf32> to vector<64x128xf32>
    %28 = arith.addf %26, %27 : vector<64x128xf32>
    %cst_16 = arith.constant 0.000000e+00 : f32
    %29 = vector.broadcast %cst_16 : f32 to vector<64x128xf32>
    %30 = arith.maximumf %28, %29 : vector<64x128xf32>
    %c3 = arith.constant 3 : index
    %c0_17 = arith.constant 0 : index
    %c0_18 = arith.constant 0 : index
    %31 = vector.load %arg1[%c3, %c0_17, %c0_18] : memref<4x288x128xbf16, #tpu.memory_space<vmem>>, vector<1x288x128xbf16>
    %32 = vector.shape_cast %31 : vector<1x288x128xbf16> to vector<288x128xbf16>
    %cst_19 = arith.constant dense<0.000000e+00> : vector<64x128xf32>
    %33 = tpu.matmul %0, %32, %cst_19 {dimension_numbers = #tpu.dot_dimension_numbers<[1], [0], [0], [1], [0, 0, 1, 1], [], []>} : vector<64x288xbf16>, vector<288x128xbf16>, vector<64x128xf32> -> vector<64x128xf32>
    %34 = vector.broadcast %1 : vector<64x1xf32> to vector<64x128xf32>
    %35 = arith.mulf %33, %34 : vector<64x128xf32>
    %36 = vector.broadcast %2 : vector<64x1xf32> to vector<64x128xf32>
    %37 = arith.addf %35, %36 : vector<64x128xf32>
    %cst_20 = arith.constant 0.000000e+00 : f32
    %38 = vector.broadcast %cst_20 : f32 to vector<64x128xf32>
    %39 = arith.maximumf %37, %38 : vector<64x128xf32>
    %40 = arith.maximumf %30, %39 : vector<64x128xf32>
    %41 = arith.maximumf %21, %40 : vector<64x128xf32>
    %c0_21 = arith.constant 0 : index
    %c0_22 = arith.constant 0 : index
    %42 = vector.load %arg5[%c0_21, %c0_22] : memref<64x128xf32, #tpu.memory_space<vmem>>, vector<64x128xf32>
    tpu.vector_store %arg5[%c0_21, %c0_22], %41 {strides = array<i32>} : memref<64x128xf32, #tpu.memory_space<vmem>>, vector<64x128xf32>,
    return
  }
  func.func @transform_0(%arg0: i32) -> (i32, i32, i32) {
    %c0_i32 = arith.constant 0 : i32
    %c0_i32_0 = arith.constant 0 : i32
    %c0_i32_1 = arith.constant 0 : i32
    return %c0_i32, %c0_i32_0, %arg0 : i32, i32, i32
  }
  func.func @transform_1(%arg0: i32) -> (i32, i32) {
    %c0_i32 = arith.constant 0 : i32
    %c0_i32_0 = arith.constant 0 : i32
    %c0_i32_1 = arith.constant 0 : i32
    return %c0_i32, %c0_i32_0 : i32, i32
  }
  func.func @transform_2(%arg0: i32) -> (i32, i32) {
    %c0_i32 = arith.constant 0 : i32
    %c0_i32_0 = arith.constant 0 : i32
    %c0_i32_1 = arith.constant 0 : i32
    return %c0_i32, %c0_i32_0 : i32, i32
  }
  func.func @transform_3(%arg0: i32) -> (i32, i32) {
    %c0_i32 = arith.constant 0 : i32
    %c0_i32_0 = arith.constant 0 : i32
    %c0_i32_1 = arith.constant 0 : i32
    return %c0_i32, %c0_i32_0 : i32, i32
  }
  func.func @transform_4(%arg0: i32) -> (i32, i32) {
    %c0_i32 = arith.constant 0 : i32
    %c0_i32_0 = arith.constant 0 : i32
    return %c0_i32, %arg0 : i32, i32
  }
}

module attributes {stable_mosaic.version = 11 : i64} {
  func.func @_fc_tail_kernel(%arg0: memref<2x576xf32, #tpu.memory_space<vmem>>, %arg1: memref<576x32xf32, #tpu.memory_space<vmem>>, %arg2: memref<1x32xf32, #tpu.memory_space<vmem>>, %arg3: memref<2x2xf32, #tpu.memory_space<vmem>>, %arg4: memref<2x4xf32, #tpu.memory_space<vmem>>, %arg5: memref<1x4xf32, #tpu.memory_space<vmem>>, %arg6: memref<32x2xf32, #tpu.memory_space<vmem>>, %arg7: memref<4x2xf32, #tpu.memory_space<vmem>>, %arg8: memref<1x2xf32, #tpu.memory_space<vmem>>, %arg9: memref<2x2xf32, #tpu.memory_space<vmem>>) attributes {dimension_semantics = [], scalar_prefetch = 0 : i64, scratch_operands = 0 : i64, tpu.core_type = #tpu.core_type<tc>} {
    %c0 = arith.constant 0 : index
    %c0_0 = arith.constant 0 : index
    %0 = vector.load %arg0[%c0, %c0_0] : memref<2x576xf32, #tpu.memory_space<vmem>>, vector<2x576xf32>
    %c0_1 = arith.constant 0 : index
    %c0_2 = arith.constant 0 : index
    %1 = vector.load %arg1[%c0_1, %c0_2] : memref<576x32xf32, #tpu.memory_space<vmem>>, vector<576x32xf32>
    %cst = arith.constant dense<0.000000e+00> : vector<2x32xf32>
    %2 = tpu.matmul %0, %1, %cst {dimension_numbers = #tpu.dot_dimension_numbers<[1], [0], [0], [1], [0, 0, 1, 1], [], []>} : vector<2x576xf32>, vector<576x32xf32>, vector<2x32xf32> -> vector<2x32xf32>
    %c0_3 = arith.constant 0 : index
    %c0_4 = arith.constant 0 : index
    %3 = vector.load %arg2[%c0_3, %c0_4] : memref<1x32xf32, #tpu.memory_space<vmem>>, vector<1x32xf32>
    %4 = vector.broadcast %3 : vector<1x32xf32> to vector<2x32xf32>
    %5 = arith.addf %2, %4 : vector<2x32xf32>
    %cst_5 = arith.constant 0.000000e+00 : f32
    %6 = vector.broadcast %cst_5 : f32 to vector<2x32xf32>
    %7 = arith.maximumf %5, %6 : vector<2x32xf32>
    %c0_6 = arith.constant 0 : index
    %c0_7 = arith.constant 0 : index
    %8 = vector.load %arg3[%c0_6, %c0_7] : memref<2x2xf32, #tpu.memory_space<vmem>>, vector<2x2xf32>
    %c0_8 = arith.constant 0 : index
    %c0_9 = arith.constant 0 : index
    %9 = vector.load %arg4[%c0_8, %c0_9] : memref<2x4xf32, #tpu.memory_space<vmem>>, vector<2x4xf32>
    %cst_10 = arith.constant dense<0.000000e+00> : vector<2x4xf32>
    %10 = tpu.matmul %8, %9, %cst_10 {dimension_numbers = #tpu.dot_dimension_numbers<[1], [0], [0], [1], [0, 0, 1, 1], [], []>} : vector<2x2xf32>, vector<2x4xf32>, vector<2x4xf32> -> vector<2x4xf32>
    %c0_11 = arith.constant 0 : index
    %c0_12 = arith.constant 0 : index
    %11 = vector.load %arg5[%c0_11, %c0_12] : memref<1x4xf32, #tpu.memory_space<vmem>>, vector<1x4xf32>
    %12 = vector.broadcast %11 : vector<1x4xf32> to vector<2x4xf32>
    %13 = arith.addf %10, %12 : vector<2x4xf32>
    %cst_13 = arith.constant 0.000000e+00 : f32
    %14 = vector.broadcast %cst_13 : f32 to vector<2x4xf32>
    %15 = arith.maximumf %13, %14 : vector<2x4xf32>
    %c0_14 = arith.constant 0 : index
    %c0_15 = arith.constant 0 : index
    %16 = vector.load %arg6[%c0_14, %c0_15] : memref<32x2xf32, #tpu.memory_space<vmem>>, vector<32x2xf32>
    %cst_16 = arith.constant dense<0.000000e+00> : vector<2x2xf32>
    %17 = tpu.matmul %7, %16, %cst_16 {dimension_numbers = #tpu.dot_dimension_numbers<[1], [0], [0], [1], [0, 0, 1, 1], [], []>} : vector<2x32xf32>, vector<32x2xf32>, vector<2x2xf32> -> vector<2x2xf32>
    %c0_17 = arith.constant 0 : index
    %c0_18 = arith.constant 0 : index
    %18 = vector.load %arg7[%c0_17, %c0_18] : memref<4x2xf32, #tpu.memory_space<vmem>>, vector<4x2xf32>
    %cst_19 = arith.constant dense<0.000000e+00> : vector<2x2xf32>
    %19 = tpu.matmul %15, %18, %cst_19 {dimension_numbers = #tpu.dot_dimension_numbers<[1], [0], [0], [1], [0, 0, 1, 1], [], []>} : vector<2x4xf32>, vector<4x2xf32>, vector<2x2xf32> -> vector<2x2xf32>
    %20 = arith.addf %17, %19 : vector<2x2xf32>
    %c0_20 = arith.constant 0 : index
    %c0_21 = arith.constant 0 : index
    %21 = vector.load %arg8[%c0_20, %c0_21] : memref<1x2xf32, #tpu.memory_space<vmem>>, vector<1x2xf32>
    %22 = vector.broadcast %21 : vector<1x2xf32> to vector<2x2xf32>
    %23 = arith.addf %20, %22 : vector<2x2xf32>
    %c0_22 = arith.constant 0 : index
    %c0_23 = arith.constant 0 : index
    %24 = vector.load %arg9[%c0_22, %c0_23] : memref<2x2xf32, #tpu.memory_space<vmem>>, vector<2x2xf32>
    tpu.vector_store %arg9[%c0_22, %c0_23], %23 {strides = array<i32>} : memref<2x2xf32, #tpu.memory_space<vmem>>, vector<2x2xf32>,
    return
  }
}

</mosaic_0001>

<llo_original>
// kernel: net_forward.4
$region0: #{net_forward.4}
  #allocation0 [shape = 'u32[]', space=smem, size = 0x4, offset = 0x4, fixed_abs, tag = 'smem constant byte address 0x4 - core index']
  #allocation1 [shape = 'u32[72,128]{1,0:T(1,128)}', space=vmem, size = 0x9000, scoped, tag = 'internal scratch']
  %s0 = inlined_call_operand.vmem [shape: bf16[4,27,5618], index: 0, kind: input, shape index: {}]
  %s1 = inlined_call_operand.vmem [shape: bf16[16,27], index: 1, kind: input, shape index: {}]
  %s2 = inlined_call_operand.vmem [shape: f32[16,1], index: 2, kind: input, shape index: {}]
  %s3 = inlined_call_operand.vmem [shape: f32[16,1], index: 3, kind: input, shape index: {}]
  %s4 = inlined_call_operand.vmem [shape: f32[16,5618], index: 4, kind: output, shape index: {}]
  %s5 = sld [smem:[#allocation0]]
  $region177: #{net_forward.4} parent=0
    _
  %s7 = ssub.s32 1, %s5
  %s8 = scalar_select 0, %s7, %s5
  $region1: #{net_forward.4} parent=0
    #allocation2 [shape = 'u8[2097152]{0}', space=vmem, size = 0x200000, scoped, tag = 'input window, operand 0']
    #allocation3 [shape = 'u8[524288]{0}', space=vmem, size = 0x80000, scoped, tag = 'output window, operand 0']
    loop: start=0, step=1, limit=4
    $region2: #{net_forward.4} parent=1 // loop_pre_header
      _
    $region3: #{net_forward.4} parent=1 // loop_header
      %s10 = sphi 0, %s14
      %p11 = scmp.ge.s32.totalorder %s10, 4
      %s20 = sphi 0, %s22
      %s23 = sphi 0, %s20
      %s24 = sphi 0, %s23
      %s40 = sphi 0, %s24
      %s44 = sphi 0, %s44
      %s46 = sphi 0, %s44
      %s47 = sphi 0, %s46
      %s61 = sphi 0, %s47
      %s65 = sphi 0, %s65
      %s67 = sphi 0, %s65
      %s68 = sphi 0, %s67
      %s82 = sphi 0, %s68
      %s86 = sphi 0, %s86
      %s88 = sphi 0, %s86
      %s89 = sphi 0, %s88
      %s103 = sphi 0, %s89
      %s109 = sphi 0, %s111
      %s112 = sphi 0, %s109
      %s113 = sphi 0, %s112
      %s129 = sphi 0, %s113
    $region4: #{net_forward.4} parent=1 // loop_header_branch
      %13 = sbr.rel (%p11) target = $region8
    $region5: #{net_forward.4} parent=1 // loop_body
      %s15 = ssub.s32 %s10, 1
      %s16 = ssub.s32 %s10, 2
      %s17 = sadd.s32 %s10, 1
      %s18 = ssub.s32 %s10, %s17
      %p19 = scmp.eq.s32.totalorder %s18, 0
      %s21 = sadd.s32 %s20, 1
      %s22 = scalar_select %p19, %s20, %s21
      %p25 = pneg %p19
      %p26 = scmp.eq.s32.totalorder %s10, 1
      %p27 = por %p25, %p26
      %p28 = scmp.ne.s32.totalorder %s20, %s23
      %p29 = scmp.eq.s32.totalorder %s10, 0
      %p30 = por %p28, %p29
      %p31 = scmp.ne.s32.totalorder %s20, %s23
      %p32 = scmp.eq.s32.totalorder %s15, 1
      %p33 = por %p31, %p32
      %p34 = scmp.ne.s32.totalorder %s23, %s24
      %p35 = scmp.eq.s32.totalorder %s15, 0
      %p36 = por %p34, %p35
      %p37 = scmp.ne.s32.totalorder %s23, %s24
      %p38 = scmp.eq.s32.totalorder %s16, 1
      %p39 = por %p37, %p38
      %p41 = scmp.ne.s32.totalorder %s24, %s40
      %p42 = scmp.eq.s32.totalorder %s16, 0
      %p43 = por %p41, %p42
      %s45 = sadd.s32 %s44, 1
      %p48 = scmp.eq.s32.totalorder %s10, 1
      %p49 = scmp.ne.s32.totalorder %s44, %s46
      %p50 = scmp.eq.s32.totalorder %s10, 0
      %p51 = por %p49, %p50
      %p52 = scmp.ne.s32.totalorder %s44, %s46
      %p53 = scmp.eq.s32.totalorder %s15, 1
      %p54 = por %p52, %p53
      %p55 = scmp.ne.s32.totalorder %s46, %s47
      %p56 = scmp.eq.s32.totalorder %s15, 0
      %p57 = por %p55, %p56
      %p58 = scmp.ne.s32.totalorder %s46, %s47
      %p59 = scmp.eq.s32.totalorder %s16, 1
      %p60 = por %p58, %p59
      %p62 = scmp.ne.s32.totalorder %s47, %s61
      %p63 = scmp.eq.s32.totalorder %s16, 0
      %p64 = por %p62, %p63
      %s66 = sadd.s32 %s65, 1
      %p69 = scmp.eq.s32.totalorder %s10, 1
      %p70 = scmp.ne.s32.totalorder %s65, %s67
      %p71 = scmp.eq.s32.totalorder %s10, 0
      %p72 = por %p70, %p71
      %p73 = scmp.ne.s32.totalorder %s65, %s67
      %p74 = scmp.eq.s32.totalorder %s15, 1
      %p75 = por %p73, %p74
      %p76 = scmp.ne.s32.totalorder %s67, %s68
      %p77 = scmp.eq.s32.totalorder %s15, 0
      %p78 = por %p76, %p77
      %p79 = scmp.ne.s32.totalorder %s67, %s68
      %p80 = scmp.eq.s32.totalorder %s16, 1
      %p81 = por %p79, %p80
      %p83 = scmp.ne.s32.totalorder %s68, %s82
      %p84 = scmp.eq.s32.totalorder %s16, 0
      %p85 = por %p83, %p84
      %s87 = sadd.s32 %s86, 1
      %p90 = scmp.eq.s32.totalorder %s10, 1
      %p91 = scmp.ne.s32.totalorder %s86, %s88
      %p92 = scmp.eq.s32.totalorder %s10, 0
      %p93 = por %p91, %p92
      %p94 = scmp.ne.s32.totalorder %s86, %s88
      %p95 = scmp.eq.s32.totalorder %s15, 1
      %p96 = por %p94, %p95
      %p97 = scmp.ne.s32.totalorder %s88, %s89
      %p98 = scmp.eq.s32.totalorder %s15, 0
      %p99 = por %p97, %p98
      %p100 = scmp.ne.s32.totalorder %s88, %s89
      %p101 = scmp.eq.s32.totalorder %s16, 1
      %p102 = por %p100, %p101
      %p104 = scmp.ne.s32.totalorder %s89, %s103
      %p105 = scmp.eq.s32.totalorder %s16, 0
      %p106 = por %p104, %p105
      %s107 = ssub.s32 %s10, %s17
      %p108 = scmp.eq.s32.totalorder %s107, 0
      %s110 = sadd.s32 %s109, 1
      %s111 = scalar_select %p108, %s109, %s110
      %p114 = pneg %p108
      %p115 = scmp.eq.s32.totalorder %s10, 1
      %p116 = por %p114, %p115
      %p117 = scmp.ne.s32.totalorder %s109, %s112
      %p118 = scmp.eq.s32.totalorder %s10, 0
      %p119 = por %p117, %p118
      %p120 = scmp.ne.s32.totalorder %s109, %s112
      %p121 = scmp.eq.s32.totalorder %s15, 1
      %p122 = por %p120, %p121
      %p123 = scmp.ne.s32.totalorder %s112, %s113
      %p124 = scmp.eq.s32.totalorder %s15, 0
      %p125 = por %p123, %p124
      %p126 = scmp.ne.s32.totalorder %s112, %s113
      %p127 = scmp.eq.s32.totalorder %s16, 1
      %p128 = por %p126, %p127
      %p130 = scmp.ne.s32.totalorder %s113, %s129
      %p131 = scmp.eq.s32.totalorder %s16, 0
      %p132 = por %p130, %p131
      %p133 = scmp.le.s32.totalorder 1, %s10
      %p134 = scmp.lt.s32.totalorder %s10, 3
      %p135 = pnand %p133, %p134
      %p136 = pneg %p135
      // Predicated region
      $region9: #{net_forward.4} parent=5 // pred_check
        _
      $region10: #{net_forward.4} parent=5 // pred_check_branch
        %138 = sbr.rel (%p135) target = $region12
      $region11: #{net_forward.4} parent=5 // pred_region
        %s139 = ssub.s32 %s10, 1
        // Predicated region
        $region13: #{net_forward.4} parent=11 // pred_check
          %p140 = pneg %p57
        $region14: #{net_forward.4} parent=11 // pred_check_branch
          %142 = sbr.rel (%p140) target = $region16
        $region15: #{net_forward.4} parent=11 // pred_region
          _
        $region16: #{net_forward.4} parent=11 // pred_fallthru
          _
        // Predicated region
        $region17: #{net_forward.4} parent=11 // pred_check
          %p143 = pneg %p78
        $region18: #{net_forward.4} parent=11 // pred_check_branch
          %145 = sbr.rel (%p143) target = $region20
        $region19: #{net_forward.4} parent=11 // pred_region
          _
        $region20: #{net_forward.4} parent=11 // pred_fallthru
          _
        // Predicated region
        $region21: #{net_forward.4} parent=11 // pred_check
          %p146 = pneg %p99
        $region22: #{net_forward.4} parent=11 // pred_check_branch
          %148 = sbr.rel (%p146) target = $region24
        $region23: #{net_forward.4} parent=11 // pred_region
          _
        $region24: #{net_forward.4} parent=11 // pred_fallthru
          _
      $region12: #{net_forward.4} parent=5 // pred_fallthru
        _
      %p149 = scmp.lt.s32.totalorder %s10, 2
      // Predicated region
      $region25: #{net_forward.4} parent=5 // pred_check
        %p150 = pneg %p149
      $region26: #{net_forward.4} parent=5 // pred_check_branch
        %152 = sbr.rel (%p150) target = $region28
      $region27: #{net_forward.4} parent=5 // pred_region
        // Predicated region
        $region29: #{net_forward.4} parent=27 // pred_check
          %p153 = pneg %p30
        $region30: #{net_forward.4} parent=27 // pred_check_branch
          %155 = sbr.rel (%p153) target = $region32
        $region31: #{net_forward.4} parent=27 // pred_region
          %s156 = sand.u32 %s20, 1
          %s157 = sand.u32 %s20, 1
          %s158 = smul.addr %s157, 2048
          %s159 = scalar_lea.vmem [#allocation2], %s158
          %s160 = smul.u32 32, %s10
          %s161 = ssub.s32 44, %s160
          %p162 = scmp.lt.s32.totalorder %s161, 32
          %s163 = scalar_select %p162, %s161, 32
          %s164 = smul.u32 64, %s163
          %p165 = scmp.ne.s32.totalorder 0, %s164
          %s166 = smul.addr %s160, 4
          %s167 = scalar_lea.vmem %s0, %s166
          %s168 = smul.u32 %s163, 4
          // Predicated region
          $region33: #{net_forward.4} parent=31 // pred_check
            %p169 = pneg %p165
          $region34: #{net_forward.4} parent=31 // pred_check_branch
            %171 = sbr.rel (%p169) target = $region36
          $region35: #{net_forward.4} parent=31 // pred_region
            %p172 = scmp.lt.u32.totalorder %s168, 8
            %p173 = pneg %p172
            // Predicated region
            $region37: #{net_forward.4} parent=35 // pred_check
              _
            $region38: #{net_forward.4} parent=35 // pred_check_branch
              %175 = sbr.rel (%p172) target = $region40
            $region39: #{net_forward.4} parent=35 // pred_region
              %s221 = sand.u32 %s168, 7
              %p222 = scmp.eq.s32.totalorder %s221, 0
              // Predicated region
              $region52: #{net_forward.4} parent=39 // pred_check
                %p223 = pneg %p222
              $region53: #{net_forward.4} parent=39 // pred_check_branch
                %225 = sbr.rel (%p223) target = $region55
              $region54: #{net_forward.4} parent=39 // pred_region
                %s226 = sshrl.u32 %s168, 3
                %s227 = sshrl.u32 %s226, 1
                // While loop
                $region56: #{net_forward.4} parent=54 // loop_pre_header
                  _
                $region57: #{net_forward.4} parent=54 // loop_header
                  %s229 = sphi 0, %s231
                  %p230 = scmp.ge.s32.totalorder %s229, %s227
                  %s234 = sphi 0, %s303
                  %s235 = sphi %s167, %s306
                  %s236 = sphi %s159, %s307
                $region58: #{net_forward.4} parent=54 // loop_header_branch
                  %233 = sbr.rel (%p230) target = $region62
                $region59: #{net_forward.4} parent=54 // loop_body
                  %v237 = vld [vmem:[%s235] sm:$0xff]
                  %238 = vst [vmem:[%s236] sm:$0xff] %v237
                  %v239 = vld [vmem:[%s235 + $0x8] sm:$0xff]
                  %240 = vst [vmem:[%s236 + $0x8] sm:$0xff] %v239
                  %v241 = vld [vmem:[%s235 + $0xb0] sm:$0xff]
                  %242 = vst [vmem:[%s236 + $0x80] sm:$0xff] %v241
                  %v243 = vld [vmem:[%s235 + $0xb8] sm:$0xff]
                  %244 = vst [vmem:[%s236 + $0x88] sm:$0xff] %v243
                  %v245 = vld [vmem:[%s235 + $0x160] sm:$0xff]
                  %246 = vst [vmem:[%s236 + $0x100] sm:$0xff] %v245
                  %v247 = vld [vmem:[%s235 + $0x168] sm:$0xff]
                  %248 = vst [vmem:[%s236 + $0x108] sm:$0xff] %v247
                  %v249 = vld [vmem:[%s235 + $0x210] sm:$0xff]
                  %250 = vst [vmem:[%s236 + $0x180] sm:$0xff] %v249
                  %v251 = vld [vmem:[%s235 + $0x218] sm:$0xff]
                  %252 = vst [vmem:[%s236 + $0x188] sm:$0xff] %v251
                  %v253 = vld [vmem:[%s235 + $0x2c0] sm:$0xff]
                  %254 = vst [vmem:[%s236 + $0x200] sm:$0xff] %v253
                  %v255 = vld [vmem:[%s235 + $0x2c8] sm:$0xff]
                  %256 = vst [vmem:[%s236 + $0x208] sm:$0xff] %v255
                  %v257 = vld [vmem:[%s235 + $0x370] sm:$0xff]
                  %258 = vst [vmem:[%s236 + $0x280] sm:$0xff] %v257
                  %v259 = vld [vmem:[%s235 + $0x378] sm:$0xff]
                  %260 = vst [vmem:[%s236 + $0x288] sm:$0xff] %v259
                  %v261 = vld [vmem:[%s235 + $0x420] sm:$0xff]
                  %262 = vst [vmem:[%s236 + $0x300] sm:$0xff] %v261
                  %v263 = vld [vmem:[%s235 + $0x428] sm:$0xff]
                  %264 = vst [vmem:[%s236 + $0x308] sm:$0xff] %v263
                  %v265 = vld [vmem:[%s235 + $0x4d0] sm:$0xff]
                  %266 = vst [vmem:[%s236 + $0x380] sm:$0xff] %v265
                  %v267 = vld [vmem:[%s235 + $0x4d8] sm:$0xff]
                  %268 = vst [vmem:[%s236 + $0x388] sm:$0xff] %v267
                  %v269 = vld [vmem:[%s235 + $0x580] sm:$0xff]
                  %270 = vst [vmem:[%s236 + $0x400] sm:$0xff] %v269
                  %v271 = vld [vmem:[%s235 + $0x588] sm:$0xff]
                  %272 = vst [vmem:[%s236 + $0x408] sm:$0xff] %v271
                  %v273 = vld [vmem:[%s235 + $0x630] sm:$0xff]
                  %274 = vst [vmem:[%s236 + $0x480] sm:$0xff] %v273
                  %v275 = vld [vmem:[%s235 + $0x638] sm:$0xff]
                  %276 = vst [vmem:[%s236 + $0x488] sm:$0xff] %v275
                  %v277 = vld [vmem:[%s235 + $0x6e0] sm:$0xff]
                  %278 = vst [vmem:[%s236 + $0x500] sm:$0xff] %v277
                  %v279 = vld [vmem:[%s235 + $0x6e8] sm:$0xff]
                  %280 = vst [vmem:[%s236 + $0x508] sm:$0xff] %v279
                  %v281 = vld [vmem:[%s235 + $0x790] sm:$0xff]
                  %282 = vst [vmem:[%s236 + $0x580] sm:$0xff] %v281
                  %v283 = vld [vmem:[%s235 + $0x798] sm:$0xff]
                  %284 = vst [vmem:[%s236 + $0x588] sm:$0xff] %v283
                  %v285 = vld [vmem:[%s235 + $0x840] sm:$0xff]
                  %286 = vst [vmem:[%s236 + $0x600] sm:$0xff] %v285
                  %v287 = vld [vmem:[%s235 + $0x848] sm:$0xff]
                  %288 = vst [vmem:[%s236 + $0x608] sm:$0xff] %v287
                  %v289 = vld [vmem:[%s235 + $0x8f0] sm:$0xff]
                  %290 = vst [vmem:[%s236 + $0x680] sm:$0xff] %v289
                  %v291 = vld [vmem:[%s235 + $0x8f8] sm:$0xff]
                  %292 = vst [vmem:[%s236 + $0x688] sm:$0xff] %v291
                  %v293 = vld [vmem:[%s235 + $0x9a0] sm:$0xff]
                  %294 = vst [vmem:[%s236 + $0x700] sm:$0xff] %v293
                  %v295 = vld [vmem:[%s235 + $0x9a8] sm:$0xff]
                  %296 = vst [vmem:[%s236 + $0x708] sm:$0xff] %v295
                  %v297 = vld [vmem:[%s235 + $0xa50] sm:$0xff]
                  %298 = vst [vmem:[%s236 + $0x780] sm:$0xff] %v297
                  %v299 = vld [vmem:[%s235 + $0xa58] sm:$0xff]
                  %300 = vst [vmem:[%s236 + $0x788] sm:$0xff] %v299
                  %s301 = sadd.s32 1, %s234
                  %p302 = scmp.ge.s32.totalorder %s301, %s227
                  %s303 = scalar_select %p302, 0, %s301
                  %s304 = smul.u32 %s303, 16
                  %s305 = smul.u32 %s303, 16
                  %s306 = scalar_lea.vmem %s167, %s304
                  %s307 = scalar_lea.vmem %s159, %s305 [#allocation2]
                $region60: #{net_forward.4} parent=54 // loop_footer
                  %s231 = sadd.s32 %s229, 1
                $region61: #{net_forward.4} parent=54 // loop_footer_branch
                  %228 = sbr.rel target = $region57
                $region62: #{net_forward.4} parent=54 // loop_exit
                  _
                %s308 = sshrl.u32 %s226, 1
                %s309 = sand.u32 %s226, 1
                %s310 = smul.u32 %s308, 2
                %s311 = smul.u32 8, %s310
                %s312 = scalar_lea.vmem %s167, %s311
                %s313 = smul.u32 8, %s310
                %s314 = scalar_lea.vmem %s159, %s313 [#allocation2]
                // While loop
                $region63: #{net_forward.4} parent=54 // loop_pre_header
                  _
                $region64: #{net_forward.4} parent=54 // loop_header
                  %s316 = sphi 0, %s318
                  %p317 = scmp.ge.s32.totalorder %s316, %s309
                  %s321 = sphi 0, %s358
                  %s322 = sphi %s312, %s361
                  %s323 = sphi %s314, %s362
                $region65: #{net_forward.4} parent=54 // loop_header_branch
                  %320 = sbr.rel (%p317) target = $region69
                $region66: #{net_forward.4} parent=54 // loop_body
                  %v324 = vld [vmem:[%s322] sm:$0xff]
                  %325 = vst [vmem:[%s323] sm:$0xff] %v324
                  %v326 = vld [vmem:[%s322 + $0xb0] sm:$0xff]
                  %327 = vst [vmem:[%s323 + $0x80] sm:$0xff] %v326
                  %v328 = vld [vmem:[%s322 + $0x160] sm:$0xff]
                  %329 = vst [vmem:[%s323 + $0x100] sm:$0xff] %v328
                  %v330 = vld [vmem:[%s322 + $0x210] sm:$0xff]
                  %331 = vst [vmem:[%s323 + $0x180] sm:$0xff] %v330
                  %v332 = vld [vmem:[%s322 + $0x2c0] sm:$0xff]
                  %333 = vst [vmem:[%s323 + $0x200] sm:$0xff] %v332
                  %v334 = vld [vmem:[%s322 + $0x370] sm:$0xff]
                  %335 = vst [vmem:[%s323 + $0x280] sm:$0xff] %v334
                  %v336 = vld [vmem:[%s322 + $0x420] sm:$0xff]
                  %337 = vst [vmem:[%s323 + $0x300] sm:$0xff] %v336
                  %v338 = vld [vmem:[%s322 + $0x4d0] sm:$0xff]
                  %339 = vst [vmem:[%s323 + $0x380] sm:$0xff] %v338
                  %v340 = vld [vmem:[%s322 + $0x580] sm:$0xff]
                  %341 = vst [vmem:[%s323 + $0x400] sm:$0xff] %v340
                  %v342 = vld [vmem:[%s322 + $0x630] sm:$0xff]
                  %343 = vst [vmem:[%s323 + $0x480] sm:$0xff] %v342
                  %v344 = vld [vmem:[%s322 + $0x6e0] sm:$0xff]
                  %345 = vst [vmem:[%s323 + $0x500] sm:$0xff] %v344
                  %v346 = vld [vmem:[%s322 + $0x790] sm:$0xff]
                  %347 = vst [vmem:[%s323 + $0x580] sm:$0xff] %v346
                  %v348 = vld [vmem:[%s322 + $0x840] sm:$0xff]
                  %349 = vst [vmem:[%s323 + $0x600] sm:$0xff] %v348
                  %v350 = vld [vmem:[%s322 + $0x8f0] sm:$0xff]
                  %351 = vst [vmem:[%s323 + $0x680] sm:$0xff] %v350
                  %v352 = vld [vmem:[%s322 + $0x9a0] sm:$0xff]
                  %353 = vst [vmem:[%s323 + $0x700] sm:$0xff] %v352
                  %v354 = vld [vmem:[%s322 + $0xa50] sm:$0xff]
                  %355 = vst [vmem:[%s323 + $0x780] sm:$0xff] %v354
                  %s356 = sadd.s32 1, %s321
                  %p357 = scmp.ge.s32.totalorder %s356, %s309
                  %s358 = scalar_select %p357, 0, %s356
                  %s359 = smul.u32 %s358, 8
                  %s360 = smul.u32 %s358, 8
                  %s361 = scalar_lea.vmem %s312, %s359
                  %s362 = scalar_lea.vmem %s314, %s360 [#allocation2]
                $region67: #{net_forward.4} parent=54 // loop_footer
                  %s318 = sadd.s32 %s316, 1
                $region68: #{net_forward.4} parent=54 // loop_footer_branch
                  %315 = sbr.rel target = $region64
                $region69: #{net_forward.4} parent=54 // loop_exit
                  _
              $region55: #{net_forward.4} parent=39 // pred_fallthru
                _
              %p363 = pneg %p222
              // Predicated region
              $region70: #{net_forward.4} parent=39 // pred_check
                _
              $region71: #{net_forward.4} parent=39 // pred_check_branch
                %365 = sbr.rel (%p222) target = $region73
              $region72: #{net_forward.4} parent=39 // pred_region
                %s366 = sand.u32 %s168, 7
                %s367 = ssub.s32 %s168, %s366
                %s368 = scalar_lea.vmem %s167, %s367
                %s369 = ssub.s32 %s168, %s366
                %s370 = scalar_lea.vmem %s159, %s369 [#allocation2]
                %s371 = sshrl.u32 %s168, 3
                %s372 = sshrl.u32 %s371, 1
                // While loop
                $region74: #{net_forward.4} parent=72 // loop_pre_header
                  _
                $region75: #{net_forward.4} parent=72 // loop_header
                  %s374 = sphi 0, %s376
                  %p375 = scmp.ge.s32.totalorder %s374, %s372
                  %s379 = sphi 0, %s448
                  %s380 = sphi %s167, %s451
                  %s381 = sphi %s159, %s452
                $region76: #{net_forward.4} parent=72 // loop_header_branch
                  %378 = sbr.rel (%p375) target = $region80
                $region77: #{net_forward.4} parent=72 // loop_body
                  %v382 = vld [vmem:[%s380] sm:$0xff]
                  %383 = vst [vmem:[%s381] sm:$0xff] %v382
                  %v384 = vld [vmem:[%s380 + $0x8] sm:$0xff]
                  %385 = vst [vmem:[%s381 + $0x8] sm:$0xff] %v384
                  %v386 = vld [vmem:[%s380 + $0xb0] sm:$0xff]
                  %387 = vst [vmem:[%s381 + $0x80] sm:$0xff] %v386
                  %v388 = vld [vmem:[%s380 + $0xb8] sm:$0xff]
                  %389 = vst [vmem:[%s381 + $0x88] sm:$0xff] %v388
                  %v390 = vld [vmem:[%s380 + $0x160] sm:$0xff]
                  %391 = vst [vmem:[%s381 + $0x100] sm:$0xff] %v390
                  %v392 = vld [vmem:[%s380 + $0x168] sm:$0xff]
                  %393 = vst [vmem:[%s381 + $0x108] sm:$0xff] %v392
                  %v394 = vld [vmem:[%s380 + $0x210] sm:$0xff]
                  %395 = vst [vmem:[%s381 + $0x180] sm:$0xff] %v394
                  %v396 = vld [vmem:[%s380 + $0x218] sm:$0xff]
                  %397 = vst [vmem:[%s381 + $0x188] sm:$0xff] %v396
                  %v398 = vld [vmem:[%s380 + $0x2c0] sm:$0xff]
                  %399 = vst [vmem:[%s381 + $0x200] sm:$0xff] %v398
                  %v400 = vld [vmem:[%s380 + $0x2c8] sm:$0xff]
                  %401 = vst [vmem:[%s381 + $0x208] sm:$0xff] %v400
                  %v402 = vld [vmem:[%s380 + $0x370] sm:$0xff]
                  %403 = vst [vmem:[%s381 + $0x280] sm:$0xff] %v402
                  %v404 = vld [vmem:[%s380 + $0x378] sm:$0xff]
                  %405 = vst [vmem:[%s381 + $0x288] sm:$0xff] %v404
                  %v406 = vld [vmem:[%s380 + $0x420] sm:$0xff]
                  %407 = vst [vmem:[%s381 + $0x300] sm:$0xff] %v406
                  %v408 = vld [vmem:[%s380 + $0x428] sm:$0xff]
                  %409 = vst [vmem:[%s381 + $0x308] sm:$0xff] %v408
                  %v410 = vld [vmem:[%s380 + $0x4d0] sm:$0xff]
                  %411 = vst [vmem:[%s381 + $0x380] sm:$0xff] %v410
                  %v412 = vld [vmem:[%s380 + $0x4d8] sm:$0xff]
                  %413 = vst [vmem:[%s381 + $0x388] sm:$0xff] %v412
                  %v414 = vld [vmem:[%s380 + $0x580] sm:$0xff]
                  %415 = vst [vmem:[%s381 + $0x400] sm:$0xff] %v414
                  %v416 = vld [vmem:[%s380 + $0x588] sm:$0xff]
                  %417 = vst [vmem:[%s381 + $0x408] sm:$0xff] %v416
                  %v418 = vld [vmem:[%s380 + $0x630] sm:$0xff]
                  %419 = vst [vmem:[%s381 + $0x480] sm:$0xff] %v418
                  %v420 = vld [vmem:[%s380 + $0x638] sm:$0xff]
                  %421 = vst [vmem:[%s381 + $0x488] sm:$0xff] %v420
                  %v422 = vld [vmem:[%s380 + $0x6e0] sm:$0xff]
                  %423 = vst [vmem:[%s381 + $0x500] sm:$0xff] %v422
                  %v424 = vld [vmem:[%s380 + $0x6e8] sm:$0xff]
                  %425 = vst [vmem:[%s381 + $0x508] sm:$0xff] %v424
                  %v426 = vld [vmem:[%s380 + $0x790] sm:$0xff]
                  %427 = vst [vmem:[%s381 + $0x580] sm:$0xff] %v426
                  %v428 = vld [vmem:[%s380 + $0x798] sm:$0xff]
                  %429 = vst [vmem:[%s381 + $0x588] sm:$0xff] %v428
                  %v430 = vld [vmem:[%s380 + $0x840] sm:$0xff]
                  %431 = vst [vmem:[%s381 + $0x600] sm:$0xff] %v430
                  %v432 = vld [vmem:[%s380 + $0x848] sm:$0xff]
                  %433 = vst [vmem:[%s381 + $0x608] sm:$0xff] %v432
                  %v434 = vld [vmem:[%s380 + $0x8f0] sm:$0xff]
                  %435 = vst [vmem:[%s381 + $0x680] sm:$0xff] %v434
                  %v436 = vld [vmem:[%s380 + $0x8f8] sm:$0xff]
                  %437 = vst [vmem:[%s381 + $0x688] sm:$0xff] %v436
                  %v438 = vld [vmem:[%s380 + $0x9a0] sm:$0xff]
                  %439 = vst [vmem:[%s381 + $0x700] sm:$0xff] %v438
                  %v440 = vld [vmem:[%s380 + $0x9a8] sm:$0xff]
                  %441 = vst [vmem:[%s381 + $0x708] sm:$0xff] %v440
                  %v442 = vld [vmem:[%s380 + $0xa50] sm:$0xff]
                  %443 = vst [vmem:[%s381 + $0x780] sm:$0xff] %v442
                  %v444 = vld [vmem:[%s380 + $0xa58] sm:$0xff]
                  %445 = vst [vmem:[%s381 + $0x788] sm:$0xff] %v444
                  %s446 = sadd.s32 1, %s379
                  %p447 = scmp.ge.s32.totalorder %s446, %s372
                  %s448 = scalar_select %p447, 0, %s446
                  %s449 = smul.u32 %s448, 16
                  %s450 = smul.u32 %s448, 16
                  %s451 = scalar_lea.vmem %s167, %s449
                  %s452 = scalar_lea.vmem %s159, %s450 [#allocation2]
                $region78: #{net_forward.4} parent=72 // loop_footer
                  %s376 = sadd.s32 %s374, 1
                $region79: #{net_forward.4} parent=72 // loop_footer_branch
                  %373 = sbr.rel target = $region75
                $region80: #{net_forward.4} parent=72 // loop_exit
                  _
                %s453 = sshrl.u32 %s371, 1
                %s454 = sand.u32 %s371, 1
                %s455 = smul.u32 %s453, 2
                %s456 = smul.u32 8, %s455
                %s457 = scalar_lea.vmem %s167, %s456
                %s458 = smul.u32 8, %s455
                %s459 = scalar_lea.vmem %s159, %s458 [#allocation2]
                // While loop
                $region81: #{net_forward.4} parent=72 // loop_pre_header
                  _
                $region82: #{net_forward.4} parent=72 // loop_header
                  %s461 = sphi 0, %s463
                  %p462 = scmp.ge.s32.totalorder %s461, %s454
                  %s466 = sphi 0, %s503
                  %s467 = sphi %s457, %s506
                  %s468 = sphi %s459, %s507
                $region83: #{net_forward.4} parent=72 // loop_header_branch
                  %465 = sbr.rel (%p462) target = $region87
                $region84: #{net_forward.4} parent=72 // loop_body
                  %v469 = vld [vmem:[%s467] sm:$0xff]
                  %470 = vst [vmem:[%s468] sm:$0xff] %v469
                  %v471 = vld [vmem:[%s467 + $0xb0] sm:$0xff]
                  %472 = vst [vmem:[%s468 + $0x80] sm:$0xff] %v471
                  %v473 = vld [vmem:[%s467 + $0x160] sm:$0xff]
                  %474 = vst [vmem:[%s468 + $0x100] sm:$0xff] %v473
                  %v475 = vld [vmem:[%s467 + $0x210] sm:$0xff]
                  %476 = vst [vmem:[%s468 + $0x180] sm:$0xff] %v475
                  %v477 = vld [vmem:[%s467 + $0x2c0] sm:$0xff]
                  %478 = vst [vmem:[%s468 + $0x200] sm:$0xff] %v477
                  %v479 = vld [vmem:[%s467 + $0x370] sm:$0xff]
                  %480 = vst [vmem:[%s468 + $0x280] sm:$0xff] %v479
                  %v481 = vld [vmem:[%s467 + $0x420] sm:$0xff]
                  %482 = vst [vmem:[%s468 + $0x300] sm:$0xff] %v481
                  %v483 = vld [vmem:[%s467 + $0x4d0] sm:$0xff]
                  %484 = vst [vmem:[%s468 + $0x380] sm:$0xff] %v483
                  %v485 = vld [vmem:[%s467 + $0x580] sm:$0xff]
                  %486 = vst [vmem:[%s468 + $0x400] sm:$0xff] %v485
                  %v487 = vld [vmem:[%s467 + $0x630] sm:$0xff]
                  %488 = vst [vmem:[%s468 + $0x480] sm:$0xff] %v487
                  %v489 = vld [vmem:[%s467 + $0x6e0] sm:$0xff]
                  %490 = vst [vmem:[%s468 + $0x500] sm:$0xff] %v489
                  %v491 = vld [vmem:[%s467 + $0x790] sm:$0xff]
                  %492 = vst [vmem:[%s468 + $0x580] sm:$0xff] %v491
                  %v493 = vld [vmem:[%s467 + $0x840] sm:$0xff]
                  %494 = vst [vmem:[%s468 + $0x600] sm:$0xff] %v493
                  %v495 = vld [vmem:[%s467 + $0x8f0] sm:$0xff]
                  %496 = vst [vmem:[%s468 + $0x680] sm:$0xff] %v495
                  %v497 = vld [vmem:[%s467 + $0x9a0] sm:$0xff]
                  %498 = vst [vmem:[%s468 + $0x700] sm:$0xff] %v497
                  %v499 = vld [vmem:[%s467 + $0xa50] sm:$0xff]
                  %500 = vst [vmem:[%s468 + $0x780] sm:$0xff] %v499
                  %s501 = sadd.s32 1, %s466
                  %p502 = scmp.ge.s32.totalorder %s501, %s454
                  %s503 = scalar_select %p502, 0, %s501
                  %s504 = smul.u32 %s503, 8
                  %s505 = smul.u32 %s503, 8
                  %s506 = scalar_lea.vmem %s457, %s504
                  %s507 = scalar_lea.vmem %s459, %s505 [#allocation2]
                $region85: #{net_forward.4} parent=72 // loop_footer
                  %s463 = sadd.s32 %s461, 1
                $region86: #{net_forward.4} parent=72 // loop_footer_branch
                  %460 = sbr.rel target = $region82
                $region87: #{net_forward.4} parent=72 // loop_exit
                  _
                %s508 = sshll.u32 1, %s366
                %s509 = ssub.s32 %s508, 1
                loop: start=0, step=1, limit=1
                $region88: #{net_forward.4} parent=72 // loop_pre_header
                  _
                $region89: #{net_forward.4} parent=72 // loop_header
                  %s511 = sphi 0, %s515
                  %p512 = scmp.ge.s32.totalorder %s511, 1
                  %s516 = sphi %s368, %s368
                  %s517 = sphi %s370, %s370
                $region90: #{net_forward.4} parent=72 // loop_header_branch
                  %514 = sbr.rel (%p512) target = $region94
                $region91: #{net_forward.4} parent=72 // loop_body
                  %v518 = vld [vmem:[%s516] sm:%s509]
                  %519 = vst [vmem:[%s517] sm:%s509] %v518
                  %v520 = vld [vmem:[%s516 + $0xb0] sm:%s509]
                  %521 = vst [vmem:[%s517 + $0x80] sm:%s509] %v520
                  %v522 = vld [vmem:[%s516 + $0x160] sm:%s509]
                  %523 = vst [vmem:[%s517 + $0x100] sm:%s509] %v522
                  %v524 = vld [vmem:[%s516 + $0x210] sm:%s509]
                  %525 = vst [vmem:[%s517 + $0x180] sm:%s509] %v524
                  %v526 = vld [vmem:[%s516 + $0x2c0] sm:%s509]
                  %527 = vst [vmem:[%s517 + $0x200] sm:%s509] %v526
                  %v528 = vld [vmem:[%s516 + $0x370] sm:%s509]
                  %529 = vst [vmem:[%s517 + $0x280] sm:%s509] %v528
                  %v530 = vld [vmem:[%s516 + $0x420] sm:%s509]
                  %531 = vst [vmem:[%s517 + $0x300] sm:%s509] %v530
                  %v532 = vld [vmem:[%s516 + $0x4d0] sm:%s509]
                  %533 = vst [vmem:[%s517 + $0x380] sm:%s509] %v532
                  %v534 = vld [vmem:[%s516 + $0x580] sm:%s509]
                  %535 = vst [vmem:[%s517 + $0x400] sm:%s509] %v534
                  %v536 = vld [vmem:[%s516 + $0x630] sm:%s509]
                  %537 = vst [vmem:[%s517 + $0x480] sm:%s509] %v536
                  %v538 = vld [vmem:[%s516 + $0x6e0] sm:%s509]
                  %539 = vst [vmem:[%s517 + $0x500] sm:%s509] %v538
                  %v540 = vld [vmem:[%s516 + $0x790] sm:%s509]
                  %541 = vst [vmem:[%s517 + $0x580] sm:%s509] %v540
                  %v542 = vld [vmem:[%s516 + $0x840] sm:%s509]
                  %543 = vst [vmem:[%s517 + $0x600] sm:%s509] %v542
                  %v544 = vld [vmem:[%s516 + $0x8f0] sm:%s509]
                  %545 = vst [vmem:[%s517 + $0x680] sm:%s509] %v544
                  %v546 = vld [vmem:[%s516 + $0x9a0] sm:%s509]
                  %547 = vst [vmem:[%s517 + $0x700] sm:%s509] %v546
                  %v548 = vld [vmem:[%s516 + $0xa50] sm:%s509]
                  %549 = vst [vmem:[%s517 + $0x780] sm:%s509] %v548
                $region92: #{net_forward.4} parent=72 // loop_footer
                  %s515 = sadd.s32 1, %s511
                $region93: #{net_forward.4} parent=72 // loop_footer_branch
                  %510 = sbr.rel target = $region89
                $region94: #{net_forward.4} parent=72 // loop_exit
                  _
              $region73: #{net_forward.4} parent=39 // pred_fallthru
                _
            $region40: #{net_forward.4} parent=35 // pred_fallthru
              _
            // Predicated region
            $region41: #{net_forward.4} parent=35 // pred_check
              %p176 = pneg %p172
            $region42: #{net_forward.4} parent=35 // pred_check_branch
              %178 = sbr.rel (%p176) target = $region44
            $region43: #{net_forward.4} parent=35 // pred_region
              %s179 = sshll.u32 1, %s168
              %s180 = ssub.s32 %s179, 1
              loop: start=0, step=1, limit=1
              $region45: #{net_forward.4} parent=43 // loop_pre_header
                _
              $region46: #{net_forward.4} parent=43 // loop_header
                %s182 = sphi 0, %s186
                %p183 = scmp.ge.s32.totalorder %s182, 1
                %s187 = sphi %s167, %s167
                %s188 = sphi %s159, %s159
              $region47: #{net_forward.4} parent=43 // loop_header_branch
                %185 = sbr.rel (%p183) target = $region51
              $region48: #{net_forward.4} parent=43 // loop_body
                %v189 = vld [vmem:[%s187] sm:%s180]
                %190 = vst [vmem:[%s188] sm:%s180] %v189
                %v191 = vld [vmem:[%s187 + $0xb0] sm:%s180]
                %192 = vst [vmem:[%s188 + $0x80] sm:%s180] %v191
                %v193 = vld [vmem:[%s187 + $0x160] sm:%s180]
                %194 = vst [vmem:[%s188 + $0x100] sm:%s180] %v193
                %v195 = vld [vmem:[%s187 + $0x210] sm:%s180]
                %196 = vst [vmem:[%s188 + $0x180] sm:%s180] %v195
                %v197 = vld [vmem:[%s187 + $0x2c0] sm:%s180]
                %198 = vst [vmem:[%s188 + $0x200] sm:%s180] %v197
                %v199 = vld [vmem:[%s187 + $0x370] sm:%s180]
                %200 = vst [vmem:[%s188 + $0x280] sm:%s180] %v199
                %v201 = vld [vmem:[%s187 + $0x420] sm:%s180]
                %202 = vst [vmem:[%s188 + $0x300] sm:%s180] %v201
                %v203 = vld [vmem:[%s187 + $0x4d0] sm:%s180]
                %204 = vst [vmem:[%s188 + $0x380] sm:%s180] %v203
                %v205 = vld [vmem:[%s187 + $0x580] sm:%s180]
                %206 = vst [vmem:[%s188 + $0x400] sm:%s180] %v205
                %v207 = vld [vmem:[%s187 + $0x630] sm:%s180]
                %208 = vst [vmem:[%s188 + $0x480] sm:%s180] %v207
                %v209 = vld [vmem:[%s187 + $0x6e0] sm:%s180]
                %210 = vst [vmem:[%s188 + $0x500] sm:%s180] %v209
                %v211 = vld [vmem:[%s187 + $0x790] sm:%s180]
                %212 = vst [vmem:[%s188 + $0x580] sm:%s180] %v211
                %v213 = vld [vmem:[%s187 + $0x840] sm:%s180]
                %214 = vst [vmem:[%s188 + $0x600] sm:%s180] %v213
                %v215 = vld [vmem:[%s187 + $0x8f0] sm:%s180]
                %216 = vst [vmem:[%s188 + $0x680] sm:%s180] %v215
                %v217 = vld [vmem:[%s187 + $0x9a0] sm:%s180]
                %218 = vst [vmem:[%s188 + $0x700] sm:%s180] %v217
                %v219 = vld [vmem:[%s187 + $0xa50] sm:%s180]
                %220 = vst [vmem:[%s188 + $0x780] sm:%s180] %v219
              $region49: #{net_forward.4} parent=43 // loop_footer
                %s186 = sadd.s32 1, %s182
              $region50: #{net_forward.4} parent=43 // loop_footer_branch
                %181 = sbr.rel target = $region46
              $region51: #{net_forward.4} parent=43 // loop_exit
                _
            $region44: #{net_forward.4} parent=35 // pred_fallthru
              _
          $region36: #{net_forward.4} parent=31 // pred_fallthru
            _
          %550 = vnop
        $region32: #{net_forward.4} parent=27 // pred_fallthru
          _
      $region28: #{net_forward.4} parent=5 // pred_fallthru
        _
      %p551 = scmp.le.s32.totalorder 1, %s10
      %p552 = scmp.lt.s32.totalorder %s10, 3
      %p553 = pnand %p551, %p552
      %p554 = pneg %p553
      // Predicated region
      $region95: #{net_forward.4} parent=5 // pred_check
        _
      $region96: #{net_forward.4} parent=5 // pred_check_branch
        %556 = sbr.rel (%p553) target = $region98
      $region97: #{net_forward.4} parent=5 // pred_region
        %s557 = ssub.s32 %s10, 1
        %s558 = sand.u32 %s23, 1
        %s559 = sand.u32 %s23, 1
        %s560 = smul.addr %s559, 2048
        %s561 = scalar_lea.vmem [#allocation2], %s560
        // Predicated region
        $region99: #{net_forward.4} parent=97 // pred_check
          %p562 = pneg %p36
        $region100: #{net_forward.4} parent=97 // pred_check_branch
          %564 = sbr.rel (%p562) target = $region102
        $region101: #{net_forward.4} parent=97 // pred_region
          _
        $region102: #{net_forward.4} parent=97 // pred_fallthru
          _
        %s565 = sand.u32 %s23, 1
        %s566 = sand.u32 %s23, 1
        %s567 = smul.addr %s566, 2048
        %s568 = scalar_lea.vmem [#allocation2], %s567
        %p569 = pneg %p36
        %p570 = pneg %p33
        %p571 = pneg %p57
        %p572 = pneg %p54
        %p573 = pneg %p78
        %p574 = pneg %p75
        %p575 = pneg %p99
        %p576 = pneg %p96
        %p577 = pneg %p125
        %p578 = pneg %p122
        %s579 = sand.u32 %s112, 1
        %s580 = sand.u32 %s112, 1
        %s581 = smul.addr %s580, 512
        %s582 = scalar_lea.vmem [#allocation3], %s581
        %s583 = smul.u32 32, %s15
        %s584 = ssub.s32 44, %s583
        %p585 = scmp.lt.s32.totalorder %s584, 32
        %s586 = scalar_select %p585, %s584, 32
        %s587 = smul.u32 64, %s586
        %s588 = smul.u32 32, %s15
        %s589 = ssub.s32 44, %s588
        %p590 = scmp.lt.s32.totalorder %s589, 32
        %s591 = scalar_select %p590, %s589, 32
        %s592 = smul.u32 16, %s591
        %v594 = vld [vmem:[%s1] sm:$0xf]
        %v595 = vld [vmem:[%s1 + $0x4] sm:$0xf]
        %v596 = vld [vmem:[%s2] sm:$0xff]
        %v597 = vld [vmem:[%s2 + $0x8] sm:$0xff]
        %v598 = vld [vmem:[%s3] sm:$0xff]
        %v599 = vld [vmem:[%s3 + $0x8] sm:$0xff]
        %v600 = vld [vmem:[%s561] sm:$0xff]
        %v601 = vld [vmem:[%s561 + $0x8] sm:$0xff]
        %v602 = vld [vmem:[%s561 + $0x10] sm:$0xff]
        %v603 = vld [vmem:[%s561 + $0x18] sm:$0xff]
        %v604 = vld [vmem:[%s561 + $0x20] sm:$0xff]
        %v605 = vld [vmem:[%s561 + $0x28] sm:$0xff]
        %v606 = vld [vmem:[%s561 + $0x30] sm:$0xff]
        %v607 = vld [vmem:[%s561 + $0x38] sm:$0xff]
        %v608 = vld [vmem:[%s561 + $0x40] sm:$0xff]
        %v609 = vld [vmem:[%s561 + $0x48] sm:$0xff]
        %v610 = vld [vmem:[%s561 + $0x50] sm:$0xff]
        %v611 = vld [vmem:[%s561 + $0x58] sm:$0xff]
        %v612 = vld [vmem:[%s561 + $0x60] sm:$0xff]
        %v613 = vld [vmem:[%s561 + $0x68] sm:$0xff]
        %v614 = vld [vmem:[%s561 + $0x70] sm:$0xff]
        %v615 = vld [vmem:[%s561 + $0x78] sm:$0xff]
        %v616 = vld [vmem:[%s561 + $0x80] sm:$0xff]
        %v617 = vld [vmem:[%s561 + $0x88] sm:$0xff]
        %v618 = vld [vmem:[%s561 + $0x90] sm:$0xff]
        %v619 = vld [vmem:[%s561 + $0x98] sm:$0xff]
        %v620 = vld [vmem:[%s561 + $0xa0] sm:$0xff]
        %v621 = vld [vmem:[%s561 + $0xa8] sm:$0xff]
        %v622 = vld [vmem:[%s561 + $0xb0] sm:$0xff]
        %v623 = vld [vmem:[%s561 + $0xb8] sm:$0xff]
        %v624 = vld [vmem:[%s561 + $0xc0] sm:$0xff]
        %v625 = vld [vmem:[%s561 + $0xc8] sm:$0xff]
        %v626 = vld [vmem:[%s561 + $0xd0] sm:$0xff]
        %v627 = vld [vmem:[%s561 + $0xd8] sm:$0xff]
        %v628 = vld [vmem:[%s561 + $0xe0] sm:$0xff]
        %v629 = vld [vmem:[%s561 + $0xe8] sm:$0xff]
        %v630 = vld [vmem:[%s561 + $0xf0] sm:$0xff]
        %v631 = vld [vmem:[%s561 + $0xf8] sm:$0xff]
        %v632 = vld [vmem:[%s561 + $0x100] sm:$0xff]
        %v633 = vld [vmem:[%s561 + $0x108] sm:$0xff]
        %v634 = vld [vmem:[%s561 + $0x110] sm:$0xff]
        %v635 = vld [vmem:[%s561 + $0x118] sm:$0xff]
        %v636 = vld [vmem:[%s561 + $0x120] sm:$0xff]
        %v637 = vld [vmem:[%s561 + $0x128] sm:$0xff]
        %v638 = vld [vmem:[%s561 + $0x130] sm:$0xff]
        %v639 = vld [vmem:[%s561 + $0x138] sm:$0xff]
        %v640 = vld [vmem:[%s561 + $0x140] sm:$0xff]
        %v641 = vld [vmem:[%s561 + $0x148] sm:$0xff]
        %v642 = vld [vmem:[%s561 + $0x150] sm:$0xff]
        %v643 = vld [vmem:[%s561 + $0x158] sm:$0xff]
        %v644 = vld [vmem:[%s561 + $0x160] sm:$0xff]
        %v645 = vld [vmem:[%s561 + $0x168] sm:$0xff]
        %v646 = vld [vmem:[%s561 + $0x170] sm:$0xff]
        %v647 = vld [vmem:[%s561 + $0x178] sm:$0xff]
        %v648 = vld [vmem:[%s561 + $0x180] sm:$0x33]
        %v649 = vld [vmem:[%s561 + $0x188] sm:$0x33]
        %v650 = vld [vmem:[%s561 + $0x190] sm:$0x33]
        %v651 = vld [vmem:[%s561 + $0x198] sm:$0x33]
        %v652 = vld [vmem:[%s561 + $0x1a0] sm:$0x33]
        %v653 = vld [vmem:[%s561 + $0x1a8] sm:$0x33]
        %v654 = vld [vmem:[%s561 + $0x1b0] sm:$0x33]
        %v655 = vld [vmem:[%s561 + $0x1b8] sm:$0x33]
        %v656 = vld [vmem:[%s561 + $0x1c0] sm:$0x33]
        %v657 = vld [vmem:[%s561 + $0x1c8] sm:$0x33]
        %v658 = vld [vmem:[%s561 + $0x1d0] sm:$0x33]
        %v659 = vld [vmem:[%s561 + $0x1d8] sm:$0x33]
        %v660 = vld [vmem:[%s561 + $0x1e0] sm:$0x33]
        %v661 = vld [vmem:[%s561 + $0x1e8] sm:$0x33]
        %v662 = vld [vmem:[%s561 + $0x1f0] sm:$0x33]
        %v663 = vld [vmem:[%s561 + $0x1f8] sm:$0x33]
        %v666 = vunpack.c.l.b16 %v594
        %v667 = vunpack.c.l.b16 %v595
        %v668 = vpack.c.b16 %v667, %v666
        %v733 = vunpack.c.l.b16 %v600
        %v734 = vunpack.c.h.b16 %v600
        %v735 = vunpack.c.l.b16 %v601
        %v736 = vunpack.c.h.b16 %v601
        %v737 = vunpack.c.l.b16 %v602
        %v738 = vunpack.c.h.b16 %v602
        %v739 = vunpack.c.l.b16 %v603
        %v740 = vunpack.c.h.b16 %v603
        %v741 = vunpack.c.l.b16 %v604
        %v742 = vunpack.c.h.b16 %v604
        %v743 = vunpack.c.l.b16 %v605
        %v744 = vunpack.c.h.b16 %v605
        %v745 = vunpack.c.l.b16 %v606
        %v746 = vunpack.c.h.b16 %v606
        %v747 = vunpack.c.l.b16 %v607
        %v748 = vunpack.c.h.b16 %v607
        %v749 = vunpack.c.l.b16 %v608
        %v750 = vunpack.c.h.b16 %v608
        %v751 = vunpack.c.l.b16 %v609
        %v752 = vunpack.c.h.b16 %v609
        %v753 = vunpack.c.l.b16 %v610
        %v754 = vunpack.c.h.b16 %v610
        %v755 = vunpack.c.l.b16 %v611
        %v756 = vunpack.c.h.b16 %v611
        %v757 = vunpack.c.l.b16 %v612
        %v758 = vunpack.c.h.b16 %v612
        %v759 = vunpack.c.l.b16 %v613
        %v760 = vunpack.c.h.b16 %v613
        %v761 = vunpack.c.l.b16 %v614
        %v762 = vunpack.c.h.b16 %v614
        %v763 = vunpack.c.l.b16 %v615
        %v764 = vunpack.c.h.b16 %v615
        %v765 = vunpack.c.l.b16 %v616
        %v766 = vunpack.c.h.b16 %v616
        %v767 = vunpack.c.l.b16 %v617
        %v768 = vunpack.c.h.b16 %v617
        %v769 = vunpack.c.l.b16 %v618
        %v770 = vunpack.c.h.b16 %v618
        %v771 = vunpack.c.l.b16 %v619
        %v772 = vunpack.c.h.b16 %v619
        %v773 = vunpack.c.l.b16 %v620
        %v774 = vunpack.c.h.b16 %v620
        %v775 = vunpack.c.l.b16 %v621
        %v776 = vunpack.c.h.b16 %v621
        %v777 = vunpack.c.l.b16 %v622
        %v778 = vunpack.c.h.b16 %v622
        %v779 = vunpack.c.l.b16 %v623
        %v780 = vunpack.c.h.b16 %v623
        %v781 = vunpack.c.l.b16 %v624
        %v782 = vunpack.c.h.b16 %v624
        %v783 = vunpack.c.l.b16 %v625
        %v784 = vunpack.c.h.b16 %v625
        %v785 = vunpack.c.l.b16 %v626
        %v786 = vunpack.c.h.b16 %v626
        %v787 = vunpack.c.l.b16 %v627
        %v788 = vunpack.c.h.b16 %v627
        %v789 = vunpack.c.l.b16 %v628
        %v790 = vunpack.c.h.b16 %v628
        %v791 = vunpack.c.l.b16 %v629
        %v792 = vunpack.c.h.b16 %v629
        %v793 = vunpack.c.l.b16 %v630
        %v794 = vunpack.c.h.b16 %v630
        %v795 = vunpack.c.l.b16 %v631
        %v796 = vunpack.c.h.b16 %v631
        %v797 = vunpack.c.l.b16 %v632
        %v798 = vunpack.c.h.b16 %v632
        %v799 = vunpack.c.l.b16 %v633
        %v800 = vunpack.c.h.b16 %v633
        %v801 = vunpack.c.l.b16 %v634
        %v802 = vunpack.c.h.b16 %v634
        %v803 = vunpack.c.l.b16 %v635
        %v804 = vunpack.c.h.b16 %v635
        %v805 = vunpack.c.l.b16 %v636
        %v806 = vunpack.c.h.b16 %v636
        %v807 = vunpack.c.l.b16 %v637
        %v808 = vunpack.c.h.b16 %v637
        %v809 = vunpack.c.l.b16 %v638
        %v810 = vunpack.c.h.b16 %v638
        %v811 = vunpack.c.l.b16 %v639
        %v812 = vunpack.c.h.b16 %v639
        %v813 = vunpack.c.l.b16 %v640
        %v814 = vunpack.c.h.b16 %v640
        %v815 = vunpack.c.l.b16 %v641
        %v816 = vunpack.c.h.b16 %v641
        %v817 = vunpack.c.l.b16 %v642
        %v818 = vunpack.c.h.b16 %v642
        %v819 = vunpack.c.l.b16 %v643
        %v820 = vunpack.c.h.b16 %v643
        %v821 = vunpack.c.l.b16 %v644
        %v822 = vunpack.c.h.b16 %v644
        %v823 = vunpack.c.l.b16 %v645
        %v824 = vunpack.c.h.b16 %v645
        %v825 = vunpack.c.l.b16 %v646
        %v826 = vunpack.c.h.b16 %v646
        %v827 = vunpack.c.l.b16 %v647
        %v828 = vunpack.c.h.b16 %v647
        %v829 = vunpack.c.l.b16 %v648
        %v830 = vunpack.c.h.b16 %v648
        %v831 = vunpack.c.l.b16 %v649
        %v832 = vunpack.c.h.b16 %v649
        %v833 = vunpack.c.l.b16 %v650
        %v834 = vunpack.c.h.b16 %v650
        %v835 = vunpack.c.l.b16 %v651
        %v836 = vunpack.c.h.b16 %v651
        %v837 = vunpack.c.l.b16 %v652
        %v838 = vunpack.c.h.b16 %v652
        %v839 = vunpack.c.l.b16 %v653
        %v840 = vunpack.c.h.b16 %v653
        %v841 = vunpack.c.l.b16 %v654
        %v842 = vunpack.c.h.b16 %v654
        %v843 = vunpack.c.l.b16 %v655
        %v844 = vunpack.c.h.b16 %v655
        %v845 = vunpack.c.l.b16 %v656
        %v846 = vunpack.c.h.b16 %v656
        %v847 = vunpack.c.l.b16 %v657
        %v848 = vunpack.c.h.b16 %v657
        %v849 = vunpack.c.l.b16 %v658
        %v850 = vunpack.c.h.b16 %v658
        %v851 = vunpack.c.l.b16 %v659
        %v852 = vunpack.c.h.b16 %v659
        %v853 = vunpack.c.l.b16 %v660
        %v854 = vunpack.c.h.b16 %v660
        %v855 = vunpack.c.l.b16 %v661
        %v856 = vunpack.c.h.b16 %v661
        %v857 = vunpack.c.l.b16 %v662
        %v858 = vunpack.c.h.b16 %v662
        %v859 = vunpack.c.l.b16 %v663
        %v860 = vunpack.c.h.b16 %v663
        %v861 = vpack.c.b16 %v765, %v733
        %v862 = vpack.c.b16 %v766, %v734
        %v863 = vpack.c.b16 %v767, %v735
        %v864 = vpack.c.b16 %v768, %v736
        %v865 = vpack.c.b16 %v769, %v737
        %v866 = vpack.c.b16 %v770, %v738
        %v867 = vpack.c.b16 %v771, %v739
        %v868 = vpack.c.b16 %v772, %v740
        %v869 = vpack.c.b16 %v773, %v741
        %v870 = vpack.c.b16 %v774, %v742
        %v871 = vpack.c.b16 %v775, %v743
        %v872 = vpack.c.b16 %v776, %v744
        %v873 = vpack.c.b16 %v777, %v745
        %v874 = vpack.c.b16 %v778, %v746
        %v875 = vpack.c.b16 %v779, %v747
        %v876 = vpack.c.b16 %v780, %v748
        %v877 = vpack.c.b16 %v781, %v749
        %v878 = vpack.c.b16 %v782, %v750
        %v879 = vpack.c.b16 %v783, %v751
        %v880 = vpack.c.b16 %v784, %v752
        %v881 = vpack.c.b16 %v785, %v753
        %v882 = vpack.c.b16 %v786, %v754
        %v883 = vpack.c.b16 %v787, %v755
        %v884 = vpack.c.b16 %v788, %v756
        %v885 = vpack.c.b16 %v789, %v757
        %v886 = vpack.c.b16 %v790, %v758
        %v887 = vpack.c.b16 %v791, %v759
        %v888 = vpack.c.b16 %v792, %v760
        %v889 = vpack.c.b16 %v793, %v761
        %v890 = vpack.c.b16 %v794, %v762
        %v891 = vpack.c.b16 %v795, %v763
        %v892 = vpack.c.b16 %v796, %v764
        %v893 = vpack.c.b16 %v829, %v797
        %v894 = vpack.c.b16 %v830, %v798
        %v895 = vpack.c.b16 %v831, %v799
        %v896 = vpack.c.b16 %v832, %v800
        %v897 = vpack.c.b16 %v833, %v801
        %v898 = vpack.c.b16 %v834, %v802
        %v899 = vpack.c.b16 %v835, %v803
        %v900 = vpack.c.b16 %v836, %v804
        %v901 = vpack.c.b16 %v837, %v805
        %v902 = vpack.c.b16 %v838, %v806
        %v903 = vpack.c.b16 %v839, %v807
        %v904 = vpack.c.b16 %v840, %v808
        %v905 = vpack.c.b16 %v841, %v809
        %v906 = vpack.c.b16 %v842, %v810
        %v907 = vpack.c.b16 %v843, %v811
        %v908 = vpack.c.b16 %v844, %v812
        %v909 = vpack.c.b16 %v845, %v813
        %v910 = vpack.c.b16 %v846, %v814
        %v911 = vpack.c.b16 %v847, %v815
        %v912 = vpack.c.b16 %v848, %v816
        %v913 = vpack.c.b16 %v849, %v817
        %v914 = vpack.c.b16 %v850, %v818
        %v915 = vpack.c.b16 %v851, %v819
        %v916 = vpack.c.b16 %v852, %v820
        %v917 = vpack.c.b16 %v853, %v821
        %v918 = vpack.c.b16 %v854, %v822
        %v919 = vpack.c.b16 %v855, %v823
        %v920 = vpack.c.b16 %v856, %v824
        %v921 = vpack.c.b16 %v857, %v825
        %v922 = vpack.c.b16 %v858, %v826
        %v923 = vpack.c.b16 %v859, %v827
        %v924 = vpack.c.b16 %v860, %v828
        %vm957 = vcmask 220160
        %v959 = vsel %vm957, %v668, 0
        %vm961 = vcmask 1044480
        %vm962 = vcmask 1045504
        %v963 = vsel %vm961, 4294967295, 65535
        %v964 = vsel %vm962, %v963, 0
        %v966 = vand.u32 %v893, %v964
        %v969 = vand.u32 %v894, %v964
        %v972 = vand.u32 %v895, %v964
        %v975 = vand.u32 %v896, %v964
        %v978 = vand.u32 %v897, %v964
        %v981 = vand.u32 %v898, %v964
        %v984 = vand.u32 %v899, %v964
        %v987 = vand.u32 %v900, %v964
        %v990 = vand.u32 %v901, %v964
        %v993 = vand.u32 %v902, %v964
        %v996 = vand.u32 %v903, %v964
        %v999 = vand.u32 %v904, %v964
        %v1002 = vand.u32 %v905, %v964
        %v1005 = vand.u32 %v906, %v964
        %v1008 = vand.u32 %v907, %v964
        %v1011 = vand.u32 %v908, %v964
        %v1014 = vand.u32 %v909, %v964
        %v1017 = vand.u32 %v910, %v964
        %v1020 = vand.u32 %v911, %v964
        %v1023 = vand.u32 %v912, %v964
        %v1026 = vand.u32 %v913, %v964
        %v1029 = vand.u32 %v914, %v964
        %v1032 = vand.u32 %v915, %v964
        %v1035 = vand.u32 %v916, %v964
        %v1038 = vand.u32 %v917, %v964
        %v1041 = vand.u32 %v918, %v964
        %v1044 = vand.u32 %v919, %v964
        %v1047 = vand.u32 %v920, %v964
        %v1050 = vand.u32 %v921, %v964
        %v1053 = vand.u32 %v922, %v964
        %v1056 = vand.u32 %v923, %v964
        %v1059 = vand.u32 %v924, %v964
        %1061 = vmatpush.bf16.msra.mxu0 0
        %1062 = vmatpush.bf16.msra.mxu0 0
        %1063 = vmatpush.bf16.msra.mxu0 0
        %1064 = vmatpush.bf16.msra.mxu0 0
        %1065 = vmatpush.bf16.msra.mxu0 0
        %1066 = vmatpush.bf16.msra.mxu0 0
        %1067 = vmatpush.bf16.msra.mxu0 %v966
        %1068 = vmatpush.bf16.msra.mxu0 %v861
        %1069 = vmatmul.bf16.gmra.mxu0 %v959
        %v1070 = vpop.f32.mrf.mxu0
        %v1071 = vadd.f32 0.0, %v1070
        %v1072 = vpop.f32.mrf.mxu0
        %v1073 = vadd.f32 0.0, %v1072
        %1074 = vdwg.mxu0
        %1075 = vmatpush.bf16.msra.mxu0 0
        %1076 = vmatpush.bf16.msra.mxu0 0
        %1077 = vmatpush.bf16.msra.mxu0 0
        %1078 = vmatpush.bf16.msra.mxu0 0
        %1079 = vmatpush.bf16.msra.mxu0 0
        %1080 = vmatpush.bf16.msra.mxu0 0
        %1081 = vmatpush.bf16.msra.mxu0 %v969
        %1082 = vmatpush.bf16.msra.mxu0 %v862
        %1083 = vmatmul.bf16.gmra.mxu0 %v959
        %v1084 = vpop.f32.mrf.mxu0
        %v1085 = vadd.f32 0.0, %v1084
        %v1086 = vpop.f32.mrf.mxu0
        %v1087 = vadd.f32 0.0, %v1086
        %1088 = vdwg.mxu0
        %1089 = vmatpush.bf16.msra.mxu0 0
        %1090 = vmatpush.bf16.msra.mxu0 0
        %1091 = vmatpush.bf16.msra.mxu0 0
        %1092 = vmatpush.bf16.msra.mxu0 0
        %1093 = vmatpush.bf16.msra.mxu0 0
        %1094 = vmatpush.bf16.msra.mxu0 0
        %1095 = vmatpush.bf16.msra.mxu0 %v972
        %1096 = vmatpush.bf16.msra.mxu0 %v863
        %1097 = vmatmul.bf16.gmra.mxu0 %v959
        %v1098 = vpop.f32.mrf.mxu0
        %v1099 = vadd.f32 0.0, %v1098
        %v1100 = vpop.f32.mrf.mxu0
        %v1101 = vadd.f32 0.0, %v1100
        %1102 = vdwg.mxu0
        %1103 = vmatpush.bf16.msra.mxu0 0
        %1104 = vmatpush.bf16.msra.mxu0 0
        %1105 = vmatpush.bf16.msra.mxu0 0
        %1106 = vmatpush.bf16.msra.mxu0 0
        %1107 = vmatpush.bf16.msra.mxu0 0
        %1108 = vmatpush.bf16.msra.mxu0 0
        %1109 = vmatpush.bf16.msra.mxu0 %v975
        %1110 = vmatpush.bf16.msra.mxu0 %v864
        %1111 = vmatmul.bf16.gmra.mxu0 %v959
        %v1112 = vpop.f32.mrf.mxu0
        %v1113 = vadd.f32 0.0, %v1112
        %v1114 = vpop.f32.mrf.mxu0
        %v1115 = vadd.f32 0.0, %v1114
        %1116 = vdwg.mxu0
        %1117 = vmatpush.bf16.msra.mxu0 0
        %1118 = vmatpush.bf16.msra.mxu0 0
        %1119 = vmatpush.bf16.msra.mxu0 0
        %1120 = vmatpush.bf16.msra.mxu0 0
        %1121 = vmatpush.bf16.msra.mxu0 0
        %1122 = vmatpush.bf16.msra.mxu0 0
        %1123 = vmatpush.bf16.msra.mxu0 %v978
        %1124 = vmatpush.bf16.msra.mxu0 %v865
        %1125 = vmatmul.bf16.gmra.mxu0 %v959
        %v1126 = vpop.f32.mrf.mxu0
        %v1127 = vadd.f32 0.0, %v1126
        %v1128 = vpop.f32.mrf.mxu0
        %v1129 = vadd.f32 0.0, %v1128
        %1130 = vdwg.mxu0
        %1131 = vmatpush.bf16.msra.mxu0 0
        %1132 = vmatpush.bf16.msra.mxu0 0
        %1133 = vmatpush.bf16.msra.mxu0 0
        %1134 = vmatpush.bf16.msra.mxu0 0
        %1135 = vmatpush.bf16.msra.mxu0 0
        %1136 = vmatpush.bf16.msra.mxu0 0
        %1137 = vmatpush.bf16.msra.mxu0 %v981
        %1138 = vmatpush.bf16.msra.mxu0 %v866
        %1139 = vmatmul.bf16.gmra.mxu0 %v959
        %v1140 = vpop.f32.mrf.mxu0
        %v1141 = vadd.f32 0.0, %v1140
        %v1142 = vpop.f32.mrf.mxu0
        %v1143 = vadd.f32 0.0, %v1142
        %1144 = vdwg.mxu0
        %1145 = vmatpush.bf16.msra.mxu0 0
        %1146 = vmatpush.bf16.msra.mxu0 0
        %1147 = vmatpush.bf16.msra.mxu0 0
        %1148 = vmatpush.bf16.msra.mxu0 0
        %1149 = vmatpush.bf16.msra.mxu0 0
        %1150 = vmatpush.bf16.msra.mxu0 0
        %1151 = vmatpush.bf16.msra.mxu0 %v984
        %1152 = vmatpush.bf16.msra.mxu0 %v867
        %1153 = vmatmul.bf16.gmra.mxu0 %v959
        %v1154 = vpop.f32.mrf.mxu0
        %v1155 = vadd.f32 0.0, %v1154
        %v1156 = vpop.f32.mrf.mxu0
        %v1157 = vadd.f32 0.0, %v1156
        %1158 = vdwg.mxu0
        %1159 = vmatpush.bf16.msra.mxu0 0
        %1160 = vmatpush.bf16.msra.mxu0 0
        %1161 = vmatpush.bf16.msra.mxu0 0
        %1162 = vmatpush.bf16.msra.mxu0 0
        %1163 = vmatpush.bf16.msra.mxu0 0
        %1164 = vmatpush.bf16.msra.mxu0 0
        %1165 = vmatpush.bf16.msra.mxu0 %v987
        %1166 = vmatpush.bf16.msra.mxu0 %v868
        %1167 = vmatmul.bf16.gmra.mxu0 %v959
        %v1168 = vpop.f32.mrf.mxu0
        %v1169 = vadd.f32 0.0, %v1168
        %v1170 = vpop.f32.mrf.mxu0
        %v1171 = vadd.f32 0.0, %v1170
        %1172 = vdwg.mxu0
        %1173 = vmatpush.bf16.msra.mxu0 0
        %1174 = vmatpush.bf16.msra.mxu0 0
        %1175 = vmatpush.bf16.msra.mxu0 0
        %1176 = vmatpush.bf16.msra.mxu0 0
        %1177 = vmatpush.bf16.msra.mxu0 0
        %1178 = vmatpush.bf16.msra.mxu0 0
        %1179 = vmatpush.bf16.msra.mxu0 %v990
        %1180 = vmatpush.bf16.msra.mxu0 %v869
        %1181 = vmatmul.bf16.gmra.mxu0 %v959
        %v1182 = vpop.f32.mrf.mxu0
        %v1183 = vadd.f32 0.0, %v1182
        %v1184 = vpop.f32.mrf.mxu0
        %v1185 = vadd.f32 0.0, %v1184
        %1186 = vdwg.mxu0
        %1187 = vmatpush.bf16.msra.mxu0 0
        %1188 = vmatpush.bf16.msra.mxu0 0
        %1189 = vmatpush.bf16.msra.mxu0 0
        %1190 = vmatpush.bf16.msra.mxu0 0
        %1191 = vmatpush.bf16.msra.mxu0 0
        %1192 = vmatpush.bf16.msra.mxu0 0
        %1193 = vmatpush.bf16.msra.mxu0 %v993
        %1194 = vmatpush.bf16.msra.mxu0 %v870
        %1195 = vmatmul.bf16.gmra.mxu0 %v959
        %v1196 = vpop.f32.mrf.mxu0
        %v1197 = vadd.f32 0.0, %v1196
        %v1198 = vpop.f32.mrf.mxu0
        %v1199 = vadd.f32 0.0, %v1198
        %1200 = vdwg.mxu0
        %1201 = vmatpush.bf16.msra.mxu0 0
        %1202 = vmatpush.bf16.msra.mxu0 0
        %1203 = vmatpush.bf16.msra.mxu0 0
        %1204 = vmatpush.bf16.msra.mxu0 0
        %1205 = vmatpush.bf16.msra.mxu0 0
        %1206 = vmatpush.bf16.msra.mxu0 0
        %1207 = vmatpush.bf16.msra.mxu0 %v996
        %1208 = vmatpush.bf16.msra.mxu0 %v871
        %1209 = vmatmul.bf16.gmra.mxu0 %v959
        %v1210 = vpop.f32.mrf.mxu0
        %v1211 = vadd.f32 0.0, %v1210
        %v1212 = vpop.f32.mrf.mxu0
        %v1213 = vadd.f32 0.0, %v1212
        %1214 = vdwg.mxu0
        %1215 = vmatpush.bf16.msra.mxu0 0
        %1216 = vmatpush.bf16.msra.mxu0 0
        %1217 = vmatpush.bf16.msra.mxu0 0
        %1218 = vmatpush.bf16.msra.mxu0 0
        %1219 = vmatpush.bf16.msra.mxu0 0
        %1220 = vmatpush.bf16.msra.mxu0 0
        %1221 = vmatpush.bf16.msra.mxu0 %v999
        %1222 = vmatpush.bf16.msra.mxu0 %v872
        %1223 = vmatmul.bf16.gmra.mxu0 %v959
        %v1224 = vpop.f32.mrf.mxu0
        %v1225 = vadd.f32 0.0, %v1224
        %v1226 = vpop.f32.mrf.mxu0
        %v1227 = vadd.f32 0.0, %v1226
        %1228 = vdwg.mxu0
        %1229 = vmatpush.bf16.msra.mxu0 0
        %1230 = vmatpush.bf16.msra.mxu0 0
        %1231 = vmatpush.bf16.msra.mxu0 0
        %1232 = vmatpush.bf16.msra.mxu0 0
        %1233 = vmatpush.bf16.msra.mxu0 0
        %1234 = vmatpush.bf16.msra.mxu0 0
        %1235 = vmatpush.bf16.msra.mxu0 %v1002
        %1236 = vmatpush.bf16.msra.mxu0 %v873
        %1237 = vmatmul.bf16.gmra.mxu0 %v959
        %v1238 = vpop.f32.mrf.mxu0
        %v1239 = vadd.f32 0.0, %v1238
        %v1240 = vpop.f32.mrf.mxu0
        %v1241 = vadd.f32 0.0, %v1240
        %1242 = vdwg.mxu0
        %1243 = vmatpush.bf16.msra.mxu0 0
        %1244 = vmatpush.bf16.msra.mxu0 0
        %1245 = vmatpush.bf16.msra.mxu0 0
        %1246 = vmatpush.bf16.msra.mxu0 0
        %1247 = vmatpush.bf16.msra.mxu0 0
        %1248 = vmatpush.bf16.msra.mxu0 0
        %1249 = vmatpush.bf16.msra.mxu0 %v1005
        %1250 = vmatpush.bf16.msra.mxu0 %v874
        %1251 = vmatmul.bf16.gmra.mxu0 %v959
        %v1252 = vpop.f32.mrf.mxu0
        %v1253 = vadd.f32 0.0, %v1252
        %v1254 = vpop.f32.mrf.mxu0
        %v1255 = vadd.f32 0.0, %v1254
        %1256 = vdwg.mxu0
        %1257 = vmatpush.bf16.msra.mxu0 0
        %1258 = vmatpush.bf16.msra.mxu0 0
        %1259 = vmatpush.bf16.msra.mxu0 0
        %1260 = vmatpush.bf16.msra.mxu0 0
        %1261 = vmatpush.bf16.msra.mxu0 0
        %1262 = vmatpush.bf16.msra.mxu0 0
        %1263 = vmatpush.bf16.msra.mxu0 %v1008
        %1264 = vmatpush.bf16.msra.mxu0 %v875
        %1265 = vmatmul.bf16.gmra.mxu0 %v959
        %v1266 = vpop.f32.mrf.mxu0
        %v1267 = vadd.f32 0.0, %v1266
        %v1268 = vpop.f32.mrf.mxu0
        %v1269 = vadd.f32 0.0, %v1268
        %1270 = vdwg.mxu0
        %1271 = vmatpush.bf16.msra.mxu0 0
        %1272 = vmatpush.bf16.msra.mxu0 0
        %1273 = vmatpush.bf16.msra.mxu0 0
        %1274 = vmatpush.bf16.msra.mxu0 0
        %1275 = vmatpush.bf16.msra.mxu0 0
        %1276 = vmatpush.bf16.msra.mxu0 0
        %1277 = vmatpush.bf16.msra.mxu0 %v1011
        %1278 = vmatpush.bf16.msra.mxu0 %v876
        %1279 = vmatmul.bf16.gmra.mxu0 %v959
        %v1280 = vpop.f32.mrf.mxu0
        %v1281 = vadd.f32 0.0, %v1280
        %v1282 = vpop.f32.mrf.mxu0
        %v1283 = vadd.f32 0.0, %v1282
        %1284 = vdwg.mxu0
        %1285 = vmatpush.bf16.msra.mxu0 0
        %1286 = vmatpush.bf16.msra.mxu0 0
        %1287 = vmatpush.bf16.msra.mxu0 0
        %1288 = vmatpush.bf16.msra.mxu0 0
        %1289 = vmatpush.bf16.msra.mxu0 0
        %1290 = vmatpush.bf16.msra.mxu0 0
        %1291 = vmatpush.bf16.msra.mxu0 %v1014
        %1292 = vmatpush.bf16.msra.mxu0 %v877
        %1293 = vmatmul.bf16.gmra.mxu0 %v959
        %v1294 = vpop.f32.mrf.mxu0
        %v1295 = vadd.f32 0.0, %v1294
        %v1296 = vpop.f32.mrf.mxu0
        %v1297 = vadd.f32 0.0, %v1296
        %1298 = vdwg.mxu0
        %1299 = vmatpush.bf16.msra.mxu0 0
        %1300 = vmatpush.bf16.msra.mxu0 0
        %1301 = vmatpush.bf16.msra.mxu0 0
        %1302 = vmatpush.bf16.msra.mxu0 0
        %1303 = vmatpush.bf16.msra.mxu0 0
        %1304 = vmatpush.bf16.msra.mxu0 0
        %1305 = vmatpush.bf16.msra.mxu0 %v1017
        %1306 = vmatpush.bf16.msra.mxu0 %v878
        %1307 = vmatmul.bf16.gmra.mxu0 %v959
        %v1308 = vpop.f32.mrf.mxu0
        %v1309 = vadd.f32 0.0, %v1308
        %v1310 = vpop.f32.mrf.mxu0
        %v1311 = vadd.f32 0.0, %v1310
        %1312 = vdwg.mxu0
        %1313 = vmatpush.bf16.msra.mxu0 0
        %1314 = vmatpush.bf16.msra.mxu0 0
        %1315 = vmatpush.bf16.msra.mxu0 0
        %1316 = vmatpush.bf16.msra.mxu0 0
        %1317 = vmatpush.bf16.msra.mxu0 0
        %1318 = vmatpush.bf16.msra.mxu0 0
        %1319 = vmatpush.bf16.msra.mxu0 %v1020
        %1320 = vmatpush.bf16.msra.mxu0 %v879
        %1321 = vmatmul.bf16.gmra.mxu0 %v959
        %v1322 = vpop.f32.mrf.mxu0
        %v1323 = vadd.f32 0.0, %v1322
        %v1324 = vpop.f32.mrf.mxu0
        %v1325 = vadd.f32 0.0, %v1324
        %1326 = vdwg.mxu0
        %1327 = vmatpush.bf16.msra.mxu0 0
        %1328 = vmatpush.bf16.msra.mxu0 0
        %1329 = vmatpush.bf16.msra.mxu0 0
        %1330 = vmatpush.bf16.msra.mxu0 0
        %1331 = vmatpush.bf16.msra.mxu0 0
        %1332 = vmatpush.bf16.msra.mxu0 0
        %1333 = vmatpush.bf16.msra.mxu0 %v1023
        %1334 = vmatpush.bf16.msra.mxu0 %v880
        %1335 = vmatmul.bf16.gmra.mxu0 %v959
        %v1336 = vpop.f32.mrf.mxu0
        %v1337 = vadd.f32 0.0, %v1336
        %v1338 = vpop.f32.mrf.mxu0
        %v1339 = vadd.f32 0.0, %v1338
        %1340 = vdwg.mxu0
        %1341 = vmatpush.bf16.msra.mxu0 0
        %1342 = vmatpush.bf16.msra.mxu0 0
        %1343 = vmatpush.bf16.msra.mxu0 0
        %1344 = vmatpush.bf16.msra.mxu0 0
        %1345 = vmatpush.bf16.msra.mxu0 0
        %1346 = vmatpush.bf16.msra.mxu0 0
        %1347 = vmatpush.bf16.msra.mxu0 %v1026
        %1348 = vmatpush.bf16.msra.mxu0 %v881
        %1349 = vmatmul.bf16.gmra.mxu0 %v959
        %v1350 = vpop.f32.mrf.mxu0
        %v1351 = vadd.f32 0.0, %v1350
        %v1352 = vpop.f32.mrf.mxu0
        %v1353 = vadd.f32 0.0, %v1352
        %1354 = vdwg.mxu0
        %1355 = vmatpush.bf16.msra.mxu0 0
        %1356 = vmatpush.bf16.msra.mxu0 0
        %1357 = vmatpush.bf16.msra.mxu0 0
        %1358 = vmatpush.bf16.msra.mxu0 0
        %1359 = vmatpush.bf16.msra.mxu0 0
        %1360 = vmatpush.bf16.msra.mxu0 0
        %1361 = vmatpush.bf16.msra.mxu0 %v1029
        %1362 = vmatpush.bf16.msra.mxu0 %v882
        %1363 = vmatmul.bf16.gmra.mxu0 %v959
        %v1364 = vpop.f32.mrf.mxu0
        %v1365 = vadd.f32 0.0, %v1364
        %v1366 = vpop.f32.mrf.mxu0
        %v1367 = vadd.f32 0.0, %v1366
        %1368 = vdwg.mxu0
        %1369 = vmatpush.bf16.msra.mxu0 0
        %1370 = vmatpush.bf16.msra.mxu0 0
        %1371 = vmatpush.bf16.msra.mxu0 0
        %1372 = vmatpush.bf16.msra.mxu0 0
        %1373 = vmatpush.bf16.msra.mxu0 0
        %1374 = vmatpush.bf16.msra.mxu0 0
        %1375 = vmatpush.bf16.msra.mxu0 %v1032
        %1376 = vmatpush.bf16.msra.mxu0 %v883
        %1377 = vmatmul.bf16.gmra.mxu0 %v959
        %v1378 = vpop.f32.mrf.mxu0
        %v1379 = vadd.f32 0.0, %v1378
        %v1380 = vpop.f32.mrf.mxu0
        %v1381 = vadd.f32 0.0, %v1380
        %1382 = vdwg.mxu0
        %1383 = vmatpush.bf16.msra.mxu0 0
        %1384 = vmatpush.bf16.msra.mxu0 0
        %1385 = vmatpush.bf16.msra.mxu0 0
        %1386 = vmatpush.bf16.msra.mxu0 0
        %1387 = vmatpush.bf16.msra.mxu0 0
        %1388 = vmatpush.bf16.msra.mxu0 0
        %1389 = vmatpush.bf16.msra.mxu0 %v1035
        %1390 = vmatpush.bf16.msra.mxu0 %v884
        %1391 = vmatmul.bf16.gmra.mxu0 %v959
        %v1392 = vpop.f32.mrf.mxu0
        %v1393 = vadd.f32 0.0, %v1392
        %v1394 = vpop.f32.mrf.mxu0
        %v1395 = vadd.f32 0.0, %v1394
        %1396 = vdwg.mxu0
        %1397 = vmatpush.bf16.msra.mxu0 0
        %1398 = vmatpush.bf16.msra.mxu0 0
        %1399 = vmatpush.bf16.msra.mxu0 0
        %1400 = vmatpush.bf16.msra.mxu0 0
        %1401 = vmatpush.bf16.msra.mxu0 0
        %1402 = vmatpush.bf16.msra.mxu0 0
        %1403 = vmatpush.bf16.msra.mxu0 %v1038
        %1404 = vmatpush.bf16.msra.mxu0 %v885
        %1405 = vmatmul.bf16.gmra.mxu0 %v959
        %v1406 = vpop.f32.mrf.mxu0
        %v1407 = vadd.f32 0.0, %v1406
        %v1408 = vpop.f32.mrf.mxu0
        %v1409 = vadd.f32 0.0, %v1408
        %1410 = vdwg.mxu0
        %1411 = vmatpush.bf16.msra.mxu0 0
        %1412 = vmatpush.bf16.msra.mxu0 0
        %1413 = vmatpush.bf16.msra.mxu0 0
        %1414 = vmatpush.bf16.msra.mxu0 0
        %1415 = vmatpush.bf16.msra.mxu0 0
        %1416 = vmatpush.bf16.msra.mxu0 0
        %1417 = vmatpush.bf16.msra.mxu0 %v1041
        %1418 = vmatpush.bf16.msra.mxu0 %v886
        %1419 = vmatmul.bf16.gmra.mxu0 %v959
        %v1420 = vpop.f32.mrf.mxu0
        %v1421 = vadd.f32 0.0, %v1420
        %v1422 = vpop.f32.mrf.mxu0
        %v1423 = vadd.f32 0.0, %v1422
        %1424 = vdwg.mxu0
        %1425 = vmatpush.bf16.msra.mxu0 0
        %1426 = vmatpush.bf16.msra.mxu0 0
        %1427 = vmatpush.bf16.msra.mxu0 0
        %1428 = vmatpush.bf16.msra.mxu0 0
        %1429 = vmatpush.bf16.msra.mxu0 0
        %1430 = vmatpush.bf16.msra.mxu0 0
        %1431 = vmatpush.bf16.msra.mxu0 %v1044
        %1432 = vmatpush.bf16.msra.mxu0 %v887
        %1433 = vmatmul.bf16.gmra.mxu0 %v959
        %v1434 = vpop.f32.mrf.mxu0
        %v1435 = vadd.f32 0.0, %v1434
        %v1436 = vpop.f32.mrf.mxu0
        %v1437 = vadd.f32 0.0, %v1436
        %1438 = vdwg.mxu0
        %1439 = vmatpush.bf16.msra.mxu0 0
        %1440 = vmatpush.bf16.msra.mxu0 0
        %1441 = vmatpush.bf16.msra.mxu0 0
        %1442 = vmatpush.bf16.msra.mxu0 0
        %1443 = vmatpush.bf16.msra.mxu0 0
        %1444 = vmatpush.bf16.msra.mxu0 0
        %1445 = vmatpush.bf16.msra.mxu0 %v1047
        %1446 = vmatpush.bf16.msra.mxu0 %v888
        %1447 = vmatmul.bf16.gmra.mxu0 %v959
        %v1448 = vpop.f32.mrf.mxu0
        %v1449 = vadd.f32 0.0, %v1448
        %v1450 = vpop.f32.mrf.mxu0
        %v1451 = vadd.f32 0.0, %v1450
        %1452 = vdwg.mxu0
        %1453 = vmatpush.bf16.msra.mxu0 0
        %1454 = vmatpush.bf16.msra.mxu0 0
        %1455 = vmatpush.bf16.msra.mxu0 0
        %1456 = vmatpush.bf16.msra.mxu0 0
        %1457 = vmatpush.bf16.msra.mxu0 0
        %1458 = vmatpush.bf16.msra.mxu0 0
        %1459 = vmatpush.bf16.msra.mxu0 %v1050
        %1460 = vmatpush.bf16.msra.mxu0 %v889
        %1461 = vmatmul.bf16.gmra.mxu0 %v959
        %v1462 = vpop.f32.mrf.mxu0
        %v1463 = vadd.f32 0.0, %v1462
        %v1464 = vpop.f32.mrf.mxu0
        %v1465 = vadd.f32 0.0, %v1464
        %1466 = vdwg.mxu0
        %1467 = vmatpush.bf16.msra.mxu0 0
        %1468 = vmatpush.bf16.msra.mxu0 0
        %1469 = vmatpush.bf16.msra.mxu0 0
        %1470 = vmatpush.bf16.msra.mxu0 0
        %1471 = vmatpush.bf16.msra.mxu0 0
        %1472 = vmatpush.bf16.msra.mxu0 0
        %1473 = vmatpush.bf16.msra.mxu0 %v1053
        %1474 = vmatpush.bf16.msra.mxu0 %v890
        %1475 = vmatmul.bf16.gmra.mxu0 %v959
        %v1476 = vpop.f32.mrf.mxu0
        %v1477 = vadd.f32 0.0, %v1476
        %v1478 = vpop.f32.mrf.mxu0
        %v1479 = vadd.f32 0.0, %v1478
        %1480 = vdwg.mxu0
        %1481 = vmatpush.bf16.msra.mxu0 0
        %1482 = vmatpush.bf16.msra.mxu0 0
        %1483 = vmatpush.bf16.msra.mxu0 0
        %1484 = vmatpush.bf16.msra.mxu0 0
        %1485 = vmatpush.bf16.msra.mxu0 0
        %1486 = vmatpush.bf16.msra.mxu0 0
        %1487 = vmatpush.bf16.msra.mxu0 %v1056
        %1488 = vmatpush.bf16.msra.mxu0 %v891
        %1489 = vmatmul.bf16.gmra.mxu0 %v959
        %v1490 = vpop.f32.mrf.mxu0
        %v1491 = vadd.f32 0.0, %v1490
        %v1492 = vpop.f32.mrf.mxu0
        %v1493 = vadd.f32 0.0, %v1492
        %1494 = vdwg.mxu0
        %1495 = vmatpush.bf16.msra.mxu0 0
        %1496 = vmatpush.bf16.msra.mxu0 0
        %1497 = vmatpush.bf16.msra.mxu0 0
        %1498 = vmatpush.bf16.msra.mxu0 0
        %1499 = vmatpush.bf16.msra.mxu0 0
        %1500 = vmatpush.bf16.msra.mxu0 0
        %1501 = vmatpush.bf16.msra.mxu0 %v1059
        %1502 = vmatpush.bf16.msra.mxu0 %v892
        %1503 = vmatmul.bf16.gmra.mxu0 %v959
        %v1504 = vpop.f32.mrf.mxu0
        %v1505 = vadd.f32 0.0, %v1504
        %v1506 = vpop.f32.mrf.mxu0
        %v1507 = vadd.f32 0.0, %v1506
        %1508 = vdwg.mxu0
        %1510 = vset.pattern.permute.xlu0 0
        %1511 = vperm.xlu0 %1510, %v596
        %v1512 = vpop.permute.xlu0 %1511
        %1515 = vset.pattern.permute.xlu0 0
        %1516 = vperm.xlu0 %1515, %v597
        %v1517 = vpop.permute.xlu0 %1516
        %v1519 = vmul.f32 %v1071, %v1512
        %v1520 = vmul.f32 %v1085, %v1512
        %v1521 = vmul.f32 %v1099, %v1512
        %v1522 = vmul.f32 %v1113, %v1512
        %v1523 = vmul.f32 %v1127, %v1512
        %v1524 = vmul.f32 %v1141, %v1512
        %v1525 = vmul.f32 %v1155, %v1512
        %v1526 = vmul.f32 %v1169, %v1512
        %v1527 = vmul.f32 %v1183, %v1512
        %v1528 = vmul.f32 %v1197, %v1512
        %v1529 = vmul.f32 %v1211, %v1512
        %v1530 = vmul.f32 %v1225, %v1512
        %v1531 = vmul.f32 %v1239, %v1512
        %v1532 = vmul.f32 %v1253, %v1512
        %v1533 = vmul.f32 %v1267, %v1512
        %v1534 = vmul.f32 %v1281, %v1512
        %v1535 = vmul.f32 %v1295, %v1512
        %v1536 = vmul.f32 %v1309, %v1512
        %v1537 = vmul.f32 %v1323, %v1512
        %v1538 = vmul.f32 %v1337, %v1512
        %v1539 = vmul.f32 %v1351, %v1512
        %v1540 = vmul.f32 %v1365, %v1512
        %v1541 = vmul.f32 %v1379, %v1512
        %v1542 = vmul.f32 %v1393, %v1512
        %v1543 = vmul.f32 %v1407, %v1512
        %v1544 = vmul.f32 %v1421, %v1512
        %v1545 = vmul.f32 %v1435, %v1512
        %v1546 = vmul.f32 %v1449, %v1512
        %v1547 = vmul.f32 %v1463, %v1512
        %v1548 = vmul.f32 %v1477, %v1512
        %v1549 = vmul.f32 %v1491, %v1512
        %v1550 = vmul.f32 %v1505, %v1512
        %v1551 = vmul.f32 %v1073, %v1517
        %v1552 = vmul.f32 %v1087, %v1517
        %v1553 = vmul.f32 %v1101, %v1517
        %v1554 = vmul.f32 %v1115, %v1517
        %v1555 = vmul.f32 %v1129, %v1517
        %v1556 = vmul.f32 %v1143, %v1517
        %v1557 = vmul.f32 %v1157, %v1517
        %v1558 = vmul.f32 %v1171, %v1517
        %v1559 = vmul.f32 %v1185, %v1517
        %v1560 = vmul.f32 %v1199, %v1517
        %v1561 = vmul.f32 %v1213, %v1517
        %v1562 = vmul.f32 %v1227, %v1517
        %v1563 = vmul.f32 %v1241, %v1517
        %v1564 = vmul.f32 %v1255, %v1517
        %v1565 = vmul.f32 %v1269, %v1517
        %v1566 = vmul.f32 %v1283, %v1517
        %v1567 = vmul.f32 %v1297, %v1517
        %v1568 = vmul.f32 %v1311, %v1517
        %v1569 = vmul.f32 %v1325, %v1517
        %v1570 = vmul.f32 %v1339, %v1517
        %v1571 = vmul.f32 %v1353, %v1517
        %v1572 = vmul.f32 %v1367, %v1517
        %v1573 = vmul.f32 %v1381, %v1517
        %v1574 = vmul.f32 %v1395, %v1517
        %v1575 = vmul.f32 %v1409, %v1517
        %v1576 = vmul.f32 %v1423, %v1517
        %v1577 = vmul.f32 %v1437, %v1517
        %v1578 = vmul.f32 %v1451, %v1517
        %v1579 = vmul.f32 %v1465, %v1517
        %v1580 = vmul.f32 %v1479, %v1517
        %v1581 = vmul.f32 %v1493, %v1517
        %v1582 = vmul.f32 %v1507, %v1517
        %1584 = vset.pattern.permute.xlu0 0
        %1585 = vperm.xlu0 %1584, %v598
        %v1586 = vpop.permute.xlu0 %1585
        %1589 = vset.pattern.permute.xlu0 0
        %1590 = vperm.xlu0 %1589, %v599
        %v1591 = vpop.permute.xlu0 %1590
        %v1593 = vadd.f32 %v1519, %v1586
        %v1594 = vadd.f32 %v1520, %v1586
        %v1595 = vadd.f32 %v1521, %v1586
        %v1596 = vadd.f32 %v1522, %v1586
        %v1597 = vadd.f32 %v1523, %v1586
        %v1598 = vadd.f32 %v1524, %v1586
        %v1599 = vadd.f32 %v1525, %v1586
        %v1600 = vadd.f32 %v1526, %v1586
        %v1601 = vadd.f32 %v1527, %v1586
        %v1602 = vadd.f32 %v1528, %v1586
        %v1603 = vadd.f32 %v1529, %v1586
        %v1604 = vadd.f32 %v1530, %v1586
        %v1605 = vadd.f32 %v1531, %v1586
        %v1606 = vadd.f32 %v1532, %v1586
        %v1607 = vadd.f32 %v1533, %v1586
        %v1608 = vadd.f32 %v1534, %v1586
        %v1609 = vadd.f32 %v1535, %v1586
        %v1610 = vadd.f32 %v1536, %v1586
        %v1611 = vadd.f32 %v1537, %v1586
        %v1612 = vadd.f32 %v1538, %v1586
        %v1613 = vadd.f32 %v1539, %v1586
        %v1614 = vadd.f32 %v1540, %v1586
        %v1615 = vadd.f32 %v1541, %v1586
        %v1616 = vadd.f32 %v1542, %v1586
        %v1617 = vadd.f32 %v1543, %v1586
        %v1618 = vadd.f32 %v1544, %v1586
        %v1619 = vadd.f32 %v1545, %v1586
        %v1620 = vadd.f32 %v1546, %v1586
        %v1621 = vadd.f32 %v1547, %v1586
        %v1622 = vadd.f32 %v1548, %v1586
        %v1623 = vadd.f32 %v1549, %v1586
        %v1624 = vadd.f32 %v1550, %v1586
        %v1625 = vadd.f32 %v1551, %v1591
        %v1626 = vadd.f32 %v1552, %v1591
        %v1627 = vadd.f32 %v1553, %v1591
        %v1628 = vadd.f32 %v1554, %v1591
        %v1629 = vadd.f32 %v1555, %v1591
        %v1630 = vadd.f32 %v1556, %v1591
        %v1631 = vadd.f32 %v1557, %v1591
        %v1632 = vadd.f32 %v1558, %v1591
        %v1633 = vadd.f32 %v1559, %v1591
        %v1634 = vadd.f32 %v1560, %v1591
        %v1635 = vadd.f32 %v1561, %v1591
        %v1636 = vadd.f32 %v1562, %v1591
        %v1637 = vadd.f32 %v1563, %v1591
        %v1638 = vadd.f32 %v1564, %v1591
        %v1639 = vadd.f32 %v1565, %v1591
        %v1640 = vadd.f32 %v1566, %v1591
        %v1641 = vadd.f32 %v1567, %v1591
        %v1642 = vadd.f32 %v1568, %v1591
        %v1643 = vadd.f32 %v1569, %v1591
        %v1644 = vadd.f32 %v1570, %v1591
        %v1645 = vadd.f32 %v1571, %v1591
        %v1646 = vadd.f32 %v1572, %v1591
        %v1647 = vadd.f32 %v1573, %v1591
        %v1648 = vadd.f32 %v1574, %v1591
        %v1649 = vadd.f32 %v1575, %v1591
        %v1650 = vadd.f32 %v1576, %v1591
        %v1651 = vadd.f32 %v1577, %v1591
        %v1652 = vadd.f32 %v1578, %v1591
        %v1653 = vadd.f32 %v1579, %v1591
        %v1654 = vadd.f32 %v1580, %v1591
        %v1655 = vadd.f32 %v1581, %v1591
        %v1656 = vadd.f32 %v1582, %v1591
        %v1657 = vmax.f32 %v1593, 0.0
        %v1658 = vmax.f32 %v1594, 0.0
        %v1659 = vmax.f32 %v1595, 0.0
        %v1660 = vmax.f32 %v1596, 0.0
        %v1661 = vmax.f32 %v1597, 0.0
        %v1662 = vmax.f32 %v1598, 0.0
        %v1663 = vmax.f32 %v1599, 0.0
        %v1664 = vmax.f32 %v1600, 0.0
        %v1665 = vmax.f32 %v1601, 0.0
        %v1666 = vmax.f32 %v1602, 0.0
        %v1667 = vmax.f32 %v1603, 0.0
        %v1668 = vmax.f32 %v1604, 0.0
        %v1669 = vmax.f32 %v1605, 0.0
        %v1670 = vmax.f32 %v1606, 0.0
        %v1671 = vmax.f32 %v1607, 0.0
        %v1672 = vmax.f32 %v1608, 0.0
        %v1673 = vmax.f32 %v1609, 0.0
        %v1674 = vmax.f32 %v1610, 0.0
        %v1675 = vmax.f32 %v1611, 0.0
        %v1676 = vmax.f32 %v1612, 0.0
        %v1677 = vmax.f32 %v1613, 0.0
        %v1678 = vmax.f32 %v1614, 0.0
        %v1679 = vmax.f32 %v1615, 0.0
        %v1680 = vmax.f32 %v1616, 0.0
        %v1681 = vmax.f32 %v1617, 0.0
        %v1682 = vmax.f32 %v1618, 0.0
        %v1683 = vmax.f32 %v1619, 0.0
        %v1684 = vmax.f32 %v1620, 0.0
        %v1685 = vmax.f32 %v1621, 0.0
        %v1686 = vmax.f32 %v1622, 0.0
        %v1687 = vmax.f32 %v1623, 0.0
        %v1688 = vmax.f32 %v1624, 0.0
        %v1689 = vmax.f32 %v1625, 0.0
        %v1690 = vmax.f32 %v1626, 0.0
        %v1691 = vmax.f32 %v1627, 0.0
        %v1692 = vmax.f32 %v1628, 0.0
        %v1693 = vmax.f32 %v1629, 0.0
        %v1694 = vmax.f32 %v1630, 0.0
        %v1695 = vmax.f32 %v1631, 0.0
        %v1696 = vmax.f32 %v1632, 0.0
        %v1697 = vmax.f32 %v1633, 0.0
        %v1698 = vmax.f32 %v1634, 0.0
        %v1699 = vmax.f32 %v1635, 0.0
        %v1700 = vmax.f32 %v1636, 0.0
        %v1701 = vmax.f32 %v1637, 0.0
        %v1702 = vmax.f32 %v1638, 0.0
        %v1703 = vmax.f32 %v1639, 0.0
        %v1704 = vmax.f32 %v1640, 0.0
        %v1705 = vmax.f32 %v1641, 0.0
        %v1706 = vmax.f32 %v1642, 0.0
        %v1707 = vmax.f32 %v1643, 0.0
        %v1708 = vmax.f32 %v1644, 0.0
        %v1709 = vmax.f32 %v1645, 0.0
        %v1710 = vmax.f32 %v1646, 0.0
        %v1711 = vmax.f32 %v1647, 0.0
        %v1712 = vmax.f32 %v1648, 0.0
        %v1713 = vmax.f32 %v1649, 0.0
        %v1714 = vmax.f32 %v1650, 0.0
        %v1715 = vmax.f32 %v1651, 0.0
        %v1716 = vmax.f32 %v1652, 0.0
        %v1717 = vmax.f32 %v1653, 0.0
        %v1718 = vmax.f32 %v1654, 0.0
        %v1719 = vmax.f32 %v1655, 0.0
        %v1720 = vmax.f32 %v1656, 0.0
        %s1721 = scalar_lea.vmem %s561, 512 [#allocation2]
        %v1722 = vld [vmem:[%s1721] sm:$0xff]
        %v1723 = vld [vmem:[%s1721 + $0x8] sm:$0xff]
        %v1724 = vld [vmem:[%s1721 + $0x10] sm:$0xff]
        %v1725 = vld [vmem:[%s1721 + $0x18] sm:$0xff]
        %v1726 = vld [vmem:[%s1721 + $0x20] sm:$0xff]
        %v1727 = vld [vmem:[%s1721 + $0x28] sm:$0xff]
        %v1728 = vld [vmem:[%s1721 + $0x30] sm:$0xff]
        %v1729 = vld [vmem:[%s1721 + $0x38] sm:$0xff]
        %v1730 = vld [vmem:[%s1721 + $0x40] sm:$0xff]
        %v1731 = vld [vmem:[%s1721 + $0x48] sm:$0xff]
        %v1732 = vld [vmem:[%s1721 + $0x50] sm:$0xff]
        %v1733 = vld [vmem:[%s1721 + $0x58] sm:$0xff]
        %v1734 = vld [vmem:[%s1721 + $0x60] sm:$0xff]
        %v1735 = vld [vmem:[%s1721 + $0x68] sm:$0xff]
        %v1736 = vld [vmem:[%s1721 + $0x70] sm:$0xff]
        %v1737 = vld [vmem:[%s1721 + $0x78] sm:$0xff]
        %v1738 = vld [vmem:[%s1721 + $0x80] sm:$0xff]
        %v1739 = vld [vmem:[%s1721 + $0x88] sm:$0xff]
        %v1740 = vld [vmem:[%s1721 + $0x90] sm:$0xff]
        %v1741 = vld [vmem:[%s1721 + $0x98] sm:$0xff]
        %v1742 = vld [vmem:[%s1721 + $0xa0] sm:$0xff]
        %v1743 = vld [vmem:[%s1721 + $0xa8] sm:$0xff]
        %v1744 = vld [vmem:[%s1721 + $0xb0] sm:$0xff]
        %v1745 = vld [vmem:[%s1721 + $0xb8] sm:$0xff]
        %v1746 = vld [vmem:[%s1721 + $0xc0] sm:$0xff]
        %v1747 = vld [vmem:[%s1721 + $0xc8] sm:$0xff]
        %v1748 = vld [vmem:[%s1721 + $0xd0] sm:$0xff]
        %v1749 = vld [vmem:[%s1721 + $0xd8] sm:$0xff]
        %v1750 = vld [vmem:[%s1721 + $0xe0] sm:$0xff]
        %v1751 = vld [vmem:[%s1721 + $0xe8] sm:$0xff]
        %v1752 = vld [vmem:[%s1721 + $0xf0] sm:$0xff]
        %v1753 = vld [vmem:[%s1721 + $0xf8] sm:$0xff]
        %v1754 = vld [vmem:[%s1721 + $0x100] sm:$0xff]
        %v1755 = vld [vmem:[%s1721 + $0x108] sm:$0xff]
        %v1756 = vld [vmem:[%s1721 + $0x110] sm:$0xff]
        %v1757 = vld [vmem:[%s1721 + $0x118] sm:$0xff]
        %v1758 = vld [vmem:[%s1721 + $0x120] sm:$0xff]
        %v1759 = vld [vmem:[%s1721 + $0x128] sm:$0xff]
        %v1760 = vld [vmem:[%s1721 + $0x130] sm:$0xff]
        %v1761 = vld [vmem:[%s1721 + $0x138] sm:$0xff]
        %v1762 = vld [vmem:[%s1721 + $0x140] sm:$0xff]
        %v1763 = vld [vmem:[%s1721 + $0x148] sm:$0xff]
        %v1764 = vld [vmem:[%s1721 + $0x150] sm:$0xff]
        %v1765 = vld [vmem:[%s1721 + $0x158] sm:$0xff]
        %v1766 = vld [vmem:[%s1721 + $0x160] sm:$0xff]
        %v1767 = vld [vmem:[%s1721 + $0x168] sm:$0xff]
        %v1768 = vld [vmem:[%s1721 + $0x170] sm:$0xff]
        %v1769 = vld [vmem:[%s1721 + $0x178] sm:$0xff]
        %v1770 = vld [vmem:[%s1721 + $0x180] sm:$0x33]
        %v1771 = vld [vmem:[%s1721 + $0x188] sm:$0x33]
        %v1772 = vld [vmem:[%s1721 + $0x190] sm:$0x33]
        %v1773 = vld [vmem:[%s1721 + $0x198] sm:$0x33]
        %v1774 = vld [vmem:[%s1721 + $0x1a0] sm:$0x33]
        %v1775 = vld [vmem:[%s1721 + $0x1a8] sm:$0x33]
        %v1776 = vld [vmem:[%s1721 + $0x1b0] sm:$0x33]
        %v1777 = vld [vmem:[%s1721 + $0x1b8] sm:$0x33]
        %v1778 = vld [vmem:[%s1721 + $0x1c0] sm:$0x33]
        %v1779 = vld [vmem:[%s1721 + $0x1c8] sm:$0x33]
        %v1780 = vld [vmem:[%s1721 + $0x1d0] sm:$0x33]
        %v1781 = vld [vmem:[%s1721 + $0x1d8] sm:$0x33]
        %v1782 = vld [vmem:[%s1721 + $0x1e0] sm:$0x33]
        %v1783 = vld [vmem:[%s1721 + $0x1e8] sm:$0x33]
        %v1784 = vld [vmem:[%s1721 + $0x1f0] sm:$0x33]
        %v1785 = vld [vmem:[%s1721 + $0x1f8] sm:$0x33]
        %v1850 = vunpack.c.l.b16 %v1722
        %v1851 = vunpack.c.h.b16 %v1722
        %v1852 = vunpack.c.l.b16 %v1723
        %v1853 = vunpack.c.h.b16 %v1723
        %v1854 = vunpack.c.l.b16 %v1724
        %v1855 = vunpack.c.h.b16 %v1724
        %v1856 = vunpack.c.l.b16 %v1725
        %v1857 = vunpack.c.h.b16 %v1725
        %v1858 = vunpack.c.l.b16 %v1726
        %v1859 = vunpack.c.h.b16 %v1726
        %v1860 = vunpack.c.l.b16 %v1727
        %v1861 = vunpack.c.h.b16 %v1727
        %v1862 = vunpack.c.l.b16 %v1728
        %v1863 = vunpack.c.h.b16 %v1728
        %v1864 = vunpack.c.l.b16 %v1729
        %v1865 = vunpack.c.h.b16 %v1729
        %v1866 = vunpack.c.l.b16 %v1730
        %v1867 = vunpack.c.h.b16 %v1730
        %v1868 = vunpack.c.l.b16 %v1731
        %v1869 = vunpack.c.h.b16 %v1731
        %v1870 = vunpack.c.l.b16 %v1732
        %v1871 = vunpack.c.h.b16 %v1732
        %v1872 = vunpack.c.l.b16 %v1733
        %v1873 = vunpack.c.h.b16 %v1733
        %v1874 = vunpack.c.l.b16 %v1734
        %v1875 = vunpack.c.h.b16 %v1734
        %v1876 = vunpack.c.l.b16 %v1735
        %v1877 = vunpack.c.h.b16 %v1735
        %v1878 = vunpack.c.l.b16 %v1736
        %v1879 = vunpack.c.h.b16 %v1736
        %v1880 = vunpack.c.l.b16 %v1737
        %v1881 = vunpack.c.h.b16 %v1737
        %v1882 = vunpack.c.l.b16 %v1738
        %v1883 = vunpack.c.h.b16 %v1738
        %v1884 = vunpack.c.l.b16 %v1739
        %v1885 = vunpack.c.h.b16 %v1739
        %v1886 = vunpack.c.l.b16 %v1740
        %v1887 = vunpack.c.h.b16 %v1740
        %v1888 = vunpack.c.l.b16 %v1741
        %v1889 = vunpack.c.h.b16 %v1741
        %v1890 = vunpack.c.l.b16 %v1742
        %v1891 = vunpack.c.h.b16 %v1742
        %v1892 = vunpack.c.l.b16 %v1743
        %v1893 = vunpack.c.h.b16 %v1743
        %v1894 = vunpack.c.l.b16 %v1744
        %v1895 = vunpack.c.h.b16 %v1744
        %v1896 = vunpack.c.l.b16 %v1745
        %v1897 = vunpack.c.h.b16 %v1745
        %v1898 = vunpack.c.l.b16 %v1746
        %v1899 = vunpack.c.h.b16 %v1746
        %v1900 = vunpack.c.l.b16 %v1747
        %v1901 = vunpack.c.h.b16 %v1747
        %v1902 = vunpack.c.l.b16 %v1748
        %v1903 = vunpack.c.h.b16 %v1748
        %v1904 = vunpack.c.l.b16 %v1749
        %v1905 = vunpack.c.h.b16 %v1749
        %v1906 = vunpack.c.l.b16 %v1750
        %v1907 = vunpack.c.h.b16 %v1750
        %v1908 = vunpack.c.l.b16 %v1751
        %v1909 = vunpack.c.h.b16 %v1751
        %v1910 = vunpack.c.l.b16 %v1752
        %v1911 = vunpack.c.h.b16 %v1752
        %v1912 = vunpack.c.l.b16 %v1753
        %v1913 = vunpack.c.h.b16 %v1753
        %v1914 = vunpack.c.l.b16 %v1754
        %v1915 = vunpack.c.h.b16 %v1754
        %v1916 = vunpack.c.l.b16 %v1755
        %v1917 = vunpack.c.h.b16 %v1755
        %v1918 = vunpack.c.l.b16 %v1756
        %v1919 = vunpack.c.h.b16 %v1756
        %v1920 = vunpack.c.l.b16 %v1757
        %v1921 = vunpack.c.h.b16 %v1757
        %v1922 = vunpack.c.l.b16 %v1758
        %v1923 = vunpack.c.h.b16 %v1758
        %v1924 = vunpack.c.l.b16 %v1759
        %v1925 = vunpack.c.h.b16 %v1759
        %v1926 = vunpack.c.l.b16 %v1760
        %v1927 = vunpack.c.h.b16 %v1760
        %v1928 = vunpack.c.l.b16 %v1761
        %v1929 = vunpack.c.h.b16 %v1761
        %v1930 = vunpack.c.l.b16 %v1762
        %v1931 = vunpack.c.h.b16 %v1762
        %v1932 = vunpack.c.l.b16 %v1763
        %v1933 = vunpack.c.h.b16 %v1763
        %v1934 = vunpack.c.l.b16 %v1764
        %v1935 = vunpack.c.h.b16 %v1764
        %v1936 = vunpack.c.l.b16 %v1765
        %v1937 = vunpack.c.h.b16 %v1765
        %v1938 = vunpack.c.l.b16 %v1766
        %v1939 = vunpack.c.h.b16 %v1766
        %v1940 = vunpack.c.l.b16 %v1767
        %v1941 = vunpack.c.h.b16 %v1767
        %v1942 = vunpack.c.l.b16 %v1768
        %v1943 = vunpack.c.h.b16 %v1768
        %v1944 = vunpack.c.l.b16 %v1769
        %v1945 = vunpack.c.h.b16 %v1769
        %v1946 = vunpack.c.l.b16 %v1770
        %v1947 = vunpack.c.h.b16 %v1770
        %v1948 = vunpack.c.l.b16 %v1771
        %v1949 = vunpack.c.h.b16 %v1771
        %v1950 = vunpack.c.l.b16 %v1772
        %v1951 = vunpack.c.h.b16 %v1772
        %v1952 = vunpack.c.l.b16 %v1773
        %v1953 = vunpack.c.h.b16 %v1773
        %v1954 = vunpack.c.l.b16 %v1774
        %v1955 = vunpack.c.h.b16 %v1774
        %v1956 = vunpack.c.l.b16 %v1775
        %v1957 = vunpack.c.h.b16 %v1775
        %v1958 = vunpack.c.l.b16 %v1776
        %v1959 = vunpack.c.h.b16 %v1776
        %v1960 = vunpack.c.l.b16 %v1777
        %v1961 = vunpack.c.h.b16 %v1777
        %v1962 = vunpack.c.l.b16 %v1778
        %v1963 = vunpack.c.h.b16 %v1778
        %v1964 = vunpack.c.l.b16 %v1779
        %v1965 = vunpack.c.h.b16 %v1779
        %v1966 = vunpack.c.l.b16 %v1780
        %v1967 = vunpack.c.h.b16 %v1780
        %v1968 = vunpack.c.l.b16 %v1781
        %v1969 = vunpack.c.h.b16 %v1781
        %v1970 = vunpack.c.l.b16 %v1782
        %v1971 = vunpack.c.h.b16 %v1782
        %v1972 = vunpack.c.l.b16 %v1783
        %v1973 = vunpack.c.h.b16 %v1783
        %v1974 = vunpack.c.l.b16 %v1784
        %v1975 = vunpack.c.h.b16 %v1784
        %v1976 = vunpack.c.l.b16 %v1785
        %v1977 = vunpack.c.h.b16 %v1785
        %v1978 = vpack.c.b16 %v1882, %v1850
        %v1979 = vpack.c.b16 %v1883, %v1851
        %v1980 = vpack.c.b16 %v1884, %v1852
        %v1981 = vpack.c.b16 %v1885, %v1853
        %v1982 = vpack.c.b16 %v1886, %v1854
        %v1983 = vpack.c.b16 %v1887, %v1855
        %v1984 = vpack.c.b16 %v1888, %v1856
        %v1985 = vpack.c.b16 %v1889, %v1857
        %v1986 = vpack.c.b16 %v1890, %v1858
        %v1987 = vpack.c.b16 %v1891, %v1859
        %v1988 = vpack.c.b16 %v1892, %v1860
        %v1989 = vpack.c.b16 %v1893, %v1861
        %v1990 = vpack.c.b16 %v1894, %v1862
        %v1991 = vpack.c.b16 %v1895, %v1863
        %v1992 = vpack.c.b16 %v1896, %v1864
        %v1993 = vpack.c.b16 %v1897, %v1865
        %v1994 = vpack.c.b16 %v1898, %v1866
        %v1995 = vpack.c.b16 %v1899, %v1867
        %v1996 = vpack.c.b16 %v1900, %v1868
        %v1997 = vpack.c.b16 %v1901, %v1869
        %v1998 = vpack.c.b16 %v1902, %v1870
        %v1999 = vpack.c.b16 %v1903, %v1871
        %v2000 = vpack.c.b16 %v1904, %v1872
        %v2001 = vpack.c.b16 %v1905, %v1873
        %v2002 = vpack.c.b16 %v1906, %v1874
        %v2003 = vpack.c.b16 %v1907, %v1875
        %v2004 = vpack.c.b16 %v1908, %v1876
        %v2005 = vpack.c.b16 %v1909, %v1877
        %v2006 = vpack.c.b16 %v1910, %v1878
        %v2007 = vpack.c.b16 %v1911, %v1879
        %v2008 = vpack.c.b16 %v1912, %v1880
        %v2009 = vpack.c.b16 %v1913, %v1881
        %v2010 = vpack.c.b16 %v1946, %v1914
        %v2011 = vpack.c.b16 %v1947, %v1915
        %v2012 = vpack.c.b16 %v1948, %v1916
        %v2013 = vpack.c.b16 %v1949, %v1917
        %v2014 = vpack.c.b16 %v1950, %v1918
        %v2015 = vpack.c.b16 %v1951, %v1919
        %v2016 = vpack.c.b16 %v1952, %v1920
        %v2017 = vpack.c.b16 %v1953, %v1921
        %v2018 = vpack.c.b16 %v1954, %v1922
        %v2019 = vpack.c.b16 %v1955, %v1923
        %v2020 = vpack.c.b16 %v1956, %v1924
        %v2021 = vpack.c.b16 %v1957, %v1925
        %v2022 = vpack.c.b16 %v1958, %v1926
        %v2023 = vpack.c.b16 %v1959, %v1927
        %v2024 = vpack.c.b16 %v1960, %v1928
        %v2025 = vpack.c.b16 %v1961, %v1929
        %v2026 = vpack.c.b16 %v1962, %v1930
        %v2027 = vpack.c.b16 %v1963, %v1931
        %v2028 = vpack.c.b16 %v1964, %v1932
        %v2029 = vpack.c.b16 %v1965, %v1933
        %v2030 = vpack.c.b16 %v1966, %v1934
        %v2031 = vpack.c.b16 %v1967, %v1935
        %v2032 = vpack.c.b16 %v1968, %v1936
        %v2033 = vpack.c.b16 %v1969, %v1937
        %v2034 = vpack.c.b16 %v1970, %v1938
        %v2035 = vpack.c.b16 %v1971, %v1939
        %v2036 = vpack.c.b16 %v1972, %v1940
        %v2037 = vpack.c.b16 %v1973, %v1941
        %v2038 = vpack.c.b16 %v1974, %v1942
        %v2039 = vpack.c.b16 %v1975, %v1943
        %v2040 = vpack.c.b16 %v1976, %v1944
        %v2041 = vpack.c.b16 %v1977, %v1945
        %v2075 = vand.u32 %v2010, %v964
        %v2078 = vand.u32 %v2011, %v964
        %v2081 = vand.u32 %v2012, %v964
        %v2084 = vand.u32 %v2013, %v964
        %v2087 = vand.u32 %v2014, %v964
        %v2090 = vand.u32 %v2015, %v964
        %v2093 = vand.u32 %v2016, %v964
        %v2096 = vand.u32 %v2017, %v964
        %v2099 = vand.u32 %v2018, %v964
        %v2102 = vand.u32 %v2019, %v964
        %v2105 = vand.u32 %v2020, %v964
        %v2108 = vand.u32 %v2021, %v964
        %v2111 = vand.u32 %v2022, %v964
        %v2114 = vand.u32 %v2023, %v964
        %v2117 = vand.u32 %v2024, %v964
        %v2120 = vand.u32 %v2025, %v964
        %v2123 = vand.u32 %v2026, %v964
        %v2126 = vand.u32 %v2027, %v964
        %v2129 = vand.u32 %v2028, %v964
        %v2132 = vand.u32 %v2029, %v964
        %v2135 = vand.u32 %v2030, %v964
        %v2138 = vand.u32 %v2031, %v964
        %v2141 = vand.u32 %v2032, %v964
        %v2144 = vand.u32 %v2033, %v964
        %v2147 = vand.u32 %v2034, %v964
        %v2150 = vand.u32 %v2035, %v964
        %v2153 = vand.u32 %v2036, %v964
        %v2156 = vand.u32 %v2037, %v964
        %v2159 = vand.u32 %v2038, %v964
        %v2162 = vand.u32 %v2039, %v964
        %v2165 = vand.u32 %v2040, %v964
        %v2168 = vand.u32 %v2041, %v964
        %2170 = vmatpush.bf16.msra.mxu0 0
        %2171 = vmatpush.bf16.msra.mxu0 0
        %2172 = vmatpush.bf16.msra.mxu0 0
        %2173 = vmatpush.bf16.msra.mxu0 0
        %2174 = vmatpush.bf16.msra.mxu0 0
        %2175 = vmatpush.bf16.msra.mxu0 0
        %2176 = vmatpush.bf16.msra.mxu0 %v2075
        %2177 = vmatpush.bf16.msra.mxu0 %v1978
        %2178 = vmatmul.bf16.gmra.mxu0 %v959
        %v2179 = vpop.f32.mrf.mxu0
        %v2180 = vadd.f32 0.0, %v2179
        %v2181 = vpop.f32.mrf.mxu0
        %v2182 = vadd.f32 0.0, %v2181
        %2183 = vdwg.mxu0
        %2184 = vmatpush.bf16.msra.mxu0 0
        %2185 = vmatpush.bf16.msra.mxu0 0
        %2186 = vmatpush.bf16.msra.mxu0 0
        %2187 = vmatpush.bf16.msra.mxu0 0
        %2188 = vmatpush.bf16.msra.mxu0 0
        %2189 = vmatpush.bf16.msra.mxu0 0
        %2190 = vmatpush.bf16.msra.mxu0 %v2078
        %2191 = vmatpush.bf16.msra.mxu0 %v1979
        %2192 = vmatmul.bf16.gmra.mxu0 %v959
        %v2193 = vpop.f32.mrf.mxu0
        %v2194 = vadd.f32 0.0, %v2193
        %v2195 = vpop.f32.mrf.mxu0
        %v2196 = vadd.f32 0.0, %v2195
        %2197 = vdwg.mxu0
        %2198 = vmatpush.bf16.msra.mxu0 0
        %2199 = vmatpush.bf16.msra.mxu0 0
        %2200 = vmatpush.bf16.msra.mxu0 0
        %2201 = vmatpush.bf16.msra.mxu0 0
        %2202 = vmatpush.bf16.msra.mxu0 0
        %2203 = vmatpush.bf16.msra.mxu0 0
        %2204 = vmatpush.bf16.msra.mxu0 %v2081
        %2205 = vmatpush.bf16.msra.mxu0 %v1980
        %2206 = vmatmul.bf16.gmra.mxu0 %v959
        %v2207 = vpop.f32.mrf.mxu0
        %v2208 = vadd.f32 0.0, %v2207
        %v2209 = vpop.f32.mrf.mxu0
        %v2210 = vadd.f32 0.0, %v2209
        %2211 = vdwg.mxu0
        %2212 = vmatpush.bf16.msra.mxu0 0
        %2213 = vmatpush.bf16.msra.mxu0 0
        %2214 = vmatpush.bf16.msra.mxu0 0
        %2215 = vmatpush.bf16.msra.mxu0 0
        %2216 = vmatpush.bf16.msra.mxu0 0
        %2217 = vmatpush.bf16.msra.mxu0 0
        %2218 = vmatpush.bf16.msra.mxu0 %v2084
        %2219 = vmatpush.bf16.msra.mxu0 %v1981
        %2220 = vmatmul.bf16.gmra.mxu0 %v959
        %v2221 = vpop.f32.mrf.mxu0
        %v2222 = vadd.f32 0.0, %v2221
        %v2223 = vpop.f32.mrf.mxu0
        %v2224 = vadd.f32 0.0, %v2223
        %2225 = vdwg.mxu0
        %2226 = vmatpush.bf16.msra.mxu0 0
        %2227 = vmatpush.bf16.msra.mxu0 0
        %2228 = vmatpush.bf16.msra.mxu0 0
        %2229 = vmatpush.bf16.msra.mxu0 0
        %2230 = vmatpush.bf16.msra.mxu0 0
        %2231 = vmatpush.bf16.msra.mxu0 0
        %2232 = vmatpush.bf16.msra.mxu0 %v2087
        %2233 = vmatpush.bf16.msra.mxu0 %v1982
        %2234 = vmatmul.bf16.gmra.mxu0 %v959
        %v2235 = vpop.f32.mrf.mxu0
        %v2236 = vadd.f32 0.0, %v2235
        %v2237 = vpop.f32.mrf.mxu0
        %v2238 = vadd.f32 0.0, %v2237
        %2239 = vdwg.mxu0
        %2240 = vmatpush.bf16.msra.mxu0 0
        %2241 = vmatpush.bf16.msra.mxu0 0
        %2242 = vmatpush.bf16.msra.mxu0 0
        %2243 = vmatpush.bf16.msra.mxu0 0
        %2244 = vmatpush.bf16.msra.mxu0 0
        %2245 = vmatpush.bf16.msra.mxu0 0
        %2246 = vmatpush.bf16.msra.mxu0 %v2090
        %2247 = vmatpush.bf16.msra.mxu0 %v1983
        %2248 = vmatmul.bf16.gmra.mxu0 %v959
        %v2249 = vpop.f32.mrf.mxu0
        %v2250 = vadd.f32 0.0, %v2249
        %v2251 = vpop.f32.mrf.mxu0
        %v2252 = vadd.f32 0.0, %v2251
        %2253 = vdwg.mxu0
        %2254 = vmatpush.bf16.msra.mxu0 0
        %2255 = vmatpush.bf16.msra.mxu0 0
        %2256 = vmatpush.bf16.msra.mxu0 0
        %2257 = vmatpush.bf16.msra.mxu0 0
        %2258 = vmatpush.bf16.msra.mxu0 0
        %2259 = vmatpush.bf16.msra.mxu0 0
        %2260 = vmatpush.bf16.msra.mxu0 %v2093
        %2261 = vmatpush.bf16.msra.mxu0 %v1984
        %2262 = vmatmul.bf16.gmra.mxu0 %v959
        %v2263 = vpop.f32.mrf.mxu0
        %v2264 = vadd.f32 0.0, %v2263
        %v2265 = vpop.f32.mrf.mxu0
        %v2266 = vadd.f32 0.0, %v2265
        %2267 = vdwg.mxu0
        %2268 = vmatpush.bf16.msra.mxu0 0
        %2269 = vmatpush.bf16.msra.mxu0 0
        %2270 = vmatpush.bf16.msra.mxu0 0
        %2271 = vmatpush.bf16.msra.mxu0 0
        %2272 = vmatpush.bf16.msra.mxu0 0
        %2273 = vmatpush.bf16.msra.mxu0 0
        %2274 = vmatpush.bf16.msra.mxu0 %v2096
        %2275 = vmatpush.bf16.msra.mxu0 %v1985
        %2276 = vmatmul.bf16.gmra.mxu0 %v959
        %v2277 = vpop.f32.mrf.mxu0
        %v2278 = vadd.f32 0.0, %v2277
        %v2279 = vpop.f32.mrf.mxu0
        %v2280 = vadd.f32 0.0, %v2279
        %2281 = vdwg.mxu0
        %2282 = vmatpush.bf16.msra.mxu0 0
        %2283 = vmatpush.bf16.msra.mxu0 0
        %2284 = vmatpush.bf16.msra.mxu0 0
        %2285 = vmatpush.bf16.msra.mxu0 0
        %2286 = vmatpush.bf16.msra.mxu0 0
        %2287 = vmatpush.bf16.msra.mxu0 0
        %2288 = vmatpush.bf16.msra.mxu0 %v2099
        %2289 = vmatpush.bf16.msra.mxu0 %v1986
        %2290 = vmatmul.bf16.gmra.mxu0 %v959
        %v2291 = vpop.f32.mrf.mxu0
        %v2292 = vadd.f32 0.0, %v2291
        %v2293 = vpop.f32.mrf.mxu0
        %v2294 = vadd.f32 0.0, %v2293
        %2295 = vdwg.mxu0
        %2296 = vmatpush.bf16.msra.mxu0 0
        %2297 = vmatpush.bf16.msra.mxu0 0
        %2298 = vmatpush.bf16.msra.mxu0 0
        %2299 = vmatpush.bf16.msra.mxu0 0
        %2300 = vmatpush.bf16.msra.mxu0 0
        %2301 = vmatpush.bf16.msra.mxu0 0
        %2302 = vmatpush.bf16.msra.mxu0 %v2102
        %2303 = vmatpush.bf16.msra.mxu0 %v1987
        %2304 = vmatmul.bf16.gmra.mxu0 %v959
        %v2305 = vpop.f32.mrf.mxu0
        %v2306 = vadd.f32 0.0, %v2305
        %v2307 = vpop.f32.mrf.mxu0
        %v2308 = vadd.f32 0.0, %v2307
        %2309 = vdwg.mxu0
        %2310 = vmatpush.bf16.msra.mxu0 0
        %2311 = vmatpush.bf16.msra.mxu0 0
        %2312 = vmatpush.bf16.msra.mxu0 0
        %2313 = vmatpush.bf16.msra.mxu0 0
        %2314 = vmatpush.bf16.msra.mxu0 0
        %2315 = vmatpush.bf16.msra.mxu0 0
        %2316 = vmatpush.bf16.msra.mxu0 %v2105
        %2317 = vmatpush.bf16.msra.mxu0 %v1988
        %2318 = vmatmul.bf16.gmra.mxu0 %v959
        %v2319 = vpop.f32.mrf.mxu0
        %v2320 = vadd.f32 0.0, %v2319
        %v2321 = vpop.f32.mrf.mxu0
        %v2322 = vadd.f32 0.0, %v2321
        %2323 = vdwg.mxu0
        %2324 = vmatpush.bf16.msra.mxu0 0
        %2325 = vmatpush.bf16.msra.mxu0 0
        %2326 = vmatpush.bf16.msra.mxu0 0
        %2327 = vmatpush.bf16.msra.mxu0 0
        %2328 = vmatpush.bf16.msra.mxu0 0
        %2329 = vmatpush.bf16.msra.mxu0 0
        %2330 = vmatpush.bf16.msra.mxu0 %v2108
        %2331 = vmatpush.bf16.msra.mxu0 %v1989
        %2332 = vmatmul.bf16.gmra.mxu0 %v959
        %v2333 = vpop.f32.mrf.mxu0
        %v2334 = vadd.f32 0.0, %v2333
        %v2335 = vpop.f32.mrf.mxu0
        %v2336 = vadd.f32 0.0, %v2335
        %2337 = vdwg.mxu0
        %2338 = vmatpush.bf16.msra.mxu0 0
        %2339 = vmatpush.bf16.msra.mxu0 0
        %2340 = vmatpush.bf16.msra.mxu0 0
        %2341 = vmatpush.bf16.msra.mxu0 0
        %2342 = vmatpush.bf16.msra.mxu0 0
        %2343 = vmatpush.bf16.msra.mxu0 0
        %2344 = vmatpush.bf16.msra.mxu0 %v2111
        %2345 = vmatpush.bf16.msra.mxu0 %v1990
        %2346 = vmatmul.bf16.gmra.mxu0 %v959
        %v2347 = vpop.f32.mrf.mxu0
        %v2348 = vadd.f32 0.0, %v2347
        %v2349 = vpop.f32.mrf.mxu0
        %v2350 = vadd.f32 0.0, %v2349
        %2351 = vdwg.mxu0
        %2352 = vmatpush.bf16.msra.mxu0 0
        %2353 = vmatpush.bf16.msra.mxu0 0
        %2354 = vmatpush.bf16.msra.mxu0 0
        %2355 = vmatpush.bf16.msra.mxu0 0
        %2356 = vmatpush.bf16.msra.mxu0 0
        %2357 = vmatpush.bf16.msra.mxu0 0
        %2358 = vmatpush.bf16.msra.mxu0 %v2114
        %2359 = vmatpush.bf16.msra.mxu0 %v1991
        %2360 = vmatmul.bf16.gmra.mxu0 %v959
        %v2361 = vpop.f32.mrf.mxu0
        %v2362 = vadd.f32 0.0, %v2361
        %v2363 = vpop.f32.mrf.mxu0
        %v2364 = vadd.f32 0.0, %v2363
        %2365 = vdwg.mxu0
        %2366 = vmatpush.bf16.msra.mxu0 0
        %2367 = vmatpush.bf16.msra.mxu0 0
        %2368 = vmatpush.bf16.msra.mxu0 0
        %2369 = vmatpush.bf16.msra.mxu0 0
        %2370 = vmatpush.bf16.msra.mxu0 0
        %2371 = vmatpush.bf16.msra.mxu0 0
        %2372 = vmatpush.bf16.msra.mxu0 %v2117
        %2373 = vmatpush.bf16.msra.mxu0 %v1992
        %2374 = vmatmul.bf16.gmra.mxu0 %v959
        %v2375 = vpop.f32.mrf.mxu0
        %v2376 = vadd.f32 0.0, %v2375
        %v2377 = vpop.f32.mrf.mxu0
        %v2378 = vadd.f32 0.0, %v2377
        %2379 = vdwg.mxu0
        %2380 = vmatpush.bf16.msra.mxu0 0
        %2381 = vmatpush.bf16.msra.mxu0 0
        %2382 = vmatpush.bf16.msra.mxu0 0
        %2383 = vmatpush.bf16.msra.mxu0 0
        %2384 = vmatpush.bf16.msra.mxu0 0
        %2385 = vmatpush.bf16.msra.mxu0 0
        %2386 = vmatpush.bf16.msra.mxu0 %v2120
        %2387 = vmatpush.bf16.msra.mxu0 %v1993
        %2388 = vmatmul.bf16.gmra.mxu0 %v959
        %v2389 = vpop.f32.mrf.mxu0
        %v2390 = vadd.f32 0.0, %v2389
        %v2391 = vpop.f32.mrf.mxu0
        %v2392 = vadd.f32 0.0, %v2391
        %2393 = vdwg.mxu0
        %2394 = vmatpush.bf16.msra.mxu0 0
        %2395 = vmatpush.bf16.msra.mxu0 0
        %2396 = vmatpush.bf16.msra.mxu0 0
        %2397 = vmatpush.bf16.msra.mxu0 0
        %2398 = vmatpush.bf16.msra.mxu0 0
        %2399 = vmatpush.bf16.msra.mxu0 0
        %2400 = vmatpush.bf16.msra.mxu0 %v2123
        %2401 = vmatpush.bf16.msra.mxu0 %v1994
        %2402 = vmatmul.bf16.gmra.mxu0 %v959
        %v2403 = vpop.f32.mrf.mxu0
        %v2404 = vadd.f32 0.0, %v2403
        %v2405 = vpop.f32.mrf.mxu0
        %v2406 = vadd.f32 0.0, %v2405
        %2407 = vdwg.mxu0
        %2408 = vmatpush.bf16.msra.mxu0 0
        %2409 = vmatpush.bf16.msra.mxu0 0
        %2410 = vmatpush.bf16.msra.mxu0 0
        %2411 = vmatpush.bf16.msra.mxu0 0
        %2412 = vmatpush.bf16.msra.mxu0 0
        %2413 = vmatpush.bf16.msra.mxu0 0
        %2414 = vmatpush.bf16.msra.mxu0 %v2126
        %2415 = vmatpush.bf16.msra.mxu0 %v1995
        %2416 = vmatmul.bf16.gmra.mxu0 %v959
        %v2417 = vpop.f32.mrf.mxu0
        %v2418 = vadd.f32 0.0, %v2417
        %v2419 = vpop.f32.mrf.mxu0
        %v2420 = vadd.f32 0.0, %v2419
        %2421 = vdwg.mxu0
        %2422 = vmatpush.bf16.msra.mxu0 0
        %2423 = vmatpush.bf16.msra.mxu0 0
        %2424 = vmatpush.bf16.msra.mxu0 0
        %2425 = vmatpush.bf16.msra.mxu0 0
        %2426 = vmatpush.bf16.msra.mxu0 0
        %2427 = vmatpush.bf16.msra.mxu0 0
        %2428 = vmatpush.bf16.msra.mxu0 %v2129
        %2429 = vmatpush.bf16.msra.mxu0 %v1996
        %2430 = vmatmul.bf16.gmra.mxu0 %v959
        %v2431 = vpop.f32.mrf.mxu0
        %v2432 = vadd.f32 0.0, %v2431
        %v2433 = vpop.f32.mrf.mxu0
        %v2434 = vadd.f32 0.0, %v2433
        %2435 = vdwg.mxu0
        %2436 = vmatpush.bf16.msra.mxu0 0
        %2437 = vmatpush.bf16.msra.mxu0 0
        %2438 = vmatpush.bf16.msra.mxu0 0
        %2439 = vmatpush.bf16.msra.mxu0 0
        %2440 = vmatpush.bf16.msra.mxu0 0
        %2441 = vmatpush.bf16.msra.mxu0 0
        %2442 = vmatpush.bf16.msra.mxu0 %v2132
        %2443 = vmatpush.bf16.msra.mxu0 %v1997
        %2444 = vmatmul.bf16.gmra.mxu0 %v959
        %v2445 = vpop.f32.mrf.mxu0
        %v2446 = vadd.f32 0.0, %v2445
        %v2447 = vpop.f32.mrf.mxu0
        %v2448 = vadd.f32 0.0, %v2447
        %2449 = vdwg.mxu0
        %2450 = vmatpush.bf16.msra.mxu0 0
        %2451 = vmatpush.bf16.msra.mxu0 0
        %2452 = vmatpush.bf16.msra.mxu0 0
        %2453 = vmatpush.bf16.msra.mxu0 0
        %2454 = vmatpush.bf16.msra.mxu0 0
        %2455 = vmatpush.bf16.msra.mxu0 0
        %2456 = vmatpush.bf16.msra.mxu0 %v2135
        %2457 = vmatpush.bf16.msra.mxu0 %v1998
        %2458 = vmatmul.bf16.gmra.mxu0 %v959
        %v2459 = vpop.f32.mrf.mxu0
        %v2460 = vadd.f32 0.0, %v2459
        %v2461 = vpop.f32.mrf.mxu0
        %v2462 = vadd.f32 0.0, %v2461
        %2463 = vdwg.mxu0
        %2464 = vmatpush.bf16.msra.mxu0 0
        %2465 = vmatpush.bf16.msra.mxu0 0
        %2466 = vmatpush.bf16.msra.mxu0 0
        %2467 = vmatpush.bf16.msra.mxu0 0
        %2468 = vmatpush.bf16.msra.mxu0 0
        %2469 = vmatpush.bf16.msra.mxu0 0
        %2470 = vmatpush.bf16.msra.mxu0 %v2138
        %2471 = vmatpush.bf16.msra.mxu0 %v1999
        %2472 = vmatmul.bf16.gmra.mxu0 %v959
        %v2473 = vpop.f32.mrf.mxu0
        %v2474 = vadd.f32 0.0, %v2473
        %v2475 = vpop.f32.mrf.mxu0
        %v2476 = vadd.f32 0.0, %v2475
        %2477 = vdwg.mxu0
        %2478 = vmatpush.bf16.msra.mxu0 0
        %2479 = vmatpush.bf16.msra.mxu0 0
        %2480 = vmatpush.bf16.msra.mxu0 0
        %2481 = vmatpush.bf16.msra.mxu0 0
        %2482 = vmatpush.bf16.msra.mxu0 0
        %2483 = vmatpush.bf16.msra.mxu0 0
        %2484 = vmatpush.bf16.msra.mxu0 %v2141
        %2485 = vmatpush.bf16.msra.mxu0 %v2000
        %2486 = vmatmul.bf16.gmra.mxu0 %v959
        %v2487 = vpop.f32.mrf.mxu0
        %v2488 = vadd.f32 0.0, %v2487
        %v2489 = vpop.f32.mrf.mxu0
        %v2490 = vadd.f32 0.0, %v2489
        %2491 = vdwg.mxu0
        %2492 = vmatpush.bf16.msra.mxu0 0
        %2493 = vmatpush.bf16.msra.mxu0 0
        %2494 = vmatpush.bf16.msra.mxu0 0
        %2495 = vmatpush.bf16.msra.mxu0 0
        %2496 = vmatpush.bf16.msra.mxu0 0
        %2497 = vmatpush.bf16.msra.mxu0 0
        %2498 = vmatpush.bf16.msra.mxu0 %v2144
        %2499 = vmatpush.bf16.msra.mxu0 %v2001
        %2500 = vmatmul.bf16.gmra.mxu0 %v959
        %v2501 = vpop.f32.mrf.mxu0
        %v2502 = vadd.f32 0.0, %v2501
        %v2503 = vpop.f32.mrf.mxu0
        %v2504 = vadd.f32 0.0, %v2503
        %2505 = vdwg.mxu0
        %2506 = vmatpush.bf16.msra.mxu0 0
        %2507 = vmatpush.bf16.msra.mxu0 0
        %2508 = vmatpush.bf16.msra.mxu0 0
        %2509 = vmatpush.bf16.msra.mxu0 0
        %2510 = vmatpush.bf16.msra.mxu0 0
        %2511 = vmatpush.bf16.msra.mxu0 0
        %2512 = vmatpush.bf16.msra.mxu0 %v2147
        %2513 = vmatpush.bf16.msra.mxu0 %v2002
        %2514 = vmatmul.bf16.gmra.mxu0 %v959
        %v2515 = vpop.f32.mrf.mxu0
        %v2516 = vadd.f32 0.0, %v2515
        %v2517 = vpop.f32.mrf.mxu0
        %v2518 = vadd.f32 0.0, %v2517
        %2519 = vdwg.mxu0
        %2520 = vmatpush.bf16.msra.mxu0 0
        %2521 = vmatpush.bf16.msra.mxu0 0
        %2522 = vmatpush.bf16.msra.mxu0 0
        %2523 = vmatpush.bf16.msra.mxu0 0
        %2524 = vmatpush.bf16.msra.mxu0 0
        %2525 = vmatpush.bf16.msra.mxu0 0
        %2526 = vmatpush.bf16.msra.mxu0 %v2150
        %2527 = vmatpush.bf16.msra.mxu0 %v2003
        %2528 = vmatmul.bf16.gmra.mxu0 %v959
        %v2529 = vpop.f32.mrf.mxu0
        %v2530 = vadd.f32 0.0, %v2529
        %v2531 = vpop.f32.mrf.mxu0
        %v2532 = vadd.f32 0.0, %v2531
        %2533 = vdwg.mxu0
        %2534 = vmatpush.bf16.msra.mxu0 0
        %2535 = vmatpush.bf16.msra.mxu0 0
        %2536 = vmatpush.bf16.msra.mxu0 0
        %2537 = vmatpush.bf16.msra.mxu0 0
        %2538 = vmatpush.bf16.msra.mxu0 0
        %2539 = vmatpush.bf16.msra.mxu0 0
        %2540 = vmatpush.bf16.msra.mxu0 %v2153
        %2541 = vmatpush.bf16.msra.mxu0 %v2004
        %2542 = vmatmul.bf16.gmra.mxu0 %v959
        %v2543 = vpop.f32.mrf.mxu0
        %v2544 = vadd.f32 0.0, %v2543
        %v2545 = vpop.f32.mrf.mxu0
        %v2546 = vadd.f32 0.0, %v2545
        %2547 = vdwg.mxu0
        %2548 = vmatpush.bf16.msra.mxu0 0
        %2549 = vmatpush.bf16.msra.mxu0 0
        %2550 = vmatpush.bf16.msra.mxu0 0
        %2551 = vmatpush.bf16.msra.mxu0 0
        %2552 = vmatpush.bf16.msra.mxu0 0
        %2553 = vmatpush.bf16.msra.mxu0 0
        %2554 = vmatpush.bf16.msra.mxu0 %v2156
        %2555 = vmatpush.bf16.msra.mxu0 %v2005
        %2556 = vmatmul.bf16.gmra.mxu0 %v959
        %v2557 = vpop.f32.mrf.mxu0
        %v2558 = vadd.f32 0.0, %v2557
        %v2559 = vpop.f32.mrf.mxu0
        %v2560 = vadd.f32 0.0, %v2559
        %2561 = vdwg.mxu0
        %2562 = vmatpush.bf16.msra.mxu0 0
        %2563 = vmatpush.bf16.msra.mxu0 0
        %2564 = vmatpush.bf16.msra.mxu0 0
        %2565 = vmatpush.bf16.msra.mxu0 0
        %2566 = vmatpush.bf16.msra.mxu0 0
        %2567 = vmatpush.bf16.msra.mxu0 0
        %2568 = vmatpush.bf16.msra.mxu0 %v2159
        %2569 = vmatpush.bf16.msra.mxu0 %v2006
        %2570 = vmatmul.bf16.gmra.mxu0 %v959
        %v2571 = vpop.f32.mrf.mxu0
        %v2572 = vadd.f32 0.0, %v2571
        %v2573 = vpop.f32.mrf.mxu0
        %v2574 = vadd.f32 0.0, %v2573
        %2575 = vdwg.mxu0
        %2576 = vmatpush.bf16.msra.mxu0 0
        %2577 = vmatpush.bf16.msra.mxu0 0
        %2578 = vmatpush.bf16.msra.mxu0 0
        %2579 = vmatpush.bf16.msra.mxu0 0
        %2580 = vmatpush.bf16.msra.mxu0 0
        %2581 = vmatpush.bf16.msra.mxu0 0
        %2582 = vmatpush.bf16.msra.mxu0 %v2162
        %2583 = vmatpush.bf16.msra.mxu0 %v2007
        %2584 = vmatmul.bf16.gmra.mxu0 %v959
        %v2585 = vpop.f32.mrf.mxu0
        %v2586 = vadd.f32 0.0, %v2585
        %v2587 = vpop.f32.mrf.mxu0
        %v2588 = vadd.f32 0.0, %v2587
        %2589 = vdwg.mxu0
        %2590 = vmatpush.bf16.msra.mxu0 0
        %2591 = vmatpush.bf16.msra.mxu0 0
        %2592 = vmatpush.bf16.msra.mxu0 0
        %2593 = vmatpush.bf16.msra.mxu0 0
        %2594 = vmatpush.bf16.msra.mxu0 0
        %2595 = vmatpush.bf16.msra.mxu0 0
        %2596 = vmatpush.bf16.msra.mxu0 %v2165
        %2597 = vmatpush.bf16.msra.mxu0 %v2008
        %2598 = vmatmul.bf16.gmra.mxu0 %v959
        %v2599 = vpop.f32.mrf.mxu0
        %v2600 = vadd.f32 0.0, %v2599
        %v2601 = vpop.f32.mrf.mxu0
        %v2602 = vadd.f32 0.0, %v2601
        %2603 = vdwg.mxu0
        %2604 = vmatpush.bf16.msra.mxu0 0
        %2605 = vmatpush.bf16.msra.mxu0 0
        %2606 = vmatpush.bf16.msra.mxu0 0
        %2607 = vmatpush.bf16.msra.mxu0 0
        %2608 = vmatpush.bf16.msra.mxu0 0
        %2609 = vmatpush.bf16.msra.mxu0 0
        %2610 = vmatpush.bf16.msra.mxu0 %v2168
        %2611 = vmatpush.bf16.msra.mxu0 %v2009
        %2612 = vmatmul.bf16.gmra.mxu0 %v959
        %v2613 = vpop.f32.mrf.mxu0
        %v2614 = vadd.f32 0.0, %v2613
        %v2615 = vpop.f32.mrf.mxu0
        %v2616 = vadd.f32 0.0, %v2615
        %2617 = vdwg.mxu0
        %v2618 = vmul.f32 %v2180, %v1512
        %v2619 = vmul.f32 %v2194, %v1512
        %v2620 = vmul.f32 %v2208, %v1512
        %v2621 = vmul.f32 %v2222, %v1512
        %v2622 = vmul.f32 %v2236, %v1512
        %v2623 = vmul.f32 %v2250, %v1512
        %v2624 = vmul.f32 %v2264, %v1512
        %v2625 = vmul.f32 %v2278, %v1512
        %v2626 = vmul.f32 %v2292, %v1512
        %v2627 = vmul.f32 %v2306, %v1512
        %v2628 = vmul.f32 %v2320, %v1512
        %v2629 = vmul.f32 %v2334, %v1512
        %v2630 = vmul.f32 %v2348, %v1512
        %v2631 = vmul.f32 %v2362, %v1512
        %v2632 = vmul.f32 %v2376, %v1512
        %v2633 = vmul.f32 %v2390, %v1512
        %v2634 = vmul.f32 %v2404, %v1512
        %v2635 = vmul.f32 %v2418, %v1512
        %v2636 = vmul.f32 %v2432, %v1512
        %v2637 = vmul.f32 %v2446, %v1512
        %v2638 = vmul.f32 %v2460, %v1512
        %v2639 = vmul.f32 %v2474, %v1512
        %v2640 = vmul.f32 %v2488, %v1512
        %v2641 = vmul.f32 %v2502, %v1512
        %v2642 = vmul.f32 %v2516, %v1512
        %v2643 = vmul.f32 %v2530, %v1512
        %v2644 = vmul.f32 %v2544, %v1512
        %v2645 = vmul.f32 %v2558, %v1512
        %v2646 = vmul.f32 %v2572, %v1512
        %v2647 = vmul.f32 %v2586, %v1512
        %v2648 = vmul.f32 %v2600, %v1512
        %v2649 = vmul.f32 %v2614, %v1512
        %v2650 = vmul.f32 %v2182, %v1517
        %v2651 = vmul.f32 %v2196, %v1517
        %v2652 = vmul.f32 %v2210, %v1517
        %v2653 = vmul.f32 %v2224, %v1517
        %v2654 = vmul.f32 %v2238, %v1517
        %v2655 = vmul.f32 %v2252, %v1517
        %v2656 = vmul.f32 %v2266, %v1517
        %v2657 = vmul.f32 %v2280, %v1517
        %v2658 = vmul.f32 %v2294, %v1517
        %v2659 = vmul.f32 %v2308, %v1517
        %v2660 = vmul.f32 %v2322, %v1517
        %v2661 = vmul.f32 %v2336, %v1517
        %v2662 = vmul.f32 %v2350, %v1517
        %v2663 = vmul.f32 %v2364, %v1517
        %v2664 = vmul.f32 %v2378, %v1517
        %v2665 = vmul.f32 %v2392, %v1517
        %v2666 = vmul.f32 %v2406, %v1517
        %v2667 = vmul.f32 %v2420, %v1517
        %v2668 = vmul.f32 %v2434, %v1517
        %v2669 = vmul.f32 %v2448, %v1517
        %v2670 = vmul.f32 %v2462, %v1517
        %v2671 = vmul.f32 %v2476, %v1517
        %v2672 = vmul.f32 %v2490, %v1517
        %v2673 = vmul.f32 %v2504, %v1517
        %v2674 = vmul.f32 %v2518, %v1517
        %v2675 = vmul.f32 %v2532, %v1517
        %v2676 = vmul.f32 %v2546, %v1517
        %v2677 = vmul.f32 %v2560, %v1517
        %v2678 = vmul.f32 %v2574, %v1517
        %v2679 = vmul.f32 %v2588, %v1517
        %v2680 = vmul.f32 %v2602, %v1517
        %v2681 = vmul.f32 %v2616, %v1517
        %v2682 = vadd.f32 %v2618, %v1586
        %v2683 = vadd.f32 %v2619, %v1586
        %v2684 = vadd.f32 %v2620, %v1586
        %v2685 = vadd.f32 %v2621, %v1586
        %v2686 = vadd.f32 %v2622, %v1586
        %v2687 = vadd.f32 %v2623, %v1586
        %v2688 = vadd.f32 %v2624, %v1586
        %v2689 = vadd.f32 %v2625, %v1586
        %v2690 = vadd.f32 %v2626, %v1586
        %v2691 = vadd.f32 %v2627, %v1586
        %v2692 = vadd.f32 %v2628, %v1586
        %v2693 = vadd.f32 %v2629, %v1586
        %v2694 = vadd.f32 %v2630, %v1586
        %v2695 = vadd.f32 %v2631, %v1586
        %v2696 = vadd.f32 %v2632, %v1586
        %v2697 = vadd.f32 %v2633, %v1586
        %v2698 = vadd.f32 %v2634, %v1586
        %v2699 = vadd.f32 %v2635, %v1586
        %v2700 = vadd.f32 %v2636, %v1586
        %v2701 = vadd.f32 %v2637, %v1586
        %v2702 = vadd.f32 %v2638, %v1586
        %v2703 = vadd.f32 %v2639, %v1586
        %v2704 = vadd.f32 %v2640, %v1586
        %v2705 = vadd.f32 %v2641, %v1586
        %v2706 = vadd.f32 %v2642, %v1586
        %v2707 = vadd.f32 %v2643, %v1586
        %v2708 = vadd.f32 %v2644, %v1586
        %v2709 = vadd.f32 %v2645, %v1586
        %v2710 = vadd.f32 %v2646, %v1586
        %v2711 = vadd.f32 %v2647, %v1586
        %v2712 = vadd.f32 %v2648, %v1586
        %v2713 = vadd.f32 %v2649, %v1586
        %v2714 = vadd.f32 %v2650, %v1591
        %v2715 = vadd.f32 %v2651, %v1591
        %v2716 = vadd.f32 %v2652, %v1591
        %v2717 = vadd.f32 %v2653, %v1591
        %v2718 = vadd.f32 %v2654, %v1591
        %v2719 = vadd.f32 %v2655, %v1591
        %v2720 = vadd.f32 %v2656, %v1591
        %v2721 = vadd.f32 %v2657, %v1591
        %v2722 = vadd.f32 %v2658, %v1591
        %v2723 = vadd.f32 %v2659, %v1591
        %v2724 = vadd.f32 %v2660, %v1591
        %v2725 = vadd.f32 %v2661, %v1591
        %v2726 = vadd.f32 %v2662, %v1591
        %v2727 = vadd.f32 %v2663, %v1591
        %v2728 = vadd.f32 %v2664, %v1591
        %v2729 = vadd.f32 %v2665, %v1591
        %v2730 = vadd.f32 %v2666, %v1591
        %v2731 = vadd.f32 %v2667, %v1591
        %v2732 = vadd.f32 %v2668, %v1591
        %v2733 = vadd.f32 %v2669, %v1591
        %v2734 = vadd.f32 %v2670, %v1591
        %v2735 = vadd.f32 %v2671, %v1591
        %v2736 = vadd.f32 %v2672, %v1591
        %v2737 = vadd.f32 %v2673, %v1591
        %v2738 = vadd.f32 %v2674, %v1591
        %v2739 = vadd.f32 %v2675, %v1591
        %v2740 = vadd.f32 %v2676, %v1591
        %v2741 = vadd.f32 %v2677, %v1591
        %v2742 = vadd.f32 %v2678, %v1591
        %v2743 = vadd.f32 %v2679, %v1591
        %v2744 = vadd.f32 %v2680, %v1591
        %v2745 = vadd.f32 %v2681, %v1591
        %v2746 = vmax.f32 %v2682, 0.0
        %v2747 = vmax.f32 %v2683, 0.0
        %v2748 = vmax.f32 %v2684, 0.0
        %v2749 = vmax.f32 %v2685, 0.0
        %v2750 = vmax.f32 %v2686, 0.0
        %v2751 = vmax.f32 %v2687, 0.0
        %v2752 = vmax.f32 %v2688, 0.0
        %v2753 = vmax.f32 %v2689, 0.0
        %v2754 = vmax.f32 %v2690, 0.0
        %v2755 = vmax.f32 %v2691, 0.0
        %v2756 = vmax.f32 %v2692, 0.0
        %v2757 = vmax.f32 %v2693, 0.0
        %v2758 = vmax.f32 %v2694, 0.0
        %v2759 = vmax.f32 %v2695, 0.0
        %v2760 = vmax.f32 %v2696, 0.0
        %v2761 = vmax.f32 %v2697, 0.0
        %v2762 = vmax.f32 %v2698, 0.0
        %v2763 = vmax.f32 %v2699, 0.0
        %v2764 = vmax.f32 %v2700, 0.0
        %v2765 = vmax.f32 %v2701, 0.0
        %v2766 = vmax.f32 %v2702, 0.0
        %v2767 = vmax.f32 %v2703, 0.0
        %v2768 = vmax.f32 %v2704, 0.0
        %v2769 = vmax.f32 %v2705, 0.0
        %v2770 = vmax.f32 %v2706, 0.0
        %v2771 = vmax.f32 %v2707, 0.0
        %v2772 = vmax.f32 %v2708, 0.0
        %v2773 = vmax.f32 %v2709, 0.0
        %v2774 = vmax.f32 %v2710, 0.0
        %v2775 = vmax.f32 %v2711, 0.0
        %v2776 = vmax.f32 %v2712, 0.0
        %v2777 = vmax.f32 %v2713, 0.0
        %v2778 = vmax.f32 %v2714, 0.0
        %v2779 = vmax.f32 %v2715, 0.0
        %v2780 = vmax.f32 %v2716, 0.0
        %v2781 = vmax.f32 %v2717, 0.0
        %v2782 = vmax.f32 %v2718, 0.0
        %v2783 = vmax.f32 %v2719, 0.0
        %v2784 = vmax.f32 %v2720, 0.0
        %v2785 = vmax.f32 %v2721, 0.0
        %v2786 = vmax.f32 %v2722, 0.0
        %v2787 = vmax.f32 %v2723, 0.0
        %v2788 = vmax.f32 %v2724, 0.0
        %v2789 = vmax.f32 %v2725, 0.0
        %v2790 = vmax.f32 %v2726, 0.0
        %v2791 = vmax.f32 %v2727, 0.0
        %v2792 = vmax.f32 %v2728, 0.0
        %v2793 = vmax.f32 %v2729, 0.0
        %v2794 = vmax.f32 %v2730, 0.0
        %v2795 = vmax.f32 %v2731, 0.0
        %v2796 = vmax.f32 %v2732, 0.0
        %v2797 = vmax.f32 %v2733, 0.0
        %v2798 = vmax.f32 %v2734, 0.0
        %v2799 = vmax.f32 %v2735, 0.0
        %v2800 = vmax.f32 %v2736, 0.0
        %v2801 = vmax.f32 %v2737, 0.0
        %v2802 = vmax.f32 %v2738, 0.0
        %v2803 = vmax.f32 %v2739, 0.0
        %v2804 = vmax.f32 %v2740, 0.0
        %v2805 = vmax.f32 %v2741, 0.0
        %v2806 = vmax.f32 %v2742, 0.0
        %v2807 = vmax.f32 %v2743, 0.0
        %v2808 = vmax.f32 %v2744, 0.0
        %v2809 = vmax.f32 %v2745, 0.0
        %v2810 = vmax.f32 %v1657, %v2746
        %v2811 = vmax.f32 %v1658, %v2747
        %v2812 = vmax.f32 %v1659, %v2748
        %v2813 = vmax.f32 %v1660, %v2749
        %v2814 = vmax.f32 %v1661, %v2750
        %v2815 = vmax.f32 %v1662, %v2751
        %v2816 = vmax.f32 %v1663, %v2752
        %v2817 = vmax.f32 %v1664, %v2753
        %v2818 = vmax.f32 %v1665, %v2754
        %v2819 = vmax.f32 %v1666, %v2755
        %v2820 = vmax.f32 %v1667, %v2756
        %v2821 = vmax.f32 %v1668, %v2757
        %v2822 = vmax.f32 %v1669, %v2758
        %v2823 = vmax.f32 %v1670, %v2759
        %v2824 = vmax.f32 %v1671, %v2760
        %v2825 = vmax.f32 %v1672, %v2761
        %v2826 = vmax.f32 %v1673, %v2762
        %v2827 = vmax.f32 %v1674, %v2763
        %v2828 = vmax.f32 %v1675, %v2764
        %v2829 = vmax.f32 %v1676, %v2765
        %v2830 = vmax.f32 %v1677, %v2766
        %v2831 = vmax.f32 %v1678, %v2767
        %v2832 = vmax.f32 %v1679, %v2768
        %v2833 = vmax.f32 %v1680, %v2769
        %v2834 = vmax.f32 %v1681, %v2770
        %v2835 = vmax.f32 %v1682, %v2771
        %v2836 = vmax.f32 %v1683, %v2772
        %v2837 = vmax.f32 %v1684, %v2773
        %v2838 = vmax.f32 %v1685, %v2774
        %v2839 = vmax.f32 %v1686, %v2775
        %v2840 = vmax.f32 %v1687, %v2776
        %v2841 = vmax.f32 %v1688, %v2777
        %v2842 = vmax.f32 %v1689, %v2778
        %v2843 = vmax.f32 %v1690, %v2779
        %v2844 = vmax.f32 %v1691, %v2780
        %v2845 = vmax.f32 %v1692, %v2781
        %v2846 = vmax.f32 %v1693, %v2782
        %v2847 = vmax.f32 %v1694, %v2783
        %v2848 = vmax.f32 %v1695, %v2784
        %v2849 = vmax.f32 %v1696, %v2785
        %v2850 = vmax.f32 %v1697, %v2786
        %v2851 = vmax.f32 %v1698, %v2787
        %v2852 = vmax.f32 %v1699, %v2788
        %v2853 = vmax.f32 %v1700, %v2789
        %v2854 = vmax.f32 %v1701, %v2790
        %v2855 = vmax.f32 %v1702, %v2791
        %v2856 = vmax.f32 %v1703, %v2792
        %v2857 = vmax.f32 %v1704, %v2793
        %v2858 = vmax.f32 %v1705, %v2794
        %v2859 = vmax.f32 %v1706, %v2795
        %v2860 = vmax.f32 %v1707, %v2796
        %v2861 = vmax.f32 %v1708, %v2797
        %v2862 = vmax.f32 %v1709, %v2798
        %v2863 = vmax.f32 %v1710, %v2799
        %v2864 = vmax.f32 %v1711, %v2800
        %v2865 = vmax.f32 %v1712, %v2801
        %v2866 = vmax.f32 %v1713, %v2802
        %v2867 = vmax.f32 %v1714, %v2803
        %v2868 = vmax.f32 %v1715, %v2804
        %v2869 = vmax.f32 %v1716, %v2805
        %v2870 = vmax.f32 %v1717, %v2806
        %v2871 = vmax.f32 %v1718, %v2807
        %v2872 = vmax.f32 %v1719, %v2808
        %v2873 = vmax.f32 %v1720, %v2809
        %s2874 = scalar_lea.vmem %s561, 1024 [#allocation2]
        %v2875 = vld [vmem:[%s2874] sm:$0xff]
        %v2876 = vld [vmem:[%s2874 + $0x8] sm:$0xff]
        %v2877 = vld [vmem:[%s2874 + $0x10] sm:$0xff]
        %v2878 = vld [vmem:[%s2874 + $0x18] sm:$0xff]
        %v2879 = vld [vmem:[%s2874 + $0x20] sm:$0xff]
        %v2880 = vld [vmem:[%s2874 + $0x28] sm:$0xff]
        %v2881 = vld [vmem:[%s2874 + $0x30] sm:$0xff]
        %v2882 = vld [vmem:[%s2874 + $0x38] sm:$0xff]
        %v2883 = vld [vmem:[%s2874 + $0x40] sm:$0xff]
        %v2884 = vld [vmem:[%s2874 + $0x48] sm:$0xff]
        %v2885 = vld [vmem:[%s2874 + $0x50] sm:$0xff]
        %v2886 = vld [vmem:[%s2874 + $0x58] sm:$0xff]
        %v2887 = vld [vmem:[%s2874 + $0x60] sm:$0xff]
        %v2888 = vld [vmem:[%s2874 + $0x68] sm:$0xff]
        %v2889 = vld [vmem:[%s2874 + $0x70] sm:$0xff]
        %v2890 = vld [vmem:[%s2874 + $0x78] sm:$0xff]
        %v2891 = vld [vmem:[%s2874 + $0x80] sm:$0xff]
        %v2892 = vld [vmem:[%s2874 + $0x88] sm:$0xff]
        %v2893 = vld [vmem:[%s2874 + $0x90] sm:$0xff]
        %v2894 = vld [vmem:[%s2874 + $0x98] sm:$0xff]
        %v2895 = vld [vmem:[%s2874 + $0xa0] sm:$0xff]
        %v2896 = vld [vmem:[%s2874 + $0xa8] sm:$0xff]
        %v2897 = vld [vmem:[%s2874 + $0xb0] sm:$0xff]
        %v2898 = vld [vmem:[%s2874 + $0xb8] sm:$0xff]
        %v2899 = vld [vmem:[%s2874 + $0xc0] sm:$0xff]
        %v2900 = vld [vmem:[%s2874 + $0xc8] sm:$0xff]
        %v2901 = vld [vmem:[%s2874 + $0xd0] sm:$0xff]
        %v2902 = vld [vmem:[%s2874 + $0xd8] sm:$0xff]
        %v2903 = vld [vmem:[%s2874 + $0xe0] sm:$0xff]
        %v2904 = vld [vmem:[%s2874 + $0xe8] sm:$0xff]
        %v2905 = vld [vmem:[%s2874 + $0xf0] sm:$0xff]
        %v2906 = vld [vmem:[%s2874 + $0xf8] sm:$0xff]
        %v2907 = vld [vmem:[%s2874 + $0x100] sm:$0xff]
        %v2908 = vld [vmem:[%s2874 + $0x108] sm:$0xff]
        %v2909 = vld [vmem:[%s2874 + $0x110] sm:$0xff]
        %v2910 = vld [vmem:[%s2874 + $0x118] sm:$0xff]
        %v2911 = vld [vmem:[%s2874 + $0x120] sm:$0xff]
        %v2912 = vld [vmem:[%s2874 + $0x128] sm:$0xff]
        %v2913 = vld [vmem:[%s2874 + $0x130] sm:$0xff]
        %v2914 = vld [vmem:[%s2874 + $0x138] sm:$0xff]
        %v2915 = vld [vmem:[%s2874 + $0x140] sm:$0xff]
        %v2916 = vld [vmem:[%s2874 + $0x148] sm:$0xff]
        %v2917 = vld [vmem:[%s2874 + $0x150] sm:$0xff]
        %v2918 = vld [vmem:[%s2874 + $0x158] sm:$0xff]
        %v2919 = vld [vmem:[%s2874 + $0x160] sm:$0xff]
        %v2920 = vld [vmem:[%s2874 + $0x168] sm:$0xff]
        %v2921 = vld [vmem:[%s2874 + $0x170] sm:$0xff]
        %v2922 = vld [vmem:[%s2874 + $0x178] sm:$0xff]
        %v2923 = vld [vmem:[%s2874 + $0x180] sm:$0x33]
        %v2924 = vld [vmem:[%s2874 + $0x188] sm:$0x33]
        %v2925 = vld [vmem:[%s2874 + $0x190] sm:$0x33]
        %v2926 = vld [vmem:[%s2874 + $0x198] sm:$0x33]
        %v2927 = vld [vmem:[%s2874 + $0x1a0] sm:$0x33]
        %v2928 = vld [vmem:[%s2874 + $0x1a8] sm:$0x33]
        %v2929 = vld [vmem:[%s2874 + $0x1b0] sm:$0x33]
        %v2930 = vld [vmem:[%s2874 + $0x1b8] sm:$0x33]
        %v2931 = vld [vmem:[%s2874 + $0x1c0] sm:$0x33]
        %v2932 = vld [vmem:[%s2874 + $0x1c8] sm:$0x33]
        %v2933 = vld [vmem:[%s2874 + $0x1d0] sm:$0x33]
        %v2934 = vld [vmem:[%s2874 + $0x1d8] sm:$0x33]
        %v2935 = vld [vmem:[%s2874 + $0x1e0] sm:$0x33]
        %v2936 = vld [vmem:[%s2874 + $0x1e8] sm:$0x33]
        %v2937 = vld [vmem:[%s2874 + $0x1f0] sm:$0x33]
        %v2938 = vld [vmem:[%s2874 + $0x1f8] sm:$0x33]
        %v3003 = vunpack.c.l.b16 %v2875
        %v3004 = vunpack.c.h.b16 %v2875
        %v3005 = vunpack.c.l.b16 %v2876
        %v3006 = vunpack.c.h.b16 %v2876
        %v3007 = vunpack.c.l.b16 %v2877
        %v3008 = vunpack.c.h.b16 %v2877
        %v3009 = vunpack.c.l.b16 %v2878
        %v3010 = vunpack.c.h.b16 %v2878
        %v3011 = vunpack.c.l.b16 %v2879
        %v3012 = vunpack.c.h.b16 %v2879
        %v3013 = vunpack.c.l.b16 %v2880
        %v3014 = vunpack.c.h.b16 %v2880
        %v3015 = vunpack.c.l.b16 %v2881
        %v3016 = vunpack.c.h.b16 %v2881
        %v3017 = vunpack.c.l.b16 %v2882
        %v3018 = vunpack.c.h.b16 %v2882
        %v3019 = vunpack.c.l.b16 %v2883
        %v3020 = vunpack.c.h.b16 %v2883
        %v3021 = vunpack.c.l.b16 %v2884
        %v3022 = vunpack.c.h.b16 %v2884
        %v3023 = vunpack.c.l.b16 %v2885
        %v3024 = vunpack.c.h.b16 %v2885
        %v3025 = vunpack.c.l.b16 %v2886
        %v3026 = vunpack.c.h.b16 %v2886
        %v3027 = vunpack.c.l.b16 %v2887
        %v3028 = vunpack.c.h.b16 %v2887
        %v3029 = vunpack.c.l.b16 %v2888
        %v3030 = vunpack.c.h.b16 %v2888
        %v3031 = vunpack.c.l.b16 %v2889
        %v3032 = vunpack.c.h.b16 %v2889
        %v3033 = vunpack.c.l.b16 %v2890
        %v3034 = vunpack.c.h.b16 %v2890
        %v3035 = vunpack.c.l.b16 %v2891
        %v3036 = vunpack.c.h.b16 %v2891
        %v3037 = vunpack.c.l.b16 %v2892
        %v3038 = vunpack.c.h.b16 %v2892
        %v3039 = vunpack.c.l.b16 %v2893
        %v3040 = vunpack.c.h.b16 %v2893
        %v3041 = vunpack.c.l.b16 %v2894
        %v3042 = vunpack.c.h.b16 %v2894
        %v3043 = vunpack.c.l.b16 %v2895
        %v3044 = vunpack.c.h.b16 %v2895
        %v3045 = vunpack.c.l.b16 %v2896
        %v3046 = vunpack.c.h.b16 %v2896
        %v3047 = vunpack.c.l.b16 %v2897
        %v3048 = vunpack.c.h.b16 %v2897
        %v3049 = vunpack.c.l.b16 %v2898
        %v3050 = vunpack.c.h.b16 %v2898
        %v3051 = vunpack.c.l.b16 %v2899
        %v3052 = vunpack.c.h.b16 %v2899
        %v3053 = vunpack.c.l.b16 %v2900
        %v3054 = vunpack.c.h.b16 %v2900
        %v3055 = vunpack.c.l.b16 %v2901
        %v3056 = vunpack.c.h.b16 %v2901
        %v3057 = vunpack.c.l.b16 %v2902
        %v3058 = vunpack.c.h.b16 %v2902
        %v3059 = vunpack.c.l.b16 %v2903
        %v3060 = vunpack.c.h.b16 %v2903
        %v3061 = vunpack.c.l.b16 %v2904
        %v3062 = vunpack.c.h.b16 %v2904
        %v3063 = vunpack.c.l.b16 %v2905
        %v3064 = vunpack.c.h.b16 %v2905
        %v3065 = vunpack.c.l.b16 %v2906
        %v3066 = vunpack.c.h.b16 %v2906
        %v3067 = vunpack.c.l.b16 %v2907
        %v3068 = vunpack.c.h.b16 %v2907
        %v3069 = vunpack.c.l.b16 %v2908
        %v3070 = vunpack.c.h.b16 %v2908
        %v3071 = vunpack.c.l.b16 %v2909
        %v3072 = vunpack.c.h.b16 %v2909
        %v3073 = vunpack.c.l.b16 %v2910
        %v3074 = vunpack.c.h.b16 %v2910
        %v3075 = vunpack.c.l.b16 %v2911
        %v3076 = vunpack.c.h.b16 %v2911
        %v3077 = vunpack.c.l.b16 %v2912
        %v3078 = vunpack.c.h.b16 %v2912
        %v3079 = vunpack.c.l.b16 %v2913
        %v3080 = vunpack.c.h.b16 %v2913
        %v3081 = vunpack.c.l.b16 %v2914
        %v3082 = vunpack.c.h.b16 %v2914
        %v3083 = vunpack.c.l.b16 %v2915
        %v3084 = vunpack.c.h.b16 %v2915
        %v3085 = vunpack.c.l.b16 %v2916
        %v3086 = vunpack.c.h.b16 %v2916
        %v3087 = vunpack.c.l.b16 %v2917
        %v3088 = vunpack.c.h.b16 %v2917
        %v3089 = vunpack.c.l.b16 %v2918
        %v3090 = vunpack.c.h.b16 %v2918
        %v3091 = vunpack.c.l.b16 %v2919
        %v3092 = vunpack.c.h.b16 %v2919
        %v3093 = vunpack.c.l.b16 %v2920
        %v3094 = vunpack.c.h.b16 %v2920
        %v3095 = vunpack.c.l.b16 %v2921
        %v3096 = vunpack.c.h.b16 %v2921
        %v3097 = vunpack.c.l.b16 %v2922
        %v3098 = vunpack.c.h.b16 %v2922
        %v3099 = vunpack.c.l.b16 %v2923
        %v3100 = vunpack.c.h.b16 %v2923
        %v3101 = vunpack.c.l.b16 %v2924
        %v3102 = vunpack.c.h.b16 %v2924
        %v3103 = vunpack.c.l.b16 %v2925
        %v3104 = vunpack.c.h.b16 %v2925
        %v3105 = vunpack.c.l.b16 %v2926
        %v3106 = vunpack.c.h.b16 %v2926
        %v3107 = vunpack.c.l.b16 %v2927
        %v3108 = vunpack.c.h.b16 %v2927
        %v3109 = vunpack.c.l.b16 %v2928
        %v3110 = vunpack.c.h.b16 %v2928
        %v3111 = vunpack.c.l.b16 %v2929
        %v3112 = vunpack.c.h.b16 %v2929
        %v3113 = vunpack.c.l.b16 %v2930
        %v3114 = vunpack.c.h.b16 %v2930
        %v3115 = vunpack.c.l.b16 %v2931
        %v3116 = vunpack.c.h.b16 %v2931
        %v3117 = vunpack.c.l.b16 %v2932
        %v3118 = vunpack.c.h.b16 %v2932
        %v3119 = vunpack.c.l.b16 %v2933
        %v3120 = vunpack.c.h.b16 %v2933
        %v3121 = vunpack.c.l.b16 %v2934
        %v3122 = vunpack.c.h.b16 %v2934
        %v3123 = vunpack.c.l.b16 %v2935
        %v3124 = vunpack.c.h.b16 %v2935
        %v3125 = vunpack.c.l.b16 %v2936
        %v3126 = vunpack.c.h.b16 %v2936
        %v3127 = vunpack.c.l.b16 %v2937
        %v3128 = vunpack.c.h.b16 %v2937
        %v3129 = vunpack.c.l.b16 %v2938
        %v3130 = vunpack.c.h.b16 %v2938
        %v3131 = vpack.c.b16 %v3035, %v3003
        %v3132 = vpack.c.b16 %v3036, %v3004
        %v3133 = vpack.c.b16 %v3037, %v3005
        %v3134 = vpack.c.b16 %v3038, %v3006
        %v3135 = vpack.c.b16 %v3039, %v3007
        %v3136 = vpack.c.b16 %v3040, %v3008
        %v3137 = vpack.c.b16 %v3041, %v3009
        %v3138 = vpack.c.b16 %v3042, %v3010
        %v3139 = vpack.c.b16 %v3043, %v3011
        %v3140 = vpack.c.b16 %v3044, %v3012
        %v3141 = vpack.c.b16 %v3045, %v3013
        %v3142 = vpack.c.b16 %v3046, %v3014
        %v3143 = vpack.c.b16 %v3047, %v3015
        %v3144 = vpack.c.b16 %v3048, %v3016
        %v3145 = vpack.c.b16 %v3049, %v3017
        %v3146 = vpack.c.b16 %v3050, %v3018
        %v3147 = vpack.c.b16 %v3051, %v3019
        %v3148 = vpack.c.b16 %v3052, %v3020
        %v3149 = vpack.c.b16 %v3053, %v3021
        %v3150 = vpack.c.b16 %v3054, %v3022
        %v3151 = vpack.c.b16 %v3055, %v3023
        %v3152 = vpack.c.b16 %v3056, %v3024
        %v3153 = vpack.c.b16 %v3057, %v3025
        %v3154 = vpack.c.b16 %v3058, %v3026
        %v3155 = vpack.c.b16 %v3059, %v3027
        %v3156 = vpack.c.b16 %v3060, %v3028
        %v3157 = vpack.c.b16 %v3061, %v3029
        %v3158 = vpack.c.b16 %v3062, %v3030
        %v3159 = vpack.c.b16 %v3063, %v3031
        %v3160 = vpack.c.b16 %v3064, %v3032
        %v3161 = vpack.c.b16 %v3065, %v3033
        %v3162 = vpack.c.b16 %v3066, %v3034
        %v3163 = vpack.c.b16 %v3099, %v3067
        %v3164 = vpack.c.b16 %v3100, %v3068
        %v3165 = vpack.c.b16 %v3101, %v3069
        %v3166 = vpack.c.b16 %v3102, %v3070
        %v3167 = vpack.c.b16 %v3103, %v3071
        %v3168 = vpack.c.b16 %v3104, %v3072
        %v3169 = vpack.c.b16 %v3105, %v3073
        %v3170 = vpack.c.b16 %v3106, %v3074
        %v3171 = vpack.c.b16 %v3107, %v3075
        %v3172 = vpack.c.b16 %v3108, %v3076
        %v3173 = vpack.c.b16 %v3109, %v3077
        %v3174 = vpack.c.b16 %v3110, %v3078
        %v3175 = vpack.c.b16 %v3111, %v3079
        %v3176 = vpack.c.b16 %v3112, %v3080
        %v3177 = vpack.c.b16 %v3113, %v3081
        %v3178 = vpack.c.b16 %v3114, %v3082
        %v3179 = vpack.c.b16 %v3115, %v3083
        %v3180 = vpack.c.b16 %v3116, %v3084
        %v3181 = vpack.c.b16 %v3117, %v3085
        %v3182 = vpack.c.b16 %v3118, %v3086
        %v3183 = vpack.c.b16 %v3119, %v3087
        %v3184 = vpack.c.b16 %v3120, %v3088
        %v3185 = vpack.c.b16 %v3121, %v3089
        %v3186 = vpack.c.b16 %v3122, %v3090
        %v3187 = vpack.c.b16 %v3123, %v3091
        %v3188 = vpack.c.b16 %v3124, %v3092
        %v3189 = vpack.c.b16 %v3125, %v3093
        %v3190 = vpack.c.b16 %v3126, %v3094
        %v3191 = vpack.c.b16 %v3127, %v3095
        %v3192 = vpack.c.b16 %v3128, %v3096
        %v3193 = vpack.c.b16 %v3129, %v3097
        %v3194 = vpack.c.b16 %v3130, %v3098
        %v3228 = vand.u32 %v3163, %v964
        %v3231 = vand.u32 %v3164, %v964
        %v3234 = vand.u32 %v3165, %v964
        %v3237 = vand.u32 %v3166, %v964
        %v3240 = vand.u32 %v3167, %v964
        %v3243 = vand.u32 %v3168, %v964
        %v3246 = vand.u32 %v3169, %v964
        %v3249 = vand.u32 %v3170, %v964
        %v3252 = vand.u32 %v3171, %v964
        %v3255 = vand.u32 %v3172, %v964
        %v3258 = vand.u32 %v3173, %v964
        %v3261 = vand.u32 %v3174, %v964
        %v3264 = vand.u32 %v3175, %v964
        %v3267 = vand.u32 %v3176, %v964
        %v3270 = vand.u32 %v3177, %v964
        %v3273 = vand.u32 %v3178, %v964
        %v3276 = vand.u32 %v3179, %v964
        %v3279 = vand.u32 %v3180, %v964
        %v3282 = vand.u32 %v3181, %v964
        %v3285 = vand.u32 %v3182, %v964
        %v3288 = vand.u32 %v3183, %v964
        %v3291 = vand.u32 %v3184, %v964
        %v3294 = vand.u32 %v3185, %v964
        %v3297 = vand.u32 %v3186, %v964
        %v3300 = vand.u32 %v3187, %v964
        %v3303 = vand.u32 %v3188, %v964
        %v3306 = vand.u32 %v3189, %v964
        %v3309 = vand.u32 %v3190, %v964
        %v3312 = vand.u32 %v3191, %v964
        %v3315 = vand.u32 %v3192, %v964
        %v3318 = vand.u32 %v3193, %v964
        %v3321 = vand.u32 %v3194, %v964
        %3323 = vmatpush.bf16.msra.mxu0 0
        %3324 = vmatpush.bf16.msra.mxu0 0
        %3325 = vmatpush.bf16.msra.mxu0 0
        %3326 = vmatpush.bf16.msra.mxu0 0
        %3327 = vmatpush.bf16.msra.mxu0 0
        %3328 = vmatpush.bf16.msra.mxu0 0
        %3329 = vmatpush.bf16.msra.mxu0 %v3228
        %3330 = vmatpush.bf16.msra.mxu0 %v3131
        %3331 = vmatmul.bf16.gmra.mxu0 %v959
        %v3332 = vpop.f32.mrf.mxu0
        %v3333 = vadd.f32 0.0, %v3332
        %v3334 = vpop.f32.mrf.mxu0
        %v3335 = vadd.f32 0.0, %v3334
        %3336 = vdwg.mxu0
        %3337 = vmatpush.bf16.msra.mxu0 0
        %3338 = vmatpush.bf16.msra.mxu0 0
        %3339 = vmatpush.bf16.msra.mxu0 0
        %3340 = vmatpush.bf16.msra.mxu0 0
        %3341 = vmatpush.bf16.msra.mxu0 0
        %3342 = vmatpush.bf16.msra.mxu0 0
        %3343 = vmatpush.bf16.msra.mxu0 %v3231
        %3344 = vmatpush.bf16.msra.mxu0 %v3132
        %3345 = vmatmul.bf16.gmra.mxu0 %v959
        %v3346 = vpop.f32.mrf.mxu0
        %v3347 = vadd.f32 0.0, %v3346
        %v3348 = vpop.f32.mrf.mxu0
        %v3349 = vadd.f32 0.0, %v3348
        %3350 = vdwg.mxu0
        %3351 = vmatpush.bf16.msra.mxu0 0
        %3352 = vmatpush.bf16.msra.mxu0 0
        %3353 = vmatpush.bf16.msra.mxu0 0
        %3354 = vmatpush.bf16.msra.mxu0 0
        %3355 = vmatpush.bf16.msra.mxu0 0
        %3356 = vmatpush.bf16.msra.mxu0 0
        %3357 = vmatpush.bf16.msra.mxu0 %v3234
        %3358 = vmatpush.bf16.msra.mxu0 %v3133
        %3359 = vmatmul.bf16.gmra.mxu0 %v959
        %v3360 = vpop.f32.mrf.mxu0
        %v3361 = vadd.f32 0.0, %v3360
        %v3362 = vpop.f32.mrf.mxu0
        %v3363 = vadd.f32 0.0, %v3362
        %3364 = vdwg.mxu0
        %3365 = vmatpush.bf16.msra.mxu0 0
        %3366 = vmatpush.bf16.msra.mxu0 0
        %3367 = vmatpush.bf16.msra.mxu0 0
        %3368 = vmatpush.bf16.msra.mxu0 0
        %3369 = vmatpush.bf16.msra.mxu0 0
        %3370 = vmatpush.bf16.msra.mxu0 0
        %3371 = vmatpush.bf16.msra.mxu0 %v3237
        %3372 = vmatpush.bf16.msra.mxu0 %v3134
        %3373 = vmatmul.bf16.gmra.mxu0 %v959
        %v3374 = vpop.f32.mrf.mxu0
        %v3375 = vadd.f32 0.0, %v3374
        %v3376 = vpop.f32.mrf.mxu0
        %v3377 = vadd.f32 0.0, %v3376
        %3378 = vdwg.mxu0
        %3379 = vmatpush.bf16.msra.mxu0 0
        %3380 = vmatpush.bf16.msra.mxu0 0
        %3381 = vmatpush.bf16.msra.mxu0 0
        %3382 = vmatpush.bf16.msra.mxu0 0
        %3383 = vmatpush.bf16.msra.mxu0 0
        %3384 = vmatpush.bf16.msra.mxu0 0
        %3385 = vmatpush.bf16.msra.mxu0 %v3240
        %3386 = vmatpush.bf16.msra.mxu0 %v3135
        %3387 = vmatmul.bf16.gmra.mxu0 %v959
        %v3388 = vpop.f32.mrf.mxu0
        %v3389 = vadd.f32 0.0, %v3388
        %v3390 = vpop.f32.mrf.mxu0
        %v3391 = vadd.f32 0.0, %v3390
        %3392 = vdwg.mxu0
        %3393 = vmatpush.bf16.msra.mxu0 0
        %3394 = vmatpush.bf16.msra.mxu0 0
        %3395 = vmatpush.bf16.msra.mxu0 0
        %3396 = vmatpush.bf16.msra.mxu0 0
        %3397 = vmatpush.bf16.msra.mxu0 0
        %3398 = vmatpush.bf16.msra.mxu0 0
        %3399 = vmatpush.bf16.msra.mxu0 %v3243
        %3400 = vmatpush.bf16.msra.mxu0 %v3136
        %3401 = vmatmul.bf16.gmra.mxu0 %v959
        %v3402 = vpop.f32.mrf.mxu0
        %v3403 = vadd.f32 0.0, %v3402
        %v3404 = vpop.f32.mrf.mxu0
        %v3405 = vadd.f32 0.0, %v3404
        %3406 = vdwg.mxu0
        %3407 = vmatpush.bf16.msra.mxu0 0
        %3408 = vmatpush.bf16.msra.mxu0 0
        %3409 = vmatpush.bf16.msra.mxu0 0
        %3410 = vmatpush.bf16.msra.mxu0 0
        %3411 = vmatpush.bf16.msra.mxu0 0
        %3412 = vmatpush.bf16.msra.mxu0 0
        %3413 = vmatpush.bf16.msra.mxu0 %v3246
        %3414 = vmatpush.bf16.msra.mxu0 %v3137
        %3415 = vmatmul.bf16.gmra.mxu0 %v959
        %v3416 = vpop.f32.mrf.mxu0
        %v3417 = vadd.f32 0.0, %v3416
        %v3418 = vpop.f32.mrf.mxu0
        %v3419 = vadd.f32 0.0, %v3418
        %3420 = vdwg.mxu0
        %3421 = vmatpush.bf16.msra.mxu0 0
        %3422 = vmatpush.bf16.msra.mxu0 0
        %3423 = vmatpush.bf16.msra.mxu0 0
        %3424 = vmatpush.bf16.msra.mxu0 0
        %3425 = vmatpush.bf16.msra.mxu0 0
        %3426 = vmatpush.bf16.msra.mxu0 0
        %3427 = vmatpush.bf16.msra.mxu0 %v3249
        %3428 = vmatpush.bf16.msra.mxu0 %v3138
        %3429 = vmatmul.bf16.gmra.mxu0 %v959
        %v3430 = vpop.f32.mrf.mxu0
        %v3431 = vadd.f32 0.0, %v3430
        %v3432 = vpop.f32.mrf.mxu0
        %v3433 = vadd.f32 0.0, %v3432
        %3434 = vdwg.mxu0
        %3435 = vmatpush.bf16.msra.mxu0 0
        %3436 = vmatpush.bf16.msra.mxu0 0
        %3437 = vmatpush.bf16.msra.mxu0 0
        %3438 = vmatpush.bf16.msra.mxu0 0
        %3439 = vmatpush.bf16.msra.mxu0 0
        %3440 = vmatpush.bf16.msra.mxu0 0
        %3441 = vmatpush.bf16.msra.mxu0 %v3252
        %3442 = vmatpush.bf16.msra.mxu0 %v3139
        %3443 = vmatmul.bf16.gmra.mxu0 %v959
        %v3444 = vpop.f32.mrf.mxu0
        %v3445 = vadd.f32 0.0, %v3444
        %v3446 = vpop.f32.mrf.mxu0
        %v3447 = vadd.f32 0.0, %v3446
        %3448 = vdwg.mxu0
        %3449 = vmatpush.bf16.msra.mxu0 0
        %3450 = vmatpush.bf16.msra.mxu0 0
        %3451 = vmatpush.bf16.msra.mxu0 0
        %3452 = vmatpush.bf16.msra.mxu0 0
        %3453 = vmatpush.bf16.msra.mxu0 0
        %3454 = vmatpush.bf16.msra.mxu0 0
        %3455 = vmatpush.bf16.msra.mxu0 %v3255
        %3456 = vmatpush.bf16.msra.mxu0 %v3140
        %3457 = vmatmul.bf16.gmra.mxu0 %v959
        %v3458 = vpop.f32.mrf.mxu0
        %v3459 = vadd.f32 0.0, %v3458
        %v3460 = vpop.f32.mrf.mxu0
        %v3461 = vadd.f32 0.0, %v3460
        %3462 = vdwg.mxu0
        %3463 = vmatpush.bf16.msra.mxu0 0
        %3464 = vmatpush.bf16.msra.mxu0 0
        %3465 = vmatpush.bf16.msra.mxu0 0
        %3466 = vmatpush.bf16.msra.mxu0 0
        %3467 = vmatpush.bf16.msra.mxu0 0
        %3468 = vmatpush.bf16.msra.mxu0 0
        %3469 = vmatpush.bf16.msra.mxu0 %v3258
        %3470 = vmatpush.bf16.msra.mxu0 %v3141
        %3471 = vmatmul.bf16.gmra.mxu0 %v959
        %v3472 = vpop.f32.mrf.mxu0
        %v3473 = vadd.f32 0.0, %v3472
        %v3474 = vpop.f32.mrf.mxu0
        %v3475 = vadd.f32 0.0, %v3474
        %3476 = vdwg.mxu0
        %3477 = vmatpush.bf16.msra.mxu0 0
        %3478 = vmatpush.bf16.msra.mxu0 0
        %3479 = vmatpush.bf16.msra.mxu0 0
        %3480 = vmatpush.bf16.msra.mxu0 0
        %3481 = vmatpush.bf16.msra.mxu0 0
        %3482 = vmatpush.bf16.msra.mxu0 0
        %3483 = vmatpush.bf16.msra.mxu0 %v3261
        %3484 = vmatpush.bf16.msra.mxu0 %v3142
        %3485 = vmatmul.bf16.gmra.mxu0 %v959
        %v3486 = vpop.f32.mrf.mxu0
        %v3487 = vadd.f32 0.0, %v3486
        %v3488 = vpop.f32.mrf.mxu0
        %v3489 = vadd.f32 0.0, %v3488
        %3490 = vdwg.mxu0
        %3491 = vmatpush.bf16.msra.mxu0 0
        %3492 = vmatpush.bf16.msra.mxu0 0
        %3493 = vmatpush.bf16.msra.mxu0 0
        %3494 = vmatpush.bf16.msra.mxu0 0
        %3495 = vmatpush.bf16.msra.mxu0 0
        %3496 = vmatpush.bf16.msra.mxu0 0
        %3497 = vmatpush.bf16.msra.mxu0 %v3264
        %3498 = vmatpush.bf16.msra.mxu0 %v3143
        %3499 = vmatmul.bf16.gmra.mxu0 %v959
        %v3500 = vpop.f32.mrf.mxu0
        %v3501 = vadd.f32 0.0, %v3500
        %v3502 = vpop.f32.mrf.mxu0
        %v3503 = vadd.f32 0.0, %v3502
        %3504 = vdwg.mxu0
        %3505 = vmatpush.bf16.msra.mxu0 0
        %3506 = vmatpush.bf16.msra.mxu0 0
        %3507 = vmatpush.bf16.msra.mxu0 0
        %3508 = vmatpush.bf16.msra.mxu0 0
        %3509 = vmatpush.bf16.msra.mxu0 0
        %3510 = vmatpush.bf16.msra.mxu0 0
        %3511 = vmatpush.bf16.msra.mxu0 %v3267
        %3512 = vmatpush.bf16.msra.mxu0 %v3144
        %3513 = vmatmul.bf16.gmra.mxu0 %v959
        %v3514 = vpop.f32.mrf.mxu0
        %v3515 = vadd.f32 0.0, %v3514
        %v3516 = vpop.f32.mrf.mxu0
        %v3517 = vadd.f32 0.0, %v3516
        %3518 = vdwg.mxu0
        %3519 = vmatpush.bf16.msra.mxu0 0
        %3520 = vmatpush.bf16.msra.mxu0 0
        %3521 = vmatpush.bf16.msra.mxu0 0
        %3522 = vmatpush.bf16.msra.mxu0 0
        %3523 = vmatpush.bf16.msra.mxu0 0
        %3524 = vmatpush.bf16.msra.mxu0 0
        %3525 = vmatpush.bf16.msra.mxu0 %v3270
        %3526 = vmatpush.bf16.msra.mxu0 %v3145
        %3527 = vmatmul.bf16.gmra.mxu0 %v959
        %v3528 = vpop.f32.mrf.mxu0
        %v3529 = vadd.f32 0.0, %v3528
        %v3530 = vpop.f32.mrf.mxu0
        %v3531 = vadd.f32 0.0, %v3530
        %3532 = vdwg.mxu0
        %3533 = vmatpush.bf16.msra.mxu0 0
        %3534 = vmatpush.bf16.msra.mxu0 0
        %3535 = vmatpush.bf16.msra.mxu0 0
        %3536 = vmatpush.bf16.msra.mxu0 0
        %3537 = vmatpush.bf16.msra.mxu0 0
        %3538 = vmatpush.bf16.msra.mxu0 0
        %3539 = vmatpush.bf16.msra.mxu0 %v3273
        %3540 = vmatpush.bf16.msra.mxu0 %v3146
        %3541 = vmatmul.bf16.gmra.mxu0 %v959
        %v3542 = vpop.f32.mrf.mxu0
        %v3543 = vadd.f32 0.0, %v3542
        %v3544 = vpop.f32.mrf.mxu0
        %v3545 = vadd.f32 0.0, %v3544
        %3546 = vdwg.mxu0
        %3547 = vmatpush.bf16.msra.mxu0 0
        %3548 = vmatpush.bf16.msra.mxu0 0
        %3549 = vmatpush.bf16.msra.mxu0 0
        %3550 = vmatpush.bf16.msra.mxu0 0
        %3551 = vmatpush.bf16.msra.mxu0 0
        %3552 = vmatpush.bf16.msra.mxu0 0
        %3553 = vmatpush.bf16.msra.mxu0 %v3276
        %3554 = vmatpush.bf16.msra.mxu0 %v3147
        %3555 = vmatmul.bf16.gmra.mxu0 %v959
        %v3556 = vpop.f32.mrf.mxu0
        %v3557 = vadd.f32 0.0, %v3556
        %v3558 = vpop.f32.mrf.mxu0
        %v3559 = vadd.f32 0.0, %v3558
        %3560 = vdwg.mxu0
        %3561 = vmatpush.bf16.msra.mxu0 0
        %3562 = vmatpush.bf16.msra.mxu0 0
        %3563 = vmatpush.bf16.msra.mxu0 0
        %3564 = vmatpush.bf16.msra.mxu0 0
        %3565 = vmatpush.bf16.msra.mxu0 0
        %3566 = vmatpush.bf16.msra.mxu0 0
        %3567 = vmatpush.bf16.msra.mxu0 %v3279
        %3568 = vmatpush.bf16.msra.mxu0 %v3148
        %3569 = vmatmul.bf16.gmra.mxu0 %v959
        %v3570 = vpop.f32.mrf.mxu0
        %v3571 = vadd.f32 0.0, %v3570
        %v3572 = vpop.f32.mrf.mxu0
        %v3573 = vadd.f32 0.0, %v3572
        %3574 = vdwg.mxu0
        %3575 = vmatpush.bf16.msra.mxu0 0
        %3576 = vmatpush.bf16.msra.mxu0 0
        %3577 = vmatpush.bf16.msra.mxu0 0
        %3578 = vmatpush.bf16.msra.mxu0 0
        %3579 = vmatpush.bf16.msra.mxu0 0
        %3580 = vmatpush.bf16.msra.mxu0 0
        %3581 = vmatpush.bf16.msra.mxu0 %v3282
        %3582 = vmatpush.bf16.msra.mxu0 %v3149
        %3583 = vmatmul.bf16.gmra.mxu0 %v959
        %v3584 = vpop.f32.mrf.mxu0
        %v3585 = vadd.f32 0.0, %v3584
        %v3586 = vpop.f32.mrf.mxu0
        %v3587 = vadd.f32 0.0, %v3586
        %3588 = vdwg.mxu0
        %3589 = vmatpush.bf16.msra.mxu0 0
        %3590 = vmatpush.bf16.msra.mxu0 0
        %3591 = vmatpush.bf16.msra.mxu0 0
        %3592 = vmatpush.bf16.msra.mxu0 0
        %3593 = vmatpush.bf16.msra.mxu0 0
        %3594 = vmatpush.bf16.msra.mxu0 0
        %3595 = vmatpush.bf16.msra.mxu0 %v3285
        %3596 = vmatpush.bf16.msra.mxu0 %v3150
        %3597 = vmatmul.bf16.gmra.mxu0 %v959
        %v3598 = vpop.f32.mrf.mxu0
        %v3599 = vadd.f32 0.0, %v3598
        %v3600 = vpop.f32.mrf.mxu0
        %v3601 = vadd.f32 0.0, %v3600
        %3602 = vdwg.mxu0
        %3603 = vmatpush.bf16.msra.mxu0 0
        %3604 = vmatpush.bf16.msra.mxu0 0
        %3605 = vmatpush.bf16.msra.mxu0 0
        %3606 = vmatpush.bf16.msra.mxu0 0
        %3607 = vmatpush.bf16.msra.mxu0 0
        %3608 = vmatpush.bf16.msra.mxu0 0
        %3609 = vmatpush.bf16.msra.mxu0 %v3288
        %3610 = vmatpush.bf16.msra.mxu0 %v3151
        %3611 = vmatmul.bf16.gmra.mxu0 %v959
        %v3612 = vpop.f32.mrf.mxu0
        %v3613 = vadd.f32 0.0, %v3612
        %v3614 = vpop.f32.mrf.mxu0
        %v3615 = vadd.f32 0.0, %v3614
        %3616 = vdwg.mxu0
        %3617 = vmatpush.bf16.msra.mxu0 0
        %3618 = vmatpush.bf16.msra.mxu0 0
        %3619 = vmatpush.bf16.msra.mxu0 0
        %3620 = vmatpush.bf16.msra.mxu0 0
        %3621 = vmatpush.bf16.msra.mxu0 0
        %3622 = vmatpush.bf16.msra.mxu0 0
        %3623 = vmatpush.bf16.msra.mxu0 %v3291
        %3624 = vmatpush.bf16.msra.mxu0 %v3152
        %3625 = vmatmul.bf16.gmra.mxu0 %v959
        %v3626 = vpop.f32.mrf.mxu0
        %v3627 = vadd.f32 0.0, %v3626
        %v3628 = vpop.f32.mrf.mxu0
        %v3629 = vadd.f32 0.0, %v3628
        %3630 = vdwg.mxu0
        %3631 = vmatpush.bf16.msra.mxu0 0
        %3632 = vmatpush.bf16.msra.mxu0 0
        %3633 = vmatpush.bf16.msra.mxu0 0
        %3634 = vmatpush.bf16.msra.mxu0 0
        %3635 = vmatpush.bf16.msra.mxu0 0
        %3636 = vmatpush.bf16.msra.mxu0 0
        %3637 = vmatpush.bf16.msra.mxu0 %v3294
        %3638 = vmatpush.bf16.msra.mxu0 %v3153
        %3639 = vmatmul.bf16.gmra.mxu0 %v959
        %v3640 = vpop.f32.mrf.mxu0
        %v3641 = vadd.f32 0.0, %v3640
        %v3642 = vpop.f32.mrf.mxu0
        %v3643 = vadd.f32 0.0, %v3642
        %3644 = vdwg.mxu0
        %3645 = vmatpush.bf16.msra.mxu0 0
        %3646 = vmatpush.bf16.msra.mxu0 0
        %3647 = vmatpush.bf16.msra.mxu0 0
        %3648 = vmatpush.bf16.msra.mxu0 0
        %3649 = vmatpush.bf16.msra.mxu0 0
        %3650 = vmatpush.bf16.msra.mxu0 0
        %3651 = vmatpush.bf16.msra.mxu0 %v3297
        %3652 = vmatpush.bf16.msra.mxu0 %v3154
        %3653 = vmatmul.bf16.gmra.mxu0 %v959
        %v3654 = vpop.f32.mrf.mxu0
        %v3655 = vadd.f32 0.0, %v3654
        %v3656 = vpop.f32.mrf.mxu0
        %v3657 = vadd.f32 0.0, %v3656
        %3658 = vdwg.mxu0
        %3659 = vmatpush.bf16.msra.mxu0 0
        %3660 = vmatpush.bf16.msra.mxu0 0
        %3661 = vmatpush.bf16.msra.mxu0 0
        %3662 = vmatpush.bf16.msra.mxu0 0
        %3663 = vmatpush.bf16.msra.mxu0 0
        %3664 = vmatpush.bf16.msra.mxu0 0
        %3665 = vmatpush.bf16.msra.mxu0 %v3300
        %3666 = vmatpush.bf16.msra.mxu0 %v3155
        %3667 = vmatmul.bf16.gmra.mxu0 %v959
        %v3668 = vpop.f32.mrf.mxu0
        %v3669 = vadd.f32 0.0, %v3668
        %v3670 = vpop.f32.mrf.mxu0
        %v3671 = vadd.f32 0.0, %v3670
        %3672 = vdwg.mxu0
        %3673 = vmatpush.bf16.msra.mxu0 0
        %3674 = vmatpush.bf16.msra.mxu0 0
        %3675 = vmatpush.bf16.msra.mxu0 0
        %3676 = vmatpush.bf16.msra.mxu0 0
        %3677 = vmatpush.bf16.msra.mxu0 0
        %3678 = vmatpush.bf16.msra.mxu0 0
        %3679 = vmatpush.bf16.msra.mxu0 %v3303
        %3680 = vmatpush.bf16.msra.mxu0 %v3156
        %3681 = vmatmul.bf16.gmra.mxu0 %v959
        %v3682 = vpop.f32.mrf.mxu0
        %v3683 = vadd.f32 0.0, %v3682
        %v3684 = vpop.f32.mrf.mxu0
        %v3685 = vadd.f32 0.0, %v3684
        %3686 = vdwg.mxu0
        %3687 = vmatpush.bf16.msra.mxu0 0
        %3688 = vmatpush.bf16.msra.mxu0 0
        %3689 = vmatpush.bf16.msra.mxu0 0
        %3690 = vmatpush.bf16.msra.mxu0 0
        %3691 = vmatpush.bf16.msra.mxu0 0
        %3692 = vmatpush.bf16.msra.mxu0 0
        %3693 = vmatpush.bf16.msra.mxu0 %v3306
        %3694 = vmatpush.bf16.msra.mxu0 %v3157
        %3695 = vmatmul.bf16.gmra.mxu0 %v959
        %v3696 = vpop.f32.mrf.mxu0
        %v3697 = vadd.f32 0.0, %v3696
        %v3698 = vpop.f32.mrf.mxu0
        %v3699 = vadd.f32 0.0, %v3698
        %3700 = vdwg.mxu0
        %3701 = vmatpush.bf16.msra.mxu0 0
        %3702 = vmatpush.bf16.msra.mxu0 0
        %3703 = vmatpush.bf16.msra.mxu0 0
        %3704 = vmatpush.bf16.msra.mxu0 0
        %3705 = vmatpush.bf16.msra.mxu0 0
        %3706 = vmatpush.bf16.msra.mxu0 0
        %3707 = vmatpush.bf16.msra.mxu0 %v3309
        %3708 = vmatpush.bf16.msra.mxu0 %v3158
        %3709 = vmatmul.bf16.gmra.mxu0 %v959
        %v3710 = vpop.f32.mrf.mxu0
        %v3711 = vadd.f32 0.0, %v3710
        %v3712 = vpop.f32.mrf.mxu0
        %v3713 = vadd.f32 0.0, %v3712
        %3714 = vdwg.mxu0
        %3715 = vmatpush.bf16.msra.mxu0 0
        %3716 = vmatpush.bf16.msra.mxu0 0
        %3717 = vmatpush.bf16.msra.mxu0 0
        %3718 = vmatpush.bf16.msra.mxu0 0
        %3719 = vmatpush.bf16.msra.mxu0 0
        %3720 = vmatpush.bf16.msra.mxu0 0
        %3721 = vmatpush.bf16.msra.mxu0 %v3312
        %3722 = vmatpush.bf16.msra.mxu0 %v3159
        %3723 = vmatmul.bf16.gmra.mxu0 %v959
        %v3724 = vpop.f32.mrf.mxu0
        %v3725 = vadd.f32 0.0, %v3724
        %v3726 = vpop.f32.mrf.mxu0
        %v3727 = vadd.f32 0.0, %v3726
        %3728 = vdwg.mxu0
        %3729 = vmatpush.bf16.msra.mxu0 0
        %3730 = vmatpush.bf16.msra.mxu0 0
        %3731 = vmatpush.bf16.msra.mxu0 0
        %3732 = vmatpush.bf16.msra.mxu0 0
        %3733 = vmatpush.bf16.msra.mxu0 0
        %3734 = vmatpush.bf16.msra.mxu0 0
        %3735 = vmatpush.bf16.msra.mxu0 %v3315
        %3736 = vmatpush.bf16.msra.mxu0 %v3160
        %3737 = vmatmul.bf16.gmra.mxu0 %v959
        %v3738 = vpop.f32.mrf.mxu0
        %v3739 = vadd.f32 0.0, %v3738
        %v3740 = vpop.f32.mrf.mxu0
        %v3741 = vadd.f32 0.0, %v3740
        %3742 = vdwg.mxu0
        %3743 = vmatpush.bf16.msra.mxu0 0
        %3744 = vmatpush.bf16.msra.mxu0 0
        %3745 = vmatpush.bf16.msra.mxu0 0
        %3746 = vmatpush.bf16.msra.mxu0 0
        %3747 = vmatpush.bf16.msra.mxu0 0
        %3748 = vmatpush.bf16.msra.mxu0 0
        %3749 = vmatpush.bf16.msra.mxu0 %v3318
        %3750 = vmatpush.bf16.msra.mxu0 %v3161
        %3751 = vmatmul.bf16.gmra.mxu0 %v959
        %v3752 = vpop.f32.mrf.mxu0
        %v3753 = vadd.f32 0.0, %v3752
        %v3754 = vpop.f32.mrf.mxu0
        %v3755 = vadd.f32 0.0, %v3754
        %3756 = vdwg.mxu0
        %3757 = vmatpush.bf16.msra.mxu0 0
        %3758 = vmatpush.bf16.msra.mxu0 0
        %3759 = vmatpush.bf16.msra.mxu0 0
        %3760 = vmatpush.bf16.msra.mxu0 0
        %3761 = vmatpush.bf16.msra.mxu0 0
        %3762 = vmatpush.bf16.msra.mxu0 0
        %3763 = vmatpush.bf16.msra.mxu0 %v3321
        %3764 = vmatpush.bf16.msra.mxu0 %v3162
        %3765 = vmatmul.bf16.gmra.mxu0 %v959
        %v3766 = vpop.f32.mrf.mxu0
        %v3767 = vadd.f32 0.0, %v3766
        %v3768 = vpop.f32.mrf.mxu0
        %v3769 = vadd.f32 0.0, %v3768
        %3770 = vdwg.mxu0
        %v3771 = vmul.f32 %v3333, %v1512
        %v3772 = vmul.f32 %v3347, %v1512
        %v3773 = vmul.f32 %v3361, %v1512
        %v3774 = vmul.f32 %v3375, %v1512
        %v3775 = vmul.f32 %v3389, %v1512
        %v3776 = vmul.f32 %v3403, %v1512
        %v3777 = vmul.f32 %v3417, %v1512
        %v3778 = vmul.f32 %v3431, %v1512
        %v3779 = vmul.f32 %v3445, %v1512
        %v3780 = vmul.f32 %v3459, %v1512
        %v3781 = vmul.f32 %v3473, %v1512
        %v3782 = vmul.f32 %v3487, %v1512
        %v3783 = vmul.f32 %v3501, %v1512
        %v3784 = vmul.f32 %v3515, %v1512
        %v3785 = vmul.f32 %v3529, %v1512
        %v3786 = vmul.f32 %v3543, %v1512
        %v3787 = vmul.f32 %v3557, %v1512
        %v3788 = vmul.f32 %v3571, %v1512
        %v3789 = vmul.f32 %v3585, %v1512
        %v3790 = vmul.f32 %v3599, %v1512
        %v3791 = vmul.f32 %v3613, %v1512
        %v3792 = vmul.f32 %v3627, %v1512
        %v3793 = vmul.f32 %v3641, %v1512
        %v3794 = vmul.f32 %v3655, %v1512
        %v3795 = vmul.f32 %v3669, %v1512
        %v3796 = vmul.f32 %v3683, %v1512
        %v3797 = vmul.f32 %v3697, %v1512
        %v3798 = vmul.f32 %v3711, %v1512
        %v3799 = vmul.f32 %v3725, %v1512
        %v3800 = vmul.f32 %v3739, %v1512
        %v3801 = vmul.f32 %v3753, %v1512
        %v3802 = vmul.f32 %v3767, %v1512
        %v3803 = vmul.f32 %v3335, %v1517
        %v3804 = vmul.f32 %v3349, %v1517
        %v3805 = vmul.f32 %v3363, %v1517
        %v3806 = vmul.f32 %v3377, %v1517
        %v3807 = vmul.f32 %v3391, %v1517
        %v3808 = vmul.f32 %v3405, %v1517
        %v3809 = vmul.f32 %v3419, %v1517
        %v3810 = vmul.f32 %v3433, %v1517
        %v3811 = vmul.f32 %v3447, %v1517
        %v3812 = vmul.f32 %v3461, %v1517
        %v3813 = vmul.f32 %v3475, %v1517
        %v3814 = vmul.f32 %v3489, %v1517
        %v3815 = vmul.f32 %v3503, %v1517
        %v3816 = vmul.f32 %v3517, %v1517
        %v3817 = vmul.f32 %v3531, %v1517
        %v3818 = vmul.f32 %v3545, %v1517
        %v3819 = vmul.f32 %v3559, %v1517
        %v3820 = vmul.f32 %v3573, %v1517
        %v3821 = vmul.f32 %v3587, %v1517
        %v3822 = vmul.f32 %v3601, %v1517
        %v3823 = vmul.f32 %v3615, %v1517
        %v3824 = vmul.f32 %v3629, %v1517
        %v3825 = vmul.f32 %v3643, %v1517
        %v3826 = vmul.f32 %v3657, %v1517
        %v3827 = vmul.f32 %v3671, %v1517
        %v3828 = vmul.f32 %v3685, %v1517
        %v3829 = vmul.f32 %v3699, %v1517
        %v3830 = vmul.f32 %v3713, %v1517
        %v3831 = vmul.f32 %v3727, %v1517
        %v3832 = vmul.f32 %v3741, %v1517
        %v3833 = vmul.f32 %v3755, %v1517
        %v3834 = vmul.f32 %v3769, %v1517
        %v3835 = vadd.f32 %v3771, %v1586
        %v3836 = vadd.f32 %v3772, %v1586
        %v3837 = vadd.f32 %v3773, %v1586
        %v3838 = vadd.f32 %v3774, %v1586
        %v3839 = vadd.f32 %v3775, %v1586
        %v3840 = vadd.f32 %v3776, %v1586
        %v3841 = vadd.f32 %v3777, %v1586
        %v3842 = vadd.f32 %v3778, %v1586
        %v3843 = vadd.f32 %v3779, %v1586
        %v3844 = vadd.f32 %v3780, %v1586
        %v3845 = vadd.f32 %v3781, %v1586
        %v3846 = vadd.f32 %v3782, %v1586
        %v3847 = vadd.f32 %v3783, %v1586
        %v3848 = vadd.f32 %v3784, %v1586
        %v3849 = vadd.f32 %v3785, %v1586
        %v3850 = vadd.f32 %v3786, %v1586
        %v3851 = vadd.f32 %v3787, %v1586
        %v3852 = vadd.f32 %v3788, %v1586
        %v3853 = vadd.f32 %v3789, %v1586
        %v3854 = vadd.f32 %v3790, %v1586
        %v3855 = vadd.f32 %v3791, %v1586
        %v3856 = vadd.f32 %v3792, %v1586
        %v3857 = vadd.f32 %v3793, %v1586
        %v3858 = vadd.f32 %v3794, %v1586
        %v3859 = vadd.f32 %v3795, %v1586
        %v3860 = vadd.f32 %v3796, %v1586
        %v3861 = vadd.f32 %v3797, %v1586
        %v3862 = vadd.f32 %v3798, %v1586
        %v3863 = vadd.f32 %v3799, %v1586
        %v3864 = vadd.f32 %v3800, %v1586
        %v3865 = vadd.f32 %v3801, %v1586
        %v3866 = vadd.f32 %v3802, %v1586
        %v3867 = vadd.f32 %v3803, %v1591
        %v3868 = vadd.f32 %v3804, %v1591
        %v3869 = vadd.f32 %v3805, %v1591
        %v3870 = vadd.f32 %v3806, %v1591
        %v3871 = vadd.f32 %v3807, %v1591
        %v3872 = vadd.f32 %v3808, %v1591
        %v3873 = vadd.f32 %v3809, %v1591
        %v3874 = vadd.f32 %v3810, %v1591
        %v3875 = vadd.f32 %v3811, %v1591
        %v3876 = vadd.f32 %v3812, %v1591
        %v3877 = vadd.f32 %v3813, %v1591
        %v3878 = vadd.f32 %v3814, %v1591
        %v3879 = vadd.f32 %v3815, %v1591
        %v3880 = vadd.f32 %v3816, %v1591
        %v3881 = vadd.f32 %v3817, %v1591
        %v3882 = vadd.f32 %v3818, %v1591
        %v3883 = vadd.f32 %v3819, %v1591
        %v3884 = vadd.f32 %v3820, %v1591
        %v3885 = vadd.f32 %v3821, %v1591
        %v3886 = vadd.f32 %v3822, %v1591
        %v3887 = vadd.f32 %v3823, %v1591
        %v3888 = vadd.f32 %v3824, %v1591
        %v3889 = vadd.f32 %v3825, %v1591
        %v3890 = vadd.f32 %v3826, %v1591
        %v3891 = vadd.f32 %v3827, %v1591
        %v3892 = vadd.f32 %v3828, %v1591
        %v3893 = vadd.f32 %v3829, %v1591
        %v3894 = vadd.f32 %v3830, %v1591
        %v3895 = vadd.f32 %v3831, %v1591
        %v3896 = vadd.f32 %v3832, %v1591
        %v3897 = vadd.f32 %v3833, %v1591
        %v3898 = vadd.f32 %v3834, %v1591
        %v3899 = vmax.f32 %v3835, 0.0
        %v3900 = vmax.f32 %v3836, 0.0
        %v3901 = vmax.f32 %v3837, 0.0
        %v3902 = vmax.f32 %v3838, 0.0
        %v3903 = vmax.f32 %v3839, 0.0
        %v3904 = vmax.f32 %v3840, 0.0
        %v3905 = vmax.f32 %v3841, 0.0
        %v3906 = vmax.f32 %v3842, 0.0
        %v3907 = vmax.f32 %v3843, 0.0
        %v3908 = vmax.f32 %v3844, 0.0
        %v3909 = vmax.f32 %v3845, 0.0
        %v3910 = vmax.f32 %v3846, 0.0
        %v3911 = vmax.f32 %v3847, 0.0
        %v3912 = vmax.f32 %v3848, 0.0
        %v3913 = vmax.f32 %v3849, 0.0
        %v3914 = vmax.f32 %v3850, 0.0
        %v3915 = vmax.f32 %v3851, 0.0
        %v3916 = vmax.f32 %v3852, 0.0
        %v3917 = vmax.f32 %v3853, 0.0
        %v3918 = vmax.f32 %v3854, 0.0
        %v3919 = vmax.f32 %v3855, 0.0
        %v3920 = vmax.f32 %v3856, 0.0
        %v3921 = vmax.f32 %v3857, 0.0
        %v3922 = vmax.f32 %v3858, 0.0
        %v3923 = vmax.f32 %v3859, 0.0
        %v3924 = vmax.f32 %v3860, 0.0
        %v3925 = vmax.f32 %v3861, 0.0
        %v3926 = vmax.f32 %v3862, 0.0
        %v3927 = vmax.f32 %v3863, 0.0
        %v3928 = vmax.f32 %v3864, 0.0
        %v3929 = vmax.f32 %v3865, 0.0
        %v3930 = vmax.f32 %v3866, 0.0
        %v3931 = vmax.f32 %v3867, 0.0
        %v3932 = vmax.f32 %v3868, 0.0
        %v3933 = vmax.f32 %v3869, 0.0
        %v3934 = vmax.f32 %v3870, 0.0
        %v3935 = vmax.f32 %v3871, 0.0
        %v3936 = vmax.f32 %v3872, 0.0
        %v3937 = vmax.f32 %v3873, 0.0
        %v3938 = vmax.f32 %v3874, 0.0
        %v3939 = vmax.f32 %v3875, 0.0
        %v3940 = vmax.f32 %v3876, 0.0
        %v3941 = vmax.f32 %v3877, 0.0
        %v3942 = vmax.f32 %v3878, 0.0
        %v3943 = vmax.f32 %v3879, 0.0
        %v3944 = vmax.f32 %v3880, 0.0
        %v3945 = vmax.f32 %v3881, 0.0
        %v3946 = vmax.f32 %v3882, 0.0
        %v3947 = vmax.f32 %v3883, 0.0
        %v3948 = vmax.f32 %v3884, 0.0
        %v3949 = vmax.f32 %v3885, 0.0
        %v3950 = vmax.f32 %v3886, 0.0
        %v3951 = vmax.f32 %v3887, 0.0
        %v3952 = vmax.f32 %v3888, 0.0
        %v3953 = vmax.f32 %v3889, 0.0
        %v3954 = vmax.f32 %v3890, 0.0
        %v3955 = vmax.f32 %v3891, 0.0
        %v3956 = vmax.f32 %v3892, 0.0
        %v3957 = vmax.f32 %v3893, 0.0
        %v3958 = vmax.f32 %v3894, 0.0
        %v3959 = vmax.f32 %v3895, 0.0
        %v3960 = vmax.f32 %v3896, 0.0
        %v3961 = vmax.f32 %v3897, 0.0
        %v3962 = vmax.f32 %v3898, 0.0
        %s3963 = scalar_lea.vmem %s561, 1536 [#allocation2]
        %v3964 = vld [vmem:[%s3963] sm:$0xff]
        %v3965 = vld [vmem:[%s3963 + $0x8] sm:$0xff]
        %v3966 = vld [vmem:[%s3963 + $0x10] sm:$0xff]
        %v3967 = vld [vmem:[%s3963 + $0x18] sm:$0xff]
        %v3968 = vld [vmem:[%s3963 + $0x20] sm:$0xff]
        %v3969 = vld [vmem:[%s3963 + $0x28] sm:$0xff]
        %v3970 = vld [vmem:[%s3963 + $0x30] sm:$0xff]
        %v3971 = vld [vmem:[%s3963 + $0x38] sm:$0xff]
        %v3972 = vld [vmem:[%s3963 + $0x40] sm:$0xff]
        %v3973 = vld [vmem:[%s3963 + $0x48] sm:$0xff]
        %v3974 = vld [vmem:[%s3963 + $0x50] sm:$0xff]
        %v3975 = vld [vmem:[%s3963 + $0x58] sm:$0xff]
        %v3976 = vld [vmem:[%s3963 + $0x60] sm:$0xff]
        %v3977 = vld [vmem:[%s3963 + $0x68] sm:$0xff]
        %v3978 = vld [vmem:[%s3963 + $0x70] sm:$0xff]
        %v3979 = vld [vmem:[%s3963 + $0x78] sm:$0xff]
        %v3980 = vld [vmem:[%s3963 + $0x80] sm:$0xff]
        %v3981 = vld [vmem:[%s3963 + $0x88] sm:$0xff]
        %v3982 = vld [vmem:[%s3963 + $0x90] sm:$0xff]
        %v3983 = vld [vmem:[%s3963 + $0x98] sm:$0xff]
        %v3984 = vld [vmem:[%s3963 + $0xa0] sm:$0xff]
        %v3985 = vld [vmem:[%s3963 + $0xa8] sm:$0xff]
        %v3986 = vld [vmem:[%s3963 + $0xb0] sm:$0xff]
        %v3987 = vld [vmem:[%s3963 + $0xb8] sm:$0xff]
        %v3988 = vld [vmem:[%s3963 + $0xc0] sm:$0xff]
        %v3989 = vld [vmem:[%s3963 + $0xc8] sm:$0xff]
        %v3990 = vld [vmem:[%s3963 + $0xd0] sm:$0xff]
        %v3991 = vld [vmem:[%s3963 + $0xd8] sm:$0xff]
        %v3992 = vld [vmem:[%s3963 + $0xe0] sm:$0xff]
        %v3993 = vld [vmem:[%s3963 + $0xe8] sm:$0xff]
        %v3994 = vld [vmem:[%s3963 + $0xf0] sm:$0xff]
        %v3995 = vld [vmem:[%s3963 + $0xf8] sm:$0xff]
        %v3996 = vld [vmem:[%s3963 + $0x100] sm:$0xff]
        %v3997 = vld [vmem:[%s3963 + $0x108] sm:$0xff]
        %v3998 = vld [vmem:[%s3963 + $0x110] sm:$0xff]
        %v3999 = vld [vmem:[%s3963 + $0x118] sm:$0xff]
        %v4000 = vld [vmem:[%s3963 + $0x120] sm:$0xff]
        %v4001 = vld [vmem:[%s3963 + $0x128] sm:$0xff]
        %v4002 = vld [vmem:[%s3963 + $0x130] sm:$0xff]
        %v4003 = vld [vmem:[%s3963 + $0x138] sm:$0xff]
        %v4004 = vld [vmem:[%s3963 + $0x140] sm:$0xff]
        %v4005 = vld [vmem:[%s3963 + $0x148] sm:$0xff]
        %v4006 = vld [vmem:[%s3963 + $0x150] sm:$0xff]
        %v4007 = vld [vmem:[%s3963 + $0x158] sm:$0xff]
        %v4008 = vld [vmem:[%s3963 + $0x160] sm:$0xff]
        %v4009 = vld [vmem:[%s3963 + $0x168] sm:$0xff]
        %v4010 = vld [vmem:[%s3963 + $0x170] sm:$0xff]
        %v4011 = vld [vmem:[%s3963 + $0x178] sm:$0xff]
        %v4012 = vld [vmem:[%s3963 + $0x180] sm:$0x33]
        %v4013 = vld [vmem:[%s3963 + $0x188] sm:$0x33]
        %v4014 = vld [vmem:[%s3963 + $0x190] sm:$0x33]
        %v4015 = vld [vmem:[%s3963 + $0x198] sm:$0x33]
        %v4016 = vld [vmem:[%s3963 + $0x1a0] sm:$0x33]
        %v4017 = vld [vmem:[%s3963 + $0x1a8] sm:$0x33]
        %v4018 = vld [vmem:[%s3963 + $0x1b0] sm:$0x33]
        %v4019 = vld [vmem:[%s3963 + $0x1b8] sm:$0x33]
        %v4020 = vld [vmem:[%s3963 + $0x1c0] sm:$0x33]
        %v4021 = vld [vmem:[%s3963 + $0x1c8] sm:$0x33]
        %v4022 = vld [vmem:[%s3963 + $0x1d0] sm:$0x33]
        %v4023 = vld [vmem:[%s3963 + $0x1d8] sm:$0x33]
        %v4024 = vld [vmem:[%s3963 + $0x1e0] sm:$0x33]
        %v4025 = vld [vmem:[%s3963 + $0x1e8] sm:$0x33]
        %v4026 = vld [vmem:[%s3963 + $0x1f0] sm:$0x33]
        %v4027 = vld [vmem:[%s3963 + $0x1f8] sm:$0x33]
        %v4092 = vunpack.c.l.b16 %v3964
        %v4093 = vunpack.c.h.b16 %v3964
        %v4094 = vunpack.c.l.b16 %v3965
        %v4095 = vunpack.c.h.b16 %v3965
        %v4096 = vunpack.c.l.b16 %v3966
        %v4097 = vunpack.c.h.b16 %v3966
        %v4098 = vunpack.c.l.b16 %v3967
        %v4099 = vunpack.c.h.b16 %v3967
        %v4100 = vunpack.c.l.b16 %v3968
        %v4101 = vunpack.c.h.b16 %v3968
        %v4102 = vunpack.c.l.b16 %v3969
        %v4103 = vunpack.c.h.b16 %v3969
        %v4104 = vunpack.c.l.b16 %v3970
        %v4105 = vunpack.c.h.b16 %v3970
        %v4106 = vunpack.c.l.b16 %v3971
        %v4107 = vunpack.c.h.b16 %v3971
        %v4108 = vunpack.c.l.b16 %v3972
        %v4109 = vunpack.c.h.b16 %v3972
        %v4110 = vunpack.c.l.b16 %v3973
        %v4111 = vunpack.c.h.b16 %v3973
        %v4112 = vunpack.c.l.b16 %v3974
        %v4113 = vunpack.c.h.b16 %v3974
        %v4114 = vunpack.c.l.b16 %v3975
        %v4115 = vunpack.c.h.b16 %v3975
        %v4116 = vunpack.c.l.b16 %v3976
        %v4117 = vunpack.c.h.b16 %v3976
        %v4118 = vunpack.c.l.b16 %v3977
        %v4119 = vunpack.c.h.b16 %v3977
        %v4120 = vunpack.c.l.b16 %v3978
        %v4121 = vunpack.c.h.b16 %v3978
        %v4122 = vunpack.c.l.b16 %v3979
        %v4123 = vunpack.c.h.b16 %v3979
        %v4124 = vunpack.c.l.b16 %v3980
        %v4125 = vunpack.c.h.b16 %v3980
        %v4126 = vunpack.c.l.b16 %v3981
        %v4127 = vunpack.c.h.b16 %v3981
        %v4128 = vunpack.c.l.b16 %v3982
        %v4129 = vunpack.c.h.b16 %v3982
        %v4130 = vunpack.c.l.b16 %v3983
        %v4131 = vunpack.c.h.b16 %v3983
        %v4132 = vunpack.c.l.b16 %v3984
        %v4133 = vunpack.c.h.b16 %v3984
        %v4134 = vunpack.c.l.b16 %v3985
        %v4135 = vunpack.c.h.b16 %v3985
        %v4136 = vunpack.c.l.b16 %v3986
        %v4137 = vunpack.c.h.b16 %v3986
        %v4138 = vunpack.c.l.b16 %v3987
        %v4139 = vunpack.c.h.b16 %v3987
        %v4140 = vunpack.c.l.b16 %v3988
        %v4141 = vunpack.c.h.b16 %v3988
        %v4142 = vunpack.c.l.b16 %v3989
        %v4143 = vunpack.c.h.b16 %v3989
        %v4144 = vunpack.c.l.b16 %v3990
        %v4145 = vunpack.c.h.b16 %v3990
        %v4146 = vunpack.c.l.b16 %v3991
        %v4147 = vunpack.c.h.b16 %v3991
        %v4148 = vunpack.c.l.b16 %v3992
        %v4149 = vunpack.c.h.b16 %v3992
        %v4150 = vunpack.c.l.b16 %v3993
        %v4151 = vunpack.c.h.b16 %v3993
        %v4152 = vunpack.c.l.b16 %v3994
        %v4153 = vunpack.c.h.b16 %v3994
        %v4154 = vunpack.c.l.b16 %v3995
        %v4155 = vunpack.c.h.b16 %v3995
        %v4156 = vunpack.c.l.b16 %v3996
        %v4157 = vunpack.c.h.b16 %v3996
        %v4158 = vunpack.c.l.b16 %v3997
        %v4159 = vunpack.c.h.b16 %v3997
        %v4160 = vunpack.c.l.b16 %v3998
        %v4161 = vunpack.c.h.b16 %v3998
        %v4162 = vunpack.c.l.b16 %v3999
        %v4163 = vunpack.c.h.b16 %v3999
        %v4164 = vunpack.c.l.b16 %v4000
        %v4165 = vunpack.c.h.b16 %v4000
        %v4166 = vunpack.c.l.b16 %v4001
        %v4167 = vunpack.c.h.b16 %v4001
        %v4168 = vunpack.c.l.b16 %v4002
        %v4169 = vunpack.c.h.b16 %v4002
        %v4170 = vunpack.c.l.b16 %v4003
        %v4171 = vunpack.c.h.b16 %v4003
        %v4172 = vunpack.c.l.b16 %v4004
        %v4173 = vunpack.c.h.b16 %v4004
        %v4174 = vunpack.c.l.b16 %v4005
        %v4175 = vunpack.c.h.b16 %v4005
        %v4176 = vunpack.c.l.b16 %v4006
        %v4177 = vunpack.c.h.b16 %v4006
        %v4178 = vunpack.c.l.b16 %v4007
        %v4179 = vunpack.c.h.b16 %v4007
        %v4180 = vunpack.c.l.b16 %v4008
        %v4181 = vunpack.c.h.b16 %v4008
        %v4182 = vunpack.c.l.b16 %v4009
        %v4183 = vunpack.c.h.b16 %v4009
        %v4184 = vunpack.c.l.b16 %v4010
        %v4185 = vunpack.c.h.b16 %v4010
        %v4186 = vunpack.c.l.b16 %v4011
        %v4187 = vunpack.c.h.b16 %v4011
        %v4188 = vunpack.c.l.b16 %v4012
        %v4189 = vunpack.c.h.b16 %v4012
        %v4190 = vunpack.c.l.b16 %v4013
        %v4191 = vunpack.c.h.b16 %v4013
        %v4192 = vunpack.c.l.b16 %v4014
        %v4193 = vunpack.c.h.b16 %v4014
        %v4194 = vunpack.c.l.b16 %v4015
        %v4195 = vunpack.c.h.b16 %v4015
        %v4196 = vunpack.c.l.b16 %v4016
        %v4197 = vunpack.c.h.b16 %v4016
        %v4198 = vunpack.c.l.b16 %v4017
        %v4199 = vunpack.c.h.b16 %v4017
        %v4200 = vunpack.c.l.b16 %v4018
        %v4201 = vunpack.c.h.b16 %v4018
        %v4202 = vunpack.c.l.b16 %v4019
        %v4203 = vunpack.c.h.b16 %v4019
        %v4204 = vunpack.c.l.b16 %v4020
        %v4205 = vunpack.c.h.b16 %v4020
        %v4206 = vunpack.c.l.b16 %v4021
        %v4207 = vunpack.c.h.b16 %v4021
        %v4208 = vunpack.c.l.b16 %v4022
        %v4209 = vunpack.c.h.b16 %v4022
        %v4210 = vunpack.c.l.b16 %v4023
        %v4211 = vunpack.c.h.b16 %v4023
        %v4212 = vunpack.c.l.b16 %v4024
        %v4213 = vunpack.c.h.b16 %v4024
        %v4214 = vunpack.c.l.b16 %v4025
        %v4215 = vunpack.c.h.b16 %v4025
        %v4216 = vunpack.c.l.b16 %v4026
        %v4217 = vunpack.c.h.b16 %v4026
        %v4218 = vunpack.c.l.b16 %v4027
        %v4219 = vunpack.c.h.b16 %v4027
        %v4220 = vpack.c.b16 %v4124, %v4092
        %v4221 = vpack.c.b16 %v4125, %v4093
        %v4222 = vpack.c.b16 %v4126, %v4094
        %v4223 = vpack.c.b16 %v4127, %v4095
        %v4224 = vpack.c.b16 %v4128, %v4096
        %v4225 = vpack.c.b16 %v4129, %v4097
        %v4226 = vpack.c.b16 %v4130, %v4098
        %v4227 = vpack.c.b16 %v4131, %v4099
        %v4228 = vpack.c.b16 %v4132, %v4100
        %v4229 = vpack.c.b16 %v4133, %v4101
        %v4230 = vpack.c.b16 %v4134, %v4102
        %v4231 = vpack.c.b16 %v4135, %v4103
        %v4232 = vpack.c.b16 %v4136, %v4104
        %v4233 = vpack.c.b16 %v4137, %v4105
        %v4234 = vpack.c.b16 %v4138, %v4106
        %v4235 = vpack.c.b16 %v4139, %v4107
        %v4236 = vpack.c.b16 %v4140, %v4108
        %v4237 = vpack.c.b16 %v4141, %v4109
        %v4238 = vpack.c.b16 %v4142, %v4110
        %v4239 = vpack.c.b16 %v4143, %v4111
        %v4240 = vpack.c.b16 %v4144, %v4112
        %v4241 = vpack.c.b16 %v4145, %v4113
        %v4242 = vpack.c.b16 %v4146, %v4114
        %v4243 = vpack.c.b16 %v4147, %v4115
        %v4244 = vpack.c.b16 %v4148, %v4116
        %v4245 = vpack.c.b16 %v4149, %v4117
        %v4246 = vpack.c.b16 %v4150, %v4118
        %v4247 = vpack.c.b16 %v4151, %v4119
        %v4248 = vpack.c.b16 %v4152, %v4120
        %v4249 = vpack.c.b16 %v4153, %v4121
        %v4250 = vpack.c.b16 %v4154, %v4122
        %v4251 = vpack.c.b16 %v4155, %v4123
        %v4252 = vpack.c.b16 %v4188, %v4156
        %v4253 = vpack.c.b16 %v4189, %v4157
        %v4254 = vpack.c.b16 %v4190, %v4158
        %v4255 = vpack.c.b16 %v4191, %v4159
        %v4256 = vpack.c.b16 %v4192, %v4160
        %v4257 = vpack.c.b16 %v4193, %v4161
        %v4258 = vpack.c.b16 %v4194, %v4162
        %v4259 = vpack.c.b16 %v4195, %v4163
        %v4260 = vpack.c.b16 %v4196, %v4164
        %v4261 = vpack.c.b16 %v4197, %v4165
        %v4262 = vpack.c.b16 %v4198, %v4166
        %v4263 = vpack.c.b16 %v4199, %v4167
        %v4264 = vpack.c.b16 %v4200, %v4168
        %v4265 = vpack.c.b16 %v4201, %v4169
        %v4266 = vpack.c.b16 %v4202, %v4170
        %v4267 = vpack.c.b16 %v4203, %v4171
        %v4268 = vpack.c.b16 %v4204, %v4172
        %v4269 = vpack.c.b16 %v4205, %v4173
        %v4270 = vpack.c.b16 %v4206, %v4174
        %v4271 = vpack.c.b16 %v4207, %v4175
        %v4272 = vpack.c.b16 %v4208, %v4176
        %v4273 = vpack.c.b16 %v4209, %v4177
        %v4274 = vpack.c.b16 %v4210, %v4178
        %v4275 = vpack.c.b16 %v4211, %v4179
        %v4276 = vpack.c.b16 %v4212, %v4180
        %v4277 = vpack.c.b16 %v4213, %v4181
        %v4278 = vpack.c.b16 %v4214, %v4182
        %v4279 = vpack.c.b16 %v4215, %v4183
        %v4280 = vpack.c.b16 %v4216, %v4184
        %v4281 = vpack.c.b16 %v4217, %v4185
        %v4282 = vpack.c.b16 %v4218, %v4186
        %v4283 = vpack.c.b16 %v4219, %v4187
        %v4317 = vand.u32 %v4252, %v964
        %v4320 = vand.u32 %v4253, %v964
        %v4323 = vand.u32 %v4254, %v964
        %v4326 = vand.u32 %v4255, %v964
        %v4329 = vand.u32 %v4256, %v964
        %v4332 = vand.u32 %v4257, %v964
        %v4335 = vand.u32 %v4258, %v964
        %v4338 = vand.u32 %v4259, %v964
        %v4341 = vand.u32 %v4260, %v964
        %v4344 = vand.u32 %v4261, %v964
        %v4347 = vand.u32 %v4262, %v964
        %v4350 = vand.u32 %v4263, %v964
        %v4353 = vand.u32 %v4264, %v964
        %v4356 = vand.u32 %v4265, %v964
        %v4359 = vand.u32 %v4266, %v964
        %v4362 = vand.u32 %v4267, %v964
        %v4365 = vand.u32 %v4268, %v964
        %v4368 = vand.u32 %v4269, %v964
        %v4371 = vand.u32 %v4270, %v964
        %v4374 = vand.u32 %v4271, %v964
        %v4377 = vand.u32 %v4272, %v964
        %v4380 = vand.u32 %v4273, %v964
        %v4383 = vand.u32 %v4274, %v964
        %v4386 = vand.u32 %v4275, %v964
        %v4389 = vand.u32 %v4276, %v964
        %v4392 = vand.u32 %v4277, %v964
        %v4395 = vand.u32 %v4278, %v964
        %v4398 = vand.u32 %v4279, %v964
        %v4401 = vand.u32 %v4280, %v964
        %v4404 = vand.u32 %v4281, %v964
        %v4407 = vand.u32 %v4282, %v964
        %v4410 = vand.u32 %v4283, %v964
        %4412 = vmatpush.bf16.msra.mxu0 0
        %4413 = vmatpush.bf16.msra.mxu0 0
        %4414 = vmatpush.bf16.msra.mxu0 0
        %4415 = vmatpush.bf16.msra.mxu0 0
        %4416 = vmatpush.bf16.msra.mxu0 0
        %4417 = vmatpush.bf16.msra.mxu0 0
        %4418 = vmatpush.bf16.msra.mxu0 %v4317
        %4419 = vmatpush.bf16.msra.mxu0 %v4220
        %4420 = vmatmul.bf16.gmra.mxu0 %v959
        %v4421 = vpop.f32.mrf.mxu0
        %v4422 = vadd.f32 0.0, %v4421
        %v4423 = vpop.f32.mrf.mxu0
        %v4424 = vadd.f32 0.0, %v4423
        %4425 = vdwg.mxu0
        %4426 = vmatpush.bf16.msra.mxu0 0
        %4427 = vmatpush.bf16.msra.mxu0 0
        %4428 = vmatpush.bf16.msra.mxu0 0
        %4429 = vmatpush.bf16.msra.mxu0 0
        %4430 = vmatpush.bf16.msra.mxu0 0
        %4431 = vmatpush.bf16.msra.mxu0 0
        %4432 = vmatpush.bf16.msra.mxu0 %v4320
        %4433 = vmatpush.bf16.msra.mxu0 %v4221
        %4434 = vmatmul.bf16.gmra.mxu0 %v959
        %v4435 = vpop.f32.mrf.mxu0
        %v4436 = vadd.f32 0.0, %v4435
        %v4437 = vpop.f32.mrf.mxu0
        %v4438 = vadd.f32 0.0, %v4437
        %4439 = vdwg.mxu0
        %4440 = vmatpush.bf16.msra.mxu0 0
        %4441 = vmatpush.bf16.msra.mxu0 0
        %4442 = vmatpush.bf16.msra.mxu0 0
        %4443 = vmatpush.bf16.msra.mxu0 0
        %4444 = vmatpush.bf16.msra.mxu0 0
        %4445 = vmatpush.bf16.msra.mxu0 0
        %4446 = vmatpush.bf16.msra.mxu0 %v4323
        %4447 = vmatpush.bf16.msra.mxu0 %v4222
        %4448 = vmatmul.bf16.gmra.mxu0 %v959
        %v4449 = vpop.f32.mrf.mxu0
        %v4450 = vadd.f32 0.0, %v4449
        %v4451 = vpop.f32.mrf.mxu0
        %v4452 = vadd.f32 0.0, %v4451
        %4453 = vdwg.mxu0
        %4454 = vmatpush.bf16.msra.mxu0 0
        %4455 = vmatpush.bf16.msra.mxu0 0
        %4456 = vmatpush.bf16.msra.mxu0 0
        %4457 = vmatpush.bf16.msra.mxu0 0
        %4458 = vmatpush.bf16.msra.mxu0 0
        %4459 = vmatpush.bf16.msra.mxu0 0
        %4460 = vmatpush.bf16.msra.mxu0 %v4326
        %4461 = vmatpush.bf16.msra.mxu0 %v4223
        %4462 = vmatmul.bf16.gmra.mxu0 %v959
        %v4463 = vpop.f32.mrf.mxu0
        %v4464 = vadd.f32 0.0, %v4463
        %v4465 = vpop.f32.mrf.mxu0
        %v4466 = vadd.f32 0.0, %v4465
        %4467 = vdwg.mxu0
        %4468 = vmatpush.bf16.msra.mxu0 0
        %4469 = vmatpush.bf16.msra.mxu0 0
        %4470 = vmatpush.bf16.msra.mxu0 0
        %4471 = vmatpush.bf16.msra.mxu0 0
        %4472 = vmatpush.bf16.msra.mxu0 0
        %4473 = vmatpush.bf16.msra.mxu0 0
        %4474 = vmatpush.bf16.msra.mxu0 %v4329
        %4475 = vmatpush.bf16.msra.mxu0 %v4224
        %4476 = vmatmul.bf16.gmra.mxu0 %v959
        %v4477 = vpop.f32.mrf.mxu0
        %v4478 = vadd.f32 0.0, %v4477
        %v4479 = vpop.f32.mrf.mxu0
        %v4480 = vadd.f32 0.0, %v4479
        %4481 = vdwg.mxu0
        %4482 = vmatpush.bf16.msra.mxu0 0
        %4483 = vmatpush.bf16.msra.mxu0 0
        %4484 = vmatpush.bf16.msra.mxu0 0
        %4485 = vmatpush.bf16.msra.mxu0 0
        %4486 = vmatpush.bf16.msra.mxu0 0
        %4487 = vmatpush.bf16.msra.mxu0 0
        %4488 = vmatpush.bf16.msra.mxu0 %v4332
        %4489 = vmatpush.bf16.msra.mxu0 %v4225
        %4490 = vmatmul.bf16.gmra.mxu0 %v959
        %v4491 = vpop.f32.mrf.mxu0
        %v4492 = vadd.f32 0.0, %v4491
        %v4493 = vpop.f32.mrf.mxu0
        %v4494 = vadd.f32 0.0, %v4493
        %4495 = vdwg.mxu0
        %4496 = vmatpush.bf16.msra.mxu0 0
        %4497 = vmatpush.bf16.msra.mxu0 0
        %4498 = vmatpush.bf16.msra.mxu0 0
        %4499 = vmatpush.bf16.msra.mxu0 0
        %4500 = vmatpush.bf16.msra.mxu0 0
        %4501 = vmatpush.bf16.msra.mxu0 0
        %4502 = vmatpush.bf16.msra.mxu0 %v4335
        %4503 = vmatpush.bf16.msra.mxu0 %v4226
        %4504 = vmatmul.bf16.gmra.mxu0 %v959
        %v4505 = vpop.f32.mrf.mxu0
        %v4506 = vadd.f32 0.0, %v4505
        %v4507 = vpop.f32.mrf.mxu0
        %v4508 = vadd.f32 0.0, %v4507
        %4509 = vdwg.mxu0
        %4510 = vmatpush.bf16.msra.mxu0 0
        %4511 = vmatpush.bf16.msra.mxu0 0
        %4512 = vmatpush.bf16.msra.mxu0 0
        %4513 = vmatpush.bf16.msra.mxu0 0
        %4514 = vmatpush.bf16.msra.mxu0 0
        %4515 = vmatpush.bf16.msra.mxu0 0
        %4516 = vmatpush.bf16.msra.mxu0 %v4338
        %4517 = vmatpush.bf16.msra.mxu0 %v4227
        %4518 = vmatmul.bf16.gmra.mxu0 %v959
        %v4519 = vpop.f32.mrf.mxu0
        %v4520 = vadd.f32 0.0, %v4519
        %v4521 = vpop.f32.mrf.mxu0
        %v4522 = vadd.f32 0.0, %v4521
        %4523 = vdwg.mxu0
        %4524 = vmatpush.bf16.msra.mxu0 0
        %4525 = vmatpush.bf16.msra.mxu0 0
        %4526 = vmatpush.bf16.msra.mxu0 0
        %4527 = vmatpush.bf16.msra.mxu0 0
        %4528 = vmatpush.bf16.msra.mxu0 0
        %4529 = vmatpush.bf16.msra.mxu0 0
        %4530 = vmatpush.bf16.msra.mxu0 %v4341
        %4531 = vmatpush.bf16.msra.mxu0 %v4228
        %4532 = vmatmul.bf16.gmra.mxu0 %v959
        %v4533 = vpop.f32.mrf.mxu0
        %v4534 = vadd.f32 0.0, %v4533
        %v4535 = vpop.f32.mrf.mxu0
        %v4536 = vadd.f32 0.0, %v4535
        %4537 = vdwg.mxu0
        %4538 = vmatpush.bf16.msra.mxu0 0
        %4539 = vmatpush.bf16.msra.mxu0 0
        %4540 = vmatpush.bf16.msra.mxu0 0
        %4541 = vmatpush.bf16.msra.mxu0 0
        %4542 = vmatpush.bf16.msra.mxu0 0
        %4543 = vmatpush.bf16.msra.mxu0 0
        %4544 = vmatpush.bf16.msra.mxu0 %v4344
        %4545 = vmatpush.bf16.msra.mxu0 %v4229
        %4546 = vmatmul.bf16.gmra.mxu0 %v959
        %v4547 = vpop.f32.mrf.mxu0
        %v4548 = vadd.f32 0.0, %v4547
        %v4549 = vpop.f32.mrf.mxu0
        %v4550 = vadd.f32 0.0, %v4549
        %4551 = vdwg.mxu0
        %4552 = vmatpush.bf16.msra.mxu0 0
        %4553 = vmatpush.bf16.msra.mxu0 0
        %4554 = vmatpush.bf16.msra.mxu0 0
        %4555 = vmatpush.bf16.msra.mxu0 0
        %4556 = vmatpush.bf16.msra.mxu0 0
        %4557 = vmatpush.bf16.msra.mxu0 0
        %4558 = vmatpush.bf16.msra.mxu0 %v4347
        %4559 = vmatpush.bf16.msra.mxu0 %v4230
        %4560 = vmatmul.bf16.gmra.mxu0 %v959
        %v4561 = vpop.f32.mrf.mxu0
        %v4562 = vadd.f32 0.0, %v4561
        %v4563 = vpop.f32.mrf.mxu0
        %v4564 = vadd.f32 0.0, %v4563
        %4565 = vdwg.mxu0
        %4566 = vmatpush.bf16.msra.mxu0 0
        %4567 = vmatpush.bf16.msra.mxu0 0
        %4568 = vmatpush.bf16.msra.mxu0 0
        %4569 = vmatpush.bf16.msra.mxu0 0
        %4570 = vmatpush.bf16.msra.mxu0 0
        %4571 = vmatpush.bf16.msra.mxu0 0
        %4572 = vmatpush.bf16.msra.mxu0 %v4350
        %4573 = vmatpush.bf16.msra.mxu0 %v4231
        %4574 = vmatmul.bf16.gmra.mxu0 %v959
        %v4575 = vpop.f32.mrf.mxu0
        %v4576 = vadd.f32 0.0, %v4575
        %v4577 = vpop.f32.mrf.mxu0
        %v4578 = vadd.f32 0.0, %v4577
        %4579 = vdwg.mxu0
        %4580 = vmatpush.bf16.msra.mxu0 0
        %4581 = vmatpush.bf16.msra.mxu0 0
        %4582 = vmatpush.bf16.msra.mxu0 0
        %4583 = vmatpush.bf16.msra.mxu0 0
        %4584 = vmatpush.bf16.msra.mxu0 0
        %4585 = vmatpush.bf16.msra.mxu0 0
        %4586 = vmatpush.bf16.msra.mxu0 %v4353
        %4587 = vmatpush.bf16.msra.mxu0 %v4232
        %4588 = vmatmul.bf16.gmra.mxu0 %v959
        %v4589 = vpop.f32.mrf.mxu0
        %v4590 = vadd.f32 0.0, %v4589
        %v4591 = vpop.f32.mrf.mxu0
        %v4592 = vadd.f32 0.0, %v4591
        %4593 = vdwg.mxu0
        %4594 = vmatpush.bf16.msra.mxu0 0
        %4595 = vmatpush.bf16.msra.mxu0 0
        %4596 = vmatpush.bf16.msra.mxu0 0
        %4597 = vmatpush.bf16.msra.mxu0 0
        %4598 = vmatpush.bf16.msra.mxu0 0
        %4599 = vmatpush.bf16.msra.mxu0 0
        %4600 = vmatpush.bf16.msra.mxu0 %v4356
        %4601 = vmatpush.bf16.msra.mxu0 %v4233
        %4602 = vmatmul.bf16.gmra.mxu0 %v959
        %v4603 = vpop.f32.mrf.mxu0
        %v4604 = vadd.f32 0.0, %v4603
        %v4605 = vpop.f32.mrf.mxu0
        %v4606 = vadd.f32 0.0, %v4605
        %4607 = vdwg.mxu0
        %4608 = vmatpush.bf16.msra.mxu0 0
        %4609 = vmatpush.bf16.msra.mxu0 0
        %4610 = vmatpush.bf16.msra.mxu0 0
        %4611 = vmatpush.bf16.msra.mxu0 0
        %4612 = vmatpush.bf16.msra.mxu0 0
        %4613 = vmatpush.bf16.msra.mxu0 0
        %4614 = vmatpush.bf16.msra.mxu0 %v4359
        %4615 = vmatpush.bf16.msra.mxu0 %v4234
        %4616 = vmatmul.bf16.gmra.mxu0 %v959
        %v4617 = vpop.f32.mrf.mxu0
        %v4618 = vadd.f32 0.0, %v4617
        %v4619 = vpop.f32.mrf.mxu0
        %v4620 = vadd.f32 0.0, %v4619
        %4621 = vdwg.mxu0
        %4622 = vmatpush.bf16.msra.mxu0 0
        %4623 = vmatpush.bf16.msra.mxu0 0
        %4624 = vmatpush.bf16.msra.mxu0 0
        %4625 = vmatpush.bf16.msra.mxu0 0
        %4626 = vmatpush.bf16.msra.mxu0 0
        %4627 = vmatpush.bf16.msra.mxu0 0
        %4628 = vmatpush.bf16.msra.mxu0 %v4362
        %4629 = vmatpush.bf16.msra.mxu0 %v4235
        %4630 = vmatmul.bf16.gmra.mxu0 %v959
        %v4631 = vpop.f32.mrf.mxu0
        %v4632 = vadd.f32 0.0, %v4631
        %v4633 = vpop.f32.mrf.mxu0
        %v4634 = vadd.f32 0.0, %v4633
        %4635 = vdwg.mxu0
        %4636 = vmatpush.bf16.msra.mxu0 0
        %4637 = vmatpush.bf16.msra.mxu0 0
        %4638 = vmatpush.bf16.msra.mxu0 0
        %4639 = vmatpush.bf16.msra.mxu0 0
        %4640 = vmatpush.bf16.msra.mxu0 0
        %4641 = vmatpush.bf16.msra.mxu0 0
        %4642 = vmatpush.bf16.msra.mxu0 %v4365
        %4643 = vmatpush.bf16.msra.mxu0 %v4236
        %4644 = vmatmul.bf16.gmra.mxu0 %v959
        %v4645 = vpop.f32.mrf.mxu0
        %v4646 = vadd.f32 0.0, %v4645
        %v4647 = vpop.f32.mrf.mxu0
        %v4648 = vadd.f32 0.0, %v4647
        %4649 = vdwg.mxu0
        %4650 = vmatpush.bf16.msra.mxu0 0
        %4651 = vmatpush.bf16.msra.mxu0 0
        %4652 = vmatpush.bf16.msra.mxu0 0
        %4653 = vmatpush.bf16.msra.mxu0 0
        %4654 = vmatpush.bf16.msra.mxu0 0
        %4655 = vmatpush.bf16.msra.mxu0 0
        %4656 = vmatpush.bf16.msra.mxu0 %v4368
        %4657 = vmatpush.bf16.msra.mxu0 %v4237
        %4658 = vmatmul.bf16.gmra.mxu0 %v959
        %v4659 = vpop.f32.mrf.mxu0
        %v4660 = vadd.f32 0.0, %v4659
        %v4661 = vpop.f32.mrf.mxu0
        %v4662 = vadd.f32 0.0, %v4661
        %4663 = vdwg.mxu0
        %4664 = vmatpush.bf16.msra.mxu0 0
        %4665 = vmatpush.bf16.msra.mxu0 0
        %4666 = vmatpush.bf16.msra.mxu0 0
        %4667 = vmatpush.bf16.msra.mxu0 0
        %4668 = vmatpush.bf16.msra.mxu0 0
        %4669 = vmatpush.bf16.msra.mxu0 0
        %4670 = vmatpush.bf16.msra.mxu0 %v4371
        %4671 = vmatpush.bf16.msra.mxu0 %v4238
        %4672 = vmatmul.bf16.gmra.mxu0 %v959
        %v4673 = vpop.f32.mrf.mxu0
        %v4674 = vadd.f32 0.0, %v4673
        %v4675 = vpop.f32.mrf.mxu0
        %v4676 = vadd.f32 0.0, %v4675
        %4677 = vdwg.mxu0
        %4678 = vmatpush.bf16.msra.mxu0 0
        %4679 = vmatpush.bf16.msra.mxu0 0
        %4680 = vmatpush.bf16.msra.mxu0 0
        %4681 = vmatpush.bf16.msra.mxu0 0
        %4682 = vmatpush.bf16.msra.mxu0 0
        %4683 = vmatpush.bf16.msra.mxu0 0
        %4684 = vmatpush.bf16.msra.mxu0 %v4374
        %4685 = vmatpush.bf16.msra.mxu0 %v4239
        %4686 = vmatmul.bf16.gmra.mxu0 %v959
        %v4687 = vpop.f32.mrf.mxu0
        %v4688 = vadd.f32 0.0, %v4687
        %v4689 = vpop.f32.mrf.mxu0
        %v4690 = vadd.f32 0.0, %v4689
        %4691 = vdwg.mxu0
        %4692 = vmatpush.bf16.msra.mxu0 0
        %4693 = vmatpush.bf16.msra.mxu0 0
        %4694 = vmatpush.bf16.msra.mxu0 0
        %4695 = vmatpush.bf16.msra.mxu0 0
        %4696 = vmatpush.bf16.msra.mxu0 0
        %4697 = vmatpush.bf16.msra.mxu0 0
        %4698 = vmatpush.bf16.msra.mxu0 %v4377
        %4699 = vmatpush.bf16.msra.mxu0 %v4240
        %4700 = vmatmul.bf16.gmra.mxu0 %v959
        %v4701 = vpop.f32.mrf.mxu0
        %v4702 = vadd.f32 0.0, %v4701
        %v4703 = vpop.f32.mrf.mxu0
        %v4704 = vadd.f32 0.0, %v4703
        %4705 = vdwg.mxu0
        %4706 = vmatpush.bf16.msra.mxu0 0
        %4707 = vmatpush.bf16.msra.mxu0 0
        %4708 = vmatpush.bf16.msra.mxu0 0
        %4709 = vmatpush.bf16.msra.mxu0 0
        %4710 = vmatpush.bf16.msra.mxu0 0
        %4711 = vmatpush.bf16.msra.mxu0 0
        %4712 = vmatpush.bf16.msra.mxu0 %v4380
        %4713 = vmatpush.bf16.msra.mxu0 %v4241
        %4714 = vmatmul.bf16.gmra.mxu0 %v959
        %v4715 = vpop.f32.mrf.mxu0
        %v4716 = vadd.f32 0.0, %v4715
        %v4717 = vpop.f32.mrf.mxu0
        %v4718 = vadd.f32 0.0, %v4717
        %4719 = vdwg.mxu0
        %4720 = vmatpush.bf16.msra.mxu0 0
        %4721 = vmatpush.bf16.msra.mxu0 0
        %4722 = vmatpush.bf16.msra.mxu0 0
        %4723 = vmatpush.bf16.msra.mxu0 0
        %4724 = vmatpush.bf16.msra.mxu0 0
        %4725 = vmatpush.bf16.msra.mxu0 0
        %4726 = vmatpush.bf16.msra.mxu0 %v4383
        %4727 = vmatpush.bf16.msra.mxu0 %v4242
        %4728 = vmatmul.bf16.gmra.mxu0 %v959
        %v4729 = vpop.f32.mrf.mxu0
        %v4730 = vadd.f32 0.0, %v4729
        %v4731 = vpop.f32.mrf.mxu0
        %v4732 = vadd.f32 0.0, %v4731
        %4733 = vdwg.mxu0
        %4734 = vmatpush.bf16.msra.mxu0 0
        %4735 = vmatpush.bf16.msra.mxu0 0
        %4736 = vmatpush.bf16.msra.mxu0 0
        %4737 = vmatpush.bf16.msra.mxu0 0
        %4738 = vmatpush.bf16.msra.mxu0 0
        %4739 = vmatpush.bf16.msra.mxu0 0
        %4740 = vmatpush.bf16.msra.mxu0 %v4386
        %4741 = vmatpush.bf16.msra.mxu0 %v4243
        %4742 = vmatmul.bf16.gmra.mxu0 %v959
        %v4743 = vpop.f32.mrf.mxu0
        %v4744 = vadd.f32 0.0, %v4743
        %v4745 = vpop.f32.mrf.mxu0
        %v4746 = vadd.f32 0.0, %v4745
        %4747 = vdwg.mxu0
        %4748 = vmatpush.bf16.msra.mxu0 0
        %4749 = vmatpush.bf16.msra.mxu0 0
        %4750 = vmatpush.bf16.msra.mxu0 0
        %4751 = vmatpush.bf16.msra.mxu0 0
        %4752 = vmatpush.bf16.msra.mxu0 0
        %4753 = vmatpush.bf16.msra.mxu0 0
        %4754 = vmatpush.bf16.msra.mxu0 %v4389
        %4755 = vmatpush.bf16.msra.mxu0 %v4244
        %4756 = vmatmul.bf16.gmra.mxu0 %v959
        %v4757 = vpop.f32.mrf.mxu0
        %v4758 = vadd.f32 0.0, %v4757
        %v4759 = vpop.f32.mrf.mxu0
        %v4760 = vadd.f32 0.0, %v4759
        %4761 = vdwg.mxu0
        %4762 = vmatpush.bf16.msra.mxu0 0
        %4763 = vmatpush.bf16.msra.mxu0 0
        %4764 = vmatpush.bf16.msra.mxu0 0
        %4765 = vmatpush.bf16.msra.mxu0 0
        %4766 = vmatpush.bf16.msra.mxu0 0
        %4767 = vmatpush.bf16.msra.mxu0 0
        %4768 = vmatpush.bf16.msra.mxu0 %v4392
        %4769 = vmatpush.bf16.msra.mxu0 %v4245
        %4770 = vmatmul.bf16.gmra.mxu0 %v959
        %v4771 = vpop.f32.mrf.mxu0
        %v4772 = vadd.f32 0.0, %v4771
        %v4773 = vpop.f32.mrf.mxu0
        %v4774 = vadd.f32 0.0, %v4773
        %4775 = vdwg.mxu0
        %4776 = vmatpush.bf16.msra.mxu0 0
        %4777 = vmatpush.bf16.msra.mxu0 0
        %4778 = vmatpush.bf16.msra.mxu0 0
        %4779 = vmatpush.bf16.msra.mxu0 0
        %4780 = vmatpush.bf16.msra.mxu0 0
        %4781 = vmatpush.bf16.msra.mxu0 0
        %4782 = vmatpush.bf16.msra.mxu0 %v4395
        %4783 = vmatpush.bf16.msra.mxu0 %v4246
        %4784 = vmatmul.bf16.gmra.mxu0 %v959
        %v4785 = vpop.f32.mrf.mxu0
        %v4786 = vadd.f32 0.0, %v4785
        %v4787 = vpop.f32.mrf.mxu0
        %v4788 = vadd.f32 0.0, %v4787
        %4789 = vdwg.mxu0
        %4790 = vmatpush.bf16.msra.mxu0 0
        %4791 = vmatpush.bf16.msra.mxu0 0
        %4792 = vmatpush.bf16.msra.mxu0 0
        %4793 = vmatpush.bf16.msra.mxu0 0
        %4794 = vmatpush.bf16.msra.mxu0 0
        %4795 = vmatpush.bf16.msra.mxu0 0
        %4796 = vmatpush.bf16.msra.mxu0 %v4398
        %4797 = vmatpush.bf16.msra.mxu0 %v4247
        %4798 = vmatmul.bf16.gmra.mxu0 %v959
        %v4799 = vpop.f32.mrf.mxu0
        %v4800 = vadd.f32 0.0, %v4799
        %v4801 = vpop.f32.mrf.mxu0
        %v4802 = vadd.f32 0.0, %v4801
        %4803 = vdwg.mxu0
        %4804 = vmatpush.bf16.msra.mxu0 0
        %4805 = vmatpush.bf16.msra.mxu0 0
        %4806 = vmatpush.bf16.msra.mxu0 0
        %4807 = vmatpush.bf16.msra.mxu0 0
        %4808 = vmatpush.bf16.msra.mxu0 0
        %4809 = vmatpush.bf16.msra.mxu0 0
        %4810 = vmatpush.bf16.msra.mxu0 %v4401
        %4811 = vmatpush.bf16.msra.mxu0 %v4248
        %4812 = vmatmul.bf16.gmra.mxu0 %v959
        %v4813 = vpop.f32.mrf.mxu0
        %v4814 = vadd.f32 0.0, %v4813
        %v4815 = vpop.f32.mrf.mxu0
        %v4816 = vadd.f32 0.0, %v4815
        %4817 = vdwg.mxu0
        %4818 = vmatpush.bf16.msra.mxu0 0
        %4819 = vmatpush.bf16.msra.mxu0 0
        %4820 = vmatpush.bf16.msra.mxu0 0
        %4821 = vmatpush.bf16.msra.mxu0 0
        %4822 = vmatpush.bf16.msra.mxu0 0
        %4823 = vmatpush.bf16.msra.mxu0 0
        %4824 = vmatpush.bf16.msra.mxu0 %v4404
        %4825 = vmatpush.bf16.msra.mxu0 %v4249
        %4826 = vmatmul.bf16.gmra.mxu0 %v959
        %v4827 = vpop.f32.mrf.mxu0
        %v4828 = vadd.f32 0.0, %v4827
        %v4829 = vpop.f32.mrf.mxu0
        %v4830 = vadd.f32 0.0, %v4829
        %4831 = vdwg.mxu0
        %4832 = vmatpush.bf16.msra.mxu0 0
        %4833 = vmatpush.bf16.msra.mxu0 0
        %4834 = vmatpush.bf16.msra.mxu0 0
        %4835 = vmatpush.bf16.msra.mxu0 0
        %4836 = vmatpush.bf16.msra.mxu0 0
        %4837 = vmatpush.bf16.msra.mxu0 0
        %4838 = vmatpush.bf16.msra.mxu0 %v4407
        %4839 = vmatpush.bf16.msra.mxu0 %v4250
        %4840 = vmatmul.bf16.gmra.mxu0 %v959
        %v4841 = vpop.f32.mrf.mxu0
        %v4842 = vadd.f32 0.0, %v4841
        %v4843 = vpop.f32.mrf.mxu0
        %v4844 = vadd.f32 0.0, %v4843
        %4845 = vdwg.mxu0
        %4846 = vmatpush.bf16.msra.mxu0 0
        %4847 = vmatpush.bf16.msra.mxu0 0
        %4848 = vmatpush.bf16.msra.mxu0 0
        %4849 = vmatpush.bf16.msra.mxu0 0
        %4850 = vmatpush.bf16.msra.mxu0 0
        %4851 = vmatpush.bf16.msra.mxu0 0
        %4852 = vmatpush.bf16.msra.mxu0 %v4410
        %4853 = vmatpush.bf16.msra.mxu0 %v4251
        %4854 = vmatmul.bf16.gmra.mxu0 %v959
        %v4855 = vpop.f32.mrf.mxu0
        %v4856 = vadd.f32 0.0, %v4855
        %v4857 = vpop.f32.mrf.mxu0
        %v4858 = vadd.f32 0.0, %v4857
        %4859 = vdwg.mxu0
        %v4860 = vmul.f32 %v4422, %v1512
        %v4861 = vmul.f32 %v4436, %v1512
        %v4862 = vmul.f32 %v4450, %v1512
        %v4863 = vmul.f32 %v4464, %v1512
        %v4864 = vmul.f32 %v4478, %v1512
        %v4865 = vmul.f32 %v4492, %v1512
        %v4866 = vmul.f32 %v4506, %v1512
        %v4867 = vmul.f32 %v4520, %v1512
        %v4868 = vmul.f32 %v4534, %v1512
        %v4869 = vmul.f32 %v4548, %v1512
        %v4870 = vmul.f32 %v4562, %v1512
        %v4871 = vmul.f32 %v4576, %v1512
        %v4872 = vmul.f32 %v4590, %v1512
        %v4873 = vmul.f32 %v4604, %v1512
        %v4874 = vmul.f32 %v4618, %v1512
        %v4875 = vmul.f32 %v4632, %v1512
        %v4876 = vmul.f32 %v4646, %v1512
        %v4877 = vmul.f32 %v4660, %v1512
        %v4878 = vmul.f32 %v4674, %v1512
        %v4879 = vmul.f32 %v4688, %v1512
        %v4880 = vmul.f32 %v4702, %v1512
        %v4881 = vmul.f32 %v4716, %v1512
        %v4882 = vmul.f32 %v4730, %v1512
        %v4883 = vmul.f32 %v4744, %v1512
        %v4884 = vmul.f32 %v4758, %v1512
        %v4885 = vmul.f32 %v4772, %v1512
        %v4886 = vmul.f32 %v4786, %v1512
        %v4887 = vmul.f32 %v4800, %v1512
        %v4888 = vmul.f32 %v4814, %v1512
        %v4889 = vmul.f32 %v4828, %v1512
        %v4890 = vmul.f32 %v4842, %v1512
        %v4891 = vmul.f32 %v4856, %v1512
        %v4892 = vmul.f32 %v4424, %v1517
        %v4893 = vmul.f32 %v4438, %v1517
        %v4894 = vmul.f32 %v4452, %v1517
        %v4895 = vmul.f32 %v4466, %v1517
        %v4896 = vmul.f32 %v4480, %v1517
        %v4897 = vmul.f32 %v4494, %v1517
        %v4898 = vmul.f32 %v4508, %v1517
        %v4899 = vmul.f32 %v4522, %v1517
        %v4900 = vmul.f32 %v4536, %v1517
        %v4901 = vmul.f32 %v4550, %v1517
        %v4902 = vmul.f32 %v4564, %v1517
        %v4903 = vmul.f32 %v4578, %v1517
        %v4904 = vmul.f32 %v4592, %v1517
        %v4905 = vmul.f32 %v4606, %v1517
        %v4906 = vmul.f32 %v4620, %v1517
        %v4907 = vmul.f32 %v4634, %v1517
        %v4908 = vmul.f32 %v4648, %v1517
        %v4909 = vmul.f32 %v4662, %v1517
        %v4910 = vmul.f32 %v4676, %v1517
        %v4911 = vmul.f32 %v4690, %v1517
        %v4912 = vmul.f32 %v4704, %v1517
        %v4913 = vmul.f32 %v4718, %v1517
        %v4914 = vmul.f32 %v4732, %v1517
        %v4915 = vmul.f32 %v4746, %v1517
        %v4916 = vmul.f32 %v4760, %v1517
        %v4917 = vmul.f32 %v4774, %v1517
        %v4918 = vmul.f32 %v4788, %v1517
        %v4919 = vmul.f32 %v4802, %v1517
        %v4920 = vmul.f32 %v4816, %v1517
        %v4921 = vmul.f32 %v4830, %v1517
        %v4922 = vmul.f32 %v4844, %v1517
        %v4923 = vmul.f32 %v4858, %v1517
        %v4924 = vadd.f32 %v4860, %v1586
        %v4925 = vadd.f32 %v4861, %v1586
        %v4926 = vadd.f32 %v4862, %v1586
        %v4927 = vadd.f32 %v4863, %v1586
        %v4928 = vadd.f32 %v4864, %v1586
        %v4929 = vadd.f32 %v4865, %v1586
        %v4930 = vadd.f32 %v4866, %v1586
        %v4931 = vadd.f32 %v4867, %v1586
        %v4932 = vadd.f32 %v4868, %v1586
        %v4933 = vadd.f32 %v4869, %v1586
        %v4934 = vadd.f32 %v4870, %v1586
        %v4935 = vadd.f32 %v4871, %v1586
        %v4936 = vadd.f32 %v4872, %v1586
        %v4937 = vadd.f32 %v4873, %v1586
        %v4938 = vadd.f32 %v4874, %v1586
        %v4939 = vadd.f32 %v4875, %v1586
        %v4940 = vadd.f32 %v4876, %v1586
        %v4941 = vadd.f32 %v4877, %v1586
        %v4942 = vadd.f32 %v4878, %v1586
        %v4943 = vadd.f32 %v4879, %v1586
        %v4944 = vadd.f32 %v4880, %v1586
        %v4945 = vadd.f32 %v4881, %v1586
        %v4946 = vadd.f32 %v4882, %v1586
        %v4947 = vadd.f32 %v4883, %v1586
        %v4948 = vadd.f32 %v4884, %v1586
        %v4949 = vadd.f32 %v4885, %v1586
        %v4950 = vadd.f32 %v4886, %v1586
        %v4951 = vadd.f32 %v4887, %v1586
        %v4952 = vadd.f32 %v4888, %v1586
        %v4953 = vadd.f32 %v4889, %v1586
        %v4954 = vadd.f32 %v4890, %v1586
        %v4955 = vadd.f32 %v4891, %v1586
        %v4956 = vadd.f32 %v4892, %v1591
        %v4957 = vadd.f32 %v4893, %v1591
        %v4958 = vadd.f32 %v4894, %v1591
        %v4959 = vadd.f32 %v4895, %v1591
        %v4960 = vadd.f32 %v4896, %v1591
        %v4961 = vadd.f32 %v4897, %v1591
        %v4962 = vadd.f32 %v4898, %v1591
        %v4963 = vadd.f32 %v4899, %v1591
        %v4964 = vadd.f32 %v4900, %v1591
        %v4965 = vadd.f32 %v4901, %v1591
        %v4966 = vadd.f32 %v4902, %v1591
        %v4967 = vadd.f32 %v4903, %v1591
        %v4968 = vadd.f32 %v4904, %v1591
        %v4969 = vadd.f32 %v4905, %v1591
        %v4970 = vadd.f32 %v4906, %v1591
        %v4971 = vadd.f32 %v4907, %v1591
        %v4972 = vadd.f32 %v4908, %v1591
        %v4973 = vadd.f32 %v4909, %v1591
        %v4974 = vadd.f32 %v4910, %v1591
        %v4975 = vadd.f32 %v4911, %v1591
        %v4976 = vadd.f32 %v4912, %v1591
        %v4977 = vadd.f32 %v4913, %v1591
        %v4978 = vadd.f32 %v4914, %v1591
        %v4979 = vadd.f32 %v4915, %v1591
        %v4980 = vadd.f32 %v4916, %v1591
        %v4981 = vadd.f32 %v4917, %v1591
        %v4982 = vadd.f32 %v4918, %v1591
        %v4983 = vadd.f32 %v4919, %v1591
        %v4984 = vadd.f32 %v4920, %v1591
        %v4985 = vadd.f32 %v4921, %v1591
        %v4986 = vadd.f32 %v4922, %v1591
        %v4987 = vadd.f32 %v4923, %v1591
        %v4988 = vmax.f32 %v4924, 0.0
        %v4989 = vmax.f32 %v4925, 0.0
        %v4990 = vmax.f32 %v4926, 0.0
        %v4991 = vmax.f32 %v4927, 0.0
        %v4992 = vmax.f32 %v4928, 0.0
        %v4993 = vmax.f32 %v4929, 0.0
        %v4994 = vmax.f32 %v4930, 0.0
        %v4995 = vmax.f32 %v4931, 0.0
        %v4996 = vmax.f32 %v4932, 0.0
        %v4997 = vmax.f32 %v4933, 0.0
        %v4998 = vmax.f32 %v4934, 0.0
        %v4999 = vmax.f32 %v4935, 0.0
        %v5000 = vmax.f32 %v4936, 0.0
        %v5001 = vmax.f32 %v4937, 0.0
        %v5002 = vmax.f32 %v4938, 0.0
        %v5003 = vmax.f32 %v4939, 0.0
        %v5004 = vmax.f32 %v4940, 0.0
        %v5005 = vmax.f32 %v4941, 0.0
        %v5006 = vmax.f32 %v4942, 0.0
        %v5007 = vmax.f32 %v4943, 0.0
        %v5008 = vmax.f32 %v4944, 0.0
        %v5009 = vmax.f32 %v4945, 0.0
        %v5010 = vmax.f32 %v4946, 0.0
        %v5011 = vmax.f32 %v4947, 0.0
        %v5012 = vmax.f32 %v4948, 0.0
        %v5013 = vmax.f32 %v4949, 0.0
        %v5014 = vmax.f32 %v4950, 0.0
        %v5015 = vmax.f32 %v4951, 0.0
        %v5016 = vmax.f32 %v4952, 0.0
        %v5017 = vmax.f32 %v4953, 0.0
        %v5018 = vmax.f32 %v4954, 0.0
        %v5019 = vmax.f32 %v4955, 0.0
        %v5020 = vmax.f32 %v4956, 0.0
        %v5021 = vmax.f32 %v4957, 0.0
        %v5022 = vmax.f32 %v4958, 0.0
        %v5023 = vmax.f32 %v4959, 0.0
        %v5024 = vmax.f32 %v4960, 0.0
        %v5025 = vmax.f32 %v4961, 0.0
        %v5026 = vmax.f32 %v4962, 0.0
        %v5027 = vmax.f32 %v4963, 0.0
        %v5028 = vmax.f32 %v4964, 0.0
        %v5029 = vmax.f32 %v4965, 0.0
        %v5030 = vmax.f32 %v4966, 0.0
        %v5031 = vmax.f32 %v4967, 0.0
        %v5032 = vmax.f32 %v4968, 0.0
        %v5033 = vmax.f32 %v4969, 0.0
        %v5034 = vmax.f32 %v4970, 0.0
        %v5035 = vmax.f32 %v4971, 0.0
        %v5036 = vmax.f32 %v4972, 0.0
        %v5037 = vmax.f32 %v4973, 0.0
        %v5038 = vmax.f32 %v4974, 0.0
        %v5039 = vmax.f32 %v4975, 0.0
        %v5040 = vmax.f32 %v4976, 0.0
        %v5041 = vmax.f32 %v4977, 0.0
        %v5042 = vmax.f32 %v4978, 0.0
        %v5043 = vmax.f32 %v4979, 0.0
        %v5044 = vmax.f32 %v4980, 0.0
        %v5045 = vmax.f32 %v4981, 0.0
        %v5046 = vmax.f32 %v4982, 0.0
        %v5047 = vmax.f32 %v4983, 0.0
        %v5048 = vmax.f32 %v4984, 0.0
        %v5049 = vmax.f32 %v4985, 0.0
        %v5050 = vmax.f32 %v4986, 0.0
        %v5051 = vmax.f32 %v4987, 0.0
        %v5052 = vmax.f32 %v3899, %v4988
        %v5053 = vmax.f32 %v3900, %v4989
        %v5054 = vmax.f32 %v3901, %v4990
        %v5055 = vmax.f32 %v3902, %v4991
        %v5056 = vmax.f32 %v3903, %v4992
        %v5057 = vmax.f32 %v3904, %v4993
        %v5058 = vmax.f32 %v3905, %v4994
        %v5059 = vmax.f32 %v3906, %v4995
        %v5060 = vmax.f32 %v3907, %v4996
        %v5061 = vmax.f32 %v3908, %v4997
        %v5062 = vmax.f32 %v3909, %v4998
        %v5063 = vmax.f32 %v3910, %v4999
        %v5064 = vmax.f32 %v3911, %v5000
        %v5065 = vmax.f32 %v3912, %v5001
        %v5066 = vmax.f32 %v3913, %v5002
        %v5067 = vmax.f32 %v3914, %v5003
        %v5068 = vmax.f32 %v3915, %v5004
        %v5069 = vmax.f32 %v3916, %v5005
        %v5070 = vmax.f32 %v3917, %v5006
        %v5071 = vmax.f32 %v3918, %v5007
        %v5072 = vmax.f32 %v3919, %v5008
        %v5073 = vmax.f32 %v3920, %v5009
        %v5074 = vmax.f32 %v3921, %v5010
        %v5075 = vmax.f32 %v3922, %v5011
        %v5076 = vmax.f32 %v3923, %v5012
        %v5077 = vmax.f32 %v3924, %v5013
        %v5078 = vmax.f32 %v3925, %v5014
        %v5079 = vmax.f32 %v3926, %v5015
        %v5080 = vmax.f32 %v3927, %v5016
        %v5081 = vmax.f32 %v3928, %v5017
        %v5082 = vmax.f32 %v3929, %v5018
        %v5083 = vmax.f32 %v3930, %v5019
        %v5084 = vmax.f32 %v3931, %v5020
        %v5085 = vmax.f32 %v3932, %v5021
        %v5086 = vmax.f32 %v3933, %v5022
        %v5087 = vmax.f32 %v3934, %v5023
        %v5088 = vmax.f32 %v3935, %v5024
        %v5089 = vmax.f32 %v3936, %v5025
        %v5090 = vmax.f32 %v3937, %v5026
        %v5091 = vmax.f32 %v3938, %v5027
        %v5092 = vmax.f32 %v3939, %v5028
        %v5093 = vmax.f32 %v3940, %v5029
        %v5094 = vmax.f32 %v3941, %v5030
        %v5095 = vmax.f32 %v3942, %v5031
        %v5096 = vmax.f32 %v3943, %v5032
        %v5097 = vmax.f32 %v3944, %v5033
        %v5098 = vmax.f32 %v3945, %v5034
        %v5099 = vmax.f32 %v3946, %v5035
        %v5100 = vmax.f32 %v3947, %v5036
        %v5101 = vmax.f32 %v3948, %v5037
        %v5102 = vmax.f32 %v3949, %v5038
        %v5103 = vmax.f32 %v3950, %v5039
        %v5104 = vmax.f32 %v3951, %v5040
        %v5105 = vmax.f32 %v3952, %v5041
        %v5106 = vmax.f32 %v3953, %v5042
        %v5107 = vmax.f32 %v3954, %v5043
        %v5108 = vmax.f32 %v3955, %v5044
        %v5109 = vmax.f32 %v3956, %v5045
        %v5110 = vmax.f32 %v3957, %v5046
        %v5111 = vmax.f32 %v3958, %v5047
        %v5112 = vmax.f32 %v3959, %v5048
        %v5113 = vmax.f32 %v3960, %v5049
        %v5114 = vmax.f32 %v3961, %v5050
        %v5115 = vmax.f32 %v3962, %v5051
        %v5116 = vmax.f32 %v2810, %v5052
        %v5117 = vmax.f32 %v2811, %v5053
        %v5118 = vmax.f32 %v2812, %v5054
        %v5119 = vmax.f32 %v2813, %v5055
        %v5120 = vmax.f32 %v2814, %v5056
        %v5121 = vmax.f32 %v2815, %v5057
        %v5122 = vmax.f32 %v2816, %v5058
        %v5123 = vmax.f32 %v2817, %v5059
        %v5124 = vmax.f32 %v2818, %v5060
        %v5125 = vmax.f32 %v2819, %v5061
        %v5126 = vmax.f32 %v2820, %v5062
        %v5127 = vmax.f32 %v2821, %v5063
        %v5128 = vmax.f32 %v2822, %v5064
        %v5129 = vmax.f32 %v2823, %v5065
        %v5130 = vmax.f32 %v2824, %v5066
        %v5131 = vmax.f32 %v2825, %v5067
        %v5132 = vmax.f32 %v2826, %v5068
        %v5133 = vmax.f32 %v2827, %v5069
        %v5134 = vmax.f32 %v2828, %v5070
        %v5135 = vmax.f32 %v2829, %v5071
        %v5136 = vmax.f32 %v2830, %v5072
        %v5137 = vmax.f32 %v2831, %v5073
        %v5138 = vmax.f32 %v2832, %v5074
        %v5139 = vmax.f32 %v2833, %v5075
        %v5140 = vmax.f32 %v2834, %v5076
        %v5141 = vmax.f32 %v2835, %v5077
        %v5142 = vmax.f32 %v2836, %v5078
        %v5143 = vmax.f32 %v2837, %v5079
        %v5144 = vmax.f32 %v2838, %v5080
        %v5145 = vmax.f32 %v2839, %v5081
        %v5146 = vmax.f32 %v2840, %v5082
        %v5147 = vmax.f32 %v2841, %v5083
        %v5148 = vmax.f32 %v2842, %v5084
        %v5149 = vmax.f32 %v2843, %v5085
        %v5150 = vmax.f32 %v2844, %v5086
        %v5151 = vmax.f32 %v2845, %v5087
        %v5152 = vmax.f32 %v2846, %v5088
        %v5153 = vmax.f32 %v2847, %v5089
        %v5154 = vmax.f32 %v2848, %v5090
        %v5155 = vmax.f32 %v2849, %v5091
        %v5156 = vmax.f32 %v2850, %v5092
        %v5157 = vmax.f32 %v2851, %v5093
        %v5158 = vmax.f32 %v2852, %v5094
        %v5159 = vmax.f32 %v2853, %v5095
        %v5160 = vmax.f32 %v2854, %v5096
        %v5161 = vmax.f32 %v2855, %v5097
        %v5162 = vmax.f32 %v2856, %v5098
        %v5163 = vmax.f32 %v2857, %v5099
        %v5164 = vmax.f32 %v2858, %v5100
        %v5165 = vmax.f32 %v2859, %v5101
        %v5166 = vmax.f32 %v2860, %v5102
        %v5167 = vmax.f32 %v2861, %v5103
        %v5168 = vmax.f32 %v2862, %v5104
        %v5169 = vmax.f32 %v2863, %v5105
        %v5170 = vmax.f32 %v2864, %v5106
        %v5171 = vmax.f32 %v2865, %v5107
        %v5172 = vmax.f32 %v2866, %v5108
        %v5173 = vmax.f32 %v2867, %v5109
        %v5174 = vmax.f32 %v2868, %v5110
        %v5175 = vmax.f32 %v2869, %v5111
        %v5176 = vmax.f32 %v2870, %v5112
        %v5177 = vmax.f32 %v2871, %v5113
        %v5178 = vmax.f32 %v2872, %v5114
        %v5179 = vmax.f32 %v2873, %v5115
        %5180 = vst [vmem:[%s582] sm:$0xff] %v5116
        %5181 = vst [vmem:[%s582 + $0x8] sm:$0xff] %v5117
        %5182 = vst [vmem:[%s582 + $0x10] sm:$0xff] %v5118
        %5183 = vst [vmem:[%s582 + $0x18] sm:$0xff] %v5119
        %5184 = vst [vmem:[%s582 + $0x20] sm:$0xff] %v5120
        %5185 = vst [vmem:[%s582 + $0x28] sm:$0xff] %v5121
        %5186 = vst [vmem:[%s582 + $0x30] sm:$0xff] %v5122
        %5187 = vst [vmem:[%s582 + $0x38] sm:$0xff] %v5123
        %5188 = vst [vmem:[%s582 + $0x40] sm:$0xff] %v5124
        %5189 = vst [vmem:[%s582 + $0x48] sm:$0xff] %v5125
        %5190 = vst [vmem:[%s582 + $0x50] sm:$0xff] %v5126
        %5191 = vst [vmem:[%s582 + $0x58] sm:$0xff] %v5127
        %5192 = vst [vmem:[%s582 + $0x60] sm:$0xff] %v5128
        %5193 = vst [vmem:[%s582 + $0x68] sm:$0xff] %v5129
        %5194 = vst [vmem:[%s582 + $0x70] sm:$0xff] %v5130
        %5195 = vst [vmem:[%s582 + $0x78] sm:$0xff] %v5131
        %5196 = vst [vmem:[%s582 + $0x80] sm:$0xff] %v5132
        %5197 = vst [vmem:[%s582 + $0x88] sm:$0xff] %v5133
        %5198 = vst [vmem:[%s582 + $0x90] sm:$0xff] %v5134
        %5199 = vst [vmem:[%s582 + $0x98] sm:$0xff] %v5135
        %5200 = vst [vmem:[%s582 + $0xa0] sm:$0xff] %v5136
        %5201 = vst [vmem:[%s582 + $0xa8] sm:$0xff] %v5137
        %5202 = vst [vmem:[%s582 + $0xb0] sm:$0xff] %v5138
        %5203 = vst [vmem:[%s582 + $0xb8] sm:$0xff] %v5139
        %5204 = vst [vmem:[%s582 + $0xc0] sm:$0xff] %v5140
        %5205 = vst [vmem:[%s582 + $0xc8] sm:$0xff] %v5141
        %5206 = vst [vmem:[%s582 + $0xd0] sm:$0xff] %v5142
        %5207 = vst [vmem:[%s582 + $0xd8] sm:$0xff] %v5143
        %5208 = vst [vmem:[%s582 + $0xe0] sm:$0xff] %v5144
        %5209 = vst [vmem:[%s582 + $0xe8] sm:$0xff] %v5145
        %5210 = vst [vmem:[%s582 + $0xf0] sm:$0xff] %v5146
        %5211 = vst [vmem:[%s582 + $0xf8] sm:$0xff] %v5147
        %5212 = vst [vmem:[%s582 + $0x100] sm:$0xff] %v5148
        %5213 = vst [vmem:[%s582 + $0x108] sm:$0xff] %v5149
        %5214 = vst [vmem:[%s582 + $0x110] sm:$0xff] %v5150
        %5215 = vst [vmem:[%s582 + $0x118] sm:$0xff] %v5151
        %5216 = vst [vmem:[%s582 + $0x120] sm:$0xff] %v5152
        %5217 = vst [vmem:[%s582 + $0x128] sm:$0xff] %v5153
        %5218 = vst [vmem:[%s582 + $0x130] sm:$0xff] %v5154
        %5219 = vst [vmem:[%s582 + $0x138] sm:$0xff] %v5155
        %5220 = vst [vmem:[%s582 + $0x140] sm:$0xff] %v5156
        %5221 = vst [vmem:[%s582 + $0x148] sm:$0xff] %v5157
        %5222 = vst [vmem:[%s582 + $0x150] sm:$0xff] %v5158
        %5223 = vst [vmem:[%s582 + $0x158] sm:$0xff] %v5159
        %5224 = vst [vmem:[%s582 + $0x160] sm:$0xff] %v5160
        %5225 = vst [vmem:[%s582 + $0x168] sm:$0xff] %v5161
        %5226 = vst [vmem:[%s582 + $0x170] sm:$0xff] %v5162
        %5227 = vst [vmem:[%s582 + $0x178] sm:$0xff] %v5163
        %5228 = vst [vmem:[%s582 + $0x180] sm:$0xff] %v5164
        %5229 = vst [vmem:[%s582 + $0x188] sm:$0xff] %v5165
        %5230 = vst [vmem:[%s582 + $0x190] sm:$0xff] %v5166
        %5231 = vst [vmem:[%s582 + $0x198] sm:$0xff] %v5167
        %5232 = vst [vmem:[%s582 + $0x1a0] sm:$0xff] %v5168
        %5233 = vst [vmem:[%s582 + $0x1a8] sm:$0xff] %v5169
        %5234 = vst [vmem:[%s582 + $0x1b0] sm:$0xff] %v5170
        %5235 = vst [vmem:[%s582 + $0x1b8] sm:$0xff] %v5171
        %5236 = vst [vmem:[%s582 + $0x1c0] sm:$0xff] %v5172
        %5237 = vst [vmem:[%s582 + $0x1c8] sm:$0xff] %v5173
        %5238 = vst [vmem:[%s582 + $0x1d0] sm:$0xff] %v5174
        %5239 = vst [vmem:[%s582 + $0x1d8] sm:$0xff] %v5175
        %5240 = vst [vmem:[%s582 + $0x1e0] sm:$0xff] %v5176
        %5241 = vst [vmem:[%s582 + $0x1e8] sm:$0xff] %v5177
        %5242 = vst [vmem:[%s582 + $0x1f0] sm:$0xff] %v5178
        %5243 = vst [vmem:[%s582 + $0x1f8] sm:$0xff] %v5179
        %s5244 = sand.u32 %s112, 1
        %s5245 = sand.u32 %s112, 1
        %s5246 = smul.addr %s5245, 512
        %s5247 = scalar_lea.vmem [#allocation3], %s5246
        // Predicated region
        $region103: #{net_forward.4} parent=97 // pred_check
          %p5248 = pneg %p122
        $region104: #{net_forward.4} parent=97 // pred_check_branch
          %5250 = sbr.rel (%p5248) target = $region106
        $region105: #{net_forward.4} parent=97 // pred_region
          %s5251 = smul.u32 32, %s15
          %s5252 = ssub.s32 44, %s5251
          %p5253 = scmp.lt.s32.totalorder %s5252, 32
          %s5254 = scalar_select %p5253, %s5252, 32
          %s5255 = smul.u32 16, %s5254
          %p5256 = scmp.ne.s32.totalorder 0, %s5255
          %s5257 = smul.addr %s5251, 8
          %s5258 = scalar_lea.vmem %s4, %s5257
          %s5259 = smul.u32 %s5254, 8
          // Predicated region
          $region107: #{net_forward.4} parent=105 // pred_check
            %p5260 = pneg %p5256
          $region108: #{net_forward.4} parent=105 // pred_check_branch
            %5262 = sbr.rel (%p5260) target = $region110
          $region109: #{net_forward.4} parent=105 // pred_region
            %p5263 = scmp.lt.u32.totalorder %s5259, 8
            %p5264 = pneg %p5263
            // Predicated region
            $region111: #{net_forward.4} parent=109 // pred_check
              _
            $region112: #{net_forward.4} parent=109 // pred_check_branch
              %5266 = sbr.rel (%p5263) target = $region114
            $region113: #{net_forward.4} parent=109 // pred_region
              %s5284 = sand.u32 %s5259, 7
              %p5285 = scmp.eq.s32.totalorder %s5284, 0
              // Predicated region
              $region126: #{net_forward.4} parent=113 // pred_check
                %p5286 = pneg %p5285
              $region127: #{net_forward.4} parent=113 // pred_check_branch
                %5288 = sbr.rel (%p5286) target = $region129
              $region128: #{net_forward.4} parent=113 // pred_region
                %s5289 = sshrl.u32 %s5259, 3
                %s5290 = sshrl.u32 %s5289, 4
                // While loop
                $region130: #{net_forward.4} parent=128 // loop_pre_header
                  _
                $region131: #{net_forward.4} parent=128 // loop_header
                  %s5292 = sphi 0, %s5294
                  %p5293 = scmp.ge.s32.totalorder %s5292, %s5290
                  %s5297 = sphi 0, %s5366
                  %s5298 = sphi %s5247, %s5369
                  %s5299 = sphi %s5258, %s5370
                $region132: #{net_forward.4} parent=128 // loop_header_branch
                  %5296 = sbr.rel (%p5293) target = $region136
                $region133: #{net_forward.4} parent=128 // loop_body
                  %v5300 = vld [vmem:[%s5298] sm:$0xff]
                  %5301 = vst [vmem:[%s5299] sm:$0xff] %v5300
                  %v5302 = vld [vmem:[%s5298 + $0x8] sm:$0xff]
                  %5303 = vst [vmem:[%s5299 + $0x8] sm:$0xff] %v5302
                  %v5304 = vld [vmem:[%s5298 + $0x10] sm:$0xff]
                  %5305 = vst [vmem:[%s5299 + $0x10] sm:$0xff] %v5304
                  %v5306 = vld [vmem:[%s5298 + $0x18] sm:$0xff]
                  %5307 = vst [vmem:[%s5299 + $0x18] sm:$0xff] %v5306
                  %v5308 = vld [vmem:[%s5298 + $0x20] sm:$0xff]
                  %5309 = vst [vmem:[%s5299 + $0x20] sm:$0xff] %v5308
                  %v5310 = vld [vmem:[%s5298 + $0x28] sm:$0xff]
                  %5311 = vst [vmem:[%s5299 + $0x28] sm:$0xff] %v5310
                  %v5312 = vld [vmem:[%s5298 + $0x30] sm:$0xff]
                  %5313 = vst [vmem:[%s5299 + $0x30] sm:$0xff] %v5312
                  %v5314 = vld [vmem:[%s5298 + $0x38] sm:$0xff]
                  %5315 = vst [vmem:[%s5299 + $0x38] sm:$0xff] %v5314
                  %v5316 = vld [vmem:[%s5298 + $0x40] sm:$0xff]
                  %5317 = vst [vmem:[%s5299 + $0x40] sm:$0xff] %v5316
                  %v5318 = vld [vmem:[%s5298 + $0x48] sm:$0xff]
                  %5319 = vst [vmem:[%s5299 + $0x48] sm:$0xff] %v5318
                  %v5320 = vld [vmem:[%s5298 + $0x50] sm:$0xff]
                  %5321 = vst [vmem:[%s5299 + $0x50] sm:$0xff] %v5320
                  %v5322 = vld [vmem:[%s5298 + $0x58] sm:$0xff]
                  %5323 = vst [vmem:[%s5299 + $0x58] sm:$0xff] %v5322
                  %v5324 = vld [vmem:[%s5298 + $0x60] sm:$0xff]
                  %5325 = vst [vmem:[%s5299 + $0x60] sm:$0xff] %v5324
                  %v5326 = vld [vmem:[%s5298 + $0x68] sm:$0xff]
                  %5327 = vst [vmem:[%s5299 + $0x68] sm:$0xff] %v5326
                  %v5328 = vld [vmem:[%s5298 + $0x70] sm:$0xff]
                  %5329 = vst [vmem:[%s5299 + $0x70] sm:$0xff] %v5328
                  %v5330 = vld [vmem:[%s5298 + $0x78] sm:$0xff]
                  %5331 = vst [vmem:[%s5299 + $0x78] sm:$0xff] %v5330
                  %v5332 = vld [vmem:[%s5298 + $0x100] sm:$0xff]
                  %5333 = vst [vmem:[%s5299 + $0x160] sm:$0xff] %v5332
                  %v5334 = vld [vmem:[%s5298 + $0x108] sm:$0xff]
                  %5335 = vst [vmem:[%s5299 + $0x168] sm:$0xff] %v5334
                  %v5336 = vld [vmem:[%s5298 + $0x110] sm:$0xff]
                  %5337 = vst [vmem:[%s5299 + $0x170] sm:$0xff] %v5336
                  %v5338 = vld [vmem:[%s5298 + $0x118] sm:$0xff]
                  %5339 = vst [vmem:[%s5299 + $0x178] sm:$0xff] %v5338
                  %v5340 = vld [vmem:[%s5298 + $0x120] sm:$0xff]
                  %5341 = vst [vmem:[%s5299 + $0x180] sm:$0xff] %v5340
                  %v5342 = vld [vmem:[%s5298 + $0x128] sm:$0xff]
                  %5343 = vst [vmem:[%s5299 + $0x188] sm:$0xff] %v5342
                  %v5344 = vld [vmem:[%s5298 + $0x130] sm:$0xff]
                  %5345 = vst [vmem:[%s5299 + $0x190] sm:$0xff] %v5344
                  %v5346 = vld [vmem:[%s5298 + $0x138] sm:$0xff]
                  %5347 = vst [vmem:[%s5299 + $0x198] sm:$0xff] %v5346
                  %v5348 = vld [vmem:[%s5298 + $0x140] sm:$0xff]
                  %5349 = vst [vmem:[%s5299 + $0x1a0] sm:$0xff] %v5348
                  %v5350 = vld [vmem:[%s5298 + $0x148] sm:$0xff]
                  %5351 = vst [vmem:[%s5299 + $0x1a8] sm:$0xff] %v5350
                  %v5352 = vld [vmem:[%s5298 + $0x150] sm:$0xff]
                  %5353 = vst [vmem:[%s5299 + $0x1b0] sm:$0xff] %v5352
                  %v5354 = vld [vmem:[%s5298 + $0x158] sm:$0xff]
                  %5355 = vst [vmem:[%s5299 + $0x1b8] sm:$0xff] %v5354
                  %v5356 = vld [vmem:[%s5298 + $0x160] sm:$0xff]
                  %5357 = vst [vmem:[%s5299 + $0x1c0] sm:$0xff] %v5356
                  %v5358 = vld [vmem:[%s5298 + $0x168] sm:$0xff]
                  %5359 = vst [vmem:[%s5299 + $0x1c8] sm:$0xff] %v5358
                  %v5360 = vld [vmem:[%s5298 + $0x170] sm:$0xff]
                  %5361 = vst [vmem:[%s5299 + $0x1d0] sm:$0xff] %v5360
                  %v5362 = vld [vmem:[%s5298 + $0x178] sm:$0xff]
                  %5363 = vst [vmem:[%s5299 + $0x1d8] sm:$0xff] %v5362
                  %s5364 = sadd.s32 1, %s5297
                  %p5365 = scmp.ge.s32.totalorder %s5364, %s5290
                  %s5366 = scalar_select %p5365, 0, %s5364
                  %s5367 = smul.u32 %s5366, 128
                  %s5368 = smul.u32 %s5366, 128
                  %s5369 = scalar_lea.vmem %s5247, %s5367 [#allocation3]
                  %s5370 = scalar_lea.vmem %s5258, %s5368
                $region134: #{net_forward.4} parent=128 // loop_footer
                  %s5294 = sadd.s32 %s5292, 1
                $region135: #{net_forward.4} parent=128 // loop_footer_branch
                  %5291 = sbr.rel target = $region131
                $region136: #{net_forward.4} parent=128 // loop_exit
                  _
                %s5371 = sshrl.u32 %s5289, 4
                %s5372 = sand.u32 %s5289, 15
                %s5373 = smul.u32 %s5371, 16
                %s5374 = smul.u32 8, %s5373
                %s5375 = scalar_lea.vmem %s5247, %s5374 [#allocation3]
                %s5376 = smul.u32 8, %s5373
                %s5377 = scalar_lea.vmem %s5258, %s5376
                // While loop
                $region137: #{net_forward.4} parent=128 // loop_pre_header
                  _
                $region138: #{net_forward.4} parent=128 // loop_header
                  %s5379 = sphi 0, %s5381
                  %p5380 = scmp.ge.s32.totalorder %s5379, %s5372
                  %s5384 = sphi 0, %s5393
                  %s5385 = sphi %s5375, %s5396
                  %s5386 = sphi %s5377, %s5397
                $region139: #{net_forward.4} parent=128 // loop_header_branch
                  %5383 = sbr.rel (%p5380) target = $region143
                $region140: #{net_forward.4} parent=128 // loop_body
                  %v5387 = vld [vmem:[%s5385] sm:$0xff]
                  %5388 = vst [vmem:[%s5386] sm:$0xff] %v5387
                  %v5389 = vld [vmem:[%s5385 + $0x100] sm:$0xff]
                  %5390 = vst [vmem:[%s5386 + $0x160] sm:$0xff] %v5389
                  %s5391 = sadd.s32 1, %s5384
                  %p5392 = scmp.ge.s32.totalorder %s5391, %s5372
                  %s5393 = scalar_select %p5392, 0, %s5391
                  %s5394 = smul.u32 %s5393, 8
                  %s5395 = smul.u32 %s5393, 8
                  %s5396 = scalar_lea.vmem %s5375, %s5394 [#allocation3]
                  %s5397 = scalar_lea.vmem %s5377, %s5395
                $region141: #{net_forward.4} parent=128 // loop_footer
                  %s5381 = sadd.s32 %s5379, 1
                $region142: #{net_forward.4} parent=128 // loop_footer_branch
                  %5378 = sbr.rel target = $region138
                $region143: #{net_forward.4} parent=128 // loop_exit
                  _
              $region129: #{net_forward.4} parent=113 // pred_fallthru
                _
              %p5398 = pneg %p5285
              // Predicated region
              $region144: #{net_forward.4} parent=113 // pred_check
                _
              $region145: #{net_forward.4} parent=113 // pred_check_branch
                %5400 = sbr.rel (%p5285) target = $region147
              $region146: #{net_forward.4} parent=113 // pred_region
                %s5401 = sand.u32 %s5259, 7
                %s5402 = ssub.s32 %s5259, %s5401
                %s5403 = scalar_lea.vmem %s5247, %s5402 [#allocation3]
                %s5404 = ssub.s32 %s5259, %s5401
                %s5405 = scalar_lea.vmem %s5258, %s5404
                %s5406 = sshrl.u32 %s5259, 3
                %s5407 = sshrl.u32 %s5406, 4
                // While loop
                $region148: #{net_forward.4} parent=146 // loop_pre_header
                  _
                $region149: #{net_forward.4} parent=146 // loop_header
                  %s5409 = sphi 0, %s5411
                  %p5410 = scmp.ge.s32.totalorder %s5409, %s5407
                  %s5414 = sphi 0, %s5483
                  %s5415 = sphi %s5247, %s5486
                  %s5416 = sphi %s5258, %s5487
                $region150: #{net_forward.4} parent=146 // loop_header_branch
                  %5413 = sbr.rel (%p5410) target = $region154
                $region151: #{net_forward.4} parent=146 // loop_body
                  %v5417 = vld [vmem:[%s5415] sm:$0xff]
                  %5418 = vst [vmem:[%s5416] sm:$0xff] %v5417
                  %v5419 = vld [vmem:[%s5415 + $0x8] sm:$0xff]
                  %5420 = vst [vmem:[%s5416 + $0x8] sm:$0xff] %v5419
                  %v5421 = vld [vmem:[%s5415 + $0x10] sm:$0xff]
                  %5422 = vst [vmem:[%s5416 + $0x10] sm:$0xff] %v5421
                  %v5423 = vld [vmem:[%s5415 + $0x18] sm:$0xff]
                  %5424 = vst [vmem:[%s5416 + $0x18] sm:$0xff] %v5423
                  %v5425 = vld [vmem:[%s5415 + $0x20] sm:$0xff]
                  %5426 = vst [vmem:[%s5416 + $0x20] sm:$0xff] %v5425
                  %v5427 = vld [vmem:[%s5415 + $0x28] sm:$0xff]
                  %5428 = vst [vmem:[%s5416 + $0x28] sm:$0xff] %v5427
                  %v5429 = vld [vmem:[%s5415 + $0x30] sm:$0xff]
                  %5430 = vst [vmem:[%s5416 + $0x30] sm:$0xff] %v5429
                  %v5431 = vld [vmem:[%s5415 + $0x38] sm:$0xff]
                  %5432 = vst [vmem:[%s5416 + $0x38] sm:$0xff] %v5431
                  %v5433 = vld [vmem:[%s5415 + $0x40] sm:$0xff]
                  %5434 = vst [vmem:[%s5416 + $0x40] sm:$0xff] %v5433
                  %v5435 = vld [vmem:[%s5415 + $0x48] sm:$0xff]
                  %5436 = vst [vmem:[%s5416 + $0x48] sm:$0xff] %v5435
                  %v5437 = vld [vmem:[%s5415 + $0x50] sm:$0xff]
                  %5438 = vst [vmem:[%s5416 + $0x50] sm:$0xff] %v5437
                  %v5439 = vld [vmem:[%s5415 + $0x58] sm:$0xff]
                  %5440 = vst [vmem:[%s5416 + $0x58] sm:$0xff] %v5439
                  %v5441 = vld [vmem:[%s5415 + $0x60] sm:$0xff]
                  %5442 = vst [vmem:[%s5416 + $0x60] sm:$0xff] %v5441
                  %v5443 = vld [vmem:[%s5415 + $0x68] sm:$0xff]
                  %5444 = vst [vmem:[%s5416 + $0x68] sm:$0xff] %v5443
                  %v5445 = vld [vmem:[%s5415 + $0x70] sm:$0xff]
                  %5446 = vst [vmem:[%s5416 + $0x70] sm:$0xff] %v5445
                  %v5447 = vld [vmem:[%s5415 + $0x78] sm:$0xff]
                  %5448 = vst [vmem:[%s5416 + $0x78] sm:$0xff] %v5447
                  %v5449 = vld [vmem:[%s5415 + $0x100] sm:$0xff]
                  %5450 = vst [vmem:[%s5416 + $0x160] sm:$0xff] %v5449
                  %v5451 = vld [vmem:[%s5415 + $0x108] sm:$0xff]
                  %5452 = vst [vmem:[%s5416 + $0x168] sm:$0xff] %v5451
                  %v5453 = vld [vmem:[%s5415 + $0x110] sm:$0xff]
                  %5454 = vst [vmem:[%s5416 + $0x170] sm:$0xff] %v5453
                  %v5455 = vld [vmem:[%s5415 + $0x118] sm:$0xff]
                  %5456 = vst [vmem:[%s5416 + $0x178] sm:$0xff] %v5455
                  %v5457 = vld [vmem:[%s5415 + $0x120] sm:$0xff]
                  %5458 = vst [vmem:[%s5416 + $0x180] sm:$0xff] %v5457
                  %v5459 = vld [vmem:[%s5415 + $0x128] sm:$0xff]
                  %5460 = vst [vmem:[%s5416 + $0x188] sm:$0xff] %v5459
                  %v5461 = vld [vmem:[%s5415 + $0x130] sm:$0xff]
                  %5462 = vst [vmem:[%s5416 + $0x190] sm:$0xff] %v5461
                  %v5463 = vld [vmem:[%s5415 + $0x138] sm:$0xff]
                  %5464 = vst [vmem:[%s5416 + $0x198] sm:$0xff] %v5463
                  %v5465 = vld [vmem:[%s5415 + $0x140] sm:$0xff]
                  %5466 = vst [vmem:[%s5416 + $0x1a0] sm:$0xff] %v5465
                  %v5467 = vld [vmem:[%s5415 + $0x148] sm:$0xff]
                  %5468 = vst [vmem:[%s5416 + $0x1a8] sm:$0xff] %v5467
                  %v5469 = vld [vmem:[%s5415 + $0x150] sm:$0xff]
                  %5470 = vst [vmem:[%s5416 + $0x1b0] sm:$0xff] %v5469
                  %v5471 = vld [vmem:[%s5415 + $0x158] sm:$0xff]
                  %5472 = vst [vmem:[%s5416 + $0x1b8] sm:$0xff] %v5471
                  %v5473 = vld [vmem:[%s5415 + $0x160] sm:$0xff]
                  %5474 = vst [vmem:[%s5416 + $0x1c0] sm:$0xff] %v5473
                  %v5475 = vld [vmem:[%s5415 + $0x168] sm:$0xff]
                  %5476 = vst [vmem:[%s5416 + $0x1c8] sm:$0xff] %v5475
                  %v5477 = vld [vmem:[%s5415 + $0x170] sm:$0xff]
                  %5478 = vst [vmem:[%s5416 + $0x1d0] sm:$0xff] %v5477
                  %v5479 = vld [vmem:[%s5415 + $0x178] sm:$0xff]
                  %5480 = vst [vmem:[%s5416 + $0x1d8] sm:$0xff] %v5479
                  %s5481 = sadd.s32 1, %s5414
                  %p5482 = scmp.ge.s32.totalorder %s5481, %s5407
                  %s5483 = scalar_select %p5482, 0, %s5481
                  %s5484 = smul.u32 %s5483, 128
                  %s5485 = smul.u32 %s5483, 128
                  %s5486 = scalar_lea.vmem %s5247, %s5484 [#allocation3]
                  %s5487 = scalar_lea.vmem %s5258, %s5485
                $region152: #{net_forward.4} parent=146 // loop_footer
                  %s5411 = sadd.s32 %s5409, 1
                $region153: #{net_forward.4} parent=146 // loop_footer_branch
                  %5408 = sbr.rel target = $region149
                $region154: #{net_forward.4} parent=146 // loop_exit
                  _
                %s5488 = sshrl.u32 %s5406, 4
                %s5489 = sand.u32 %s5406, 15
                %s5490 = smul.u32 %s5488, 16
                %s5491 = smul.u32 8, %s5490
                %s5492 = scalar_lea.vmem %s5247, %s5491 [#allocation3]
                %s5493 = smul.u32 8, %s5490
                %s5494 = scalar_lea.vmem %s5258, %s5493
                // While loop
                $region155: #{net_forward.4} parent=146 // loop_pre_header
                  _
                $region156: #{net_forward.4} parent=146 // loop_header
                  %s5496 = sphi 0, %s5498
                  %p5497 = scmp.ge.s32.totalorder %s5496, %s5489
                  %s5501 = sphi 0, %s5510
                  %s5502 = sphi %s5492, %s5513
                  %s5503 = sphi %s5494, %s5514
                $region157: #{net_forward.4} parent=146 // loop_header_branch
                  %5500 = sbr.rel (%p5497) target = $region161
                $region158: #{net_forward.4} parent=146 // loop_body
                  %v5504 = vld [vmem:[%s5502] sm:$0xff]
                  %5505 = vst [vmem:[%s5503] sm:$0xff] %v5504
                  %v5506 = vld [vmem:[%s5502 + $0x100] sm:$0xff]
                  %5507 = vst [vmem:[%s5503 + $0x160] sm:$0xff] %v5506
                  %s5508 = sadd.s32 1, %s5501
                  %p5509 = scmp.ge.s32.totalorder %s5508, %s5489
                  %s5510 = scalar_select %p5509, 0, %s5508
                  %s5511 = smul.u32 %s5510, 8
                  %s5512 = smul.u32 %s5510, 8
                  %s5513 = scalar_lea.vmem %s5492, %s5511 [#allocation3]
                  %s5514 = scalar_lea.vmem %s5494, %s5512
                $region159: #{net_forward.4} parent=146 // loop_footer
                  %s5498 = sadd.s32 %s5496, 1
                $region160: #{net_forward.4} parent=146 // loop_footer_branch
                  %5495 = sbr.rel target = $region156
                $region161: #{net_forward.4} parent=146 // loop_exit
                  _
                %s5515 = sshll.u32 1, %s5401
                %s5516 = ssub.s32 %s5515, 1
                loop: start=0, step=1, limit=1
                $region162: #{net_forward.4} parent=146 // loop_pre_header
                  _
                $region163: #{net_forward.4} parent=146 // loop_header
                  %s5518 = sphi 0, %s5522
                  %p5519 = scmp.ge.s32.totalorder %s5518, 1
                  %s5523 = sphi %s5403, %s5403
                  %s5524 = sphi %s5405, %s5405
                $region164: #{net_forward.4} parent=146 // loop_header_branch
                  %5521 = sbr.rel (%p5519) target = $region168
                $region165: #{net_forward.4} parent=146 // loop_body
                  %v5525 = vld [vmem:[%s5523] sm:%s5516]
                  %5526 = vst [vmem:[%s5524] sm:%s5516] %v5525
                  %v5527 = vld [vmem:[%s5523 + $0x100] sm:%s5516]
                  %5528 = vst [vmem:[%s5524 + $0x160] sm:%s5516] %v5527
                $region166: #{net_forward.4} parent=146 // loop_footer
                  %s5522 = sadd.s32 1, %s5518
                $region167: #{net_forward.4} parent=146 // loop_footer_branch
                  %5517 = sbr.rel target = $region163
                $region168: #{net_forward.4} parent=146 // loop_exit
                  _
              $region147: #{net_forward.4} parent=113 // pred_fallthru
                _
            $region114: #{net_forward.4} parent=109 // pred_fallthru
              _
            // Predicated region
            $region115: #{net_forward.4} parent=109 // pred_check
              %p5267 = pneg %p5263
            $region116: #{net_forward.4} parent=109 // pred_check_branch
              %5269 = sbr.rel (%p5267) target = $region118
            $region117: #{net_forward.4} parent=109 // pred_region
              %s5270 = sshll.u32 1, %s5259
              %s5271 = ssub.s32 %s5270, 1
              loop: start=0, step=1, limit=1
              $region119: #{net_forward.4} parent=117 // loop_pre_header
                _
              $region120: #{net_forward.4} parent=117 // loop_header
                %s5273 = sphi 0, %s5277
                %p5274 = scmp.ge.s32.totalorder %s5273, 1
                %s5278 = sphi %s5247, %s5247
                %s5279 = sphi %s5258, %s5258
              $region121: #{net_forward.4} parent=117 // loop_header_branch
                %5276 = sbr.rel (%p5274) target = $region125
              $region122: #{net_forward.4} parent=117 // loop_body
                %v5280 = vld [vmem:[%s5278] sm:%s5271]
                %5281 = vst [vmem:[%s5279] sm:%s5271] %v5280
                %v5282 = vld [vmem:[%s5278 + $0x100] sm:%s5271]
                %5283 = vst [vmem:[%s5279 + $0x160] sm:%s5271] %v5282
              $region123: #{net_forward.4} parent=117 // loop_footer
                %s5277 = sadd.s32 1, %s5273
              $region124: #{net_forward.4} parent=117 // loop_footer_branch
                %5272 = sbr.rel target = $region120
              $region125: #{net_forward.4} parent=117 // loop_exit
                _
            $region118: #{net_forward.4} parent=109 // pred_fallthru
              _
          $region110: #{net_forward.4} parent=105 // pred_fallthru
            _
          %5529 = vnop
        $region106: #{net_forward.4} parent=97 // pred_fallthru
          _
      $region98: #{net_forward.4} parent=5 // pred_fallthru
        _
      %p5530 = scmp.le.s32.totalorder 2, %s10
      // Predicated region
      $region169: #{net_forward.4} parent=5 // pred_check
        %p5531 = pneg %p5530
      $region170: #{net_forward.4} parent=5 // pred_check_branch
        %5533 = sbr.rel (%p5531) target = $region172
      $region171: #{net_forward.4} parent=5 // pred_region
        %s5534 = ssub.s32 %s10, 2
        // Predicated region
        $region173: #{net_forward.4} parent=171 // pred_check
          %p5535 = pneg %p128
        $region174: #{net_forward.4} parent=171 // pred_check_branch
          %5537 = sbr.rel (%p5535) target = $region176
        $region175: #{net_forward.4} parent=171 // pred_region
          %s5538 = sand.u32 %s113, 1
          %s5539 = sand.u32 %s113, 1
          %s5540 = smul.addr %s5539, 512
          %s5541 = scalar_lea.vmem [#allocation3], %s5540
        $region176: #{net_forward.4} parent=171 // pred_fallthru
          _
      $region172: #{net_forward.4} parent=5 // pred_fallthru
        _
    $region6: #{net_forward.4} parent=1 // loop_footer
      %s14 = sadd.s32 1, %s10
    $region7: #{net_forward.4} parent=1 // loop_footer_branch
      %9 = sbr.rel target = $region3
    $region8: #{net_forward.4} parent=1 // loop_exit
      _

// kernel: net_forward.5
$region0: #{net_forward.5}
  #allocation0 [shape = 'u32[]', space=smem, size = 0x4, offset = 0x4, fixed_abs, tag = 'smem constant byte address 0x4 - core index']
  #allocation1 [shape = 'u32[72,128]{1,0:T(1,128)}', space=vmem, size = 0x9000, scoped, tag = 'internal scratch']
  %s0 = inlined_call_operand.vmem [shape: bf16[4,144,338], index: 0, kind: input, shape index: {}]
  %s1 = inlined_call_operand.vmem [shape: bf16[32,144], index: 1, kind: input, shape index: {}]
  %s2 = inlined_call_operand.vmem [shape: f32[32,1], index: 2, kind: input, shape index: {}]
  %s3 = inlined_call_operand.vmem [shape: f32[32,1], index: 3, kind: input, shape index: {}]
  %s4 = inlined_call_operand.vmem [shape: f32[32,338], index: 4, kind: output, shape index: {}]
  %s5 = sld [smem:[#allocation0]]
  $region26: #{net_forward.5} parent=0
    _
  %s7 = ssub.s32 1, %s5
  %s8 = scalar_select 0, %s7, %s5
  // Predicated region
  $region2: #{net_forward.5} parent=0 // pred_check
    _
  $region3: #{net_forward.5} parent=0 // pred_check_branch
    %10 = sbr.rel (0) target = $region5
  $region4: #{net_forward.5} parent=0 // pred_region
    _
  $region5: #{net_forward.5} parent=0 // pred_fallthru
    _
  // Predicated region
  $region6: #{net_forward.5} parent=0 // pred_check
    _
  $region7: #{net_forward.5} parent=0 // pred_check_branch
    %12 = sbr.rel (0) target = $region9
  $region8: #{net_forward.5} parent=0 // pred_region
    _
  $region9: #{net_forward.5} parent=0 // pred_fallthru
    _
  // Predicated region
  $region10: #{net_forward.5} parent=0 // pred_check
    _
  $region11: #{net_forward.5} parent=0 // pred_check_branch
    %14 = sbr.rel (0) target = $region13
  $region12: #{net_forward.5} parent=0 // pred_region
    _
  $region13: #{net_forward.5} parent=0 // pred_fallthru
    _
  // Predicated region
  $region14: #{net_forward.5} parent=0 // pred_check
    _
  $region15: #{net_forward.5} parent=0 // pred_check_branch
    %16 = sbr.rel (0) target = $region17
  $region16: #{net_forward.5} parent=0 // pred_region
    _
  $region17: #{net_forward.5} parent=0 // pred_fallthru
    _
  %v18 = vld [vmem:[%s1] sm:$0xff]
  %v19 = vld [vmem:[%s1 + $0x8] sm:$0xff]
  %v20 = vld [vmem:[%s1 + $0x10] sm:$0xff]
  %v21 = vld [vmem:[%s1 + $0x18] sm:$0xff]
  %v22 = vld [vmem:[%s2] sm:$0xff]
  %v23 = vld [vmem:[%s2 + $0x8] sm:$0xff]
  %v24 = vld [vmem:[%s2 + $0x10] sm:$0xff]
  %v25 = vld [vmem:[%s2 + $0x18] sm:$0xff]
  %v26 = vld [vmem:[%s3] sm:$0xff]
  %v27 = vld [vmem:[%s3 + $0x8] sm:$0xff]
  %v28 = vld [vmem:[%s3 + $0x10] sm:$0xff]
  %v29 = vld [vmem:[%s3 + $0x18] sm:$0xff]
  %v30 = vld [vmem:[%s0] sm:$0xff]
  %v31 = vld [vmem:[%s0 + $0x8] sm:$0xf]
  %v32 = vld [vmem:[%s0 + $0xc] sm:$0xff]
  %v33 = vld [vmem:[%s0 + $0x14] sm:$0xf]
  %v34 = vld [vmem:[%s0 + $0x18] sm:$0xff]
  %v35 = vld [vmem:[%s0 + $0x20] sm:$0xf]
  %v36 = vld [vmem:[%s0 + $0x24] sm:$0xff]
  %v37 = vld [vmem:[%s0 + $0x2c] sm:$0xf]
  %v38 = vld [vmem:[%s0 + $0x30] sm:$0xff]
  %v39 = vld [vmem:[%s0 + $0x38] sm:$0xf]
  %v40 = vld [vmem:[%s0 + $0x3c] sm:$0xff]
  %v41 = vld [vmem:[%s0 + $0x44] sm:$0xf]
  %v42 = vld [vmem:[%s0 + $0x48] sm:$0xff]
  %v43 = vld [vmem:[%s0 + $0x50] sm:$0xf]
  %v44 = vld [vmem:[%s0 + $0x54] sm:$0xff]
  %v45 = vld [vmem:[%s0 + $0x5c] sm:$0xf]
  %v46 = vld [vmem:[%s0 + $0x60] sm:$0xff]
  %v47 = vld [vmem:[%s0 + $0x68] sm:$0xf]
  %v48 = vld [vmem:[%s0 + $0x6c] sm:$0xff]
  %v49 = vld [vmem:[%s0 + $0x74] sm:$0xf]
  %v50 = vld [vmem:[%s0 + $0x78] sm:$0xff]
  %v51 = vld [vmem:[%s0 + $0x80] sm:$0xf]
  %v52 = vld [vmem:[%s0 + $0x84] sm:$0xff]
  %v53 = vld [vmem:[%s0 + $0x8c] sm:$0xf]
  %v54 = vld [vmem:[%s0 + $0x90] sm:$0xff]
  %v55 = vld [vmem:[%s0 + $0x98] sm:$0xf]
  %v56 = vld [vmem:[%s0 + $0x9c] sm:$0xff]
  %v57 = vld [vmem:[%s0 + $0xa4] sm:$0xf]
  %v58 = vld [vmem:[%s0 + $0xa8] sm:$0xff]
  %v59 = vld [vmem:[%s0 + $0xb0] sm:$0xf]
  %v60 = vld [vmem:[%s0 + $0xb4] sm:$0xff]
  %v61 = vld [vmem:[%s0 + $0xbc] sm:$0xf]
  %v62 = vld [vmem:[%s0 + $0xc0] sm:$0xff]
  %v63 = vld [vmem:[%s0 + $0xc8] sm:$0xf]
  %v64 = vld [vmem:[%s0 + $0xcc] sm:$0xff]
  %v65 = vld [vmem:[%s0 + $0xd4] sm:$0xf]
  %v70 = vunpack.c.l.b16 %v18
  %v71 = vunpack.c.h.b16 %v18
  %v72 = vunpack.c.l.b16 %v19
  %v73 = vunpack.c.h.b16 %v19
  %v74 = vunpack.c.l.b16 %v20
  %v75 = vunpack.c.h.b16 %v20
  %v76 = vunpack.c.l.b16 %v21
  %v77 = vunpack.c.h.b16 %v21
  %v78 = vpack.c.b16 %v72, %v70
  %v79 = vpack.c.b16 %v73, %v71
  %v80 = vpack.c.b16 %v76, %v74
  %v81 = vpack.c.b16 %v77, %v75
  %v120 = vunpack.c.l.b16 %v30
  %v121 = vunpack.c.h.b16 %v30
  %v122 = vunpack.c.l.b16 %v31
  %v123 = vunpack.c.l.b16 %v32
  %v124 = vunpack.c.h.b16 %v32
  %v125 = vunpack.c.l.b16 %v33
  %v126 = vunpack.c.l.b16 %v34
  %v127 = vunpack.c.h.b16 %v34
  %v128 = vunpack.c.l.b16 %v35
  %v129 = vunpack.c.l.b16 %v36
  %v130 = vunpack.c.h.b16 %v36
  %v131 = vunpack.c.l.b16 %v37
  %v132 = vunpack.c.l.b16 %v38
  %v133 = vunpack.c.h.b16 %v38
  %v134 = vunpack.c.l.b16 %v39
  %v135 = vunpack.c.l.b16 %v40
  %v136 = vunpack.c.h.b16 %v40
  %v137 = vunpack.c.l.b16 %v41
  %v138 = vunpack.c.l.b16 %v42
  %v139 = vunpack.c.h.b16 %v42
  %v140 = vunpack.c.l.b16 %v43
  %v141 = vunpack.c.l.b16 %v44
  %v142 = vunpack.c.h.b16 %v44
  %v143 = vunpack.c.l.b16 %v45
  %v144 = vunpack.c.l.b16 %v46
  %v145 = vunpack.c.h.b16 %v46
  %v146 = vunpack.c.l.b16 %v47
  %v147 = vunpack.c.l.b16 %v48
  %v148 = vunpack.c.h.b16 %v48
  %v149 = vunpack.c.l.b16 %v49
  %v150 = vunpack.c.l.b16 %v50
  %v151 = vunpack.c.h.b16 %v50
  %v152 = vunpack.c.l.b16 %v51
  %v153 = vunpack.c.l.b16 %v52
  %v154 = vunpack.c.h.b16 %v52
  %v155 = vunpack.c.l.b16 %v53
  %v156 = vunpack.c.l.b16 %v54
  %v157 = vunpack.c.h.b16 %v54
  %v158 = vunpack.c.l.b16 %v55
  %v159 = vunpack.c.l.b16 %v56
  %v160 = vunpack.c.h.b16 %v56
  %v161 = vunpack.c.l.b16 %v57
  %v162 = vunpack.c.l.b16 %v58
  %v163 = vunpack.c.h.b16 %v58
  %v164 = vunpack.c.l.b16 %v59
  %v165 = vunpack.c.l.b16 %v60
  %v166 = vunpack.c.h.b16 %v60
  %v167 = vunpack.c.l.b16 %v61
  %v168 = vunpack.c.l.b16 %v62
  %v169 = vunpack.c.h.b16 %v62
  %v170 = vunpack.c.l.b16 %v63
  %v171 = vunpack.c.l.b16 %v64
  %v172 = vunpack.c.h.b16 %v64
  %v173 = vunpack.c.l.b16 %v65
  %v174 = vpack.c.b16 %v123, %v120
  %v175 = vpack.c.b16 %v124, %v121
  %v176 = vpack.c.b16 %v125, %v122
  %v177 = vpack.c.b16 %v129, %v126
  %v178 = vpack.c.b16 %v130, %v127
  %v179 = vpack.c.b16 %v131, %v128
  %v180 = vpack.c.b16 %v135, %v132
  %v181 = vpack.c.b16 %v136, %v133
  %v182 = vpack.c.b16 %v137, %v134
  %v183 = vpack.c.b16 %v141, %v138
  %v184 = vpack.c.b16 %v142, %v139
  %v185 = vpack.c.b16 %v143, %v140
  %v186 = vpack.c.b16 %v147, %v144
  %v187 = vpack.c.b16 %v148, %v145
  %v188 = vpack.c.b16 %v149, %v146
  %v189 = vpack.c.b16 %v153, %v150
  %v190 = vpack.c.b16 %v154, %v151
  %v191 = vpack.c.b16 %v155, %v152
  %v192 = vpack.c.b16 %v159, %v156
  %v193 = vpack.c.b16 %v160, %v157
  %v194 = vpack.c.b16 %v161, %v158
  %v195 = vpack.c.b16 %v165, %v162
  %v196 = vpack.c.b16 %v166, %v163
  %v197 = vpack.c.b16 %v167, %v164
  %v198 = vpack.c.b16 %v171, %v168
  %v199 = vpack.c.b16 %v172, %v169
  %v200 = vpack.c.b16 %v173, %v170
  %vm228 = vcmask 130048
  %v230 = vsel %vm228, %v79, 0
  %v233 = vsel %vm228, %v81, 0
  %235 = vmatpush.bf16.msra.mxu0 %v195
  %236 = vmatpush.bf16.msra.mxu0 %v192
  %237 = vmatpush.bf16.msra.mxu0 %v189
  %238 = vmatpush.bf16.msra.mxu0 %v186
  %239 = vmatpush.bf16.msra.mxu0 %v183
  %240 = vmatpush.bf16.msra.mxu0 %v180
  %241 = vmatpush.bf16.msra.mxu0 %v177
  %242 = vmatpush.bf16.msra.mxu0 %v174
  %243 = vmatmul.bf16.gmra.mxu0 %v78
  %v244 = vpop.f32.mrf.mxu0
  %v245 = vadd.f32 0.0, %v244
  %v246 = vpop.f32.mrf.mxu0
  %v247 = vadd.f32 0.0, %v246
  %248 = vmatmul.bf16.gmra.mxu0 %v80
  %v249 = vpop.f32.mrf.mxu0
  %v250 = vadd.f32 0.0, %v249
  %v251 = vpop.f32.mrf.mxu0
  %v252 = vadd.f32 0.0, %v251
  %253 = vdwg.mxu0
  %254 = vmatpush.bf16.msra.mxu0 0
  %255 = vmatpush.bf16.msra.mxu0 0
  %256 = vmatpush.bf16.msra.mxu0 0
  %257 = vmatpush.bf16.msra.mxu0 0
  %258 = vmatpush.bf16.msra.mxu0 0
  %259 = vmatpush.bf16.msra.mxu0 0
  %260 = vmatpush.bf16.msra.mxu0 0
  %261 = vmatpush.bf16.msra.mxu0 %v198
  %262 = vmatmul.bf16.gmra.mxu0 %v230
  %v263 = vpop.f32.mrf.mxu0
  %v264 = vadd.f32 %v245, %v263
  %v265 = vpop.f32.mrf.mxu0
  %v266 = vadd.f32 %v247, %v265
  %267 = vmatmul.bf16.gmra.mxu0 %v233
  %v268 = vpop.f32.mrf.mxu0
  %v269 = vadd.f32 %v250, %v268
  %v270 = vpop.f32.mrf.mxu0
  %v271 = vadd.f32 %v252, %v270
  %272 = vdwg.mxu0
  %273 = vmatpush.bf16.msra.mxu0 %v196
  %274 = vmatpush.bf16.msra.mxu0 %v193
  %275 = vmatpush.bf16.msra.mxu0 %v190
  %276 = vmatpush.bf16.msra.mxu0 %v187
  %277 = vmatpush.bf16.msra.mxu0 %v184
  %278 = vmatpush.bf16.msra.mxu0 %v181
  %279 = vmatpush.bf16.msra.mxu0 %v178
  %280 = vmatpush.bf16.msra.mxu0 %v175
  %281 = vmatmul.bf16.gmra.mxu0 %v78
  %v282 = vpop.f32.mrf.mxu0
  %v283 = vadd.f32 0.0, %v282
  %v284 = vpop.f32.mrf.mxu0
  %v285 = vadd.f32 0.0, %v284
  %286 = vmatmul.bf16.gmra.mxu0 %v80
  %v287 = vpop.f32.mrf.mxu0
  %v288 = vadd.f32 0.0, %v287
  %v289 = vpop.f32.mrf.mxu0
  %v290 = vadd.f32 0.0, %v289
  %291 = vdwg.mxu0
  %292 = vmatpush.bf16.msra.mxu0 0
  %293 = vmatpush.bf16.msra.mxu0 0
  %294 = vmatpush.bf16.msra.mxu0 0
  %295 = vmatpush.bf16.msra.mxu0 0
  %296 = vmatpush.bf16.msra.mxu0 0
  %297 = vmatpush.bf16.msra.mxu0 0
  %298 = vmatpush.bf16.msra.mxu0 0
  %299 = vmatpush.bf16.msra.mxu0 %v199
  %300 = vmatmul.bf16.gmra.mxu0 %v230
  %v301 = vpop.f32.mrf.mxu0
  %v302 = vadd.f32 %v283, %v301
  %v303 = vpop.f32.mrf.mxu0
  %v304 = vadd.f32 %v285, %v303
  %305 = vmatmul.bf16.gmra.mxu0 %v233
  %v306 = vpop.f32.mrf.mxu0
  %v307 = vadd.f32 %v288, %v306
  %v308 = vpop.f32.mrf.mxu0
  %v309 = vadd.f32 %v290, %v308
  %310 = vdwg.mxu0
  %311 = vmatpush.bf16.msra.mxu0 %v197
  %312 = vmatpush.bf16.msra.mxu0 %v194
  %313 = vmatpush.bf16.msra.mxu0 %v191
  %314 = vmatpush.bf16.msra.mxu0 %v188
  %315 = vmatpush.bf16.msra.mxu0 %v185
  %316 = vmatpush.bf16.msra.mxu0 %v182
  %317 = vmatpush.bf16.msra.mxu0 %v179
  %318 = vmatpush.bf16.msra.mxu0 %v176
  %319 = vmatmul.bf16.gmra.mxu0 %v78
  %v320 = vpop.f32.mrf.mxu0
  %v321 = vadd.f32 0.0, %v320
  %v322 = vpop.f32.mrf.mxu0
  %v323 = vadd.f32 0.0, %v322
  %324 = vmatmul.bf16.gmra.mxu0 %v80
  %v325 = vpop.f32.mrf.mxu0
  %v326 = vadd.f32 0.0, %v325
  %v327 = vpop.f32.mrf.mxu0
  %v328 = vadd.f32 0.0, %v327
  %329 = vdwg.mxu0
  %330 = vmatpush.bf16.msra.mxu0 0
  %331 = vmatpush.bf16.msra.mxu0 0
  %332 = vmatpush.bf16.msra.mxu0 0
  %333 = vmatpush.bf16.msra.mxu0 0
  %334 = vmatpush.bf16.msra.mxu0 0
  %335 = vmatpush.bf16.msra.mxu0 0
  %336 = vmatpush.bf16.msra.mxu0 0
  %337 = vmatpush.bf16.msra.mxu0 %v200
  %338 = vmatmul.bf16.gmra.mxu0 %v230
  %v339 = vpop.f32.mrf.mxu0
  %v340 = vadd.f32 %v321, %v339
  %v341 = vpop.f32.mrf.mxu0
  %v342 = vadd.f32 %v323, %v341
  %343 = vmatmul.bf16.gmra.mxu0 %v233
  %v344 = vpop.f32.mrf.mxu0
  %v345 = vadd.f32 %v326, %v344
  %v346 = vpop.f32.mrf.mxu0
  %v347 = vadd.f32 %v328, %v346
  %348 = vdwg.mxu0
  %350 = vset.pattern.permute.xlu0 0
  %351 = vperm.xlu0 %350, %v22
  %v352 = vpop.permute.xlu0 %351
  %355 = vset.pattern.permute.xlu0 0
  %356 = vperm.xlu0 %355, %v23
  %v357 = vpop.permute.xlu0 %356
  %360 = vset.pattern.permute.xlu0 0
  %361 = vperm.xlu0 %360, %v24
  %v362 = vpop.permute.xlu0 %361
  %365 = vset.pattern.permute.xlu0 0
  %366 = vperm.xlu0 %365, %v25
  %v367 = vpop.permute.xlu0 %366
  %v369 = vmul.f32 %v264, %v352
  %v370 = vmul.f32 %v302, %v352
  %v371 = vmul.f32 %v340, %v352
  %v372 = vmul.f32 %v266, %v357
  %v373 = vmul.f32 %v304, %v357
  %v374 = vmul.f32 %v342, %v357
  %v375 = vmul.f32 %v269, %v362
  %v376 = vmul.f32 %v307, %v362
  %v377 = vmul.f32 %v345, %v362
  %v378 = vmul.f32 %v271, %v367
  %v379 = vmul.f32 %v309, %v367
  %v380 = vmul.f32 %v347, %v367
  %382 = vset.pattern.permute.xlu0 0
  %383 = vperm.xlu0 %382, %v26
  %v384 = vpop.permute.xlu0 %383
  %387 = vset.pattern.permute.xlu0 0
  %388 = vperm.xlu0 %387, %v27
  %v389 = vpop.permute.xlu0 %388
  %392 = vset.pattern.permute.xlu0 0
  %393 = vperm.xlu0 %392, %v28
  %v394 = vpop.permute.xlu0 %393
  %397 = vset.pattern.permute.xlu0 0
  %398 = vperm.xlu0 %397, %v29
  %v399 = vpop.permute.xlu0 %398
  %v401 = vadd.f32 %v369, %v384
  %v402 = vadd.f32 %v370, %v384
  %v403 = vadd.f32 %v371, %v384
  %v404 = vadd.f32 %v372, %v389
  %v405 = vadd.f32 %v373, %v389
  %v406 = vadd.f32 %v374, %v389
  %v407 = vadd.f32 %v375, %v394
  %v408 = vadd.f32 %v376, %v394
  %v409 = vadd.f32 %v377, %v394
  %v410 = vadd.f32 %v378, %v399
  %v411 = vadd.f32 %v379, %v399
  %v412 = vadd.f32 %v380, %v399
  %v413 = vmax.f32 %v401, 0.0
  %v414 = vmax.f32 %v402, 0.0
  %v415 = vmax.f32 %v403, 0.0
  %v416 = vmax.f32 %v404, 0.0
  %v417 = vmax.f32 %v405, 0.0
  %v418 = vmax.f32 %v406, 0.0
  %v419 = vmax.f32 %v407, 0.0
  %v420 = vmax.f32 %v408, 0.0
  %v421 = vmax.f32 %v409, 0.0
  %v422 = vmax.f32 %v410, 0.0
  %v423 = vmax.f32 %v411, 0.0
  %v424 = vmax.f32 %v412, 0.0
  %s425 = scalar_lea.vmem %s0, 216
  %v426 = vld [vmem:[%s425] sm:$0xff]
  %v427 = vld [vmem:[%s425 + $0x8] sm:$0xf]
  %v428 = vld [vmem:[%s425 + $0xc] sm:$0xff]
  %v429 = vld [vmem:[%s425 + $0x14] sm:$0xf]
  %v430 = vld [vmem:[%s425 + $0x18] sm:$0xff]
  %v431 = vld [vmem:[%s425 + $0x20] sm:$0xf]
  %v432 = vld [vmem:[%s425 + $0x24] sm:$0xff]
  %v433 = vld [vmem:[%s425 + $0x2c] sm:$0xf]
  %v434 = vld [vmem:[%s425 + $0x30] sm:$0xff]
  %v435 = vld [vmem:[%s425 + $0x38] sm:$0xf]
  %v436 = vld [vmem:[%s425 + $0x3c] sm:$0xff]
  %v437 = vld [vmem:[%s425 + $0x44] sm:$0xf]
  %v438 = vld [vmem:[%s425 + $0x48] sm:$0xff]
  %v439 = vld [vmem:[%s425 + $0x50] sm:$0xf]
  %v440 = vld [vmem:[%s425 + $0x54] sm:$0xff]
  %v441 = vld [vmem:[%s425 + $0x5c] sm:$0xf]
  %v442 = vld [vmem:[%s425 + $0x60] sm:$0xff]
  %v443 = vld [vmem:[%s425 + $0x68] sm:$0xf]
  %v444 = vld [vmem:[%s425 + $0x6c] sm:$0xff]
  %v445 = vld [vmem:[%s425 + $0x74] sm:$0xf]
  %v446 = vld [vmem:[%s425 + $0x78] sm:$0xff]
  %v447 = vld [vmem:[%s425 + $0x80] sm:$0xf]
  %v448 = vld [vmem:[%s425 + $0x84] sm:$0xff]
  %v449 = vld [vmem:[%s425 + $0x8c] sm:$0xf]
  %v450 = vld [vmem:[%s425 + $0x90] sm:$0xff]
  %v451 = vld [vmem:[%s425 + $0x98] sm:$0xf]
  %v452 = vld [vmem:[%s425 + $0x9c] sm:$0xff]
  %v453 = vld [vmem:[%s425 + $0xa4] sm:$0xf]
  %v454 = vld [vmem:[%s425 + $0xa8] sm:$0xff]
  %v455 = vld [vmem:[%s425 + $0xb0] sm:$0xf]
  %v456 = vld [vmem:[%s425 + $0xb4] sm:$0xff]
  %v457 = vld [vmem:[%s425 + $0xbc] sm:$0xf]
  %v458 = vld [vmem:[%s425 + $0xc0] sm:$0xff]
  %v459 = vld [vmem:[%s425 + $0xc8] sm:$0xf]
  %v460 = vld [vmem:[%s425 + $0xcc] sm:$0xff]
  %v461 = vld [vmem:[%s425 + $0xd4] sm:$0xf]
  %v498 = vunpack.c.l.b16 %v426
  %v499 = vunpack.c.h.b16 %v426
  %v500 = vunpack.c.l.b16 %v427
  %v501 = vunpack.c.l.b16 %v428
  %v502 = vunpack.c.h.b16 %v428
  %v503 = vunpack.c.l.b16 %v429
  %v504 = vunpack.c.l.b16 %v430
  %v505 = vunpack.c.h.b16 %v430
  %v506 = vunpack.c.l.b16 %v431
  %v507 = vunpack.c.l.b16 %v432
  %v508 = vunpack.c.h.b16 %v432
  %v509 = vunpack.c.l.b16 %v433
  %v510 = vunpack.c.l.b16 %v434
  %v511 = vunpack.c.h.b16 %v434
  %v512 = vunpack.c.l.b16 %v435
  %v513 = vunpack.c.l.b16 %v436
  %v514 = vunpack.c.h.b16 %v436
  %v515 = vunpack.c.l.b16 %v437
  %v516 = vunpack.c.l.b16 %v438
  %v517 = vunpack.c.h.b16 %v438
  %v518 = vunpack.c.l.b16 %v439
  %v519 = vunpack.c.l.b16 %v440
  %v520 = vunpack.c.h.b16 %v440
  %v521 = vunpack.c.l.b16 %v441
  %v522 = vunpack.c.l.b16 %v442
  %v523 = vunpack.c.h.b16 %v442
  %v524 = vunpack.c.l.b16 %v443
  %v525 = vunpack.c.l.b16 %v444
  %v526 = vunpack.c.h.b16 %v444
  %v527 = vunpack.c.l.b16 %v445
  %v528 = vunpack.c.l.b16 %v446
  %v529 = vunpack.c.h.b16 %v446
  %v530 = vunpack.c.l.b16 %v447
  %v531 = vunpack.c.l.b16 %v448
  %v532 = vunpack.c.h.b16 %v448
  %v533 = vunpack.c.l.b16 %v449
  %v534 = vunpack.c.l.b16 %v450
  %v535 = vunpack.c.h.b16 %v450
  %v536 = vunpack.c.l.b16 %v451
  %v537 = vunpack.c.l.b16 %v452
  %v538 = vunpack.c.h.b16 %v452
  %v539 = vunpack.c.l.b16 %v453
  %v540 = vunpack.c.l.b16 %v454
  %v541 = vunpack.c.h.b16 %v454
  %v542 = vunpack.c.l.b16 %v455
  %v543 = vunpack.c.l.b16 %v456
  %v544 = vunpack.c.h.b16 %v456
  %v545 = vunpack.c.l.b16 %v457
  %v546 = vunpack.c.l.b16 %v458
  %v547 = vunpack.c.h.b16 %v458
  %v548 = vunpack.c.l.b16 %v459
  %v549 = vunpack.c.l.b16 %v460
  %v550 = vunpack.c.h.b16 %v460
  %v551 = vunpack.c.l.b16 %v461
  %v552 = vpack.c.b16 %v501, %v498
  %v553 = vpack.c.b16 %v502, %v499
  %v554 = vpack.c.b16 %v503, %v500
  %v555 = vpack.c.b16 %v507, %v504
  %v556 = vpack.c.b16 %v508, %v505
  %v557 = vpack.c.b16 %v509, %v506
  %v558 = vpack.c.b16 %v513, %v510
  %v559 = vpack.c.b16 %v514, %v511
  %v560 = vpack.c.b16 %v515, %v512
  %v561 = vpack.c.b16 %v519, %v516
  %v562 = vpack.c.b16 %v520, %v517
  %v563 = vpack.c.b16 %v521, %v518
  %v564 = vpack.c.b16 %v525, %v522
  %v565 = vpack.c.b16 %v526, %v523
  %v566 = vpack.c.b16 %v527, %v524
  %v567 = vpack.c.b16 %v531, %v528
  %v568 = vpack.c.b16 %v532, %v529
  %v569 = vpack.c.b16 %v533, %v530
  %v570 = vpack.c.b16 %v537, %v534
  %v571 = vpack.c.b16 %v538, %v535
  %v572 = vpack.c.b16 %v539, %v536
  %v573 = vpack.c.b16 %v543, %v540
  %v574 = vpack.c.b16 %v544, %v541
  %v575 = vpack.c.b16 %v545, %v542
  %v576 = vpack.c.b16 %v549, %v546
  %v577 = vpack.c.b16 %v550, %v547
  %v578 = vpack.c.b16 %v551, %v548
  %606 = vmatpush.bf16.msra.mxu0 %v573
  %607 = vmatpush.bf16.msra.mxu0 %v570
  %608 = vmatpush.bf16.msra.mxu0 %v567
  %609 = vmatpush.bf16.msra.mxu0 %v564
  %610 = vmatpush.bf16.msra.mxu0 %v561
  %611 = vmatpush.bf16.msra.mxu0 %v558
  %612 = vmatpush.bf16.msra.mxu0 %v555
  %613 = vmatpush.bf16.msra.mxu0 %v552
  %614 = vmatmul.bf16.gmra.mxu0 %v78
  %v615 = vpop.f32.mrf.mxu0
  %v616 = vadd.f32 0.0, %v615
  %v617 = vpop.f32.mrf.mxu0
  %v618 = vadd.f32 0.0, %v617
  %619 = vmatmul.bf16.gmra.mxu0 %v80
  %v620 = vpop.f32.mrf.mxu0
  %v621 = vadd.f32 0.0, %v620
  %v622 = vpop.f32.mrf.mxu0
  %v623 = vadd.f32 0.0, %v622
  %624 = vdwg.mxu0
  %625 = vmatpush.bf16.msra.mxu0 0
  %626 = vmatpush.bf16.msra.mxu0 0
  %627 = vmatpush.bf16.msra.mxu0 0
  %628 = vmatpush.bf16.msra.mxu0 0
  %629 = vmatpush.bf16.msra.mxu0 0
  %630 = vmatpush.bf16.msra.mxu0 0
  %631 = vmatpush.bf16.msra.mxu0 0
  %632 = vmatpush.bf16.msra.mxu0 %v576
  %633 = vmatmul.bf16.gmra.mxu0 %v230
  %v634 = vpop.f32.mrf.mxu0
  %v635 = vadd.f32 %v616, %v634
  %v636 = vpop.f32.mrf.mxu0
  %v637 = vadd.f32 %v618, %v636
  %638 = vmatmul.bf16.gmra.mxu0 %v233
  %v639 = vpop.f32.mrf.mxu0
  %v640 = vadd.f32 %v621, %v639
  %v641 = vpop.f32.mrf.mxu0
  %v642 = vadd.f32 %v623, %v641
  %643 = vdwg.mxu0
  %644 = vmatpush.bf16.msra.mxu0 %v574
  %645 = vmatpush.bf16.msra.mxu0 %v571
  %646 = vmatpush.bf16.msra.mxu0 %v568
  %647 = vmatpush.bf16.msra.mxu0 %v565
  %648 = vmatpush.bf16.msra.mxu0 %v562
  %649 = vmatpush.bf16.msra.mxu0 %v559
  %650 = vmatpush.bf16.msra.mxu0 %v556
  %651 = vmatpush.bf16.msra.mxu0 %v553
  %652 = vmatmul.bf16.gmra.mxu0 %v78
  %v653 = vpop.f32.mrf.mxu0
  %v654 = vadd.f32 0.0, %v653
  %v655 = vpop.f32.mrf.mxu0
  %v656 = vadd.f32 0.0, %v655
  %657 = vmatmul.bf16.gmra.mxu0 %v80
  %v658 = vpop.f32.mrf.mxu0
  %v659 = vadd.f32 0.0, %v658
  %v660 = vpop.f32.mrf.mxu0
  %v661 = vadd.f32 0.0, %v660
  %662 = vdwg.mxu0
  %663 = vmatpush.bf16.msra.mxu0 0
  %664 = vmatpush.bf16.msra.mxu0 0
  %665 = vmatpush.bf16.msra.mxu0 0
  %666 = vmatpush.bf16.msra.mxu0 0
  %667 = vmatpush.bf16.msra.mxu0 0
  %668 = vmatpush.bf16.msra.mxu0 0
  %669 = vmatpush.bf16.msra.mxu0 0
  %670 = vmatpush.bf16.msra.mxu0 %v577
  %671 = vmatmul.bf16.gmra.mxu0 %v230
  %v672 = vpop.f32.mrf.mxu0
  %v673 = vadd.f32 %v654, %v672
  %v674 = vpop.f32.mrf.mxu0
  %v675 = vadd.f32 %v656, %v674
  %676 = vmatmul.bf16.gmra.mxu0 %v233
  %v677 = vpop.f32.mrf.mxu0
  %v678 = vadd.f32 %v659, %v677
  %v679 = vpop.f32.mrf.mxu0
  %v680 = vadd.f32 %v661, %v679
  %681 = vdwg.mxu0
  %682 = vmatpush.bf16.msra.mxu0 %v575
  %683 = vmatpush.bf16.msra.mxu0 %v572
  %684 = vmatpush.bf16.msra.mxu0 %v569
  %685 = vmatpush.bf16.msra.mxu0 %v566
  %686 = vmatpush.bf16.msra.mxu0 %v563
  %687 = vmatpush.bf16.msra.mxu0 %v560
  %688 = vmatpush.bf16.msra.mxu0 %v557
  %689 = vmatpush.bf16.msra.mxu0 %v554
  %690 = vmatmul.bf16.gmra.mxu0 %v78
  %v691 = vpop.f32.mrf.mxu0
  %v692 = vadd.f32 0.0, %v691
  %v693 = vpop.f32.mrf.mxu0
  %v694 = vadd.f32 0.0, %v693
  %695 = vmatmul.bf16.gmra.mxu0 %v80
  %v696 = vpop.f32.mrf.mxu0
  %v697 = vadd.f32 0.0, %v696
  %v698 = vpop.f32.mrf.mxu0
  %v699 = vadd.f32 0.0, %v698
  %700 = vdwg.mxu0
  %701 = vmatpush.bf16.msra.mxu0 0
  %702 = vmatpush.bf16.msra.mxu0 0
  %703 = vmatpush.bf16.msra.mxu0 0
  %704 = vmatpush.bf16.msra.mxu0 0
  %705 = vmatpush.bf16.msra.mxu0 0
  %706 = vmatpush.bf16.msra.mxu0 0
  %707 = vmatpush.bf16.msra.mxu0 0
  %708 = vmatpush.bf16.msra.mxu0 %v578
  %709 = vmatmul.bf16.gmra.mxu0 %v230
  %v710 = vpop.f32.mrf.mxu0
  %v711 = vadd.f32 %v692, %v710
  %v712 = vpop.f32.mrf.mxu0
  %v713 = vadd.f32 %v694, %v712
  %714 = vmatmul.bf16.gmra.mxu0 %v233
  %v715 = vpop.f32.mrf.mxu0
  %v716 = vadd.f32 %v697, %v715
  %v717 = vpop.f32.mrf.mxu0
  %v718 = vadd.f32 %v699, %v717
  %719 = vdwg.mxu0
  %v720 = vmul.f32 %v635, %v352
  %v721 = vmul.f32 %v673, %v352
  %v722 = vmul.f32 %v711, %v352
  %v723 = vmul.f32 %v637, %v357
  %v724 = vmul.f32 %v675, %v357
  %v725 = vmul.f32 %v713, %v357
  %v726 = vmul.f32 %v640, %v362
  %v727 = vmul.f32 %v678, %v362
  %v728 = vmul.f32 %v716, %v362
  %v729 = vmul.f32 %v642, %v367
  %v730 = vmul.f32 %v680, %v367
  %v731 = vmul.f32 %v718, %v367
  %v732 = vadd.f32 %v720, %v384
  %v733 = vadd.f32 %v721, %v384
  %v734 = vadd.f32 %v722, %v384
  %v735 = vadd.f32 %v723, %v389
  %v736 = vadd.f32 %v724, %v389
  %v737 = vadd.f32 %v725, %v389
  %v738 = vadd.f32 %v726, %v394
  %v739 = vadd.f32 %v727, %v394
  %v740 = vadd.f32 %v728, %v394
  %v741 = vadd.f32 %v729, %v399
  %v742 = vadd.f32 %v730, %v399
  %v743 = vadd.f32 %v731, %v399
  %v744 = vmax.f32 %v732, 0.0
  %v745 = vmax.f32 %v733, 0.0
  %v746 = vmax.f32 %v734, 0.0
  %v747 = vmax.f32 %v735, 0.0
  %v748 = vmax.f32 %v736, 0.0
  %v749 = vmax.f32 %v737, 0.0
  %v750 = vmax.f32 %v738, 0.0
  %v751 = vmax.f32 %v739, 0.0
  %v752 = vmax.f32 %v740, 0.0
  %v753 = vmax.f32 %v741, 0.0
  %v754 = vmax.f32 %v742, 0.0
  %v755 = vmax.f32 %v743, 0.0
  %v756 = vmax.f32 %v413, %v744
  %v757 = vmax.f32 %v414, %v745
  %v758 = vmax.f32 %v415, %v746
  %v759 = vmax.f32 %v416, %v747
  %v760 = vmax.f32 %v417, %v748
  %v761 = vmax.f32 %v418, %v749
  %v762 = vmax.f32 %v419, %v750
  %v763 = vmax.f32 %v420, %v751
  %v764 = vmax.f32 %v421, %v752
  %v765 = vmax.f32 %v422, %v753
  %v766 = vmax.f32 %v423, %v754
  %v767 = vmax.f32 %v424, %v755
  %s768 = scalar_lea.vmem %s0, 432
  %v769 = vld [vmem:[%s768] sm:$0xff]
  %v770 = vld [vmem:[%s768 + $0x8] sm:$0xf]
  %v771 = vld [vmem:[%s768 + $0xc] sm:$0xff]
  %v772 = vld [vmem:[%s768 + $0x14] sm:$0xf]
  %v773 = vld [vmem:[%s768 + $0x18] sm:$0xff]
  %v774 = vld [vmem:[%s768 + $0x20] sm:$0xf]
  %v775 = vld [vmem:[%s768 + $0x24] sm:$0xff]
  %v776 = vld [vmem:[%s768 + $0x2c] sm:$0xf]
  %v777 = vld [vmem:[%s768 + $0x30] sm:$0xff]
  %v778 = vld [vmem:[%s768 + $0x38] sm:$0xf]
  %v779 = vld [vmem:[%s768 + $0x3c] sm:$0xff]
  %v780 = vld [vmem:[%s768 + $0x44] sm:$0xf]
  %v781 = vld [vmem:[%s768 + $0x48] sm:$0xff]
  %v782 = vld [vmem:[%s768 + $0x50] sm:$0xf]
  %v783 = vld [vmem:[%s768 + $0x54] sm:$0xff]
  %v784 = vld [vmem:[%s768 + $0x5c] sm:$0xf]
  %v785 = vld [vmem:[%s768 + $0x60] sm:$0xff]
  %v786 = vld [vmem:[%s768 + $0x68] sm:$0xf]
  %v787 = vld [vmem:[%s768 + $0x6c] sm:$0xff]
  %v788 = vld [vmem:[%s768 + $0x74] sm:$0xf]
  %v789 = vld [vmem:[%s768 + $0x78] sm:$0xff]
  %v790 = vld [vmem:[%s768 + $0x80] sm:$0xf]
  %v791 = vld [vmem:[%s768 + $0x84] sm:$0xff]
  %v792 = vld [vmem:[%s768 + $0x8c] sm:$0xf]
  %v793 = vld [vmem:[%s768 + $0x90] sm:$0xff]
  %v794 = vld [vmem:[%s768 + $0x98] sm:$0xf]
  %v795 = vld [vmem:[%s768 + $0x9c] sm:$0xff]
  %v796 = vld [vmem:[%s768 + $0xa4] sm:$0xf]
  %v797 = vld [vmem:[%s768 + $0xa8] sm:$0xff]
  %v798 = vld [vmem:[%s768 + $0xb0] sm:$0xf]
  %v799 = vld [vmem:[%s768 + $0xb4] sm:$0xff]
  %v800 = vld [vmem:[%s768 + $0xbc] sm:$0xf]
  %v801 = vld [vmem:[%s768 + $0xc0] sm:$0xff]
  %v802 = vld [vmem:[%s768 + $0xc8] sm:$0xf]
  %v803 = vld [vmem:[%s768 + $0xcc] sm:$0xff]
  %v804 = vld [vmem:[%s768 + $0xd4] sm:$0xf]
  %v841 = vunpack.c.l.b16 %v769
  %v842 = vunpack.c.h.b16 %v769
  %v843 = vunpack.c.l.b16 %v770
  %v844 = vunpack.c.l.b16 %v771
  %v845 = vunpack.c.h.b16 %v771
  %v846 = vunpack.c.l.b16 %v772
  %v847 = vunpack.c.l.b16 %v773
  %v848 = vunpack.c.h.b16 %v773
  %v849 = vunpack.c.l.b16 %v774
  %v850 = vunpack.c.l.b16 %v775
  %v851 = vunpack.c.h.b16 %v775
  %v852 = vunpack.c.l.b16 %v776
  %v853 = vunpack.c.l.b16 %v777
  %v854 = vunpack.c.h.b16 %v777
  %v855 = vunpack.c.l.b16 %v778
  %v856 = vunpack.c.l.b16 %v779
  %v857 = vunpack.c.h.b16 %v779
  %v858 = vunpack.c.l.b16 %v780
  %v859 = vunpack.c.l.b16 %v781
  %v860 = vunpack.c.h.b16 %v781
  %v861 = vunpack.c.l.b16 %v782
  %v862 = vunpack.c.l.b16 %v783
  %v863 = vunpack.c.h.b16 %v783
  %v864 = vunpack.c.l.b16 %v784
  %v865 = vunpack.c.l.b16 %v785
  %v866 = vunpack.c.h.b16 %v785
  %v867 = vunpack.c.l.b16 %v786
  %v868 = vunpack.c.l.b16 %v787
  %v869 = vunpack.c.h.b16 %v787
  %v870 = vunpack.c.l.b16 %v788
  %v871 = vunpack.c.l.b16 %v789
  %v872 = vunpack.c.h.b16 %v789
  %v873 = vunpack.c.l.b16 %v790
  %v874 = vunpack.c.l.b16 %v791
  %v875 = vunpack.c.h.b16 %v791
  %v876 = vunpack.c.l.b16 %v792
  %v877 = vunpack.c.l.b16 %v793
  %v878 = vunpack.c.h.b16 %v793
  %v879 = vunpack.c.l.b16 %v794
  %v880 = vunpack.c.l.b16 %v795
  %v881 = vunpack.c.h.b16 %v795
  %v882 = vunpack.c.l.b16 %v796
  %v883 = vunpack.c.l.b16 %v797
  %v884 = vunpack.c.h.b16 %v797
  %v885 = vunpack.c.l.b16 %v798
  %v886 = vunpack.c.l.b16 %v799
  %v887 = vunpack.c.h.b16 %v799
  %v888 = vunpack.c.l.b16 %v800
  %v889 = vunpack.c.l.b16 %v801
  %v890 = vunpack.c.h.b16 %v801
  %v891 = vunpack.c.l.b16 %v802
  %v892 = vunpack.c.l.b16 %v803
  %v893 = vunpack.c.h.b16 %v803
  %v894 = vunpack.c.l.b16 %v804
  %v895 = vpack.c.b16 %v844, %v841
  %v896 = vpack.c.b16 %v845, %v842
  %v897 = vpack.c.b16 %v846, %v843
  %v898 = vpack.c.b16 %v850, %v847
  %v899 = vpack.c.b16 %v851, %v848
  %v900 = vpack.c.b16 %v852, %v849
  %v901 = vpack.c.b16 %v856, %v853
  %v902 = vpack.c.b16 %v857, %v854
  %v903 = vpack.c.b16 %v858, %v855
  %v904 = vpack.c.b16 %v862, %v859
  %v905 = vpack.c.b16 %v863, %v860
  %v906 = vpack.c.b16 %v864, %v861
  %v907 = vpack.c.b16 %v868, %v865
  %v908 = vpack.c.b16 %v869, %v866
  %v909 = vpack.c.b16 %v870, %v867
  %v910 = vpack.c.b16 %v874, %v871
  %v911 = vpack.c.b16 %v875, %v872
  %v912 = vpack.c.b16 %v876, %v873
  %v913 = vpack.c.b16 %v880, %v877
  %v914 = vpack.c.b16 %v881, %v878
  %v915 = vpack.c.b16 %v882, %v879
  %v916 = vpack.c.b16 %v886, %v883
  %v917 = vpack.c.b16 %v887, %v884
  %v918 = vpack.c.b16 %v888, %v885
  %v919 = vpack.c.b16 %v892, %v889
  %v920 = vpack.c.b16 %v893, %v890
  %v921 = vpack.c.b16 %v894, %v891
  %949 = vmatpush.bf16.msra.mxu0 %v916
  %950 = vmatpush.bf16.msra.mxu0 %v913
  %951 = vmatpush.bf16.msra.mxu0 %v910
  %952 = vmatpush.bf16.msra.mxu0 %v907
  %953 = vmatpush.bf16.msra.mxu0 %v904
  %954 = vmatpush.bf16.msra.mxu0 %v901
  %955 = vmatpush.bf16.msra.mxu0 %v898
  %956 = vmatpush.bf16.msra.mxu0 %v895
  %957 = vmatmul.bf16.gmra.mxu0 %v78
  %v958 = vpop.f32.mrf.mxu0
  %v959 = vadd.f32 0.0, %v958
  %v960 = vpop.f32.mrf.mxu0
  %v961 = vadd.f32 0.0, %v960
  %962 = vmatmul.bf16.gmra.mxu0 %v80
  %v963 = vpop.f32.mrf.mxu0
  %v964 = vadd.f32 0.0, %v963
  %v965 = vpop.f32.mrf.mxu0
  %v966 = vadd.f32 0.0, %v965
  %967 = vdwg.mxu0
  %968 = vmatpush.bf16.msra.mxu0 0
  %969 = vmatpush.bf16.msra.mxu0 0
  %970 = vmatpush.bf16.msra.mxu0 0
  %971 = vmatpush.bf16.msra.mxu0 0
  %972 = vmatpush.bf16.msra.mxu0 0
  %973 = vmatpush.bf16.msra.mxu0 0
  %974 = vmatpush.bf16.msra.mxu0 0
  %975 = vmatpush.bf16.msra.mxu0 %v919
  %976 = vmatmul.bf16.gmra.mxu0 %v230
  %v977 = vpop.f32.mrf.mxu0
  %v978 = vadd.f32 %v959, %v977
  %v979 = vpop.f32.mrf.mxu0
  %v980 = vadd.f32 %v961, %v979
  %981 = vmatmul.bf16.gmra.mxu0 %v233
  %v982 = vpop.f32.mrf.mxu0
  %v983 = vadd.f32 %v964, %v982
  %v984 = vpop.f32.mrf.mxu0
  %v985 = vadd.f32 %v966, %v984
  %986 = vdwg.mxu0
  %987 = vmatpush.bf16.msra.mxu0 %v917
  %988 = vmatpush.bf16.msra.mxu0 %v914
  %989 = vmatpush.bf16.msra.mxu0 %v911
  %990 = vmatpush.bf16.msra.mxu0 %v908
  %991 = vmatpush.bf16.msra.mxu0 %v905
  %992 = vmatpush.bf16.msra.mxu0 %v902
  %993 = vmatpush.bf16.msra.mxu0 %v899
  %994 = vmatpush.bf16.msra.mxu0 %v896
  %995 = vmatmul.bf16.gmra.mxu0 %v78
  %v996 = vpop.f32.mrf.mxu0
  %v997 = vadd.f32 0.0, %v996
  %v998 = vpop.f32.mrf.mxu0
  %v999 = vadd.f32 0.0, %v998
  %1000 = vmatmul.bf16.gmra.mxu0 %v80
  %v1001 = vpop.f32.mrf.mxu0
  %v1002 = vadd.f32 0.0, %v1001
  %v1003 = vpop.f32.mrf.mxu0
  %v1004 = vadd.f32 0.0, %v1003
  %1005 = vdwg.mxu0
  %1006 = vmatpush.bf16.msra.mxu0 0
  %1007 = vmatpush.bf16.msra.mxu0 0
  %1008 = vmatpush.bf16.msra.mxu0 0
  %1009 = vmatpush.bf16.msra.mxu0 0
  %1010 = vmatpush.bf16.msra.mxu0 0
  %1011 = vmatpush.bf16.msra.mxu0 0
  %1012 = vmatpush.bf16.msra.mxu0 0
  %1013 = vmatpush.bf16.msra.mxu0 %v920
  %1014 = vmatmul.bf16.gmra.mxu0 %v230
  %v1015 = vpop.f32.mrf.mxu0
  %v1016 = vadd.f32 %v997, %v1015
  %v1017 = vpop.f32.mrf.mxu0
  %v1018 = vadd.f32 %v999, %v1017
  %1019 = vmatmul.bf16.gmra.mxu0 %v233
  %v1020 = vpop.f32.mrf.mxu0
  %v1021 = vadd.f32 %v1002, %v1020
  %v1022 = vpop.f32.mrf.mxu0
  %v1023 = vadd.f32 %v1004, %v1022
  %1024 = vdwg.mxu0
  %1025 = vmatpush.bf16.msra.mxu0 %v918
  %1026 = vmatpush.bf16.msra.mxu0 %v915
  %1027 = vmatpush.bf16.msra.mxu0 %v912
  %1028 = vmatpush.bf16.msra.mxu0 %v909
  %1029 = vmatpush.bf16.msra.mxu0 %v906
  %1030 = vmatpush.bf16.msra.mxu0 %v903
  %1031 = vmatpush.bf16.msra.mxu0 %v900
  %1032 = vmatpush.bf16.msra.mxu0 %v897
  %1033 = vmatmul.bf16.gmra.mxu0 %v78
  %v1034 = vpop.f32.mrf.mxu0
  %v1035 = vadd.f32 0.0, %v1034
  %v1036 = vpop.f32.mrf.mxu0
  %v1037 = vadd.f32 0.0, %v1036
  %1038 = vmatmul.bf16.gmra.mxu0 %v80
  %v1039 = vpop.f32.mrf.mxu0
  %v1040 = vadd.f32 0.0, %v1039
  %v1041 = vpop.f32.mrf.mxu0
  %v1042 = vadd.f32 0.0, %v1041
  %1043 = vdwg.mxu0
  %1044 = vmatpush.bf16.msra.mxu0 0
  %1045 = vmatpush.bf16.msra.mxu0 0
  %1046 = vmatpush.bf16.msra.mxu0 0
  %1047 = vmatpush.bf16.msra.mxu0 0
  %1048 = vmatpush.bf16.msra.mxu0 0
  %1049 = vmatpush.bf16.msra.mxu0 0
  %1050 = vmatpush.bf16.msra.mxu0 0
  %1051 = vmatpush.bf16.msra.mxu0 %v921
  %1052 = vmatmul.bf16.gmra.mxu0 %v230
  %v1053 = vpop.f32.mrf.mxu0
  %v1054 = vadd.f32 %v1035, %v1053
  %v1055 = vpop.f32.mrf.mxu0
  %v1056 = vadd.f32 %v1037, %v1055
  %1057 = vmatmul.bf16.gmra.mxu0 %v233
  %v1058 = vpop.f32.mrf.mxu0
  %v1059 = vadd.f32 %v1040, %v1058
  %v1060 = vpop.f32.mrf.mxu0
  %v1061 = vadd.f32 %v1042, %v1060
  %1062 = vdwg.mxu0
  %v1063 = vmul.f32 %v978, %v352
  %v1064 = vmul.f32 %v1016, %v352
  %v1065 = vmul.f32 %v1054, %v352
  %v1066 = vmul.f32 %v980, %v357
  %v1067 = vmul.f32 %v1018, %v357
  %v1068 = vmul.f32 %v1056, %v357
  %v1069 = vmul.f32 %v983, %v362
  %v1070 = vmul.f32 %v1021, %v362
  %v1071 = vmul.f32 %v1059, %v362
  %v1072 = vmul.f32 %v985, %v367
  %v1073 = vmul.f32 %v1023, %v367
  %v1074 = vmul.f32 %v1061, %v367
  %v1075 = vadd.f32 %v1063, %v384
  %v1076 = vadd.f32 %v1064, %v384
  %v1077 = vadd.f32 %v1065, %v384
  %v1078 = vadd.f32 %v1066, %v389
  %v1079 = vadd.f32 %v1067, %v389
  %v1080 = vadd.f32 %v1068, %v389
  %v1081 = vadd.f32 %v1069, %v394
  %v1082 = vadd.f32 %v1070, %v394
  %v1083 = vadd.f32 %v1071, %v394
  %v1084 = vadd.f32 %v1072, %v399
  %v1085 = vadd.f32 %v1073, %v399
  %v1086 = vadd.f32 %v1074, %v399
  %v1087 = vmax.f32 %v1075, 0.0
  %v1088 = vmax.f32 %v1076, 0.0
  %v1089 = vmax.f32 %v1077, 0.0
  %v1090 = vmax.f32 %v1078, 0.0
  %v1091 = vmax.f32 %v1079, 0.0
  %v1092 = vmax.f32 %v1080, 0.0
  %v1093 = vmax.f32 %v1081, 0.0
  %v1094 = vmax.f32 %v1082, 0.0
  %v1095 = vmax.f32 %v1083, 0.0
  %v1096 = vmax.f32 %v1084, 0.0
  %v1097 = vmax.f32 %v1085, 0.0
  %v1098 = vmax.f32 %v1086, 0.0
  %s1099 = scalar_lea.vmem %s0, 648
  %v1100 = vld [vmem:[%s1099] sm:$0xff]
  %v1101 = vld [vmem:[%s1099 + $0x8] sm:$0xf]
  %v1102 = vld [vmem:[%s1099 + $0xc] sm:$0xff]
  %v1103 = vld [vmem:[%s1099 + $0x14] sm:$0xf]
  %v1104 = vld [vmem:[%s1099 + $0x18] sm:$0xff]
  %v1105 = vld [vmem:[%s1099 + $0x20] sm:$0xf]
  %v1106 = vld [vmem:[%s1099 + $0x24] sm:$0xff]
  %v1107 = vld [vmem:[%s1099 + $0x2c] sm:$0xf]
  %v1108 = vld [vmem:[%s1099 + $0x30] sm:$0xff]
  %v1109 = vld [vmem:[%s1099 + $0x38] sm:$0xf]
  %v1110 = vld [vmem:[%s1099 + $0x3c] sm:$0xff]
  %v1111 = vld [vmem:[%s1099 + $0x44] sm:$0xf]
  %v1112 = vld [vmem:[%s1099 + $0x48] sm:$0xff]
  %v1113 = vld [vmem:[%s1099 + $0x50] sm:$0xf]
  %v1114 = vld [vmem:[%s1099 + $0x54] sm:$0xff]
  %v1115 = vld [vmem:[%s1099 + $0x5c] sm:$0xf]
  %v1116 = vld [vmem:[%s1099 + $0x60] sm:$0xff]
  %v1117 = vld [vmem:[%s1099 + $0x68] sm:$0xf]
  %v1118 = vld [vmem:[%s1099 + $0x6c] sm:$0xff]
  %v1119 = vld [vmem:[%s1099 + $0x74] sm:$0xf]
  %v1120 = vld [vmem:[%s1099 + $0x78] sm:$0xff]
  %v1121 = vld [vmem:[%s1099 + $0x80] sm:$0xf]
  %v1122 = vld [vmem:[%s1099 + $0x84] sm:$0xff]
  %v1123 = vld [vmem:[%s1099 + $0x8c] sm:$0xf]
  %v1124 = vld [vmem:[%s1099 + $0x90] sm:$0xff]
  %v1125 = vld [vmem:[%s1099 + $0x98] sm:$0xf]
  %v1126 = vld [vmem:[%s1099 + $0x9c] sm:$0xff]
  %v1127 = vld [vmem:[%s1099 + $0xa4] sm:$0xf]
  %v1128 = vld [vmem:[%s1099 + $0xa8] sm:$0xff]
  %v1129 = vld [vmem:[%s1099 + $0xb0] sm:$0xf]
  %v1130 = vld [vmem:[%s1099 + $0xb4] sm:$0xff]
  %v1131 = vld [vmem:[%s1099 + $0xbc] sm:$0xf]
  %v1132 = vld [vmem:[%s1099 + $0xc0] sm:$0xff]
  %v1133 = vld [vmem:[%s1099 + $0xc8] sm:$0xf]
  %v1134 = vld [vmem:[%s1099 + $0xcc] sm:$0xff]
  %v1135 = vld [vmem:[%s1099 + $0xd4] sm:$0xf]
  %v1172 = vunpack.c.l.b16 %v1100
  %v1173 = vunpack.c.h.b16 %v1100
  %v1174 = vunpack.c.l.b16 %v1101
  %v1175 = vunpack.c.l.b16 %v1102
  %v1176 = vunpack.c.h.b16 %v1102
  %v1177 = vunpack.c.l.b16 %v1103
  %v1178 = vunpack.c.l.b16 %v1104
  %v1179 = vunpack.c.h.b16 %v1104
  %v1180 = vunpack.c.l.b16 %v1105
  %v1181 = vunpack.c.l.b16 %v1106
  %v1182 = vunpack.c.h.b16 %v1106
  %v1183 = vunpack.c.l.b16 %v1107
  %v1184 = vunpack.c.l.b16 %v1108
  %v1185 = vunpack.c.h.b16 %v1108
  %v1186 = vunpack.c.l.b16 %v1109
  %v1187 = vunpack.c.l.b16 %v1110
  %v1188 = vunpack.c.h.b16 %v1110
  %v1189 = vunpack.c.l.b16 %v1111
  %v1190 = vunpack.c.l.b16 %v1112
  %v1191 = vunpack.c.h.b16 %v1112
  %v1192 = vunpack.c.l.b16 %v1113
  %v1193 = vunpack.c.l.b16 %v1114
  %v1194 = vunpack.c.h.b16 %v1114
  %v1195 = vunpack.c.l.b16 %v1115
  %v1196 = vunpack.c.l.b16 %v1116
  %v1197 = vunpack.c.h.b16 %v1116
  %v1198 = vunpack.c.l.b16 %v1117
  %v1199 = vunpack.c.l.b16 %v1118
  %v1200 = vunpack.c.h.b16 %v1118
  %v1201 = vunpack.c.l.b16 %v1119
  %v1202 = vunpack.c.l.b16 %v1120
  %v1203 = vunpack.c.h.b16 %v1120
  %v1204 = vunpack.c.l.b16 %v1121
  %v1205 = vunpack.c.l.b16 %v1122
  %v1206 = vunpack.c.h.b16 %v1122
  %v1207 = vunpack.c.l.b16 %v1123
  %v1208 = vunpack.c.l.b16 %v1124
  %v1209 = vunpack.c.h.b16 %v1124
  %v1210 = vunpack.c.l.b16 %v1125
  %v1211 = vunpack.c.l.b16 %v1126
  %v1212 = vunpack.c.h.b16 %v1126
  %v1213 = vunpack.c.l.b16 %v1127
  %v1214 = vunpack.c.l.b16 %v1128
  %v1215 = vunpack.c.h.b16 %v1128
  %v1216 = vunpack.c.l.b16 %v1129
  %v1217 = vunpack.c.l.b16 %v1130
  %v1218 = vunpack.c.h.b16 %v1130
  %v1219 = vunpack.c.l.b16 %v1131
  %v1220 = vunpack.c.l.b16 %v1132
  %v1221 = vunpack.c.h.b16 %v1132
  %v1222 = vunpack.c.l.b16 %v1133
  %v1223 = vunpack.c.l.b16 %v1134
  %v1224 = vunpack.c.h.b16 %v1134
  %v1225 = vunpack.c.l.b16 %v1135
  %v1226 = vpack.c.b16 %v1175, %v1172
  %v1227 = vpack.c.b16 %v1176, %v1173
  %v1228 = vpack.c.b16 %v1177, %v1174
  %v1229 = vpack.c.b16 %v1181, %v1178
  %v1230 = vpack.c.b16 %v1182, %v1179
  %v1231 = vpack.c.b16 %v1183, %v1180
  %v1232 = vpack.c.b16 %v1187, %v1184
  %v1233 = vpack.c.b16 %v1188, %v1185
  %v1234 = vpack.c.b16 %v1189, %v1186
  %v1235 = vpack.c.b16 %v1193, %v1190
  %v1236 = vpack.c.b16 %v1194, %v1191
  %v1237 = vpack.c.b16 %v1195, %v1192
  %v1238 = vpack.c.b16 %v1199, %v1196
  %v1239 = vpack.c.b16 %v1200, %v1197
  %v1240 = vpack.c.b16 %v1201, %v1198
  %v1241 = vpack.c.b16 %v1205, %v1202
  %v1242 = vpack.c.b16 %v1206, %v1203
  %v1243 = vpack.c.b16 %v1207, %v1204
  %v1244 = vpack.c.b16 %v1211, %v1208
  %v1245 = vpack.c.b16 %v1212, %v1209
  %v1246 = vpack.c.b16 %v1213, %v1210
  %v1247 = vpack.c.b16 %v1217, %v1214
  %v1248 = vpack.c.b16 %v1218, %v1215
  %v1249 = vpack.c.b16 %v1219, %v1216
  %v1250 = vpack.c.b16 %v1223, %v1220
  %v1251 = vpack.c.b16 %v1224, %v1221
  %v1252 = vpack.c.b16 %v1225, %v1222
  %1280 = vmatpush.bf16.msra.mxu0 %v1247
  %1281 = vmatpush.bf16.msra.mxu0 %v1244
  %1282 = vmatpush.bf16.msra.mxu0 %v1241
  %1283 = vmatpush.bf16.msra.mxu0 %v1238
  %1284 = vmatpush.bf16.msra.mxu0 %v1235
  %1285 = vmatpush.bf16.msra.mxu0 %v1232
  %1286 = vmatpush.bf16.msra.mxu0 %v1229
  %1287 = vmatpush.bf16.msra.mxu0 %v1226
  %1288 = vmatmul.bf16.gmra.mxu0 %v78
  %v1289 = vpop.f32.mrf.mxu0
  %v1290 = vadd.f32 0.0, %v1289
  %v1291 = vpop.f32.mrf.mxu0
  %v1292 = vadd.f32 0.0, %v1291
  %1293 = vmatmul.bf16.gmra.mxu0 %v80
  %v1294 = vpop.f32.mrf.mxu0
  %v1295 = vadd.f32 0.0, %v1294
  %v1296 = vpop.f32.mrf.mxu0
  %v1297 = vadd.f32 0.0, %v1296
  %1298 = vdwg.mxu0
  %1299 = vmatpush.bf16.msra.mxu0 0
  %1300 = vmatpush.bf16.msra.mxu0 0
  %1301 = vmatpush.bf16.msra.mxu0 0
  %1302 = vmatpush.bf16.msra.mxu0 0
  %1303 = vmatpush.bf16.msra.mxu0 0
  %1304 = vmatpush.bf16.msra.mxu0 0
  %1305 = vmatpush.bf16.msra.mxu0 0
  %1306 = vmatpush.bf16.msra.mxu0 %v1250
  %1307 = vmatmul.bf16.gmra.mxu0 %v230
  %v1308 = vpop.f32.mrf.mxu0
  %v1309 = vadd.f32 %v1290, %v1308
  %v1310 = vpop.f32.mrf.mxu0
  %v1311 = vadd.f32 %v1292, %v1310
  %1312 = vmatmul.bf16.gmra.mxu0 %v233
  %v1313 = vpop.f32.mrf.mxu0
  %v1314 = vadd.f32 %v1295, %v1313
  %v1315 = vpop.f32.mrf.mxu0
  %v1316 = vadd.f32 %v1297, %v1315
  %1317 = vdwg.mxu0
  %1318 = vmatpush.bf16.msra.mxu0 %v1248
  %1319 = vmatpush.bf16.msra.mxu0 %v1245
  %1320 = vmatpush.bf16.msra.mxu0 %v1242
  %1321 = vmatpush.bf16.msra.mxu0 %v1239
  %1322 = vmatpush.bf16.msra.mxu0 %v1236
  %1323 = vmatpush.bf16.msra.mxu0 %v1233
  %1324 = vmatpush.bf16.msra.mxu0 %v1230
  %1325 = vmatpush.bf16.msra.mxu0 %v1227
  %1326 = vmatmul.bf16.gmra.mxu0 %v78
  %v1327 = vpop.f32.mrf.mxu0
  %v1328 = vadd.f32 0.0, %v1327
  %v1329 = vpop.f32.mrf.mxu0
  %v1330 = vadd.f32 0.0, %v1329
  %1331 = vmatmul.bf16.gmra.mxu0 %v80
  %v1332 = vpop.f32.mrf.mxu0
  %v1333 = vadd.f32 0.0, %v1332
  %v1334 = vpop.f32.mrf.mxu0
  %v1335 = vadd.f32 0.0, %v1334
  %1336 = vdwg.mxu0
  %1337 = vmatpush.bf16.msra.mxu0 0
  %1338 = vmatpush.bf16.msra.mxu0 0
  %1339 = vmatpush.bf16.msra.mxu0 0
  %1340 = vmatpush.bf16.msra.mxu0 0
  %1341 = vmatpush.bf16.msra.mxu0 0
  %1342 = vmatpush.bf16.msra.mxu0 0
  %1343 = vmatpush.bf16.msra.mxu0 0
  %1344 = vmatpush.bf16.msra.mxu0 %v1251
  %1345 = vmatmul.bf16.gmra.mxu0 %v230
  %v1346 = vpop.f32.mrf.mxu0
  %v1347 = vadd.f32 %v1328, %v1346
  %v1348 = vpop.f32.mrf.mxu0
  %v1349 = vadd.f32 %v1330, %v1348
  %1350 = vmatmul.bf16.gmra.mxu0 %v233
  %v1351 = vpop.f32.mrf.mxu0
  %v1352 = vadd.f32 %v1333, %v1351
  %v1353 = vpop.f32.mrf.mxu0
  %v1354 = vadd.f32 %v1335, %v1353
  %1355 = vdwg.mxu0
  %1356 = vmatpush.bf16.msra.mxu0 %v1249
  %1357 = vmatpush.bf16.msra.mxu0 %v1246
  %1358 = vmatpush.bf16.msra.mxu0 %v1243
  %1359 = vmatpush.bf16.msra.mxu0 %v1240
  %1360 = vmatpush.bf16.msra.mxu0 %v1237
  %1361 = vmatpush.bf16.msra.mxu0 %v1234
  %1362 = vmatpush.bf16.msra.mxu0 %v1231
  %1363 = vmatpush.bf16.msra.mxu0 %v1228
  %1364 = vmatmul.bf16.gmra.mxu0 %v78
  %v1365 = vpop.f32.mrf.mxu0
  %v1366 = vadd.f32 0.0, %v1365
  %v1367 = vpop.f32.mrf.mxu0
  %v1368 = vadd.f32 0.0, %v1367
  %1369 = vmatmul.bf16.gmra.mxu0 %v80
  %v1370 = vpop.f32.mrf.mxu0
  %v1371 = vadd.f32 0.0, %v1370
  %v1372 = vpop.f32.mrf.mxu0
  %v1373 = vadd.f32 0.0, %v1372
  %1374 = vdwg.mxu0
  %1375 = vmatpush.bf16.msra.mxu0 0
  %1376 = vmatpush.bf16.msra.mxu0 0
  %1377 = vmatpush.bf16.msra.mxu0 0
  %1378 = vmatpush.bf16.msra.mxu0 0
  %1379 = vmatpush.bf16.msra.mxu0 0
  %1380 = vmatpush.bf16.msra.mxu0 0
  %1381 = vmatpush.bf16.msra.mxu0 0
  %1382 = vmatpush.bf16.msra.mxu0 %v1252
  %1383 = vmatmul.bf16.gmra.mxu0 %v230
  %v1384 = vpop.f32.mrf.mxu0
  %v1385 = vadd.f32 %v1366, %v1384
  %v1386 = vpop.f32.mrf.mxu0
  %v1387 = vadd.f32 %v1368, %v1386
  %1388 = vmatmul.bf16.gmra.mxu0 %v233
  %v1389 = vpop.f32.mrf.mxu0
  %v1390 = vadd.f32 %v1371, %v1389
  %v1391 = vpop.f32.mrf.mxu0
  %v1392 = vadd.f32 %v1373, %v1391
  %1393 = vdwg.mxu0
  %v1394 = vmul.f32 %v1309, %v352
  %v1395 = vmul.f32 %v1347, %v352
  %v1396 = vmul.f32 %v1385, %v352
  %v1397 = vmul.f32 %v1311, %v357
  %v1398 = vmul.f32 %v1349, %v357
  %v1399 = vmul.f32 %v1387, %v357
  %v1400 = vmul.f32 %v1314, %v362
  %v1401 = vmul.f32 %v1352, %v362
  %v1402 = vmul.f32 %v1390, %v362
  %v1403 = vmul.f32 %v1316, %v367
  %v1404 = vmul.f32 %v1354, %v367
  %v1405 = vmul.f32 %v1392, %v367
  %v1406 = vadd.f32 %v1394, %v384
  %v1407 = vadd.f32 %v1395, %v384
  %v1408 = vadd.f32 %v1396, %v384
  %v1409 = vadd.f32 %v1397, %v389
  %v1410 = vadd.f32 %v1398, %v389
  %v1411 = vadd.f32 %v1399, %v389
  %v1412 = vadd.f32 %v1400, %v394
  %v1413 = vadd.f32 %v1401, %v394
  %v1414 = vadd.f32 %v1402, %v394
  %v1415 = vadd.f32 %v1403, %v399
  %v1416 = vadd.f32 %v1404, %v399
  %v1417 = vadd.f32 %v1405, %v399
  %v1418 = vmax.f32 %v1406, 0.0
  %v1419 = vmax.f32 %v1407, 0.0
  %v1420 = vmax.f32 %v1408, 0.0
  %v1421 = vmax.f32 %v1409, 0.0
  %v1422 = vmax.f32 %v1410, 0.0
  %v1423 = vmax.f32 %v1411, 0.0
  %v1424 = vmax.f32 %v1412, 0.0
  %v1425 = vmax.f32 %v1413, 0.0
  %v1426 = vmax.f32 %v1414, 0.0
  %v1427 = vmax.f32 %v1415, 0.0
  %v1428 = vmax.f32 %v1416, 0.0
  %v1429 = vmax.f32 %v1417, 0.0
  %v1430 = vmax.f32 %v1087, %v1418
  %v1431 = vmax.f32 %v1088, %v1419
  %v1432 = vmax.f32 %v1089, %v1420
  %v1433 = vmax.f32 %v1090, %v1421
  %v1434 = vmax.f32 %v1091, %v1422
  %v1435 = vmax.f32 %v1092, %v1423
  %v1436 = vmax.f32 %v1093, %v1424
  %v1437 = vmax.f32 %v1094, %v1425
  %v1438 = vmax.f32 %v1095, %v1426
  %v1439 = vmax.f32 %v1096, %v1427
  %v1440 = vmax.f32 %v1097, %v1428
  %v1441 = vmax.f32 %v1098, %v1429
  %v1442 = vmax.f32 %v756, %v1430
  %v1443 = vmax.f32 %v757, %v1431
  %v1444 = vmax.f32 %v758, %v1432
  %v1445 = vmax.f32 %v759, %v1433
  %v1446 = vmax.f32 %v760, %v1434
  %v1447 = vmax.f32 %v761, %v1435
  %v1448 = vmax.f32 %v762, %v1436
  %v1449 = vmax.f32 %v763, %v1437
  %v1450 = vmax.f32 %v764, %v1438
  %v1451 = vmax.f32 %v765, %v1439
  %v1452 = vmax.f32 %v766, %v1440
  %v1453 = vmax.f32 %v767, %v1441
  %1454 = vst [vmem:[%s4] sm:$0xff] %v1442
  %1455 = vst [vmem:[%s4 + $0x8] sm:$0xff] %v1443
  %1456 = vst [vmem:[%s4 + $0x10] sm:$0xff] %v1444
  %1457 = vst [vmem:[%s4 + $0x18] sm:$0xff] %v1445
  %1458 = vst [vmem:[%s4 + $0x20] sm:$0xff] %v1446
  %1459 = vst [vmem:[%s4 + $0x28] sm:$0xff] %v1447
  %1460 = vst [vmem:[%s4 + $0x30] sm:$0xff] %v1448
  %1461 = vst [vmem:[%s4 + $0x38] sm:$0xff] %v1449
  %1462 = vst [vmem:[%s4 + $0x40] sm:$0xff] %v1450
  %1463 = vst [vmem:[%s4 + $0x48] sm:$0xff] %v1451
  %1464 = vst [vmem:[%s4 + $0x50] sm:$0xff] %v1452
  %1465 = vst [vmem:[%s4 + $0x58] sm:$0xff] %v1453
  // Predicated region
  $region18: #{net_forward.5} parent=0 // pred_check
    _
  $region19: #{net_forward.5} parent=0 // pred_check_branch
    %1467 = sbr.rel (0) target = $region21
  $region20: #{net_forward.5} parent=0 // pred_region
    _
  $region21: #{net_forward.5} parent=0 // pred_fallthru
    _
  // Predicated region
  $region22: #{net_forward.5} parent=0 // pred_check
    _
  $region23: #{net_forward.5} parent=0 // pred_check_branch
    %1469 = sbr.rel (0) target = $region25
  $region24: #{net_forward.5} parent=0 // pred_region
    _
  $region25: #{net_forward.5} parent=0 // pred_fallthru
    _

// kernel: net_forward.7
$region0: #{net_forward.7}
  #allocation0 [shape = 'u32[]', space=smem, size = 0x4, offset = 0x4, fixed_abs, tag = 'smem constant byte address 0x4 - core index']
  #allocation1 [shape = 'u32[72,128]{1,0:T(1,128)}', space=vmem, size = 0x9000, scoped, tag = 'internal scratch']
  %s0 = inlined_call_operand.vmem [shape: f32[2,576], index: 0, kind: input, shape index: {}]
  %s1 = inlined_call_operand.vmem [shape: f32[576,32], index: 1, kind: input, shape index: {}]
  %s2 = inlined_call_operand.vmem [shape: f32[1,32], index: 2, kind: input, shape index: {}]
  %s3 = inlined_call_operand.vmem [shape: f32[2,2], index: 3, kind: input, shape index: {}]
  %s4 = inlined_call_operand.vmem [shape: f32[2,4], index: 4, kind: input, shape index: {}]
  %s5 = inlined_call_operand.vmem [shape: f32[1,4], index: 5, kind: input, shape index: {}]
  %s6 = inlined_call_operand.vmem [shape: f32[32,2], index: 6, kind: input, shape index: {}]
  %s7 = inlined_call_operand.vmem [shape: f32[4,2], index: 7, kind: input, shape index: {}]
  %s8 = inlined_call_operand.vmem [shape: f32[1,2], index: 8, kind: input, shape index: {}]
  %s9 = inlined_call_operand.hbm [shape: f32[2,2], index: 9, kind: output, shape index: {}]
  %s10 = sld [smem:[#allocation0]]
  $region46: #{net_forward.7} parent=0
    _
  %s12 = ssub.s32 1, %s10
  %s13 = scalar_select 0, %s12, %s10
  $region1: #{net_forward.7} parent=0
    #allocation2 [shape = 'u8[1024]{0}', space=vmem, size = 0x400, scoped, tag = 'output window, operand 0, single buffered']
    #allocation3 [shape = 's32[1]{0}', space=sflag, size = 0x4, scoped, tag = 'scoped memory for net_forward.7']
    %14 = vsyncpa [#allocation3], 0
    // Predicated region
    $region2: #{net_forward.7} parent=1 // pred_check
      _
    $region3: #{net_forward.7} parent=1 // pred_check_branch
      %16 = sbr.rel (0) target = $region5
    $region4: #{net_forward.7} parent=1 // pred_region
      _
    $region5: #{net_forward.7} parent=1 // pred_fallthru
      _
    // Predicated region
    $region6: #{net_forward.7} parent=1 // pred_check
      _
    $region7: #{net_forward.7} parent=1 // pred_check_branch
      %18 = sbr.rel (0) target = $region9
    $region8: #{net_forward.7} parent=1 // pred_region
      _
    $region9: #{net_forward.7} parent=1 // pred_fallthru
      _
    // Predicated region
    $region10: #{net_forward.7} parent=1 // pred_check
      _
    $region11: #{net_forward.7} parent=1 // pred_check_branch
      %20 = sbr.rel (0) target = $region13
    $region12: #{net_forward.7} parent=1 // pred_region
      _
    $region13: #{net_forward.7} parent=1 // pred_fallthru
      _
    // Predicated region
    $region14: #{net_forward.7} parent=1 // pred_check
      _
    $region15: #{net_forward.7} parent=1 // pred_check_branch
      %22 = sbr.rel (0) target = $region17
    $region16: #{net_forward.7} parent=1 // pred_region
      _
    $region17: #{net_forward.7} parent=1 // pred_fallthru
      _
    // Predicated region
    $region18: #{net_forward.7} parent=1 // pred_check
      _
    $region19: #{net_forward.7} parent=1 // pred_check_branch
      %24 = sbr.rel (0) target = $region21
    $region20: #{net_forward.7} parent=1 // pred_region
      _
    $region21: #{net_forward.7} parent=1 // pred_fallthru
      _
    // Predicated region
    $region22: #{net_forward.7} parent=1 // pred_check
      _
    $region23: #{net_forward.7} parent=1 // pred_check_branch
      %26 = sbr.rel (0) target = $region25
    $region24: #{net_forward.7} parent=1 // pred_region
      _
    $region25: #{net_forward.7} parent=1 // pred_fallthru
      _
    // Predicated region
    $region26: #{net_forward.7} parent=1 // pred_check
      _
    $region27: #{net_forward.7} parent=1 // pred_check_branch
      %28 = sbr.rel (0) target = $region29
    $region28: #{net_forward.7} parent=1 // pred_region
      _
    $region29: #{net_forward.7} parent=1 // pred_fallthru
      _
    // Predicated region
    $region30: #{net_forward.7} parent=1 // pred_check
      _
    $region31: #{net_forward.7} parent=1 // pred_check_branch
      %30 = sbr.rel (0) target = $region33
    $region32: #{net_forward.7} parent=1 // pred_region
      _
    $region33: #{net_forward.7} parent=1 // pred_fallthru
      _
    // Predicated region
    $region34: #{net_forward.7} parent=1 // pred_check
      _
    $region35: #{net_forward.7} parent=1 // pred_check_branch
      %32 = sbr.rel (0) target = $region37
    $region36: #{net_forward.7} parent=1 // pred_region
      _
    $region37: #{net_forward.7} parent=1 // pred_fallthru
      _
    %v33 = vld [vmem:[%s0] sm:$0xff]
    %v34 = vld [vmem:[%s0 + $0x8] sm:$0x3]
    %v35 = vld [vmem:[%s1] sm:$0xff]
    %v36 = vld [vmem:[%s1 + $0x8] sm:$0xff]
    %v37 = vld [vmem:[%s1 + $0x10] sm:$0xff]
    %v38 = vld [vmem:[%s1 + $0x18] sm:$0xff]
    %v39 = vld [vmem:[%s1 + $0x20] sm:$0xff]
    %v40 = vld [vmem:[%s1 + $0x28] sm:$0xff]
    %v41 = vld [vmem:[%s1 + $0x30] sm:$0xff]
    %v42 = vld [vmem:[%s1 + $0x38] sm:$0xff]
    %v43 = vld [vmem:[%s1 + $0x40] sm:$0xff]
    %v44 = vld [vmem:[%s1 + $0x48] sm:$0xff]
    %v45 = vld [vmem:[%s1 + $0x50] sm:$0xff]
    %v46 = vld [vmem:[%s1 + $0x58] sm:$0xff]
    %v47 = vld [vmem:[%s1 + $0x60] sm:$0xff]
    %v48 = vld [vmem:[%s1 + $0x68] sm:$0xff]
    %v49 = vld [vmem:[%s1 + $0x70] sm:$0xff]
    %v50 = vld [vmem:[%s1 + $0x78] sm:$0xff]
    %v51 = vld [vmem:[%s1 + $0x80] sm:$0xff]
    %v52 = vld [vmem:[%s1 + $0x88] sm:$0xff]
    %v53 = vld [vmem:[%s1 + $0x90] sm:$0xff]
    %v54 = vld [vmem:[%s1 + $0x98] sm:$0xff]
    %v55 = vld [vmem:[%s1 + $0xa0] sm:$0xff]
    %v56 = vld [vmem:[%s1 + $0xa8] sm:$0xff]
    %v57 = vld [vmem:[%s1 + $0xb0] sm:$0xff]
    %v58 = vld [vmem:[%s1 + $0xb8] sm:$0xff]
    %v59 = vld [vmem:[%s1 + $0xc0] sm:$0xff]
    %v60 = vld [vmem:[%s1 + $0xc8] sm:$0xff]
    %v61 = vld [vmem:[%s1 + $0xd0] sm:$0xff]
    %v62 = vld [vmem:[%s1 + $0xd8] sm:$0xff]
    %v63 = vld [vmem:[%s1 + $0xe0] sm:$0xff]
    %v64 = vld [vmem:[%s1 + $0xe8] sm:$0xff]
    %v65 = vld [vmem:[%s1 + $0xf0] sm:$0xff]
    %v66 = vld [vmem:[%s1 + $0xf8] sm:$0xff]
    %v67 = vld [vmem:[%s1 + $0x100] sm:$0xff]
    %v68 = vld [vmem:[%s1 + $0x108] sm:$0xff]
    %v69 = vld [vmem:[%s1 + $0x110] sm:$0xff]
    %v70 = vld [vmem:[%s1 + $0x118] sm:$0xff]
    %v71 = vld [vmem:[%s1 + $0x120] sm:$0xff]
    %v72 = vld [vmem:[%s1 + $0x128] sm:$0xff]
    %v73 = vld [vmem:[%s1 + $0x130] sm:$0xff]
    %v74 = vld [vmem:[%s1 + $0x138] sm:$0xff]
    %v75 = vld [vmem:[%s1 + $0x140] sm:$0xff]
    %v76 = vld [vmem:[%s1 + $0x148] sm:$0xff]
    %v77 = vld [vmem:[%s1 + $0x150] sm:$0xff]
    %v78 = vld [vmem:[%s1 + $0x158] sm:$0xff]
    %v79 = vld [vmem:[%s1 + $0x160] sm:$0xff]
    %v80 = vld [vmem:[%s1 + $0x168] sm:$0xff]
    %v81 = vld [vmem:[%s1 + $0x170] sm:$0xff]
    %v82 = vld [vmem:[%s1 + $0x178] sm:$0xff]
    %v83 = vld [vmem:[%s1 + $0x180] sm:$0xff]
    %v84 = vld [vmem:[%s1 + $0x188] sm:$0xff]
    %v85 = vld [vmem:[%s1 + $0x190] sm:$0xff]
    %v86 = vld [vmem:[%s1 + $0x198] sm:$0xff]
    %v87 = vld [vmem:[%s1 + $0x1a0] sm:$0xff]
    %v88 = vld [vmem:[%s1 + $0x1a8] sm:$0xff]
    %v89 = vld [vmem:[%s1 + $0x1b0] sm:$0xff]
    %v90 = vld [vmem:[%s1 + $0x1b8] sm:$0xff]
    %v91 = vld [vmem:[%s1 + $0x1c0] sm:$0xff]
    %v92 = vld [vmem:[%s1 + $0x1c8] sm:$0xff]
    %v93 = vld [vmem:[%s1 + $0x1d0] sm:$0xff]
    %v94 = vld [vmem:[%s1 + $0x1d8] sm:$0xff]
    %v95 = vld [vmem:[%s1 + $0x1e0] sm:$0xff]
    %v96 = vld [vmem:[%s1 + $0x1e8] sm:$0xff]
    %v97 = vld [vmem:[%s1 + $0x1f0] sm:$0xff]
    %v98 = vld [vmem:[%s1 + $0x1f8] sm:$0xff]
    %v99 = vld [vmem:[%s1 + $0x200] sm:$0xff]
    %v100 = vld [vmem:[%s1 + $0x208] sm:$0xff]
    %v101 = vld [vmem:[%s1 + $0x210] sm:$0xff]
    %v102 = vld [vmem:[%s1 + $0x218] sm:$0xff]
    %v103 = vld [vmem:[%s1 + $0x220] sm:$0xff]
    %v104 = vld [vmem:[%s1 + $0x228] sm:$0xff]
    %v105 = vld [vmem:[%s1 + $0x230] sm:$0xff]
    %v106 = vld [vmem:[%s1 + $0x238] sm:$0xff]
    %v107 = vld [vmem:[%s2] sm:$0x1]
    %v109 = vperm.slane %v107, 0
    %113 = vst [vmem:[#allocation1] ss:$4 sm:$0xff] %v33
    %s114 = scalar_lea.vmem [#allocation1], 32
    %115 = vst [vmem:[%s114] ss:$4 sm:$0xff] %v34
    %v116 = vld.sshfl [vmem:[#allocation1] sm:$0xff pattern:$0x73625140]
    %v117 = vld.sshfl [vmem:[#allocation1 + $0x8] sm:$0xff pattern:$0x73625140]
    %v118 = vld.sshfl [vmem:[#allocation1 + $0x10] sm:$0xff pattern:$0x73625140]
    %v119 = vld.sshfl [vmem:[#allocation1 + $0x18] sm:$0xff pattern:$0x73625140]
    %v120 = vld.sshfl [vmem:[#allocation1 + $0x20] sm:$0xff pattern:$0x73625140]
    %vm125 = vcmask 523264
    %v126 = vsel %vm125, %v120, 0
    %128 = vmatpush.msra.mxu0 %v50
    %129 = vmatpush.msra.mxu0 %v49
    %130 = vmatpush.msra.mxu0 %v48
    %131 = vmatpush.msra.mxu0 %v47
    %132 = vmatpush.msra.mxu0 %v46
    %133 = vmatpush.msra.mxu0 %v45
    %134 = vmatpush.msra.mxu0 %v44
    %135 = vmatpush.msra.mxu0 %v43
    %136 = vmatpush.msra.mxu0 %v42
    %137 = vmatpush.msra.mxu0 %v41
    %138 = vmatpush.msra.mxu0 %v40
    %139 = vmatpush.msra.mxu0 %v39
    %140 = vmatpush.msra.mxu0 %v38
    %141 = vmatpush.msra.mxu0 %v37
    %142 = vmatpush.msra.mxu0 %v36
    %143 = vmatpush.msra.mxu0 %v35
    %144 = vmatmul.f32.gmra.mxu0 %v116
    %v145 = vpop.f32.mrf.mxu0
    %v146 = vadd.f32 %v109, %v145
    %147 = vdwg.mxu0
    %148 = vmatpush.msra.mxu0 %v66
    %149 = vmatpush.msra.mxu0 %v65
    %150 = vmatpush.msra.mxu0 %v64
    %151 = vmatpush.msra.mxu0 %v63
    %152 = vmatpush.msra.mxu0 %v62
    %153 = vmatpush.msra.mxu0 %v61
    %154 = vmatpush.msra.mxu0 %v60
    %155 = vmatpush.msra.mxu0 %v59
    %156 = vmatpush.msra.mxu0 %v58
    %157 = vmatpush.msra.mxu0 %v57
    %158 = vmatpush.msra.mxu0 %v56
    %159 = vmatpush.msra.mxu0 %v55
    %160 = vmatpush.msra.mxu0 %v54
    %161 = vmatpush.msra.mxu0 %v53
    %162 = vmatpush.msra.mxu0 %v52
    %163 = vmatpush.msra.mxu0 %v51
    %164 = vmatmul.f32.gmra.mxu0 %v117
    %v165 = vpop.f32.mrf.mxu0
    %v166 = vadd.f32 %v146, %v165
    %167 = vdwg.mxu0
    %168 = vmatpush.msra.mxu0 %v82
    %169 = vmatpush.msra.mxu0 %v81
    %170 = vmatpush.msra.mxu0 %v80
    %171 = vmatpush.msra.mxu0 %v79
    %172 = vmatpush.msra.mxu0 %v78
    %173 = vmatpush.msra.mxu0 %v77
    %174 = vmatpush.msra.mxu0 %v76
    %175 = vmatpush.msra.mxu0 %v75
    %176 = vmatpush.msra.mxu0 %v74
    %177 = vmatpush.msra.mxu0 %v73
    %178 = vmatpush.msra.mxu0 %v72
    %179 = vmatpush.msra.mxu0 %v71
    %180 = vmatpush.msra.mxu0 %v70
    %181 = vmatpush.msra.mxu0 %v69
    %182 = vmatpush.msra.mxu0 %v68
    %183 = vmatpush.msra.mxu0 %v67
    %184 = vmatmul.f32.gmra.mxu0 %v118
    %v185 = vpop.f32.mrf.mxu0
    %v186 = vadd.f32 %v166, %v185
    %187 = vdwg.mxu0
    %188 = vmatpush.msra.mxu0 %v98
    %189 = vmatpush.msra.mxu0 %v97
    %190 = vmatpush.msra.mxu0 %v96
    %191 = vmatpush.msra.mxu0 %v95
    %192 = vmatpush.msra.mxu0 %v94
    %193 = vmatpush.msra.mxu0 %v93
    %194 = vmatpush.msra.mxu0 %v92
    %195 = vmatpush.msra.mxu0 %v91
    %196 = vmatpush.msra.mxu0 %v90
    %197 = vmatpush.msra.mxu0 %v89
    %198 = vmatpush.msra.mxu0 %v88
    %199 = vmatpush.msra.mxu0 %v87
    %200 = vmatpush.msra.mxu0 %v86
    %201 = vmatpush.msra.mxu0 %v85
    %202 = vmatpush.msra.mxu0 %v84
    %203 = vmatpush.msra.mxu0 %v83
    %204 = vmatmul.f32.gmra.mxu0 %v119
    %v205 = vpop.f32.mrf.mxu0
    %v206 = vadd.f32 %v186, %v205
    %207 = vdwg.mxu0
    %208 = vmatpush.msra.mxu0 0.0
    %209 = vmatpush.msra.mxu0 0.0
    %210 = vmatpush.msra.mxu0 0.0
    %211 = vmatpush.msra.mxu0 0.0
    %212 = vmatpush.msra.mxu0 0.0
    %213 = vmatpush.msra.mxu0 0.0
    %214 = vmatpush.msra.mxu0 0.0
    %215 = vmatpush.msra.mxu0 0.0
    %216 = vmatpush.msra.mxu0 %v106
    %217 = vmatpush.msra.mxu0 %v105
    %218 = vmatpush.msra.mxu0 %v104
    %219 = vmatpush.msra.mxu0 %v103
    %220 = vmatpush.msra.mxu0 %v102
    %221 = vmatpush.msra.mxu0 %v101
    %222 = vmatpush.msra.mxu0 %v100
    %223 = vmatpush.msra.mxu0 %v99
    %224 = vmatmul.f32.gmra.mxu0 %v126
    %v225 = vpop.f32.mrf.mxu0
    %v226 = vadd.f32 %v206, %v225
    %227 = vdwg.mxu0
    %v228 = vmax.f32 %v226, 0.0
    %v229 = vld [vmem:[%s3] sm:$0x3]
    %v230 = vld [vmem:[%s4] sm:$0x3]
    %v231 = vld [vmem:[%s5] sm:$0x1]
    %v233 = vperm.slane %v231, 0
    %vm235 = vcmask 15360
    %v237 = vsel %vm235, %v229, 0
    %vm239 = vcmask 1041408
    %v241 = vsel %vm239, %v230, 0
    %243 = vmatpush.msra.mxu0 0.0
    %244 = vmatpush.msra.mxu0 0.0
    %245 = vmatpush.msra.mxu0 0.0
    %246 = vmatpush.msra.mxu0 0.0
    %247 = vmatpush.msra.mxu0 0.0
    %248 = vmatpush.msra.mxu0 0.0
    %249 = vmatpush.msra.mxu0 0.0
    %250 = vmatpush.msra.mxu0 0.0
    %251 = vmatpush.msra.mxu0 0.0
    %252 = vmatpush.msra.mxu0 0.0
    %253 = vmatpush.msra.mxu0 0.0
    %254 = vmatpush.msra.mxu0 0.0
    %255 = vmatpush.msra.mxu0 0.0
    %256 = vmatpush.msra.mxu0 0.0
    %257 = vmatpush.msra.mxu0 0.0
    %258 = vmatpush.msra.mxu0 %v241
    %259 = vmatmul.f32.gmra.mxu0 %v237
    %v260 = vpop.f32.mrf.mxu0
    %v261 = vadd.f32 %v233, %v260
    %262 = vdwg.mxu0
    %v263 = vmax.f32 %v261, 0.0
    %v264 = vld [vmem:[%s6] sm:$0xff]
    %v265 = vld [vmem:[%s6 + $0x8] sm:$0xff]
    %v266 = vld [vmem:[%s6 + $0x10] sm:$0xff]
    %v267 = vld [vmem:[%s6 + $0x18] sm:$0xff]
    %v268 = vld [vmem:[%s7] sm:$0xf]
    %vm269 = vcmask 31744
    %v271 = vsel %vm269, %v263, 0
    %vm273 = vcmask 1043456
    %v275 = vsel %vm273, %v268, 0
    %277 = vmatpush.msra.mxu0 0.0
    %278 = vmatpush.msra.mxu0 0.0
    %279 = vmatpush.msra.mxu0 0.0
    %280 = vmatpush.msra.mxu0 0.0
    %281 = vmatpush.msra.mxu0 0.0
    %282 = vmatpush.msra.mxu0 0.0
    %283 = vmatpush.msra.mxu0 0.0
    %284 = vmatpush.msra.mxu0 0.0
    %285 = vmatpush.msra.mxu0 0.0
    %286 = vmatpush.msra.mxu0 0.0
    %287 = vmatpush.msra.mxu0 0.0
    %288 = vmatpush.msra.mxu0 0.0
    %289 = vmatpush.msra.mxu0 0.0
    %290 = vmatpush.msra.mxu0 0.0
    %291 = vmatpush.msra.mxu0 0.0
    %292 = vmatpush.msra.mxu0 %v275
    %293 = vmatmul.f32.gmra.mxu0 %v271
    %v294 = vpop.f32.mrf.mxu0
    %v295 = vadd.f32 0.0, %v294
    %296 = vdwg.mxu0
    %vm297 = vcmask 261120
    %v299 = vsel %vm297, %v228, 0
    %301 = vmatpush.msra.mxu0 0.0
    %302 = vmatpush.msra.mxu0 0.0
    %303 = vmatpush.msra.mxu0 0.0
    %304 = vmatpush.msra.mxu0 0.0
    %305 = vmatpush.msra.mxu0 0.0
    %306 = vmatpush.msra.mxu0 0.0
    %307 = vmatpush.msra.mxu0 0.0
    %308 = vmatpush.msra.mxu0 0.0
    %309 = vmatpush.msra.mxu0 0.0
    %310 = vmatpush.msra.mxu0 0.0
    %311 = vmatpush.msra.mxu0 0.0
    %312 = vmatpush.msra.mxu0 0.0
    %313 = vmatpush.msra.mxu0 %v267
    %314 = vmatpush.msra.mxu0 %v266
    %315 = vmatpush.msra.mxu0 %v265
    %316 = vmatpush.msra.mxu0 %v264
    %317 = vmatmul.f32.gmra.mxu0 %v299
    %v318 = vpop.f32.mrf.mxu0
    %v319 = vadd.f32 %v295, %v318
    %320 = vdwg.mxu0
    %v321 = vld [vmem:[%s8] sm:$0x1]
    %v323 = vperm.slane %v321, 0
    %v325 = vadd.f32 %v319, %v323
    %vm326 = vcmask 9216
    %327 = vst.msk [vmem:[#allocation2] sm:$0x3] %vm326, %v325
    // Predicated region
    $region38: #{net_forward.7} parent=1 // pred_check
      _
    $region39: #{net_forward.7} parent=1 // pred_check_branch
      %329 = sbr.rel (0) target = $region41
    $region40: #{net_forward.7} parent=1 // pred_region
      %331 = vsyncadd [#allocation3], 0
      %s333 = sshll.u32 [#allocation2], 4
      %s334 = int_to_ptr.vmem [resolvable:$true] %s333
      %s335 = sshll.u32 %s9, 4
      %s336 = int_to_ptr.hbm [resolvable:$true] %s335
      %338 = dma.vmem_to_hbm [thread:$0]  %s334, 32, %s336, [#allocation3]
    $region41: #{net_forward.7} parent=1 // pred_fallthru
      _
    // Predicated region
    $region42: #{net_forward.7} parent=1 // pred_check
      _
    $region43: #{net_forward.7} parent=1 // pred_check_branch
      %340 = sbr.rel (0) target = $region45
    $region44: #{net_forward.7} parent=1 // pred_region
      %342 = dma.done [#allocation3], 32
    $region45: #{net_forward.7} parent=1 // pred_fallthru
      _
    %343 = vsyncpa [#allocation3], 1

// kernel: net_forward.6
$region0: #{net_forward.6}
  #allocation0 [shape = 'u32[]', space=smem, size = 0x4, offset = 0x4, fixed_abs, tag = 'smem constant byte address 0x4 - core index']
  #allocation1 [shape = 'u32[72,128]{1,0:T(1,128)}', space=vmem, size = 0x9000, scoped, tag = 'internal scratch']
  %s0 = inlined_call_operand.vmem [shape: bf16[4,288,18], index: 0, kind: input, shape index: {}]
  %s1 = inlined_call_operand.vmem [shape: bf16[64,288], index: 1, kind: input, shape index: {}]
  %s2 = inlined_call_operand.vmem [shape: f32[64,1], index: 2, kind: input, shape index: {}]
  %s3 = inlined_call_operand.vmem [shape: f32[64,1], index: 3, kind: input, shape index: {}]
  %s4 = inlined_call_operand.vmem [shape: f32[64,18], index: 4, kind: output, shape index: {}]
  %s5 = sld [smem:[#allocation0]]
  $region26: #{net_forward.6} parent=0
    _
  %s7 = ssub.s32 1, %s5
  %s8 = scalar_select 0, %s7, %s5
  // Predicated region
  $region2: #{net_forward.6} parent=0 // pred_check
    _
  $region3: #{net_forward.6} parent=0 // pred_check_branch
    %10 = sbr.rel (0) target = $region5
  $region4: #{net_forward.6} parent=0 // pred_region
    _
  $region5: #{net_forward.6} parent=0 // pred_fallthru
    _
  // Predicated region
  $region6: #{net_forward.6} parent=0 // pred_check
    _
  $region7: #{net_forward.6} parent=0 // pred_check_branch
    %12 = sbr.rel (0) target = $region9
  $region8: #{net_forward.6} parent=0 // pred_region
    _
  $region9: #{net_forward.6} parent=0 // pred_fallthru
    _
  // Predicated region
  $region10: #{net_forward.6} parent=0 // pred_check
    _
  $region11: #{net_forward.6} parent=0 // pred_check_branch
    %14 = sbr.rel (0) target = $region13
  $region12: #{net_forward.6} parent=0 // pred_region
    _
  $region13: #{net_forward.6} parent=0 // pred_fallthru
    _
  // Predicated region
  $region14: #{net_forward.6} parent=0 // pred_check
    _
  $region15: #{net_forward.6} parent=0 // pred_check_branch
    %16 = sbr.rel (0) target = $region17
  $region16: #{net_forward.6} parent=0 // pred_region
    _
  $region17: #{net_forward.6} parent=0 // pred_fallthru
    _
  %v18 = vld [vmem:[%s1] sm:$0xff]
  %v19 = vld [vmem:[%s1 + $0x8] sm:$0xf]
  %v20 = vld [vmem:[%s1 + $0xc] sm:$0xff]
  %v21 = vld [vmem:[%s1 + $0x14] sm:$0xf]
  %v22 = vld [vmem:[%s1 + $0x18] sm:$0xff]
  %v23 = vld [vmem:[%s1 + $0x20] sm:$0xf]
  %v24 = vld [vmem:[%s1 + $0x24] sm:$0xff]
  %v25 = vld [vmem:[%s1 + $0x2c] sm:$0xf]
  %v26 = vld [vmem:[%s1 + $0x30] sm:$0xff]
  %v27 = vld [vmem:[%s1 + $0x38] sm:$0xf]
  %v28 = vld [vmem:[%s1 + $0x3c] sm:$0xff]
  %v29 = vld [vmem:[%s1 + $0x44] sm:$0xf]
  %v30 = vld [vmem:[%s1 + $0x48] sm:$0xff]
  %v31 = vld [vmem:[%s1 + $0x50] sm:$0xf]
  %v32 = vld [vmem:[%s1 + $0x54] sm:$0xff]
  %v33 = vld [vmem:[%s1 + $0x5c] sm:$0xf]
  %v34 = vld [vmem:[%s2] sm:$0xff]
  %v35 = vld [vmem:[%s2 + $0x8] sm:$0xff]
  %v36 = vld [vmem:[%s2 + $0x10] sm:$0xff]
  %v37 = vld [vmem:[%s2 + $0x18] sm:$0xff]
  %v38 = vld [vmem:[%s2 + $0x20] sm:$0xff]
  %v39 = vld [vmem:[%s2 + $0x28] sm:$0xff]
  %v40 = vld [vmem:[%s2 + $0x30] sm:$0xff]
  %v41 = vld [vmem:[%s2 + $0x38] sm:$0xff]
  %v42 = vld [vmem:[%s3] sm:$0xff]
  %v43 = vld [vmem:[%s3 + $0x8] sm:$0xff]
  %v44 = vld [vmem:[%s3 + $0x10] sm:$0xff]
  %v45 = vld [vmem:[%s3 + $0x18] sm:$0xff]
  %v46 = vld [vmem:[%s3 + $0x20] sm:$0xff]
  %v47 = vld [vmem:[%s3 + $0x28] sm:$0xff]
  %v48 = vld [vmem:[%s3 + $0x30] sm:$0xff]
  %v49 = vld [vmem:[%s3 + $0x38] sm:$0xff]
  %v50 = vld [vmem:[%s0] sm:$0xf]
  %v51 = vld [vmem:[%s0 + $0x4] sm:$0xf]
  %v52 = vld [vmem:[%s0 + $0x8] sm:$0xf]
  %v53 = vld [vmem:[%s0 + $0xc] sm:$0xf]
  %v54 = vld [vmem:[%s0 + $0x10] sm:$0xf]
  %v55 = vld [vmem:[%s0 + $0x14] sm:$0xf]
  %v56 = vld [vmem:[%s0 + $0x18] sm:$0xf]
  %v57 = vld [vmem:[%s0 + $0x1c] sm:$0xf]
  %v58 = vld [vmem:[%s0 + $0x20] sm:$0xf]
  %v59 = vld [vmem:[%s0 + $0x24] sm:$0xf]
  %v60 = vld [vmem:[%s0 + $0x28] sm:$0xf]
  %v61 = vld [vmem:[%s0 + $0x2c] sm:$0xf]
  %v62 = vld [vmem:[%s0 + $0x30] sm:$0xf]
  %v63 = vld [vmem:[%s0 + $0x34] sm:$0xf]
  %v64 = vld [vmem:[%s0 + $0x38] sm:$0xf]
  %v65 = vld [vmem:[%s0 + $0x3c] sm:$0xf]
  %v66 = vld [vmem:[%s0 + $0x40] sm:$0xf]
  %v67 = vld [vmem:[%s0 + $0x44] sm:$0xf]
  %v68 = vld [vmem:[%s0 + $0x48] sm:$0xf]
  %v69 = vld [vmem:[%s0 + $0x4c] sm:$0xf]
  %v70 = vld [vmem:[%s0 + $0x50] sm:$0xf]
  %v71 = vld [vmem:[%s0 + $0x54] sm:$0xf]
  %v72 = vld [vmem:[%s0 + $0x58] sm:$0xf]
  %v73 = vld [vmem:[%s0 + $0x5c] sm:$0xf]
  %v74 = vld [vmem:[%s0 + $0x60] sm:$0xf]
  %v75 = vld [vmem:[%s0 + $0x64] sm:$0xf]
  %v76 = vld [vmem:[%s0 + $0x68] sm:$0xf]
  %v77 = vld [vmem:[%s0 + $0x6c] sm:$0xf]
  %v78 = vld [vmem:[%s0 + $0x70] sm:$0xf]
  %v79 = vld [vmem:[%s0 + $0x74] sm:$0xf]
  %v80 = vld [vmem:[%s0 + $0x78] sm:$0xf]
  %v81 = vld [vmem:[%s0 + $0x7c] sm:$0xf]
  %v82 = vld [vmem:[%s0 + $0x80] sm:$0xf]
  %v83 = vld [vmem:[%s0 + $0x84] sm:$0xf]
  %v84 = vld [vmem:[%s0 + $0x88] sm:$0xf]
  %v85 = vld [vmem:[%s0 + $0x8c] sm:$0xf]
  %v102 = vunpack.c.l.b16 %v18
  %v103 = vunpack.c.h.b16 %v18
  %v104 = vunpack.c.l.b16 %v19
  %v105 = vunpack.c.l.b16 %v20
  %v106 = vunpack.c.h.b16 %v20
  %v107 = vunpack.c.l.b16 %v21
  %v108 = vunpack.c.l.b16 %v22
  %v109 = vunpack.c.h.b16 %v22
  %v110 = vunpack.c.l.b16 %v23
  %v111 = vunpack.c.l.b16 %v24
  %v112 = vunpack.c.h.b16 %v24
  %v113 = vunpack.c.l.b16 %v25
  %v114 = vunpack.c.l.b16 %v26
  %v115 = vunpack.c.h.b16 %v26
  %v116 = vunpack.c.l.b16 %v27
  %v117 = vunpack.c.l.b16 %v28
  %v118 = vunpack.c.h.b16 %v28
  %v119 = vunpack.c.l.b16 %v29
  %v120 = vunpack.c.l.b16 %v30
  %v121 = vunpack.c.h.b16 %v30
  %v122 = vunpack.c.l.b16 %v31
  %v123 = vunpack.c.l.b16 %v32
  %v124 = vunpack.c.h.b16 %v32
  %v125 = vunpack.c.l.b16 %v33
  %v126 = vpack.c.b16 %v105, %v102
  %v127 = vpack.c.b16 %v106, %v103
  %v128 = vpack.c.b16 %v107, %v104
  %v129 = vpack.c.b16 %v111, %v108
  %v130 = vpack.c.b16 %v112, %v109
  %v131 = vpack.c.b16 %v113, %v110
  %v132 = vpack.c.b16 %v117, %v114
  %v133 = vpack.c.b16 %v118, %v115
  %v134 = vpack.c.b16 %v119, %v116
  %v135 = vpack.c.b16 %v123, %v120
  %v136 = vpack.c.b16 %v124, %v121
  %v137 = vpack.c.b16 %v125, %v122
  %v182 = vunpack.c.l.b16 %v50
  %v183 = vunpack.c.l.b16 %v51
  %v184 = vunpack.c.l.b16 %v52
  %v185 = vunpack.c.l.b16 %v53
  %v186 = vunpack.c.l.b16 %v54
  %v187 = vunpack.c.l.b16 %v55
  %v188 = vunpack.c.l.b16 %v56
  %v189 = vunpack.c.l.b16 %v57
  %v190 = vunpack.c.l.b16 %v58
  %v191 = vunpack.c.l.b16 %v59
  %v192 = vunpack.c.l.b16 %v60
  %v193 = vunpack.c.l.b16 %v61
  %v194 = vunpack.c.l.b16 %v62
  %v195 = vunpack.c.l.b16 %v63
  %v196 = vunpack.c.l.b16 %v64
  %v197 = vunpack.c.l.b16 %v65
  %v198 = vunpack.c.l.b16 %v66
  %v199 = vunpack.c.l.b16 %v67
  %v200 = vunpack.c.l.b16 %v68
  %v201 = vunpack.c.l.b16 %v69
  %v202 = vunpack.c.l.b16 %v70
  %v203 = vunpack.c.l.b16 %v71
  %v204 = vunpack.c.l.b16 %v72
  %v205 = vunpack.c.l.b16 %v73
  %v206 = vunpack.c.l.b16 %v74
  %v207 = vunpack.c.l.b16 %v75
  %v208 = vunpack.c.l.b16 %v76
  %v209 = vunpack.c.l.b16 %v77
  %v210 = vunpack.c.l.b16 %v78
  %v211 = vunpack.c.l.b16 %v79
  %v212 = vunpack.c.l.b16 %v80
  %v213 = vunpack.c.l.b16 %v81
  %v214 = vunpack.c.l.b16 %v82
  %v215 = vunpack.c.l.b16 %v83
  %v216 = vunpack.c.l.b16 %v84
  %v217 = vunpack.c.l.b16 %v85
  %v218 = vpack.c.b16 %v183, %v182
  %v219 = vpack.c.b16 %v185, %v184
  %v220 = vpack.c.b16 %v187, %v186
  %v221 = vpack.c.b16 %v189, %v188
  %v222 = vpack.c.b16 %v191, %v190
  %v223 = vpack.c.b16 %v193, %v192
  %v224 = vpack.c.b16 %v195, %v194
  %v225 = vpack.c.b16 %v197, %v196
  %v226 = vpack.c.b16 %v199, %v198
  %v227 = vpack.c.b16 %v201, %v200
  %v228 = vpack.c.b16 %v203, %v202
  %v229 = vpack.c.b16 %v205, %v204
  %v230 = vpack.c.b16 %v207, %v206
  %v231 = vpack.c.b16 %v209, %v208
  %v232 = vpack.c.b16 %v211, %v210
  %v233 = vpack.c.b16 %v213, %v212
  %v234 = vpack.c.b16 %v215, %v214
  %v235 = vpack.c.b16 %v217, %v216
  %vm254 = vcmask 261120
  %v256 = vsel %vm254, %v128, 0
  %v259 = vsel %vm254, %v131, 0
  %v262 = vsel %vm254, %v134, 0
  %v265 = vsel %vm254, %v137, 0
  %267 = vmatpush.bf16.msra.mxu0 %v225
  %268 = vmatpush.bf16.msra.mxu0 %v224
  %269 = vmatpush.bf16.msra.mxu0 %v223
  %270 = vmatpush.bf16.msra.mxu0 %v222
  %271 = vmatpush.bf16.msra.mxu0 %v221
  %272 = vmatpush.bf16.msra.mxu0 %v220
  %273 = vmatpush.bf16.msra.mxu0 %v219
  %274 = vmatpush.bf16.msra.mxu0 %v218
  %275 = vmatmul.bf16.gmra.mxu0 %v126
  %v276 = vpop.f32.mrf.mxu0
  %v277 = vadd.f32 0.0, %v276
  %v278 = vpop.f32.mrf.mxu0
  %v279 = vadd.f32 0.0, %v278
  %280 = vmatmul.bf16.gmra.mxu0 %v129
  %v281 = vpop.f32.mrf.mxu0
  %v282 = vadd.f32 0.0, %v281
  %v283 = vpop.f32.mrf.mxu0
  %v284 = vadd.f32 0.0, %v283
  %285 = vmatmul.bf16.gmra.mxu0 %v132
  %v286 = vpop.f32.mrf.mxu0
  %v287 = vadd.f32 0.0, %v286
  %v288 = vpop.f32.mrf.mxu0
  %v289 = vadd.f32 0.0, %v288
  %290 = vmatmul.bf16.gmra.mxu0 %v135
  %v291 = vpop.f32.mrf.mxu0
  %v292 = vadd.f32 0.0, %v291
  %v293 = vpop.f32.mrf.mxu0
  %v294 = vadd.f32 0.0, %v293
  %295 = vdwg.mxu0
  %296 = vmatpush.bf16.msra.mxu0 %v233
  %297 = vmatpush.bf16.msra.mxu0 %v232
  %298 = vmatpush.bf16.msra.mxu0 %v231
  %299 = vmatpush.bf16.msra.mxu0 %v230
  %300 = vmatpush.bf16.msra.mxu0 %v229
  %301 = vmatpush.bf16.msra.mxu0 %v228
  %302 = vmatpush.bf16.msra.mxu0 %v227
  %303 = vmatpush.bf16.msra.mxu0 %v226
  %304 = vmatmul.bf16.gmra.mxu0 %v127
  %v305 = vpop.f32.mrf.mxu0
  %v306 = vadd.f32 %v277, %v305
  %v307 = vpop.f32.mrf.mxu0
  %v308 = vadd.f32 %v279, %v307
  %309 = vmatmul.bf16.gmra.mxu0 %v130
  %v310 = vpop.f32.mrf.mxu0
  %v311 = vadd.f32 %v282, %v310
  %v312 = vpop.f32.mrf.mxu0
  %v313 = vadd.f32 %v284, %v312
  %314 = vmatmul.bf16.gmra.mxu0 %v133
  %v315 = vpop.f32.mrf.mxu0
  %v316 = vadd.f32 %v287, %v315
  %v317 = vpop.f32.mrf.mxu0
  %v318 = vadd.f32 %v289, %v317
  %319 = vmatmul.bf16.gmra.mxu0 %v136
  %v320 = vpop.f32.mrf.mxu0
  %v321 = vadd.f32 %v292, %v320
  %v322 = vpop.f32.mrf.mxu0
  %v323 = vadd.f32 %v294, %v322
  %324 = vdwg.mxu0
  %325 = vmatpush.bf16.msra.mxu0 0
  %326 = vmatpush.bf16.msra.mxu0 0
  %327 = vmatpush.bf16.msra.mxu0 0
  %328 = vmatpush.bf16.msra.mxu0 0
  %329 = vmatpush.bf16.msra.mxu0 0
  %330 = vmatpush.bf16.msra.mxu0 0
  %331 = vmatpush.bf16.msra.mxu0 %v235
  %332 = vmatpush.bf16.msra.mxu0 %v234
  %333 = vmatmul.bf16.gmra.mxu0 %v256
  %v334 = vpop.f32.mrf.mxu0
  %v335 = vadd.f32 %v306, %v334
  %v336 = vpop.f32.mrf.mxu0
  %v337 = vadd.f32 %v308, %v336
  %338 = vmatmul.bf16.gmra.mxu0 %v259
  %v339 = vpop.f32.mrf.mxu0
  %v340 = vadd.f32 %v311, %v339
  %v341 = vpop.f32.mrf.mxu0
  %v342 = vadd.f32 %v313, %v341
  %343 = vmatmul.bf16.gmra.mxu0 %v262
  %v344 = vpop.f32.mrf.mxu0
  %v345 = vadd.f32 %v316, %v344
  %v346 = vpop.f32.mrf.mxu0
  %v347 = vadd.f32 %v318, %v346
  %348 = vmatmul.bf16.gmra.mxu0 %v265
  %v349 = vpop.f32.mrf.mxu0
  %v350 = vadd.f32 %v321, %v349
  %v351 = vpop.f32.mrf.mxu0
  %v352 = vadd.f32 %v323, %v351
  %353 = vdwg.mxu0
  %355 = vset.pattern.permute.xlu0 0
  %356 = vperm.xlu0 %355, %v34
  %v357 = vpop.permute.xlu0 %356
  %360 = vset.pattern.permute.xlu0 0
  %361 = vperm.xlu0 %360, %v35
  %v362 = vpop.permute.xlu0 %361
  %365 = vset.pattern.permute.xlu0 0
  %366 = vperm.xlu0 %365, %v36
  %v367 = vpop.permute.xlu0 %366
  %370 = vset.pattern.permute.xlu0 0
  %371 = vperm.xlu0 %370, %v37
  %v372 = vpop.permute.xlu0 %371
  %375 = vset.pattern.permute.xlu0 0
  %376 = vperm.xlu0 %375, %v38
  %v377 = vpop.permute.xlu0 %376
  %380 = vset.pattern.permute.xlu0 0
  %381 = vperm.xlu0 %380, %v39
  %v382 = vpop.permute.xlu0 %381
  %385 = vset.pattern.permute.xlu0 0
  %386 = vperm.xlu0 %385, %v40
  %v387 = vpop.permute.xlu0 %386
  %390 = vset.pattern.permute.xlu0 0
  %391 = vperm.xlu0 %390, %v41
  %v392 = vpop.permute.xlu0 %391
  %v394 = vmul.f32 %v335, %v357
  %v395 = vmul.f32 %v337, %v362
  %v396 = vmul.f32 %v340, %v367
  %v397 = vmul.f32 %v342, %v372
  %v398 = vmul.f32 %v345, %v377
  %v399 = vmul.f32 %v347, %v382
  %v400 = vmul.f32 %v350, %v387
  %v401 = vmul.f32 %v352, %v392
  %403 = vset.pattern.permute.xlu0 0
  %404 = vperm.xlu0 %403, %v42
  %v405 = vpop.permute.xlu0 %404
  %408 = vset.pattern.permute.xlu0 0
  %409 = vperm.xlu0 %408, %v43
  %v410 = vpop.permute.xlu0 %409
  %413 = vset.pattern.permute.xlu0 0
  %414 = vperm.xlu0 %413, %v44
  %v415 = vpop.permute.xlu0 %414
  %418 = vset.pattern.permute.xlu0 0
  %419 = vperm.xlu0 %418, %v45
  %v420 = vpop.permute.xlu0 %419
  %423 = vset.pattern.permute.xlu0 0
  %424 = vperm.xlu0 %423, %v46
  %v425 = vpop.permute.xlu0 %424
  %428 = vset.pattern.permute.xlu0 0
  %429 = vperm.xlu0 %428, %v47
  %v430 = vpop.permute.xlu0 %429
  %433 = vset.pattern.permute.xlu0 0
  %434 = vperm.xlu0 %433, %v48
  %v435 = vpop.permute.xlu0 %434
  %438 = vset.pattern.permute.xlu0 0
  %439 = vperm.xlu0 %438, %v49
  %v440 = vpop.permute.xlu0 %439
  %v442 = vadd.f32 %v394, %v405
  %v443 = vadd.f32 %v395, %v410
  %v444 = vadd.f32 %v396, %v415
  %v445 = vadd.f32 %v397, %v420
  %v446 = vadd.f32 %v398, %v425
  %v447 = vadd.f32 %v399, %v430
  %v448 = vadd.f32 %v400, %v435
  %v449 = vadd.f32 %v401, %v440
  %v450 = vmax.f32 %v442, 0.0
  %v451 = vmax.f32 %v443, 0.0
  %v452 = vmax.f32 %v444, 0.0
  %v453 = vmax.f32 %v445, 0.0
  %v454 = vmax.f32 %v446, 0.0
  %v455 = vmax.f32 %v447, 0.0
  %v456 = vmax.f32 %v448, 0.0
  %v457 = vmax.f32 %v449, 0.0
  %s458 = scalar_lea.vmem %s0, 144
  %v459 = vld [vmem:[%s458] sm:$0xf]
  %v460 = vld [vmem:[%s458 + $0x4] sm:$0xf]
  %v461 = vld [vmem:[%s458 + $0x8] sm:$0xf]
  %v462 = vld [vmem:[%s458 + $0xc] sm:$0xf]
  %v463 = vld [vmem:[%s458 + $0x10] sm:$0xf]
  %v464 = vld [vmem:[%s458 + $0x14] sm:$0xf]
  %v465 = vld [vmem:[%s458 + $0x18] sm:$0xf]
  %v466 = vld [vmem:[%s458 + $0x1c] sm:$0xf]
  %v467 = vld [vmem:[%s458 + $0x20] sm:$0xf]
  %v468 = vld [vmem:[%s458 + $0x24] sm:$0xf]
  %v469 = vld [vmem:[%s458 + $0x28] sm:$0xf]
  %v470 = vld [vmem:[%s458 + $0x2c] sm:$0xf]
  %v471 = vld [vmem:[%s458 + $0x30] sm:$0xf]
  %v472 = vld [vmem:[%s458 + $0x34] sm:$0xf]
  %v473 = vld [vmem:[%s458 + $0x38] sm:$0xf]
  %v474 = vld [vmem:[%s458 + $0x3c] sm:$0xf]
  %v475 = vld [vmem:[%s458 + $0x40] sm:$0xf]
  %v476 = vld [vmem:[%s458 + $0x44] sm:$0xf]
  %v477 = vld [vmem:[%s458 + $0x48] sm:$0xf]
  %v478 = vld [vmem:[%s458 + $0x4c] sm:$0xf]
  %v479 = vld [vmem:[%s458 + $0x50] sm:$0xf]
  %v480 = vld [vmem:[%s458 + $0x54] sm:$0xf]
  %v481 = vld [vmem:[%s458 + $0x58] sm:$0xf]
  %v482 = vld [vmem:[%s458 + $0x5c] sm:$0xf]
  %v483 = vld [vmem:[%s458 + $0x60] sm:$0xf]
  %v484 = vld [vmem:[%s458 + $0x64] sm:$0xf]
  %v485 = vld [vmem:[%s458 + $0x68] sm:$0xf]
  %v486 = vld [vmem:[%s458 + $0x6c] sm:$0xf]
  %v487 = vld [vmem:[%s458 + $0x70] sm:$0xf]
  %v488 = vld [vmem:[%s458 + $0x74] sm:$0xf]
  %v489 = vld [vmem:[%s458 + $0x78] sm:$0xf]
  %v490 = vld [vmem:[%s458 + $0x7c] sm:$0xf]
  %v491 = vld [vmem:[%s458 + $0x80] sm:$0xf]
  %v492 = vld [vmem:[%s458 + $0x84] sm:$0xf]
  %v493 = vld [vmem:[%s458 + $0x88] sm:$0xf]
  %v494 = vld [vmem:[%s458 + $0x8c] sm:$0xf]
  %v531 = vunpack.c.l.b16 %v459
  %v532 = vunpack.c.l.b16 %v460
  %v533 = vunpack.c.l.b16 %v461
  %v534 = vunpack.c.l.b16 %v462
  %v535 = vunpack.c.l.b16 %v463
  %v536 = vunpack.c.l.b16 %v464
  %v537 = vunpack.c.l.b16 %v465
  %v538 = vunpack.c.l.b16 %v466
  %v539 = vunpack.c.l.b16 %v467
  %v540 = vunpack.c.l.b16 %v468
  %v541 = vunpack.c.l.b16 %v469
  %v542 = vunpack.c.l.b16 %v470
  %v543 = vunpack.c.l.b16 %v471
  %v544 = vunpack.c.l.b16 %v472
  %v545 = vunpack.c.l.b16 %v473
  %v546 = vunpack.c.l.b16 %v474
  %v547 = vunpack.c.l.b16 %v475
  %v548 = vunpack.c.l.b16 %v476
  %v549 = vunpack.c.l.b16 %v477
  %v550 = vunpack.c.l.b16 %v478
  %v551 = vunpack.c.l.b16 %v479
  %v552 = vunpack.c.l.b16 %v480
  %v553 = vunpack.c.l.b16 %v481
  %v554 = vunpack.c.l.b16 %v482
  %v555 = vunpack.c.l.b16 %v483
  %v556 = vunpack.c.l.b16 %v484
  %v557 = vunpack.c.l.b16 %v485
  %v558 = vunpack.c.l.b16 %v486
  %v559 = vunpack.c.l.b16 %v487
  %v560 = vunpack.c.l.b16 %v488
  %v561 = vunpack.c.l.b16 %v489
  %v562 = vunpack.c.l.b16 %v490
  %v563 = vunpack.c.l.b16 %v491
  %v564 = vunpack.c.l.b16 %v492
  %v565 = vunpack.c.l.b16 %v493
  %v566 = vunpack.c.l.b16 %v494
  %v567 = vpack.c.b16 %v532, %v531
  %v568 = vpack.c.b16 %v534, %v533
  %v569 = vpack.c.b16 %v536, %v535
  %v570 = vpack.c.b16 %v538, %v537
  %v571 = vpack.c.b16 %v540, %v539
  %v572 = vpack.c.b16 %v542, %v541
  %v573 = vpack.c.b16 %v544, %v543
  %v574 = vpack.c.b16 %v546, %v545
  %v575 = vpack.c.b16 %v548, %v547
  %v576 = vpack.c.b16 %v550, %v549
  %v577 = vpack.c.b16 %v552, %v551
  %v578 = vpack.c.b16 %v554, %v553
  %v579 = vpack.c.b16 %v556, %v555
  %v580 = vpack.c.b16 %v558, %v557
  %v581 = vpack.c.b16 %v560, %v559
  %v582 = vpack.c.b16 %v562, %v561
  %v583 = vpack.c.b16 %v564, %v563
  %v584 = vpack.c.b16 %v566, %v565
  %603 = vmatpush.bf16.msra.mxu0 %v574
  %604 = vmatpush.bf16.msra.mxu0 %v573
  %605 = vmatpush.bf16.msra.mxu0 %v572
  %606 = vmatpush.bf16.msra.mxu0 %v571
  %607 = vmatpush.bf16.msra.mxu0 %v570
  %608 = vmatpush.bf16.msra.mxu0 %v569
  %609 = vmatpush.bf16.msra.mxu0 %v568
  %610 = vmatpush.bf16.msra.mxu0 %v567
  %611 = vmatmul.bf16.gmra.mxu0 %v126
  %v612 = vpop.f32.mrf.mxu0
  %v613 = vadd.f32 0.0, %v612
  %v614 = vpop.f32.mrf.mxu0
  %v615 = vadd.f32 0.0, %v614
  %616 = vmatmul.bf16.gmra.mxu0 %v129
  %v617 = vpop.f32.mrf.mxu0
  %v618 = vadd.f32 0.0, %v617
  %v619 = vpop.f32.mrf.mxu0
  %v620 = vadd.f32 0.0, %v619
  %621 = vmatmul.bf16.gmra.mxu0 %v132
  %v622 = vpop.f32.mrf.mxu0
  %v623 = vadd.f32 0.0, %v622
  %v624 = vpop.f32.mrf.mxu0
  %v625 = vadd.f32 0.0, %v624
  %626 = vmatmul.bf16.gmra.mxu0 %v135
  %v627 = vpop.f32.mrf.mxu0
  %v628 = vadd.f32 0.0, %v627
  %v629 = vpop.f32.mrf.mxu0
  %v630 = vadd.f32 0.0, %v629
  %631 = vdwg.mxu0
  %632 = vmatpush.bf16.msra.mxu0 %v582
  %633 = vmatpush.bf16.msra.mxu0 %v581
  %634 = vmatpush.bf16.msra.mxu0 %v580
  %635 = vmatpush.bf16.msra.mxu0 %v579
  %636 = vmatpush.bf16.msra.mxu0 %v578
  %637 = vmatpush.bf16.msra.mxu0 %v577
  %638 = vmatpush.bf16.msra.mxu0 %v576
  %639 = vmatpush.bf16.msra.mxu0 %v575
  %640 = vmatmul.bf16.gmra.mxu0 %v127
  %v641 = vpop.f32.mrf.mxu0
  %v642 = vadd.f32 %v613, %v641
  %v643 = vpop.f32.mrf.mxu0
  %v644 = vadd.f32 %v615, %v643
  %645 = vmatmul.bf16.gmra.mxu0 %v130
  %v646 = vpop.f32.mrf.mxu0
  %v647 = vadd.f32 %v618, %v646
  %v648 = vpop.f32.mrf.mxu0
  %v649 = vadd.f32 %v620, %v648
  %650 = vmatmul.bf16.gmra.mxu0 %v133
  %v651 = vpop.f32.mrf.mxu0
  %v652 = vadd.f32 %v623, %v651
  %v653 = vpop.f32.mrf.mxu0
  %v654 = vadd.f32 %v625, %v653
  %655 = vmatmul.bf16.gmra.mxu0 %v136
  %v656 = vpop.f32.mrf.mxu0
  %v657 = vadd.f32 %v628, %v656
  %v658 = vpop.f32.mrf.mxu0
  %v659 = vadd.f32 %v630, %v658
  %660 = vdwg.mxu0
  %661 = vmatpush.bf16.msra.mxu0 0
  %662 = vmatpush.bf16.msra.mxu0 0
  %663 = vmatpush.bf16.msra.mxu0 0
  %664 = vmatpush.bf16.msra.mxu0 0
  %665 = vmatpush.bf16.msra.mxu0 0
  %666 = vmatpush.bf16.msra.mxu0 0
  %667 = vmatpush.bf16.msra.mxu0 %v584
  %668 = vmatpush.bf16.msra.mxu0 %v583
  %669 = vmatmul.bf16.gmra.mxu0 %v256
  %v670 = vpop.f32.mrf.mxu0
  %v671 = vadd.f32 %v642, %v670
  %v672 = vpop.f32.mrf.mxu0
  %v673 = vadd.f32 %v644, %v672
  %674 = vmatmul.bf16.gmra.mxu0 %v259
  %v675 = vpop.f32.mrf.mxu0
  %v676 = vadd.f32 %v647, %v675
  %v677 = vpop.f32.mrf.mxu0
  %v678 = vadd.f32 %v649, %v677
  %679 = vmatmul.bf16.gmra.mxu0 %v262
  %v680 = vpop.f32.mrf.mxu0
  %v681 = vadd.f32 %v652, %v680
  %v682 = vpop.f32.mrf.mxu0
  %v683 = vadd.f32 %v654, %v682
  %684 = vmatmul.bf16.gmra.mxu0 %v265
  %v685 = vpop.f32.mrf.mxu0
  %v686 = vadd.f32 %v657, %v685
  %v687 = vpop.f32.mrf.mxu0
  %v688 = vadd.f32 %v659, %v687
  %689 = vdwg.mxu0
  %v690 = vmul.f32 %v671, %v357
  %v691 = vmul.f32 %v673, %v362
  %v692 = vmul.f32 %v676, %v367
  %v693 = vmul.f32 %v678, %v372
  %v694 = vmul.f32 %v681, %v377
  %v695 = vmul.f32 %v683, %v382
  %v696 = vmul.f32 %v686, %v387
  %v697 = vmul.f32 %v688, %v392
  %v698 = vadd.f32 %v690, %v405
  %v699 = vadd.f32 %v691, %v410
  %v700 = vadd.f32 %v692, %v415
  %v701 = vadd.f32 %v693, %v420
  %v702 = vadd.f32 %v694, %v425
  %v703 = vadd.f32 %v695, %v430
  %v704 = vadd.f32 %v696, %v435
  %v705 = vadd.f32 %v697, %v440
  %v706 = vmax.f32 %v698, 0.0
  %v707 = vmax.f32 %v699, 0.0
  %v708 = vmax.f32 %v700, 0.0
  %v709 = vmax.f32 %v701, 0.0
  %v710 = vmax.f32 %v702, 0.0
  %v711 = vmax.f32 %v703, 0.0
  %v712 = vmax.f32 %v704, 0.0
  %v713 = vmax.f32 %v705, 0.0
  %v714 = vmax.f32 %v450, %v706
  %v715 = vmax.f32 %v451, %v707
  %v716 = vmax.f32 %v452, %v708
  %v717 = vmax.f32 %v453, %v709
  %v718 = vmax.f32 %v454, %v710
  %v719 = vmax.f32 %v455, %v711
  %v720 = vmax.f32 %v456, %v712
  %v721 = vmax.f32 %v457, %v713
  %s722 = scalar_lea.vmem %s0, 288
  %v723 = vld [vmem:[%s722] sm:$0xf]
  %v724 = vld [vmem:[%s722 + $0x4] sm:$0xf]
  %v725 = vld [vmem:[%s722 + $0x8] sm:$0xf]
  %v726 = vld [vmem:[%s722 + $0xc] sm:$0xf]
  %v727 = vld [vmem:[%s722 + $0x10] sm:$0xf]
  %v728 = vld [vmem:[%s722 + $0x14] sm:$0xf]
  %v729 = vld [vmem:[%s722 + $0x18] sm:$0xf]
  %v730 = vld [vmem:[%s722 + $0x1c] sm:$0xf]
  %v731 = vld [vmem:[%s722 + $0x20] sm:$0xf]
  %v732 = vld [vmem:[%s722 + $0x24] sm:$0xf]
  %v733 = vld [vmem:[%s722 + $0x28] sm:$0xf]
  %v734 = vld [vmem:[%s722 + $0x2c] sm:$0xf]
  %v735 = vld [vmem:[%s722 + $0x30] sm:$0xf]
  %v736 = vld [vmem:[%s722 + $0x34] sm:$0xf]
  %v737 = vld [vmem:[%s722 + $0x38] sm:$0xf]
  %v738 = vld [vmem:[%s722 + $0x3c] sm:$0xf]
  %v739 = vld [vmem:[%s722 + $0x40] sm:$0xf]
  %v740 = vld [vmem:[%s722 + $0x44] sm:$0xf]
  %v741 = vld [vmem:[%s722 + $0x48] sm:$0xf]
  %v742 = vld [vmem:[%s722 + $0x4c] sm:$0xf]
  %v743 = vld [vmem:[%s722 + $0x50] sm:$0xf]
  %v744 = vld [vmem:[%s722 + $0x54] sm:$0xf]
  %v745 = vld [vmem:[%s722 + $0x58] sm:$0xf]
  %v746 = vld [vmem:[%s722 + $0x5c] sm:$0xf]
  %v747 = vld [vmem:[%s722 + $0x60] sm:$0xf]
  %v748 = vld [vmem:[%s722 + $0x64] sm:$0xf]
  %v749 = vld [vmem:[%s722 + $0x68] sm:$0xf]
  %v750 = vld [vmem:[%s722 + $0x6c] sm:$0xf]
  %v751 = vld [vmem:[%s722 + $0x70] sm:$0xf]
  %v752 = vld [vmem:[%s722 + $0x74] sm:$0xf]
  %v753 = vld [vmem:[%s722 + $0x78] sm:$0xf]
  %v754 = vld [vmem:[%s722 + $0x7c] sm:$0xf]
  %v755 = vld [vmem:[%s722 + $0x80] sm:$0xf]
  %v756 = vld [vmem:[%s722 + $0x84] sm:$0xf]
  %v757 = vld [vmem:[%s722 + $0x88] sm:$0xf]
  %v758 = vld [vmem:[%s722 + $0x8c] sm:$0xf]
  %v795 = vunpack.c.l.b16 %v723
  %v796 = vunpack.c.l.b16 %v724
  %v797 = vunpack.c.l.b16 %v725
  %v798 = vunpack.c.l.b16 %v726
  %v799 = vunpack.c.l.b16 %v727
  %v800 = vunpack.c.l.b16 %v728
  %v801 = vunpack.c.l.b16 %v729
  %v802 = vunpack.c.l.b16 %v730
  %v803 = vunpack.c.l.b16 %v731
  %v804 = vunpack.c.l.b16 %v732
  %v805 = vunpack.c.l.b16 %v733
  %v806 = vunpack.c.l.b16 %v734
  %v807 = vunpack.c.l.b16 %v735
  %v808 = vunpack.c.l.b16 %v736
  %v809 = vunpack.c.l.b16 %v737
  %v810 = vunpack.c.l.b16 %v738
  %v811 = vunpack.c.l.b16 %v739
  %v812 = vunpack.c.l.b16 %v740
  %v813 = vunpack.c.l.b16 %v741
  %v814 = vunpack.c.l.b16 %v742
  %v815 = vunpack.c.l.b16 %v743
  %v816 = vunpack.c.l.b16 %v744
  %v817 = vunpack.c.l.b16 %v745
  %v818 = vunpack.c.l.b16 %v746
  %v819 = vunpack.c.l.b16 %v747
  %v820 = vunpack.c.l.b16 %v748
  %v821 = vunpack.c.l.b16 %v749
  %v822 = vunpack.c.l.b16 %v750
  %v823 = vunpack.c.l.b16 %v751
  %v824 = vunpack.c.l.b16 %v752
  %v825 = vunpack.c.l.b16 %v753
  %v826 = vunpack.c.l.b16 %v754
  %v827 = vunpack.c.l.b16 %v755
  %v828 = vunpack.c.l.b16 %v756
  %v829 = vunpack.c.l.b16 %v757
  %v830 = vunpack.c.l.b16 %v758
  %v831 = vpack.c.b16 %v796, %v795
  %v832 = vpack.c.b16 %v798, %v797
  %v833 = vpack.c.b16 %v800, %v799
  %v834 = vpack.c.b16 %v802, %v801
  %v835 = vpack.c.b16 %v804, %v803
  %v836 = vpack.c.b16 %v806, %v805
  %v837 = vpack.c.b16 %v808, %v807
  %v838 = vpack.c.b16 %v810, %v809
  %v839 = vpack.c.b16 %v812, %v811
  %v840 = vpack.c.b16 %v814, %v813
  %v841 = vpack.c.b16 %v816, %v815
  %v842 = vpack.c.b16 %v818, %v817
  %v843 = vpack.c.b16 %v820, %v819
  %v844 = vpack.c.b16 %v822, %v821
  %v845 = vpack.c.b16 %v824, %v823
  %v846 = vpack.c.b16 %v826, %v825
  %v847 = vpack.c.b16 %v828, %v827
  %v848 = vpack.c.b16 %v830, %v829
  %867 = vmatpush.bf16.msra.mxu0 %v838
  %868 = vmatpush.bf16.msra.mxu0 %v837
  %869 = vmatpush.bf16.msra.mxu0 %v836
  %870 = vmatpush.bf16.msra.mxu0 %v835
  %871 = vmatpush.bf16.msra.mxu0 %v834
  %872 = vmatpush.bf16.msra.mxu0 %v833
  %873 = vmatpush.bf16.msra.mxu0 %v832
  %874 = vmatpush.bf16.msra.mxu0 %v831
  %875 = vmatmul.bf16.gmra.mxu0 %v126
  %v876 = vpop.f32.mrf.mxu0
  %v877 = vadd.f32 0.0, %v876
  %v878 = vpop.f32.mrf.mxu0
  %v879 = vadd.f32 0.0, %v878
  %880 = vmatmul.bf16.gmra.mxu0 %v129
  %v881 = vpop.f32.mrf.mxu0
  %v882 = vadd.f32 0.0, %v881
  %v883 = vpop.f32.mrf.mxu0
  %v884 = vadd.f32 0.0, %v883
  %885 = vmatmul.bf16.gmra.mxu0 %v132
  %v886 = vpop.f32.mrf.mxu0
  %v887 = vadd.f32 0.0, %v886
  %v888 = vpop.f32.mrf.mxu0
  %v889 = vadd.f32 0.0, %v888
  %890 = vmatmul.bf16.gmra.mxu0 %v135
  %v891 = vpop.f32.mrf.mxu0
  %v892 = vadd.f32 0.0, %v891
  %v893 = vpop.f32.mrf.mxu0
  %v894 = vadd.f32 0.0, %v893
  %895 = vdwg.mxu0
  %896 = vmatpush.bf16.msra.mxu0 %v846
  %897 = vmatpush.bf16.msra.mxu0 %v845
  %898 = vmatpush.bf16.msra.mxu0 %v844
  %899 = vmatpush.bf16.msra.mxu0 %v843
  %900 = vmatpush.bf16.msra.mxu0 %v842
  %901 = vmatpush.bf16.msra.mxu0 %v841
  %902 = vmatpush.bf16.msra.mxu0 %v840
  %903 = vmatpush.bf16.msra.mxu0 %v839
  %904 = vmatmul.bf16.gmra.mxu0 %v127
  %v905 = vpop.f32.mrf.mxu0
  %v906 = vadd.f32 %v877, %v905
  %v907 = vpop.f32.mrf.mxu0
  %v908 = vadd.f32 %v879, %v907
  %909 = vmatmul.bf16.gmra.mxu0 %v130
  %v910 = vpop.f32.mrf.mxu0
  %v911 = vadd.f32 %v882, %v910
  %v912 = vpop.f32.mrf.mxu0
  %v913 = vadd.f32 %v884, %v912
  %914 = vmatmul.bf16.gmra.mxu0 %v133
  %v915 = vpop.f32.mrf.mxu0
  %v916 = vadd.f32 %v887, %v915
  %v917 = vpop.f32.mrf.mxu0
  %v918 = vadd.f32 %v889, %v917
  %919 = vmatmul.bf16.gmra.mxu0 %v136
  %v920 = vpop.f32.mrf.mxu0
  %v921 = vadd.f32 %v892, %v920
  %v922 = vpop.f32.mrf.mxu0
  %v923 = vadd.f32 %v894, %v922
  %924 = vdwg.mxu0
  %925 = vmatpush.bf16.msra.mxu0 0
  %926 = vmatpush.bf16.msra.mxu0 0
  %927 = vmatpush.bf16.msra.mxu0 0
  %928 = vmatpush.bf16.msra.mxu0 0
  %929 = vmatpush.bf16.msra.mxu0 0
  %930 = vmatpush.bf16.msra.mxu0 0
  %931 = vmatpush.bf16.msra.mxu0 %v848
  %932 = vmatpush.bf16.msra.mxu0 %v847
  %933 = vmatmul.bf16.gmra.mxu0 %v256
  %v934 = vpop.f32.mrf.mxu0
  %v935 = vadd.f32 %v906, %v934
  %v936 = vpop.f32.mrf.mxu0
  %v937 = vadd.f32 %v908, %v936
  %938 = vmatmul.bf16.gmra.mxu0 %v259
  %v939 = vpop.f32.mrf.mxu0
  %v940 = vadd.f32 %v911, %v939
  %v941 = vpop.f32.mrf.mxu0
  %v942 = vadd.f32 %v913, %v941
  %943 = vmatmul.bf16.gmra.mxu0 %v262
  %v944 = vpop.f32.mrf.mxu0
  %v945 = vadd.f32 %v916, %v944
  %v946 = vpop.f32.mrf.mxu0
  %v947 = vadd.f32 %v918, %v946
  %948 = vmatmul.bf16.gmra.mxu0 %v265
  %v949 = vpop.f32.mrf.mxu0
  %v950 = vadd.f32 %v921, %v949
  %v951 = vpop.f32.mrf.mxu0
  %v952 = vadd.f32 %v923, %v951
  %953 = vdwg.mxu0
  %v954 = vmul.f32 %v935, %v357
  %v955 = vmul.f32 %v937, %v362
  %v956 = vmul.f32 %v940, %v367
  %v957 = vmul.f32 %v942, %v372
  %v958 = vmul.f32 %v945, %v377
  %v959 = vmul.f32 %v947, %v382
  %v960 = vmul.f32 %v950, %v387
  %v961 = vmul.f32 %v952, %v392
  %v962 = vadd.f32 %v954, %v405
  %v963 = vadd.f32 %v955, %v410
  %v964 = vadd.f32 %v956, %v415
  %v965 = vadd.f32 %v957, %v420
  %v966 = vadd.f32 %v958, %v425
  %v967 = vadd.f32 %v959, %v430
  %v968 = vadd.f32 %v960, %v435
  %v969 = vadd.f32 %v961, %v440
  %v970 = vmax.f32 %v962, 0.0
  %v971 = vmax.f32 %v963, 0.0
  %v972 = vmax.f32 %v964, 0.0
  %v973 = vmax.f32 %v965, 0.0
  %v974 = vmax.f32 %v966, 0.0
  %v975 = vmax.f32 %v967, 0.0
  %v976 = vmax.f32 %v968, 0.0
  %v977 = vmax.f32 %v969, 0.0
  %s978 = scalar_lea.vmem %s0, 432
  %v979 = vld [vmem:[%s978] sm:$0xf]
  %v980 = vld [vmem:[%s978 + $0x4] sm:$0xf]
  %v981 = vld [vmem:[%s978 + $0x8] sm:$0xf]
  %v982 = vld [vmem:[%s978 + $0xc] sm:$0xf]
  %v983 = vld [vmem:[%s978 + $0x10] sm:$0xf]
  %v984 = vld [vmem:[%s978 + $0x14] sm:$0xf]
  %v985 = vld [vmem:[%s978 + $0x18] sm:$0xf]
  %v986 = vld [vmem:[%s978 + $0x1c] sm:$0xf]
  %v987 = vld [vmem:[%s978 + $0x20] sm:$0xf]
  %v988 = vld [vmem:[%s978 + $0x24] sm:$0xf]
  %v989 = vld [vmem:[%s978 + $0x28] sm:$0xf]
  %v990 = vld [vmem:[%s978 + $0x2c] sm:$0xf]
  %v991 = vld [vmem:[%s978 + $0x30] sm:$0xf]
  %v992 = vld [vmem:[%s978 + $0x34] sm:$0xf]
  %v993 = vld [vmem:[%s978 + $0x38] sm:$0xf]
  %v994 = vld [vmem:[%s978 + $0x3c] sm:$0xf]
  %v995 = vld [vmem:[%s978 + $0x40] sm:$0xf]
  %v996 = vld [vmem:[%s978 + $0x44] sm:$0xf]
  %v997 = vld [vmem:[%s978 + $0x48] sm:$0xf]
  %v998 = vld [vmem:[%s978 + $0x4c] sm:$0xf]
  %v999 = vld [vmem:[%s978 + $0x50] sm:$0xf]
  %v1000 = vld [vmem:[%s978 + $0x54] sm:$0xf]
  %v1001 = vld [vmem:[%s978 + $0x58] sm:$0xf]
  %v1002 = vld [vmem:[%s978 + $0x5c] sm:$0xf]
  %v1003 = vld [vmem:[%s978 + $0x60] sm:$0xf]
  %v1004 = vld [vmem:[%s978 + $0x64] sm:$0xf]
  %v1005 = vld [vmem:[%s978 + $0x68] sm:$0xf]
  %v1006 = vld [vmem:[%s978 + $0x6c] sm:$0xf]
  %v1007 = vld [vmem:[%s978 + $0x70] sm:$0xf]
  %v1008 = vld [vmem:[%s978 + $0x74] sm:$0xf]
  %v1009 = vld [vmem:[%s978 + $0x78] sm:$0xf]
  %v1010 = vld [vmem:[%s978 + $0x7c] sm:$0xf]
  %v1011 = vld [vmem:[%s978 + $0x80] sm:$0xf]
  %v1012 = vld [vmem:[%s978 + $0x84] sm:$0xf]
  %v1013 = vld [vmem:[%s978 + $0x88] sm:$0xf]
  %v1014 = vld [vmem:[%s978 + $0x8c] sm:$0xf]
  %v1051 = vunpack.c.l.b16 %v979
  %v1052 = vunpack.c.l.b16 %v980
  %v1053 = vunpack.c.l.b16 %v981
  %v1054 = vunpack.c.l.b16 %v982
  %v1055 = vunpack.c.l.b16 %v983
  %v1056 = vunpack.c.l.b16 %v984
  %v1057 = vunpack.c.l.b16 %v985
  %v1058 = vunpack.c.l.b16 %v986
  %v1059 = vunpack.c.l.b16 %v987
  %v1060 = vunpack.c.l.b16 %v988
  %v1061 = vunpack.c.l.b16 %v989
  %v1062 = vunpack.c.l.b16 %v990
  %v1063 = vunpack.c.l.b16 %v991
  %v1064 = vunpack.c.l.b16 %v992
  %v1065 = vunpack.c.l.b16 %v993
  %v1066 = vunpack.c.l.b16 %v994
  %v1067 = vunpack.c.l.b16 %v995
  %v1068 = vunpack.c.l.b16 %v996
  %v1069 = vunpack.c.l.b16 %v997
  %v1070 = vunpack.c.l.b16 %v998
  %v1071 = vunpack.c.l.b16 %v999
  %v1072 = vunpack.c.l.b16 %v1000
  %v1073 = vunpack.c.l.b16 %v1001
  %v1074 = vunpack.c.l.b16 %v1002
  %v1075 = vunpack.c.l.b16 %v1003
  %v1076 = vunpack.c.l.b16 %v1004
  %v1077 = vunpack.c.l.b16 %v1005
  %v1078 = vunpack.c.l.b16 %v1006
  %v1079 = vunpack.c.l.b16 %v1007
  %v1080 = vunpack.c.l.b16 %v1008
  %v1081 = vunpack.c.l.b16 %v1009
  %v1082 = vunpack.c.l.b16 %v1010
  %v1083 = vunpack.c.l.b16 %v1011
  %v1084 = vunpack.c.l.b16 %v1012
  %v1085 = vunpack.c.l.b16 %v1013
  %v1086 = vunpack.c.l.b16 %v1014
  %v1087 = vpack.c.b16 %v1052, %v1051
  %v1088 = vpack.c.b16 %v1054, %v1053
  %v1089 = vpack.c.b16 %v1056, %v1055
  %v1090 = vpack.c.b16 %v1058, %v1057
  %v1091 = vpack.c.b16 %v1060, %v1059
  %v1092 = vpack.c.b16 %v1062, %v1061
  %v1093 = vpack.c.b16 %v1064, %v1063
  %v1094 = vpack.c.b16 %v1066, %v1065
  %v1095 = vpack.c.b16 %v1068, %v1067
  %v1096 = vpack.c.b16 %v1070, %v1069
  %v1097 = vpack.c.b16 %v1072, %v1071
  %v1098 = vpack.c.b16 %v1074, %v1073
  %v1099 = vpack.c.b16 %v1076, %v1075
  %v1100 = vpack.c.b16 %v1078, %v1077
  %v1101 = vpack.c.b16 %v1080, %v1079
  %v1102 = vpack.c.b16 %v1082, %v1081
  %v1103 = vpack.c.b16 %v1084, %v1083
  %v1104 = vpack.c.b16 %v1086, %v1085
  %1123 = vmatpush.bf16.msra.mxu0 %v1094
  %1124 = vmatpush.bf16.msra.mxu0 %v1093
  %1125 = vmatpush.bf16.msra.mxu0 %v1092
  %1126 = vmatpush.bf16.msra.mxu0 %v1091
  %1127 = vmatpush.bf16.msra.mxu0 %v1090
  %1128 = vmatpush.bf16.msra.mxu0 %v1089
  %1129 = vmatpush.bf16.msra.mxu0 %v1088
  %1130 = vmatpush.bf16.msra.mxu0 %v1087
  %1131 = vmatmul.bf16.gmra.mxu0 %v126
  %v1132 = vpop.f32.mrf.mxu0
  %v1133 = vadd.f32 0.0, %v1132
  %v1134 = vpop.f32.mrf.mxu0
  %v1135 = vadd.f32 0.0, %v1134
  %1136 = vmatmul.bf16.gmra.mxu0 %v129
  %v1137 = vpop.f32.mrf.mxu0
  %v1138 = vadd.f32 0.0, %v1137
  %v1139 = vpop.f32.mrf.mxu0
  %v1140 = vadd.f32 0.0, %v1139
  %1141 = vmatmul.bf16.gmra.mxu0 %v132
  %v1142 = vpop.f32.mrf.mxu0
  %v1143 = vadd.f32 0.0, %v1142
  %v1144 = vpop.f32.mrf.mxu0
  %v1145 = vadd.f32 0.0, %v1144
  %1146 = vmatmul.bf16.gmra.mxu0 %v135
  %v1147 = vpop.f32.mrf.mxu0
  %v1148 = vadd.f32 0.0, %v1147
  %v1149 = vpop.f32.mrf.mxu0
  %v1150 = vadd.f32 0.0, %v1149
  %1151 = vdwg.mxu0
  %1152 = vmatpush.bf16.msra.mxu0 %v1102
  %1153 = vmatpush.bf16.msra.mxu0 %v1101
  %1154 = vmatpush.bf16.msra.mxu0 %v1100
  %1155 = vmatpush.bf16.msra.mxu0 %v1099
  %1156 = vmatpush.bf16.msra.mxu0 %v1098
  %1157 = vmatpush.bf16.msra.mxu0 %v1097
  %1158 = vmatpush.bf16.msra.mxu0 %v1096
  %1159 = vmatpush.bf16.msra.mxu0 %v1095
  %1160 = vmatmul.bf16.gmra.mxu0 %v127
  %v1161 = vpop.f32.mrf.mxu0
  %v1162 = vadd.f32 %v1133, %v1161
  %v1163 = vpop.f32.mrf.mxu0
  %v1164 = vadd.f32 %v1135, %v1163
  %1165 = vmatmul.bf16.gmra.mxu0 %v130
  %v1166 = vpop.f32.mrf.mxu0
  %v1167 = vadd.f32 %v1138, %v1166
  %v1168 = vpop.f32.mrf.mxu0
  %v1169 = vadd.f32 %v1140, %v1168
  %1170 = vmatmul.bf16.gmra.mxu0 %v133
  %v1171 = vpop.f32.mrf.mxu0
  %v1172 = vadd.f32 %v1143, %v1171
  %v1173 = vpop.f32.mrf.mxu0
  %v1174 = vadd.f32 %v1145, %v1173
  %1175 = vmatmul.bf16.gmra.mxu0 %v136
  %v1176 = vpop.f32.mrf.mxu0
  %v1177 = vadd.f32 %v1148, %v1176
  %v1178 = vpop.f32.mrf.mxu0
  %v1179 = vadd.f32 %v1150, %v1178
  %1180 = vdwg.mxu0
  %1181 = vmatpush.bf16.msra.mxu0 0
  %1182 = vmatpush.bf16.msra.mxu0 0
  %1183 = vmatpush.bf16.msra.mxu0 0
  %1184 = vmatpush.bf16.msra.mxu0 0
  %1185 = vmatpush.bf16.msra.mxu0 0
  %1186 = vmatpush.bf16.msra.mxu0 0
  %1187 = vmatpush.bf16.msra.mxu0 %v1104
  %1188 = vmatpush.bf16.msra.mxu0 %v1103
  %1189 = vmatmul.bf16.gmra.mxu0 %v256
  %v1190 = vpop.f32.mrf.mxu0
  %v1191 = vadd.f32 %v1162, %v1190
  %v1192 = vpop.f32.mrf.mxu0
  %v1193 = vadd.f32 %v1164, %v1192
  %1194 = vmatmul.bf16.gmra.mxu0 %v259
  %v1195 = vpop.f32.mrf.mxu0
  %v1196 = vadd.f32 %v1167, %v1195
  %v1197 = vpop.f32.mrf.mxu0
  %v1198 = vadd.f32 %v1169, %v1197
  %1199 = vmatmul.bf16.gmra.mxu0 %v262
  %v1200 = vpop.f32.mrf.mxu0
  %v1201 = vadd.f32 %v1172, %v1200
  %v1202 = vpop.f32.mrf.mxu0
  %v1203 = vadd.f32 %v1174, %v1202
  %1204 = vmatmul.bf16.gmra.mxu0 %v265
  %v1205 = vpop.f32.mrf.mxu0
  %v1206 = vadd.f32 %v1177, %v1205
  %v1207 = vpop.f32.mrf.mxu0
  %v1208 = vadd.f32 %v1179, %v1207
  %1209 = vdwg.mxu0
  %v1210 = vmul.f32 %v1191, %v357
  %v1211 = vmul.f32 %v1193, %v362
  %v1212 = vmul.f32 %v1196, %v367
  %v1213 = vmul.f32 %v1198, %v372
  %v1214 = vmul.f32 %v1201, %v377
  %v1215 = vmul.f32 %v1203, %v382
  %v1216 = vmul.f32 %v1206, %v387
  %v1217 = vmul.f32 %v1208, %v392
  %v1218 = vadd.f32 %v1210, %v405
  %v1219 = vadd.f32 %v1211, %v410
  %v1220 = vadd.f32 %v1212, %v415
  %v1221 = vadd.f32 %v1213, %v420
  %v1222 = vadd.f32 %v1214, %v425
  %v1223 = vadd.f32 %v1215, %v430
  %v1224 = vadd.f32 %v1216, %v435
  %v1225 = vadd.f32 %v1217, %v440
  %v1226 = vmax.f32 %v1218, 0.0
  %v1227 = vmax.f32 %v1219, 0.0
  %v1228 = vmax.f32 %v1220, 0.0
  %v1229 = vmax.f32 %v1221, 0.0
  %v1230 = vmax.f32 %v1222, 0.0
  %v1231 = vmax.f32 %v1223, 0.0
  %v1232 = vmax.f32 %v1224, 0.0
  %v1233 = vmax.f32 %v1225, 0.0
  %v1234 = vmax.f32 %v970, %v1226
  %v1235 = vmax.f32 %v971, %v1227
  %v1236 = vmax.f32 %v972, %v1228
  %v1237 = vmax.f32 %v973, %v1229
  %v1238 = vmax.f32 %v974, %v1230
  %v1239 = vmax.f32 %v975, %v1231
  %v1240 = vmax.f32 %v976, %v1232
  %v1241 = vmax.f32 %v977, %v1233
  %v1242 = vmax.f32 %v714, %v1234
  %v1243 = vmax.f32 %v715, %v1235
  %v1244 = vmax.f32 %v716, %v1236
  %v1245 = vmax.f32 %v717, %v1237
  %v1246 = vmax.f32 %v718, %v1238
  %v1247 = vmax.f32 %v719, %v1239
  %v1248 = vmax.f32 %v720, %v1240
  %v1249 = vmax.f32 %v721, %v1241
  %1250 = vst [vmem:[%s4] sm:$0xff] %v1242
  %1251 = vst [vmem:[%s4 + $0x8] sm:$0xff] %v1243
  %1252 = vst [vmem:[%s4 + $0x10] sm:$0xff] %v1244
  %1253 = vst [vmem:[%s4 + $0x18] sm:$0xff] %v1245
  %1254 = vst [vmem:[%s4 + $0x20] sm:$0xff] %v1246
  %1255 = vst [vmem:[%s4 + $0x28] sm:$0xff] %v1247
  %1256 = vst [vmem:[%s4 + $0x30] sm:$0xff] %v1248
  %1257 = vst [vmem:[%s4 + $0x38] sm:$0xff] %v1249
  // Predicated region
  $region18: #{net_forward.6} parent=0 // pred_check
    _
  $region19: #{net_forward.6} parent=0 // pred_check_branch
    %1259 = sbr.rel (0) target = $region21
  $region20: #{net_forward.6} parent=0 // pred_region
    _
  $region21: #{net_forward.6} parent=0 // pred_fallthru
    _
  // Predicated region
  $region22: #{net_forward.6} parent=0 // pred_check
    _
  $region23: #{net_forward.6} parent=0 // pred_check_branch
    %1261 = sbr.rel (0) target = $region25
  $region24: #{net_forward.6} parent=0 // pred_region
    _
  $region25: #{net_forward.6} parent=0 // pred_fallthru
    _

</llo_original>
